<compile_context>
chip_gen: v5e
topology: v5e:2x2
jax: 0.10.0
libtpu: 0.0.40
codegen_flags: <defaults>
</compile_context>

<pallas_src>
import functools

import numpy as np

import jax
import jax.numpy as jnp
from jax import lax
from jax.experimental import pallas as pl
from jax.experimental.pallas import tpu as pltpu

# Static architecture constants (fixed by the PyTorch module definition).
_BEFORE_STRIDES = (2, 2, 1, 1, 1)   # strides of the 5 "before" Conv1d layers
_BEFORE_L0 = 64                     # length fed to the "before" stack (256 = 64*4)
_CONV_PAD = 1
_LANES = 128


def _full_spec(a):
    """Whole-array BlockSpec for a grid=(1,) pallas_call."""
    nd = a.ndim
    return pl.BlockSpec(a.shape, lambda i, nd=nd: (0,) * nd)


# --------------------------------------------------------------------------
# One-time weight plumbing helpers (run outside the jitted hot path).
# --------------------------------------------------------------------------
def _conv_toeplitz(w, b, l_in, stride, padding):
    """Lower a Conv1d (Cout, Cin, K) to a dense column-form matmul matrix
    (Lout*Cout, Lin*Cin).  Flattening matches PyTorch reshape((-1, L, C)):
    index = position * C + channel."""
    c_out, c_in, k = w.shape
    l_out = (l_in + 2 * padding - k) // stride + 1
    sel = np.zeros((l_out, k, l_in), np.float32)
    for lo in range(l_out):
        for kk in range(k):
            li = stride * lo + kk - padding
            if 0 <= li < l_in:
                sel[lo, kk, li] = 1.0
    mat = jnp.einsum("pkl,oik->poli", jnp.asarray(sel), w)
    mat = mat.reshape(l_out * c_out, l_in * c_in)
    bias = jnp.tile(b, l_out).reshape(l_out * c_out, 1)
    return mat, bias, l_out


def prepare_params(params, batch):
    """Hoisted one-time preprocessing: Toeplitz lowering, K-merged con weights,
    GRU weight transposes, bias reshapes, ensemble-scale layouts."""
    cnn, gru = params["cnn"], params["gru"]
    T, O = params["cnn_weight"].shape
    B = batch

    before = []
    l_in = _BEFORE_L0
    for (w, b), s in zip(cnn["before"], _BEFORE_STRIDES):
        mat, bias, l_in = _conv_toeplitz(w, b, l_in, s, _CONV_PAD)
        before.append((mat, bias))

    con = []
    for (w, b) in cnn["con"]:
        # stacked input is [x_{t-1}; x_t; x_{t+1}] -> merged weight [W_k0 | W_k1 | W_k2]
        wm = jnp.concatenate([w[:, :, 0], w[:, :, 1], w[:, :, 2]], axis=1)  # (Cout, 3*Cin)
        con.append((wm, b.reshape(-1, 1)))

    cnn_prep = dict(
        emb_station=cnn["emb_station"], emb_step=cnn["emb_step"], emb_hour=cnn["emb_hour"],
        lr_w=cnn["lr_w"], lr_b=cnn["lr_b"].reshape(-1, 1),
        before=before, con=con,
        f1=cnn["fin_w1"], fb1=cnn["fin_b1"].reshape(-1, 1),
        f2=cnn["fin_w2"], fb2=cnn["fin_b2"].reshape(-1, 1),
        f3=cnn["fin_w3"], fb3=cnn["fin_b3"].reshape(-1, 1),
    )

    glayers = [dict(wihT=l["w_ih"].T, bih=l["b_ih"].reshape(1, -1),
                    whhT=l["w_hh"].T, bhh=l["b_hh"].reshape(1, -1))
               for l in gru["layers"]]
    gru_prep = dict(
        emb_station=gru["emb_station"], emb_step=gru["emb_step"], emb_hour=gru["emb_hour"],
        layers=glayers,
        mlp_w=gru["mlp_w"], mlp_b=gru["mlp_b"].reshape(-1, 1),
    )

    # column (t, b): col index = t*B + b  ->  scale value at timestep t
    csc = jnp.repeat(params["cnn_weight"].T, B, axis=1)   # (O, T*B)
    gsc = jnp.repeat(params["gru_weight"].T, B, axis=1)   # (O, T*B)
    return dict(cnn=cnn_prep, gru=gru_prep, csc=csc, gsc=gsc)


# --------------------------------------------------------------------------
# Fused kernel: CNN branch + GRU branch + ensemble combine.
# CNN activations are column-major (features, NPAD) with NPAD a multiple of
# 128 lanes; valid columns are ordered (t, b) = t*B + b, pad columns are zero.
# --------------------------------------------------------------------------
def _fused_kernel(*refs, n_before, n_con, num_layers, batch, seq_len, hidden, n_valid):
    f32 = jnp.float32
    B, T, H, N = batch, seq_len, hidden, n_valid

    idx = 0
    xc = refs[idx][...]; idx += 1                      # (F_cnn, NPAD) CNN input, column layout
    xg = refs[idx][...]; idx += 1                      # (N, F_gru)    GRU input, row = t*B + b
    lrw = refs[idx][...]; lrb = refs[idx + 1][...]; idx += 2
    before = []
    for _ in range(n_before):
        before.append((refs[idx][...], refs[idx + 1][...])); idx += 2
    con = []
    for _ in range(n_con):
        con.append((refs[idx][...], refs[idx + 1][...])); idx += 2
    f1 = refs[idx][...]; fb1 = refs[idx + 1][...]
    f2 = refs[idx + 2][...]; fb2 = refs[idx + 3][...]
    f3 = refs[idx + 4][...]; fb3 = refs[idx + 5][...]; idx += 6
    csc = refs[idx][...]; idx += 1                     # (O, N) cnn_weight, col = t*B + b
    glayers = []
    for _ in range(num_layers):
        glayers.append(tuple(refs[idx + j][...] for j in range(4))); idx += 4
    mlp_w = refs[idx][...]; mlp_b = refs[idx + 1][...]; idx += 2
    gsc = refs[idx][...]; idx += 1                     # (O, N) gru_weight, col = t*B + b
    out_ref = refs[idx]

    npad = xc.shape[1]

    def elu(v):  # ELU(alpha=1); clamp the exp arg so the unselected branch stays finite
        return jnp.where(v > 0, v, jnp.exp(jnp.minimum(v, 0.0)) - 1.0)

    # ---------------- CNN branch (column layout, lane dense) ----------------
    h = jnp.dot(lrw, xc, preferred_element_type=f32) + lrb            # lr_embedding (no act)
    for mat, bias in before:                                          # Toeplitz-lowered convs
        h = elu(jnp.dot(mat, h, preferred_element_type=f32) + bias)

    col_valid = lax.broadcasted_iota(jnp.int32, (1, npad), 1) < N
    for wm, cb in con:                                                # K=3, pad=1 convs along t
        h = jnp.where(col_valid, h, 0.0)     # zero pad columns so rolled boundaries read zero
        hprev = pltpu.roll(h, shift=B, axis=1)           # col (t,b) <- (t-1,b); t==0   -> 0
        hnext = pltpu.roll(h, shift=npad - B, axis=1)    # col (t,b) <- (t+1,b); t==T-1 -> 0
        stk = jnp.concatenate([hprev, h, hnext], axis=0)              # (3*Cin, NPAD)
        h = elu(jnp.dot(wm, stk, preferred_element_type=f32) + cb)    # single merged matmul

    # final_layer: Linear-ELU, Linear-ELU, Linear; ensemble scale folded in
    h = elu(jnp.dot(f1, h, preferred_element_type=f32) + fb1)
    h = elu(jnp.dot(f2, h, preferred_element_type=f32) + fb2)
    cnn_col = jnp.dot(f3, h, preferred_element_type=f32) + fb3        # (O, NPAD)
    cnn_part = cnn_col[:, :N] * csc                                   # (O, N)

    # ---------------- GRU branch: fully unrolled recurrence -----------------
    feat = xg                                                         # (N, in_dim), row = t*B+b
    for (wihT, bih, whhT, bhh) in glayers:
        # input projection hoisted out of the serial loop: one matmul per layer
        gx_all = jnp.dot(feat, wihT, preferred_element_type=f32) + bih   # (N, 3H)
        hcur = jnp.zeros((B, H), f32)                                 # hidden=None -> zeros
        hs = []
        for t in range(T):                       # static unroll -> static indexing everywhere
            gx = gx_all[t * B:(t + 1) * B, :]
            gh = jnp.dot(hcur, whhT, preferred_element_type=f32) + bhh
            rz = jax.nn.sigmoid(gx[:, :2 * H] + gh[:, :2 * H])        # merged r,z sigmoid
            r = rz[:, :H]
            z = rz[:, H:]
            n = jnp.tanh(gx[:, 2 * H:] + r * gh[:, 2 * H:])
            hcur = n + z * (hcur - n)            # == (1 - z) * n + z * h
            hs.append(hcur)
        feat = jnp.concatenate(hs, axis=0)                            # (N, H)

    # deferred epilogue: one MLP matmul (as h @ mlp^T -> column layout), one
    # sigmoid, scaling and ensemble add, one bulk store.
    y = jax.nn.sigmoid(
        lax.dot_general(mlp_w, feat, (((1,), (1,)), ((), ())),
                        preferred_element_type=f32) + mlp_b)          # (O, N)
    out_ref[...] = y * gsc + cnn_part                                 # (O, N), col = t*B + b


# --------------------------------------------------------------------------
# Forward pass (embedding gathers + input layout plumbing + one pallas_call).
# --------------------------------------------------------------------------
def _embed_cat(p, cat_input):
    # TODO(synk): embedding gather (lookup) kept in plain JAX; not a hot path.
    st = jnp.take(p["emb_station"], cat_input[..., 0], axis=0)
    sp = jnp.take(p["emb_step"], cat_input[..., 1], axis=0)
    hr = jnp.take(p["emb_hour"], cat_input[..., 2], axis=0)
    return jnp.concatenate([st, sp, hr], axis=-1)                     # (B, T, 6)


@jax.jit
def heterogeneous_forward(prep, con_input, cat_input):
    B, T, _ = con_input.shape
    cnn_p, gru_p = prep["cnn"], prep["gru"]
    O = cnn_p["f3"].shape[0]
    H = gru_p["layers"][0]["whhT"].shape[0]
    N = B * T
    npad = -(-(N + B) // _LANES) * _LANES        # >= N + B zero columns for roll boundaries

    cat_cnn = _embed_cat(cnn_p, cat_input)
    cat_gru = _embed_cat(gru_p, cat_input)
    x_cnn = jnp.concatenate([con_input, cat_cnn], axis=-1)            # (B, T, Fc)
    x_gru = jnp.concatenate([con_input, cat_gru], axis=-1)            # (B, T, Fg)

    Fc = x_cnn.shape[-1]
    Fg = x_gru.shape[-1]
    x_col = jnp.transpose(x_cnn, (2, 1, 0)).reshape(Fc, N)            # col = t*B + b
    x_col = jnp.pad(x_col, ((0, 0), (0, npad - N)))                   # lane-dense, zero pad
    xg = jnp.transpose(x_gru, (1, 0, 2)).reshape(N, Fg)               # row = t*B + b

    args = [x_col, xg, cnn_p["lr_w"], cnn_p["lr_b"]]
    for mat, bias in cnn_p["before"]:
        args += [mat, bias]
    for wm, cb in cnn_p["con"]:
        args += [wm, cb]
    args += [cnn_p["f1"], cnn_p["fb1"], cnn_p["f2"], cnn_p["fb2"],
             cnn_p["f3"], cnn_p["fb3"], prep["csc"]]
    for l in gru_p["layers"]:
        args += [l["wihT"], l["bih"], l["whhT"], l["bhh"]]
    args += [gru_p["mlp_w"], gru_p["mlp_b"], prep["gsc"]]

    kernel = functools.partial(
        _fused_kernel,
        n_before=len(cnn_p["before"]), n_con=len(cnn_p["con"]),
        num_layers=len(gru_p["layers"]), batch=B, seq_len=T, hidden=H, n_valid=N)

    out_col = pl.pallas_call(
        kernel,
        out_shape=jax.ShapeDtypeStruct((O, N), jnp.float32),
        grid=(1,),
        in_specs=[_full_spec(a) for a in args],
        out_specs=pl.BlockSpec((O, N), lambda i: (0, 0)),
        compiler_params=pltpu.CompilerParams(dimension_semantics=("arbitrary",)),
    )(*args)

    out = jnp.transpose(out_col.reshape(O, T, B), (2, 1, 0))          # (B, T, O)
    return out, cat_gru


# --------------------------------------------------------------------------
# Deterministic parameter construction (PyTorch-layout weights).
# --------------------------------------------------------------------------
def init_params(key, num_con_features, feature_size, hidden_size,
                num_layers, output_size, timestep):
    assert feature_size == num_con_features + 6, "GRU feature_size must be num_con_features + 6"
    keys = iter(jax.random.split(key, 128))

    def nrm(shape, s=0.1):
        return (s * jax.random.normal(next(keys), shape)).astype(jnp.float32)

    cnn = dict(
        emb_station=nrm((14, 2)), emb_step=nrm((48, 2)), emb_hour=nrm((24, 2)),
        lr_w=nrm((256, num_con_features + 6)), lr_b=nrm((256,)),          # Linear (out, in)
        before=[(nrm((8, 4, 3)), nrm((8,))),                              # Conv1d (Cout, Cin, K)
                (nrm((8, 8, 3)), nrm((8,))),
                (nrm((8, 8, 3)), nrm((8,))),
                (nrm((8, 8, 3)), nrm((8,))),
                (nrm((4, 8, 3)), nrm((4,)))],
        con=[(nrm((32, 64, 3)), nrm((32,))),
             (nrm((32, 32, 3)), nrm((32,))),
             (nrm((32, 32, 3)), nrm((32,))),
             (nrm((32, 32, 3)), nrm((32,))),
             (nrm((32, 32, 3)), nrm((32,)))],
        fin_w1=nrm((32, 32)), fin_b1=nrm((32,)),
        fin_w2=nrm((32, 32)), fin_b2=nrm((32,)),
        fin_w3=nrm((output_size, 32)), fin_b3=nrm((output_size,)),
    )

    layers = []
    in_dim = feature_size
    for _ in range(num_layers):
        layers.append(dict(
            w_ih=nrm((3 * hidden_size, in_dim)), b_ih=nrm((3 * hidden_size,)),
            w_hh=nrm((3 * hidden_size, hidden_size)), b_hh=nrm((3 * hidden_size,)),
        ))
        in_dim = hidden_size

    gru = dict(
        emb_station=nrm((14, 2)), emb_step=nrm((48, 2)), emb_hour=nrm((24, 2)),
        layers=layers,
        mlp_w=nrm((output_size, hidden_size)), mlp_b=nrm((output_size,)),
    )

    return dict(
        cnn=cnn, gru=gru,
        cnn_weight=jax.nn.softplus(jax.random.normal(next(keys), (timestep, output_size))).astype(jnp.float32),
        gru_weight=jax.nn.softplus(jax.random.normal(next(keys), (timestep, output_size))).astype(jnp.float32),
    )


# --------------------------------------------------------------------------
if __name__ == "__main__":
    B = 2
    NUM_CON = 10
    FEATURE = NUM_CON + 6          # 16
    HIDDEN = 32
    NUM_LAYERS = 1
    OUTPUT_SIZE = 4                # fixed by the hard-coded reshapes in the module
    TIMESTEP = 48                  # fixed by the hard-coded reshapes in the module

    key = jax.random.PRNGKey(0)
    kp, kc, k1, k2, k3 = jax.random.split(key, 5)
    params = init_params(kp, NUM_CON, FEATURE, HIDDEN, NUM_LAYERS, OUTPUT_SIZE, TIMESTEP)
    prep = prepare_params(params, B)   # one-time weight plumbing, outside the jitted hot path

    con_input = jax.random.normal(kc, (B, TIMESTEP, NUM_CON), dtype=jnp.float32)
    station = jax.random.randint(k1, (B, TIMESTEP, 1), 0, 14)
    step = jax.random.randint(k2, (B, TIMESTEP, 1), 0, 48)
    hour = jax.random.randint(k3, (B, TIMESTEP, 1), 0, 24)
    cat_input = jnp.concatenate([station, step, hour], axis=-1).astype(jnp.int32)

    out, cat_output = heterogeneous_forward(prep, con_input, cat_input)
    out = jax.block_until_ready(out)
    cat_output = jax.block_until_ready(cat_output)

    assert out.shape == (B, TIMESTEP, OUTPUT_SIZE), out.shape
    assert cat_output.shape == (B, TIMESTEP, 6), cat_output.shape
    assert bool(jnp.all(jnp.isfinite(out)))
    print("KERNEL_OK")
</pallas_src>

<mosaic_0001>
module attributes {stable_mosaic.version = 11 : i64} {
  func.func @_fused_kernel(%arg0: i32, %arg1: memref<16x128xf32, #tpu.memory_space<vmem>>, %arg2: memref<96x16xf32, #tpu.memory_space<vmem>>, %arg3: memref<256x16xf32, #tpu.memory_space<vmem>>, %arg4: memref<256x1xf32, #tpu.memory_space<vmem>>, %arg5: memref<256x256xf32, #tpu.memory_space<vmem>>, %arg6: memref<256x1xf32, #tpu.memory_space<vmem>>, %arg7: memref<128x256xf32, #tpu.memory_space<vmem>>, %arg8: memref<128x1xf32, #tpu.memory_space<vmem>>, %arg9: memref<128x128xf32, #tpu.memory_space<vmem>>, %arg10: memref<128x1xf32, #tpu.memory_space<vmem>>, %arg11: memref<128x128xf32, #tpu.memory_space<vmem>>, %arg12: memref<128x1xf32, #tpu.memory_space<vmem>>, %arg13: memref<64x128xf32, #tpu.memory_space<vmem>>, %arg14: memref<64x1xf32, #tpu.memory_space<vmem>>, %arg15: memref<32x192xf32, #tpu.memory_space<vmem>>, %arg16: memref<32x1xf32, #tpu.memory_space<vmem>>, %arg17: memref<32x96xf32, #tpu.memory_space<vmem>>, %arg18: memref<32x1xf32, #tpu.memory_space<vmem>>, %arg19: memref<32x96xf32, #tpu.memory_space<vmem>>, %arg20: memref<32x1xf32, #tpu.memory_space<vmem>>, %arg21: memref<32x96xf32, #tpu.memory_space<vmem>>, %arg22: memref<32x1xf32, #tpu.memory_space<vmem>>, %arg23: memref<32x96xf32, #tpu.memory_space<vmem>>, %arg24: memref<32x1xf32, #tpu.memory_space<vmem>>, %arg25: memref<32x32xf32, #tpu.memory_space<vmem>>, %arg26: memref<32x1xf32, #tpu.memory_space<vmem>>, %arg27: memref<32x32xf32, #tpu.memory_space<vmem>>, %arg28: memref<32x1xf32, #tpu.memory_space<vmem>>, %arg29: memref<4x32xf32, #tpu.memory_space<vmem>>, %arg30: memref<4x1xf32, #tpu.memory_space<vmem>>, %arg31: memref<4x96xf32, #tpu.memory_space<vmem>>, %arg32: memref<16x96xf32, #tpu.memory_space<vmem>>, %arg33: memref<1x96xf32, #tpu.memory_space<vmem>>, %arg34: memref<32x96xf32, #tpu.memory_space<vmem>>, %arg35: memref<1x96xf32, #tpu.memory_space<vmem>>, %arg36: memref<4x32xf32, #tpu.memory_space<vmem>>, %arg37: memref<4x1xf32, #tpu.memory_space<vmem>>, %arg38: memref<4x96xf32, #tpu.memory_space<vmem>>, %arg39: memref<4x96xf32, #tpu.memory_space<vmem>>) attributes {dimension_semantics = [#tpu.dimension_semantics<arbitrary>], iteration_bounds = array<i64: 1>, scalar_prefetch = 0 : i64, scratch_operands = 0 : i64, tpu.core_type = #tpu.core_type<tc>, window_params = [{pipeline_mode = #tpu.pipeline_mode<synchronous>, transform_indices = @transform_0, window_bounds = array<i64: 16, 128>}, {pipeline_mode = #tpu.pipeline_mode<synchronous>, transform_indices = @transform_1, window_bounds = array<i64: 96, 16>}, {pipeline_mode = #tpu.pipeline_mode<synchronous>, transform_indices = @transform_2, window_bounds = array<i64: 256, 16>}, {pipeline_mode = #tpu.pipeline_mode<synchronous>, transform_indices = @transform_3, window_bounds = array<i64: 256, 1>}, {pipeline_mode = #tpu.pipeline_mode<synchronous>, transform_indices = @transform_4, window_bounds = array<i64: 256, 256>}, {pipeline_mode = #tpu.pipeline_mode<synchronous>, transform_indices = @transform_5, window_bounds = array<i64: 256, 1>}, {pipeline_mode = #tpu.pipeline_mode<synchronous>, transform_indices = @transform_6, window_bounds = array<i64: 128, 256>}, {pipeline_mode = #tpu.pipeline_mode<synchronous>, transform_indices = @transform_7, window_bounds = array<i64: 128, 1>}, {pipeline_mode = #tpu.pipeline_mode<synchronous>, transform_indices = @transform_8, window_bounds = array<i64: 128, 128>}, {pipeline_mode = #tpu.pipeline_mode<synchronous>, transform_indices = @transform_9, window_bounds = array<i64: 128, 1>}, {pipeline_mode = #tpu.pipeline_mode<synchronous>, transform_indices = @transform_10, window_bounds = array<i64: 128, 128>}, {pipeline_mode = #tpu.pipeline_mode<synchronous>, transform_indices = @transform_11, window_bounds = array<i64: 128, 1>}, {pipeline_mode = #tpu.pipeline_mode<synchronous>, transform_indices = @transform_12, window_bounds = array<i64: 64, 128>}, {pipeline_mode = #tpu.pipeline_mode<synchronous>, transform_indices = @transform_13, window_bounds = array<i64: 64, 1>}, {pipeline_mode = #tpu.pipeline_mode<synchronous>, transform_indices = @transform_14, window_bounds = array<i64: 32, 192>}, {pipeline_mode = #tpu.pipeline_mode<synchronous>, transform_indices = @transform_15, window_bounds = array<i64: 32, 1>}, {pipeline_mode = #tpu.pipeline_mode<synchronous>, transform_indices = @transform_16, window_bounds = array<i64: 32, 96>}, {pipeline_mode = #tpu.pipeline_mode<synchronous>, transform_indices = @transform_17, window_bounds = array<i64: 32, 1>}, {pipeline_mode = #tpu.pipeline_mode<synchronous>, transform_indices = @transform_18, window_bounds = array<i64: 32, 96>}, {pipeline_mode = #tpu.pipeline_mode<synchronous>, transform_indices = @transform_19, window_bounds = array<i64: 32, 1>}, {pipeline_mode = #tpu.pipeline_mode<synchronous>, transform_indices = @transform_20, window_bounds = array<i64: 32, 96>}, {pipeline_mode = #tpu.pipeline_mode<synchronous>, transform_indices = @transform_21, window_bounds = array<i64: 32, 1>}, {pipeline_mode = #tpu.pipeline_mode<synchronous>, transform_indices = @transform_22, window_bounds = array<i64: 32, 96>}, {pipeline_mode = #tpu.pipeline_mode<synchronous>, transform_indices = @transform_23, window_bounds = array<i64: 32, 1>}, {pipeline_mode = #tpu.pipeline_mode<synchronous>, transform_indices = @transform_24, window_bounds = array<i64: 32, 32>}, {pipeline_mode = #tpu.pipeline_mode<synchronous>, transform_indices = @transform_25, window_bounds = array<i64: 32, 1>}, {pipeline_mode = #tpu.pipeline_mode<synchronous>, transform_indices = @transform_26, window_bounds = array<i64: 32, 32>}, {pipeline_mode = #tpu.pipeline_mode<synchronous>, transform_indices = @transform_27, window_bounds = array<i64: 32, 1>}, {pipeline_mode = #tpu.pipeline_mode<synchronous>, transform_indices = @transform_28, window_bounds = array<i64: 4, 32>}, {pipeline_mode = #tpu.pipeline_mode<synchronous>, transform_indices = @transform_29, window_bounds = array<i64: 4, 1>}, {pipeline_mode = #tpu.pipeline_mode<synchronous>, transform_indices = @transform_30, window_bounds = array<i64: 4, 96>}, {pipeline_mode = #tpu.pipeline_mode<synchronous>, transform_indices = @transform_31, window_bounds = array<i64: 16, 96>}, {pipeline_mode = #tpu.pipeline_mode<synchronous>, transform_indices = @transform_32, window_bounds = array<i64: 1, 96>}, {pipeline_mode = #tpu.pipeline_mode<synchronous>, transform_indices = @transform_33, window_bounds = array<i64: 32, 96>}, {pipeline_mode = #tpu.pipeline_mode<synchronous>, transform_indices = @transform_34, window_bounds = array<i64: 1, 96>}, {pipeline_mode = #tpu.pipeline_mode<synchronous>, transform_indices = @transform_35, window_bounds = array<i64: 4, 32>}, {pipeline_mode = #tpu.pipeline_mode<synchronous>, transform_indices = @transform_36, window_bounds = array<i64: 4, 1>}, {pipeline_mode = #tpu.pipeline_mode<synchronous>, transform_indices = @transform_37, window_bounds = array<i64: 4, 96>}, {pipeline_mode = #tpu.pipeline_mode<synchronous>, transform_indices = @transform_38, window_bounds = array<i64: 4, 96>}]} {
    %c0 = arith.constant 0 : index
    %c0_0 = arith.constant 0 : index
    %0 = vector.load %arg1[%c0, %c0_0] : memref<16x128xf32, #tpu.memory_space<vmem>>, vector<16x128xf32>
    %c0_1 = arith.constant 0 : index
    %c0_2 = arith.constant 0 : index
    %1 = vector.load %arg2[%c0_1, %c0_2] : memref<96x16xf32, #tpu.memory_space<vmem>>, vector<96x16xf32>
    %c0_3 = arith.constant 0 : index
    %c0_4 = arith.constant 0 : index
    %2 = vector.load %arg3[%c0_3, %c0_4] : memref<256x16xf32, #tpu.memory_space<vmem>>, vector<256x16xf32>
    %c0_5 = arith.constant 0 : index
    %c0_6 = arith.constant 0 : index
    %3 = vector.load %arg4[%c0_5, %c0_6] : memref<256x1xf32, #tpu.memory_space<vmem>>, vector<256x1xf32>
    %c0_7 = arith.constant 0 : index
    %c0_8 = arith.constant 0 : index
    %4 = vector.load %arg5[%c0_7, %c0_8] : memref<256x256xf32, #tpu.memory_space<vmem>>, vector<256x256xf32>
    %c0_9 = arith.constant 0 : index
    %c0_10 = arith.constant 0 : index
    %5 = vector.load %arg6[%c0_9, %c0_10] : memref<256x1xf32, #tpu.memory_space<vmem>>, vector<256x1xf32>
    %c0_11 = arith.constant 0 : index
    %c0_12 = arith.constant 0 : index
    %6 = vector.load %arg7[%c0_11, %c0_12] : memref<128x256xf32, #tpu.memory_space<vmem>>, vector<128x256xf32>
    %c0_13 = arith.constant 0 : index
    %c0_14 = arith.constant 0 : index
    %7 = vector.load %arg8[%c0_13, %c0_14] : memref<128x1xf32, #tpu.memory_space<vmem>>, vector<128x1xf32>
    %c0_15 = arith.constant 0 : index
    %c0_16 = arith.constant 0 : index
    %8 = vector.load %arg9[%c0_15, %c0_16] : memref<128x128xf32, #tpu.memory_space<vmem>>, vector<128x128xf32>
    %c0_17 = arith.constant 0 : index
    %c0_18 = arith.constant 0 : index
    %9 = vector.load %arg10[%c0_17, %c0_18] : memref<128x1xf32, #tpu.memory_space<vmem>>, vector<128x1xf32>
    %c0_19 = arith.constant 0 : index
    %c0_20 = arith.constant 0 : index
    %10 = vector.load %arg11[%c0_19, %c0_20] : memref<128x128xf32, #tpu.memory_space<vmem>>, vector<128x128xf32>
    %c0_21 = arith.constant 0 : index
    %c0_22 = arith.constant 0 : index
    %11 = vector.load %arg12[%c0_21, %c0_22] : memref<128x1xf32, #tpu.memory_space<vmem>>, vector<128x1xf32>
    %c0_23 = arith.constant 0 : index
    %c0_24 = arith.constant 0 : index
    %12 = vector.load %arg13[%c0_23, %c0_24] : memref<64x128xf32, #tpu.memory_space<vmem>>, vector<64x128xf32>
    %c0_25 = arith.constant 0 : index
    %c0_26 = arith.constant 0 : index
    %13 = vector.load %arg14[%c0_25, %c0_26] : memref<64x1xf32, #tpu.memory_space<vmem>>, vector<64x1xf32>
    %c0_27 = arith.constant 0 : index
    %c0_28 = arith.constant 0 : index
    %14 = vector.load %arg15[%c0_27, %c0_28] : memref<32x192xf32, #tpu.memory_space<vmem>>, vector<32x192xf32>
    %c0_29 = arith.constant 0 : index
    %c0_30 = arith.constant 0 : index
    %15 = vector.load %arg16[%c0_29, %c0_30] : memref<32x1xf32, #tpu.memory_space<vmem>>, vector<32x1xf32>
    %c0_31 = arith.constant 0 : index
    %c0_32 = arith.constant 0 : index
    %16 = vector.load %arg17[%c0_31, %c0_32] : memref<32x96xf32, #tpu.memory_space<vmem>>, vector<32x96xf32>
    %c0_33 = arith.constant 0 : index
    %c0_34 = arith.constant 0 : index
    %17 = vector.load %arg18[%c0_33, %c0_34] : memref<32x1xf32, #tpu.memory_space<vmem>>, vector<32x1xf32>
    %c0_35 = arith.constant 0 : index
    %c0_36 = arith.constant 0 : index
    %18 = vector.load %arg19[%c0_35, %c0_36] : memref<32x96xf32, #tpu.memory_space<vmem>>, vector<32x96xf32>
    %c0_37 = arith.constant 0 : index
    %c0_38 = arith.constant 0 : index
    %19 = vector.load %arg20[%c0_37, %c0_38] : memref<32x1xf32, #tpu.memory_space<vmem>>, vector<32x1xf32>
    %c0_39 = arith.constant 0 : index
    %c0_40 = arith.constant 0 : index
    %20 = vector.load %arg21[%c0_39, %c0_40] : memref<32x96xf32, #tpu.memory_space<vmem>>, vector<32x96xf32>
    %c0_41 = arith.constant 0 : index
    %c0_42 = arith.constant 0 : index
    %21 = vector.load %arg22[%c0_41, %c0_42] : memref<32x1xf32, #tpu.memory_space<vmem>>, vector<32x1xf32>
    %c0_43 = arith.constant 0 : index
    %c0_44 = arith.constant 0 : index
    %22 = vector.load %arg23[%c0_43, %c0_44] : memref<32x96xf32, #tpu.memory_space<vmem>>, vector<32x96xf32>
    %c0_45 = arith.constant 0 : index
    %c0_46 = arith.constant 0 : index
    %23 = vector.load %arg24[%c0_45, %c0_46] : memref<32x1xf32, #tpu.memory_space<vmem>>, vector<32x1xf32>
    %c0_47 = arith.constant 0 : index
    %c0_48 = arith.constant 0 : index
    %24 = vector.load %arg25[%c0_47, %c0_48] : memref<32x32xf32, #tpu.memory_space<vmem>>, vector<32x32xf32>
    %c0_49 = arith.constant 0 : index
    %c0_50 = arith.constant 0 : index
    %25 = vector.load %arg26[%c0_49, %c0_50] : memref<32x1xf32, #tpu.memory_space<vmem>>, vector<32x1xf32>
    %c0_51 = arith.constant 0 : index
    %c0_52 = arith.constant 0 : index
    %26 = vector.load %arg27[%c0_51, %c0_52] : memref<32x32xf32, #tpu.memory_space<vmem>>, vector<32x32xf32>
    %c0_53 = arith.constant 0 : index
    %c0_54 = arith.constant 0 : index
    %27 = vector.load %arg28[%c0_53, %c0_54] : memref<32x1xf32, #tpu.memory_space<vmem>>, vector<32x1xf32>
    %c0_55 = arith.constant 0 : index
    %c0_56 = arith.constant 0 : index
    %28 = vector.load %arg29[%c0_55, %c0_56] : memref<4x32xf32, #tpu.memory_space<vmem>>, vector<4x32xf32>
    %c0_57 = arith.constant 0 : index
    %c0_58 = arith.constant 0 : index
    %29 = vector.load %arg30[%c0_57, %c0_58] : memref<4x1xf32, #tpu.memory_space<vmem>>, vector<4x1xf32>
    %c0_59 = arith.constant 0 : index
    %c0_60 = arith.constant 0 : index
    %30 = vector.load %arg31[%c0_59, %c0_60] : memref<4x96xf32, #tpu.memory_space<vmem>>, vector<4x96xf32>
    %c0_61 = arith.constant 0 : index
    %c0_62 = arith.constant 0 : index
    %31 = vector.load %arg32[%c0_61, %c0_62] : memref<16x96xf32, #tpu.memory_space<vmem>>, vector<16x96xf32>
    %c0_63 = arith.constant 0 : index
    %c0_64 = arith.constant 0 : index
    %32 = vector.load %arg33[%c0_63, %c0_64] : memref<1x96xf32, #tpu.memory_space<vmem>>, vector<1x96xf32>
    %c0_65 = arith.constant 0 : index
    %c0_66 = arith.constant 0 : index
    %33 = vector.load %arg34[%c0_65, %c0_66] : memref<32x96xf32, #tpu.memory_space<vmem>>, vector<32x96xf32>
    %c0_67 = arith.constant 0 : index
    %c0_68 = arith.constant 0 : index
    %34 = vector.load %arg35[%c0_67, %c0_68] : memref<1x96xf32, #tpu.memory_space<vmem>>, vector<1x96xf32>
    %c0_69 = arith.constant 0 : index
    %c0_70 = arith.constant 0 : index
    %35 = vector.load %arg36[%c0_69, %c0_70] : memref<4x32xf32, #tpu.memory_space<vmem>>, vector<4x32xf32>
    %c0_71 = arith.constant 0 : index
    %c0_72 = arith.constant 0 : index
    %36 = vector.load %arg37[%c0_71, %c0_72] : memref<4x1xf32, #tpu.memory_space<vmem>>, vector<4x1xf32>
    %c0_73 = arith.constant 0 : index
    %c0_74 = arith.constant 0 : index
    %37 = vector.load %arg38[%c0_73, %c0_74] : memref<4x96xf32, #tpu.memory_space<vmem>>, vector<4x96xf32>
    %cst = arith.constant dense<0.000000e+00> : vector<256x128xf32>
    %38 = tpu.matmul %2, %0, %cst {dimension_numbers = #tpu.dot_dimension_numbers<[1], [0], [0], [1], [0, 0, 1, 1], [], []>} : vector<256x16xf32>, vector<16x128xf32>, vector<256x128xf32> -> vector<256x128xf32>
    %39 = vector.broadcast %3 : vector<256x1xf32> to vector<256x128xf32>
    %40 = arith.addf %38, %39 : vector<256x128xf32>
    %cst_75 = arith.constant dense<0.000000e+00> : vector<256x128xf32>
    %41 = tpu.matmul %4, %40, %cst_75 {dimension_numbers = #tpu.dot_dimension_numbers<[1], [0], [0], [1], [0, 0, 1, 1], [], []>} : vector<256x256xf32>, vector<256x128xf32>, vector<256x128xf32> -> vector<256x128xf32>
    %42 = vector.broadcast %5 : vector<256x1xf32> to vector<256x128xf32>
    %43 = arith.addf %41, %42 : vector<256x128xf32>
    %cst_76 = arith.constant 0.000000e+00 : f32
    %44 = vector.broadcast %cst_76 : f32 to vector<256x128xf32>
    %45 = arith.cmpf ogt, %43, %44 : vector<256x128xf32>
    %cst_77 = arith.constant 0.000000e+00 : f32
    %46 = vector.broadcast %cst_77 : f32 to vector<256x128xf32>
    %47 = arith.minimumf %43, %46 : vector<256x128xf32>
    %48 = math.exp %47 : vector<256x128xf32>
    %cst_78 = arith.constant 1.000000e+00 : f32
    %49 = vector.broadcast %cst_78 : f32 to vector<256x128xf32>
    %50 = arith.subf %48, %49 : vector<256x128xf32>
    %51 = arith.select %45, %43, %50 : vector<256x128xi1>, vector<256x128xf32>
    %cst_79 = arith.constant dense<0.000000e+00> : vector<128x128xf32>
    %52 = tpu.matmul %6, %51, %cst_79 {dimension_numbers = #tpu.dot_dimension_numbers<[1], [0], [0], [1], [0, 0, 1, 1], [], []>} : vector<128x256xf32>, vector<256x128xf32>, vector<128x128xf32> -> vector<128x128xf32>
    %53 = vector.broadcast %7 : vector<128x1xf32> to vector<128x128xf32>
    %54 = arith.addf %52, %53 : vector<128x128xf32>
    %cst_80 = arith.constant 0.000000e+00 : f32
    %55 = vector.broadcast %cst_80 : f32 to vector<128x128xf32>
    %56 = arith.cmpf ogt, %54, %55 : vector<128x128xf32>
    %cst_81 = arith.constant 0.000000e+00 : f32
    %57 = vector.broadcast %cst_81 : f32 to vector<128x128xf32>
    %58 = arith.minimumf %54, %57 : vector<128x128xf32>
    %59 = math.exp %58 : vector<128x128xf32>
    %cst_82 = arith.constant 1.000000e+00 : f32
    %60 = vector.broadcast %cst_82 : f32 to vector<128x128xf32>
    %61 = arith.subf %59, %60 : vector<128x128xf32>
    %62 = arith.select %56, %54, %61 : vector<128x128xi1>, vector<128x128xf32>
    %cst_83 = arith.constant dense<0.000000e+00> : vector<128x128xf32>
    %63 = tpu.matmul %8, %62, %cst_83 {dimension_numbers = #tpu.dot_dimension_numbers<[1], [0], [0], [1], [0, 0, 1, 1], [], []>} : vector<128x128xf32>, vector<128x128xf32>, vector<128x128xf32> -> vector<128x128xf32>
    %64 = vector.broadcast %9 : vector<128x1xf32> to vector<128x128xf32>
    %65 = arith.addf %63, %64 : vector<128x128xf32>
    %cst_84 = arith.constant 0.000000e+00 : f32
    %66 = vector.broadcast %cst_84 : f32 to vector<128x128xf32>
    %67 = arith.cmpf ogt, %65, %66 : vector<128x128xf32>
    %cst_85 = arith.constant 0.000000e+00 : f32
    %68 = vector.broadcast %cst_85 : f32 to vector<128x128xf32>
    %69 = arith.minimumf %65, %68 : vector<128x128xf32>
    %70 = math.exp %69 : vector<128x128xf32>
    %cst_86 = arith.constant 1.000000e+00 : f32
    %71 = vector.broadcast %cst_86 : f32 to vector<128x128xf32>
    %72 = arith.subf %70, %71 : vector<128x128xf32>
    %73 = arith.select %67, %65, %72 : vector<128x128xi1>, vector<128x128xf32>
    %cst_87 = arith.constant dense<0.000000e+00> : vector<128x128xf32>
    %74 = tpu.matmul %10, %73, %cst_87 {dimension_numbers = #tpu.dot_dimension_numbers<[1], [0], [0], [1], [0, 0, 1, 1], [], []>} : vector<128x128xf32>, vector<128x128xf32>, vector<128x128xf32> -> vector<128x128xf32>
    %75 = vector.broadcast %11 : vector<128x1xf32> to vector<128x128xf32>
    %76 = arith.addf %74, %75 : vector<128x128xf32>
    %cst_88 = arith.constant 0.000000e+00 : f32
    %77 = vector.broadcast %cst_88 : f32 to vector<128x128xf32>
    %78 = arith.cmpf ogt, %76, %77 : vector<128x128xf32>
    %cst_89 = arith.constant 0.000000e+00 : f32
    %79 = vector.broadcast %cst_89 : f32 to vector<128x128xf32>
    %80 = arith.minimumf %76, %79 : vector<128x128xf32>
    %81 = math.exp %80 : vector<128x128xf32>
    %cst_90 = arith.constant 1.000000e+00 : f32
    %82 = vector.broadcast %cst_90 : f32 to vector<128x128xf32>
    %83 = arith.subf %81, %82 : vector<128x128xf32>
    %84 = arith.select %78, %76, %83 : vector<128x128xi1>, vector<128x128xf32>
    %cst_91 = arith.constant dense<0.000000e+00> : vector<64x128xf32>
    %85 = tpu.matmul %12, %84, %cst_91 {dimension_numbers = #tpu.dot_dimension_numbers<[1], [0], [0], [1], [0, 0, 1, 1], [], []>} : vector<64x128xf32>, vector<128x128xf32>, vector<64x128xf32> -> vector<64x128xf32>
    %86 = vector.broadcast %13 : vector<64x1xf32> to vector<64x128xf32>
    %87 = arith.addf %85, %86 : vector<64x128xf32>
    %cst_92 = arith.constant 0.000000e+00 : f32
    %88 = vector.broadcast %cst_92 : f32 to vector<64x128xf32>
    %89 = arith.cmpf ogt, %87, %88 : vector<64x128xf32>
    %cst_93 = arith.constant 0.000000e+00 : f32
    %90 = vector.broadcast %cst_93 : f32 to vector<64x128xf32>
    %91 = arith.minimumf %87, %90 : vector<64x128xf32>
    %92 = math.exp %91 : vector<64x128xf32>
    %cst_94 = arith.constant 1.000000e+00 : f32
    %93 = vector.broadcast %cst_94 : f32 to vector<64x128xf32>
    %94 = arith.subf %92, %93 : vector<64x128xf32>
    %95 = arith.select %89, %87, %94 : vector<64x128xi1>, vector<64x128xf32>
    %96 = tpu.iota {dimensions = array<i32: 1>} : vector<1x128xi32>
    %c96_i32 = arith.constant 96 : i32
    %97 = vector.broadcast %c96_i32 : i32 to vector<1x128xi32>
    %98 = arith.cmpi slt, %96, %97 : vector<1x128xi32>
    %cst_95 = arith.constant 0.000000e+00 : f32
    %99 = vector.shape_cast %98 : vector<1x128xi1> to vector<1x128xi1>
    %100 = vector.broadcast %99 : vector<1x128xi1> to vector<64x128xi1>
    %101 = vector.broadcast %cst_95 : f32 to vector<64x128xf32>
    %102 = arith.select %100, %95, %101 : vector<64x128xi1>, vector<64x128xf32>
    %c2_i32 = arith.constant 2 : i32
    %103 = tpu.dynamic_rotate %102 by %c2_i32 dim 1 : vector<64x128xf32>, i32 -> vector<64x128xf32>
    %c126_i32 = arith.constant 126 : i32
    %104 = tpu.dynamic_rotate %102 by %c126_i32 dim 1 : vector<64x128xf32>, i32 -> vector<64x128xf32>
    %105 = tpu.concatenate %103, %102, %104 in 0 : vector<64x128xf32>, vector<64x128xf32>, vector<64x128xf32> -> vector<192x128xf32>
    %cst_96 = arith.constant dense<0.000000e+00> : vector<32x128xf32>
    %106 = tpu.matmul %14, %105, %cst_96 {dimension_numbers = #tpu.dot_dimension_numbers<[1], [0], [0], [1], [0, 0, 1, 1], [], []>} : vector<32x192xf32>, vector<192x128xf32>, vector<32x128xf32> -> vector<32x128xf32>
    %107 = vector.broadcast %15 : vector<32x1xf32> to vector<32x128xf32>
    %108 = arith.addf %106, %107 : vector<32x128xf32>
    %cst_97 = arith.constant 0.000000e+00 : f32
    %109 = vector.broadcast %cst_97 : f32 to vector<32x128xf32>
    %110 = arith.cmpf ogt, %108, %109 : vector<32x128xf32>
    %cst_98 = arith.constant 0.000000e+00 : f32
    %111 = vector.broadcast %cst_98 : f32 to vector<32x128xf32>
    %112 = arith.minimumf %108, %111 : vector<32x128xf32>
    %113 = math.exp %112 : vector<32x128xf32>
    %cst_99 = arith.constant 1.000000e+00 : f32
    %114 = vector.broadcast %cst_99 : f32 to vector<32x128xf32>
    %115 = arith.subf %113, %114 : vector<32x128xf32>
    %116 = arith.select %110, %108, %115 : vector<32x128xi1>, vector<32x128xf32>
    %cst_100 = arith.constant 0.000000e+00 : f32
    %117 = vector.shape_cast %98 : vector<1x128xi1> to vector<1x128xi1>
    %118 = vector.broadcast %117 : vector<1x128xi1> to vector<32x128xi1>
    %119 = vector.broadcast %cst_100 : f32 to vector<32x128xf32>
    %120 = arith.select %118, %116, %119 : vector<32x128xi1>, vector<32x128xf32>
    %c2_i32_101 = arith.constant 2 : i32
    %121 = tpu.dynamic_rotate %120 by %c2_i32_101 dim 1 : vector<32x128xf32>, i32 -> vector<32x128xf32>
    %c126_i32_102 = arith.constant 126 : i32
    %122 = tpu.dynamic_rotate %120 by %c126_i32_102 dim 1 : vector<32x128xf32>, i32 -> vector<32x128xf32>
    %123 = tpu.concatenate %121, %120, %122 in 0 : vector<32x128xf32>, vector<32x128xf32>, vector<32x128xf32> -> vector<96x128xf32>
    %cst_103 = arith.constant dense<0.000000e+00> : vector<32x128xf32>
    %124 = tpu.matmul %16, %123, %cst_103 {dimension_numbers = #tpu.dot_dimension_numbers<[1], [0], [0], [1], [0, 0, 1, 1], [], []>} : vector<32x96xf32>, vector<96x128xf32>, vector<32x128xf32> -> vector<32x128xf32>
    %125 = vector.broadcast %17 : vector<32x1xf32> to vector<32x128xf32>
    %126 = arith.addf %124, %125 : vector<32x128xf32>
    %cst_104 = arith.constant 0.000000e+00 : f32
    %127 = vector.broadcast %cst_104 : f32 to vector<32x128xf32>
    %128 = arith.cmpf ogt, %126, %127 : vector<32x128xf32>
    %cst_105 = arith.constant 0.000000e+00 : f32
    %129 = vector.broadcast %cst_105 : f32 to vector<32x128xf32>
    %130 = arith.minimumf %126, %129 : vector<32x128xf32>
    %131 = math.exp %130 : vector<32x128xf32>
    %cst_106 = arith.constant 1.000000e+00 : f32
    %132 = vector.broadcast %cst_106 : f32 to vector<32x128xf32>
    %133 = arith.subf %131, %132 : vector<32x128xf32>
    %134 = arith.select %128, %126, %133 : vector<32x128xi1>, vector<32x128xf32>
    %cst_107 = arith.constant 0.000000e+00 : f32
    %135 = vector.shape_cast %98 : vector<1x128xi1> to vector<1x128xi1>
    %136 = vector.broadcast %135 : vector<1x128xi1> to vector<32x128xi1>
    %137 = vector.broadcast %cst_107 : f32 to vector<32x128xf32>
    %138 = arith.select %136, %134, %137 : vector<32x128xi1>, vector<32x128xf32>
    %c2_i32_108 = arith.constant 2 : i32
    %139 = tpu.dynamic_rotate %138 by %c2_i32_108 dim 1 : vector<32x128xf32>, i32 -> vector<32x128xf32>
    %c126_i32_109 = arith.constant 126 : i32
    %140 = tpu.dynamic_rotate %138 by %c126_i32_109 dim 1 : vector<32x128xf32>, i32 -> vector<32x128xf32>
    %141 = tpu.concatenate %139, %138, %140 in 0 : vector<32x128xf32>, vector<32x128xf32>, vector<32x128xf32> -> vector<96x128xf32>
    %cst_110 = arith.constant dense<0.000000e+00> : vector<32x128xf32>
    %142 = tpu.matmul %18, %141, %cst_110 {dimension_numbers = #tpu.dot_dimension_numbers<[1], [0], [0], [1], [0, 0, 1, 1], [], []>} : vector<32x96xf32>, vector<96x128xf32>, vector<32x128xf32> -> vector<32x128xf32>
    %143 = vector.broadcast %19 : vector<32x1xf32> to vector<32x128xf32>
    %144 = arith.addf %142, %143 : vector<32x128xf32>
    %cst_111 = arith.constant 0.000000e+00 : f32
    %145 = vector.broadcast %cst_111 : f32 to vector<32x128xf32>
    %146 = arith.cmpf ogt, %144, %145 : vector<32x128xf32>
    %cst_112 = arith.constant 0.000000e+00 : f32
    %147 = vector.broadcast %cst_112 : f32 to vector<32x128xf32>
    %148 = arith.minimumf %144, %147 : vector<32x128xf32>
    %149 = math.exp %148 : vector<32x128xf32>
    %cst_113 = arith.constant 1.000000e+00 : f32
    %150 = vector.broadcast %cst_113 : f32 to vector<32x128xf32>
    %151 = arith.subf %149, %150 : vector<32x128xf32>
    %152 = arith.select %146, %144, %151 : vector<32x128xi1>, vector<32x128xf32>
    %cst_114 = arith.constant 0.000000e+00 : f32
    %153 = vector.shape_cast %98 : vector<1x128xi1> to vector<1x128xi1>
    %154 = vector.broadcast %153 : vector<1x128xi1> to vector<32x128xi1>
    %155 = vector.broadcast %cst_114 : f32 to vector<32x128xf32>
    %156 = arith.select %154, %152, %155 : vector<32x128xi1>, vector<32x128xf32>
    %c2_i32_115 = arith.constant 2 : i32
    %157 = tpu.dynamic_rotate %156 by %c2_i32_115 dim 1 : vector<32x128xf32>, i32 -> vector<32x128xf32>
    %c126_i32_116 = arith.constant 126 : i32
    %158 = tpu.dynamic_rotate %156 by %c126_i32_116 dim 1 : vector<32x128xf32>, i32 -> vector<32x128xf32>
    %159 = tpu.concatenate %157, %156, %158 in 0 : vector<32x128xf32>, vector<32x128xf32>, vector<32x128xf32> -> vector<96x128xf32>
    %cst_117 = arith.constant dense<0.000000e+00> : vector<32x128xf32>
    %160 = tpu.matmul %20, %159, %cst_117 {dimension_numbers = #tpu.dot_dimension_numbers<[1], [0], [0], [1], [0, 0, 1, 1], [], []>} : vector<32x96xf32>, vector<96x128xf32>, vector<32x128xf32> -> vector<32x128xf32>
    %161 = vector.broadcast %21 : vector<32x1xf32> to vector<32x128xf32>
    %162 = arith.addf %160, %161 : vector<32x128xf32>
    %cst_118 = arith.constant 0.000000e+00 : f32
    %163 = vector.broadcast %cst_118 : f32 to vector<32x128xf32>
    %164 = arith.cmpf ogt, %162, %163 : vector<32x128xf32>
    %cst_119 = arith.constant 0.000000e+00 : f32
    %165 = vector.broadcast %cst_119 : f32 to vector<32x128xf32>
    %166 = arith.minimumf %162, %165 : vector<32x128xf32>
    %167 = math.exp %166 : vector<32x128xf32>
    %cst_120 = arith.constant 1.000000e+00 : f32
    %168 = vector.broadcast %cst_120 : f32 to vector<32x128xf32>
    %169 = arith.subf %167, %168 : vector<32x128xf32>
    %170 = arith.select %164, %162, %169 : vector<32x128xi1>, vector<32x128xf32>
    %cst_121 = arith.constant 0.000000e+00 : f32
    %171 = vector.shape_cast %98 : vector<1x128xi1> to vector<1x128xi1>
    %172 = vector.broadcast %171 : vector<1x128xi1> to vector<32x128xi1>
    %173 = vector.broadcast %cst_121 : f32 to vector<32x128xf32>
    %174 = arith.select %172, %170, %173 : vector<32x128xi1>, vector<32x128xf32>
    %c2_i32_122 = arith.constant 2 : i32
    %175 = tpu.dynamic_rotate %174 by %c2_i32_122 dim 1 : vector<32x128xf32>, i32 -> vector<32x128xf32>
    %c126_i32_123 = arith.constant 126 : i32
    %176 = tpu.dynamic_rotate %174 by %c126_i32_123 dim 1 : vector<32x128xf32>, i32 -> vector<32x128xf32>
    %177 = tpu.concatenate %175, %174, %176 in 0 : vector<32x128xf32>, vector<32x128xf32>, vector<32x128xf32> -> vector<96x128xf32>
    %cst_124 = arith.constant dense<0.000000e+00> : vector<32x128xf32>
    %178 = tpu.matmul %22, %177, %cst_124 {dimension_numbers = #tpu.dot_dimension_numbers<[1], [0], [0], [1], [0, 0, 1, 1], [], []>} : vector<32x96xf32>, vector<96x128xf32>, vector<32x128xf32> -> vector<32x128xf32>
    %179 = vector.broadcast %23 : vector<32x1xf32> to vector<32x128xf32>
    %180 = arith.addf %178, %179 : vector<32x128xf32>
    %cst_125 = arith.constant 0.000000e+00 : f32
    %181 = vector.broadcast %cst_125 : f32 to vector<32x128xf32>
    %182 = arith.cmpf ogt, %180, %181 : vector<32x128xf32>
    %cst_126 = arith.constant 0.000000e+00 : f32
    %183 = vector.broadcast %cst_126 : f32 to vector<32x128xf32>
    %184 = arith.minimumf %180, %183 : vector<32x128xf32>
    %185 = math.exp %184 : vector<32x128xf32>
    %cst_127 = arith.constant 1.000000e+00 : f32
    %186 = vector.broadcast %cst_127 : f32 to vector<32x128xf32>
    %187 = arith.subf %185, %186 : vector<32x128xf32>
    %188 = arith.select %182, %180, %187 : vector<32x128xi1>, vector<32x128xf32>
    %cst_128 = arith.constant dense<0.000000e+00> : vector<32x128xf32>
    %189 = tpu.matmul %24, %188, %cst_128 {dimension_numbers = #tpu.dot_dimension_numbers<[1], [0], [0], [1], [0, 0, 1, 1], [], []>} : vector<32x32xf32>, vector<32x128xf32>, vector<32x128xf32> -> vector<32x128xf32>
    %190 = vector.broadcast %25 : vector<32x1xf32> to vector<32x128xf32>
    %191 = arith.addf %189, %190 : vector<32x128xf32>
    %cst_129 = arith.constant 0.000000e+00 : f32
    %192 = vector.broadcast %cst_129 : f32 to vector<32x128xf32>
    %193 = arith.cmpf ogt, %191, %192 : vector<32x128xf32>
    %cst_130 = arith.constant 0.000000e+00 : f32
    %194 = vector.broadcast %cst_130 : f32 to vector<32x128xf32>
    %195 = arith.minimumf %191, %194 : vector<32x128xf32>
    %196 = math.exp %195 : vector<32x128xf32>
    %cst_131 = arith.constant 1.000000e+00 : f32
    %197 = vector.broadcast %cst_131 : f32 to vector<32x128xf32>
    %198 = arith.subf %196, %197 : vector<32x128xf32>
    %199 = arith.select %193, %191, %198 : vector<32x128xi1>, vector<32x128xf32>
    %cst_132 = arith.constant dense<0.000000e+00> : vector<32x128xf32>
    %200 = tpu.matmul %26, %199, %cst_132 {dimension_numbers = #tpu.dot_dimension_numbers<[1], [0], [0], [1], [0, 0, 1, 1], [], []>} : vector<32x32xf32>, vector<32x128xf32>, vector<32x128xf32> -> vector<32x128xf32>
    %201 = vector.broadcast %27 : vector<32x1xf32> to vector<32x128xf32>
    %202 = arith.addf %200, %201 : vector<32x128xf32>
    %cst_133 = arith.constant 0.000000e+00 : f32
    %203 = vector.broadcast %cst_133 : f32 to vector<32x128xf32>
    %204 = arith.cmpf ogt, %202, %203 : vector<32x128xf32>
    %cst_134 = arith.constant 0.000000e+00 : f32
    %205 = vector.broadcast %cst_134 : f32 to vector<32x128xf32>
    %206 = arith.minimumf %202, %205 : vector<32x128xf32>
    %207 = math.exp %206 : vector<32x128xf32>
    %cst_135 = arith.constant 1.000000e+00 : f32
    %208 = vector.broadcast %cst_135 : f32 to vector<32x128xf32>
    %209 = arith.subf %207, %208 : vector<32x128xf32>
    %210 = arith.select %204, %202, %209 : vector<32x128xi1>, vector<32x128xf32>
    %cst_136 = arith.constant dense<0.000000e+00> : vector<4x128xf32>
    %211 = tpu.matmul %28, %210, %cst_136 {dimension_numbers = #tpu.dot_dimension_numbers<[1], [0], [0], [1], [0, 0, 1, 1], [], []>} : vector<4x32xf32>, vector<32x128xf32>, vector<4x128xf32> -> vector<4x128xf32>
    %212 = vector.broadcast %29 : vector<4x1xf32> to vector<4x128xf32>
    %213 = arith.addf %211, %212 : vector<4x128xf32>
    %214 = vector.extract_strided_slice %213 {offsets = [0, 0], sizes = [4, 96], strides = [1, 1]} : vector<4x128xf32> to vector<4x96xf32>
    %215 = arith.mulf %214, %30 : vector<4x96xf32>
    %cst_137 = arith.constant dense<0.000000e+00> : vector<96x96xf32>
    %216 = tpu.matmul %1, %31, %cst_137 {dimension_numbers = #tpu.dot_dimension_numbers<[1], [0], [0], [1], [0, 0, 1, 1], [], []>} : vector<96x16xf32>, vector<16x96xf32>, vector<96x96xf32> -> vector<96x96xf32>
    %217 = vector.broadcast %32 : vector<1x96xf32> to vector<96x96xf32>
    %218 = arith.addf %216, %217 : vector<96x96xf32>
    %cst_138 = arith.constant 0.000000e+00 : f32
    %219 = vector.broadcast %cst_138 : f32 to vector<2x32xf32>
    %220 = vector.extract_strided_slice %218 {offsets = [0, 0], sizes = [2, 96], strides = [1, 1]} : vector<96x96xf32> to vector<2x96xf32>
    %cst_139 = arith.constant dense<0.000000e+00> : vector<2x96xf32>
    %221 = tpu.matmul %219, %33, %cst_139 {dimension_numbers = #tpu.dot_dimension_numbers<[1], [0], [0], [1], [0, 0, 1, 1], [], []>} : vector<2x32xf32>, vector<32x96xf32>, vector<2x96xf32> -> vector<2x96xf32>
    %222 = vector.broadcast %34 : vector<1x96xf32> to vector<2x96xf32>
    %223 = arith.addf %221, %222 : vector<2x96xf32>
    %224 = vector.extract_strided_slice %220 {offsets = [0, 0], sizes = [2, 64], strides = [1, 1]} : vector<2x96xf32> to vector<2x64xf32>
    %225 = vector.extract_strided_slice %223 {offsets = [0, 0], sizes = [2, 64], strides = [1, 1]} : vector<2x96xf32> to vector<2x64xf32>
    %226 = arith.addf %224, %225 : vector<2x64xf32>
    %227 = arith.negf %226 : vector<2x64xf32>
    %228 = math.exp %227 : vector<2x64xf32>
    %cst_140 = arith.constant 1.000000e+00 : f32
    %229 = vector.broadcast %cst_140 : f32 to vector<2x64xf32>
    %230 = arith.addf %229, %228 : vector<2x64xf32>
    %231 = arith.divf %229, %230 : vector<2x64xf32>
    %232 = vector.extract_strided_slice %231 {offsets = [0, 0], sizes = [2, 32], strides = [1, 1]} : vector<2x64xf32> to vector<2x32xf32>
    %233 = vector.extract_strided_slice %231 {offsets = [0, 32], sizes = [2, 32], strides = [1, 1]} : vector<2x64xf32> to vector<2x32xf32>
    %234 = vector.extract_strided_slice %220 {offsets = [0, 64], sizes = [2, 32], strides = [1, 1]} : vector<2x96xf32> to vector<2x32xf32>
    %235 = vector.extract_strided_slice %223 {offsets = [0, 64], sizes = [2, 32], strides = [1, 1]} : vector<2x96xf32> to vector<2x32xf32>
    %236 = arith.mulf %232, %235 : vector<2x32xf32>
    %237 = arith.addf %234, %236 : vector<2x32xf32>
    %238 = math.tanh %237 : vector<2x32xf32>
    %239 = arith.subf %219, %238 : vector<2x32xf32>
    %240 = arith.mulf %233, %239 : vector<2x32xf32>
    %241 = arith.addf %238, %240 : vector<2x32xf32>
    %242 = vector.extract_strided_slice %218 {offsets = [2, 0], sizes = [2, 96], strides = [1, 1]} : vector<96x96xf32> to vector<2x96xf32>
    %cst_141 = arith.constant dense<0.000000e+00> : vector<2x96xf32>
    %243 = tpu.matmul %241, %33, %cst_141 {dimension_numbers = #tpu.dot_dimension_numbers<[1], [0], [0], [1], [0, 0, 1, 1], [], []>} : vector<2x32xf32>, vector<32x96xf32>, vector<2x96xf32> -> vector<2x96xf32>
    %244 = vector.broadcast %34 : vector<1x96xf32> to vector<2x96xf32>
    %245 = arith.addf %243, %244 : vector<2x96xf32>
    %246 = vector.extract_strided_slice %242 {offsets = [0, 0], sizes = [2, 64], strides = [1, 1]} : vector<2x96xf32> to vector<2x64xf32>
    %247 = vector.extract_strided_slice %245 {offsets = [0, 0], sizes = [2, 64], strides = [1, 1]} : vector<2x96xf32> to vector<2x64xf32>
    %248 = arith.addf %246, %247 : vector<2x64xf32>
    %249 = arith.negf %248 : vector<2x64xf32>
    %250 = math.exp %249 : vector<2x64xf32>
    %cst_142 = arith.constant 1.000000e+00 : f32
    %251 = vector.broadcast %cst_142 : f32 to vector<2x64xf32>
    %252 = arith.addf %251, %250 : vector<2x64xf32>
    %253 = arith.divf %251, %252 : vector<2x64xf32>
    %254 = vector.extract_strided_slice %253 {offsets = [0, 0], sizes = [2, 32], strides = [1, 1]} : vector<2x64xf32> to vector<2x32xf32>
    %255 = vector.extract_strided_slice %253 {offsets = [0, 32], sizes = [2, 32], strides = [1, 1]} : vector<2x64xf32> to vector<2x32xf32>
    %256 = vector.extract_strided_slice %242 {offsets = [0, 64], sizes = [2, 32], strides = [1, 1]} : vector<2x96xf32> to vector<2x32xf32>
    %257 = vector.extract_strided_slice %245 {offsets = [0, 64], sizes = [2, 32], strides = [1, 1]} : vector<2x96xf32> to vector<2x32xf32>
    %258 = arith.mulf %254, %257 : vector<2x32xf32>
    %259 = arith.addf %256, %258 : vector<2x32xf32>
    %260 = math.tanh %259 : vector<2x32xf32>
    %261 = arith.subf %241, %260 : vector<2x32xf32>
    %262 = arith.mulf %255, %261 : vector<2x32xf32>
    %263 = arith.addf %260, %262 : vector<2x32xf32>
    %264 = vector.extract_strided_slice %218 {offsets = [4, 0], sizes = [2, 96], strides = [1, 1]} : vector<96x96xf32> to vector<2x96xf32>
    %cst_143 = arith.constant dense<0.000000e+00> : vector<2x96xf32>
    %265 = tpu.matmul %263, %33, %cst_143 {dimension_numbers = #tpu.dot_dimension_numbers<[1], [0], [0], [1], [0, 0, 1, 1], [], []>} : vector<2x32xf32>, vector<32x96xf32>, vector<2x96xf32> -> vector<2x96xf32>
    %266 = vector.broadcast %34 : vector<1x96xf32> to vector<2x96xf32>
    %267 = arith.addf %265, %266 : vector<2x96xf32>
    %268 = vector.extract_strided_slice %264 {offsets = [0, 0], sizes = [2, 64], strides = [1, 1]} : vector<2x96xf32> to vector<2x64xf32>
    %269 = vector.extract_strided_slice %267 {offsets = [0, 0], sizes = [2, 64], strides = [1, 1]} : vector<2x96xf32> to vector<2x64xf32>
    %270 = arith.addf %268, %269 : vector<2x64xf32>
    %271 = arith.negf %270 : vector<2x64xf32>
    %272 = math.exp %271 : vector<2x64xf32>
    %cst_144 = arith.constant 1.000000e+00 : f32
    %273 = vector.broadcast %cst_144 : f32 to vector<2x64xf32>
    %274 = arith.addf %273, %272 : vector<2x64xf32>
    %275 = arith.divf %273, %274 : vector<2x64xf32>
    %276 = vector.extract_strided_slice %275 {offsets = [0, 0], sizes = [2, 32], strides = [1, 1]} : vector<2x64xf32> to vector<2x32xf32>
    %277 = vector.extract_strided_slice %275 {offsets = [0, 32], sizes = [2, 32], strides = [1, 1]} : vector<2x64xf32> to vector<2x32xf32>
    %278 = vector.extract_strided_slice %264 {offsets = [0, 64], sizes = [2, 32], strides = [1, 1]} : vector<2x96xf32> to vector<2x32xf32>
    %279 = vector.extract_strided_slice %267 {offsets = [0, 64], sizes = [2, 32], strides = [1, 1]} : vector<2x96xf32> to vector<2x32xf32>
    %280 = arith.mulf %276, %279 : vector<2x32xf32>
    %281 = arith.addf %278, %280 : vector<2x32xf32>
    %282 = math.tanh %281 : vector<2x32xf32>
    %283 = arith.subf %263, %282 : vector<2x32xf32>
    %284 = arith.mulf %277, %283 : vector<2x32xf32>
    %285 = arith.addf %282, %284 : vector<2x32xf32>
    %286 = vector.extract_strided_slice %218 {offsets = [6, 0], sizes = [2, 96], strides = [1, 1]} : vector<96x96xf32> to vector<2x96xf32>
    %cst_145 = arith.constant dense<0.000000e+00> : vector<2x96xf32>
    %287 = tpu.matmul %285, %33, %cst_145 {dimension_numbers = #tpu.dot_dimension_numbers<[1], [0], [0], [1], [0, 0, 1, 1], [], []>} : vector<2x32xf32>, vector<32x96xf32>, vector<2x96xf32> -> vector<2x96xf32>
    %288 = vector.broadcast %34 : vector<1x96xf32> to vector<2x96xf32>
    %289 = arith.addf %287, %288 : vector<2x96xf32>
    %290 = vector.extract_strided_slice %286 {offsets = [0, 0], sizes = [2, 64], strides = [1, 1]} : vector<2x96xf32> to vector<2x64xf32>
    %291 = vector.extract_strided_slice %289 {offsets = [0, 0], sizes = [2, 64], strides = [1, 1]} : vector<2x96xf32> to vector<2x64xf32>
    %292 = arith.addf %290, %291 : vector<2x64xf32>
    %293 = arith.negf %292 : vector<2x64xf32>
    %294 = math.exp %293 : vector<2x64xf32>
    %cst_146 = arith.constant 1.000000e+00 : f32
    %295 = vector.broadcast %cst_146 : f32 to vector<2x64xf32>
    %296 = arith.addf %295, %294 : vector<2x64xf32>
    %297 = arith.divf %295, %296 : vector<2x64xf32>
    %298 = vector.extract_strided_slice %297 {offsets = [0, 0], sizes = [2, 32], strides = [1, 1]} : vector<2x64xf32> to vector<2x32xf32>
    %299 = vector.extract_strided_slice %297 {offsets = [0, 32], sizes = [2, 32], strides = [1, 1]} : vector<2x64xf32> to vector<2x32xf32>
    %300 = vector.extract_strided_slice %286 {offsets = [0, 64], sizes = [2, 32], strides = [1, 1]} : vector<2x96xf32> to vector<2x32xf32>
    %301 = vector.extract_strided_slice %289 {offsets = [0, 64], sizes = [2, 32], strides = [1, 1]} : vector<2x96xf32> to vector<2x32xf32>
    %302 = arith.mulf %298, %301 : vector<2x32xf32>
    %303 = arith.addf %300, %302 : vector<2x32xf32>
    %304 = math.tanh %303 : vector<2x32xf32>
    %305 = arith.subf %285, %304 : vector<2x32xf32>
    %306 = arith.mulf %299, %305 : vector<2x32xf32>
    %307 = arith.addf %304, %306 : vector<2x32xf32>
    %308 = vector.extract_strided_slice %218 {offsets = [8, 0], sizes = [2, 96], strides = [1, 1]} : vector<96x96xf32> to vector<2x96xf32>
    %cst_147 = arith.constant dense<0.000000e+00> : vector<2x96xf32>
    %309 = tpu.matmul %307, %33, %cst_147 {dimension_numbers = #tpu.dot_dimension_numbers<[1], [0], [0], [1], [0, 0, 1, 1], [], []>} : vector<2x32xf32>, vector<32x96xf32>, vector<2x96xf32> -> vector<2x96xf32>
    %310 = vector.broadcast %34 : vector<1x96xf32> to vector<2x96xf32>
    %311 = arith.addf %309, %310 : vector<2x96xf32>
    %312 = vector.extract_strided_slice %308 {offsets = [0, 0], sizes = [2, 64], strides = [1, 1]} : vector<2x96xf32> to vector<2x64xf32>
    %313 = vector.extract_strided_slice %311 {offsets = [0, 0], sizes = [2, 64], strides = [1, 1]} : vector<2x96xf32> to vector<2x64xf32>
    %314 = arith.addf %312, %313 : vector<2x64xf32>
    %315 = arith.negf %314 : vector<2x64xf32>
    %316 = math.exp %315 : vector<2x64xf32>
    %cst_148 = arith.constant 1.000000e+00 : f32
    %317 = vector.broadcast %cst_148 : f32 to vector<2x64xf32>
    %318 = arith.addf %317, %316 : vector<2x64xf32>
    %319 = arith.divf %317, %318 : vector<2x64xf32>
    %320 = vector.extract_strided_slice %319 {offsets = [0, 0], sizes = [2, 32], strides = [1, 1]} : vector<2x64xf32> to vector<2x32xf32>
    %321 = vector.extract_strided_slice %319 {offsets = [0, 32], sizes = [2, 32], strides = [1, 1]} : vector<2x64xf32> to vector<2x32xf32>
    %322 = vector.extract_strided_slice %308 {offsets = [0, 64], sizes = [2, 32], strides = [1, 1]} : vector<2x96xf32> to vector<2x32xf32>
    %323 = vector.extract_strided_slice %311 {offsets = [0, 64], sizes = [2, 32], strides = [1, 1]} : vector<2x96xf32> to vector<2x32xf32>
    %324 = arith.mulf %320, %323 : vector<2x32xf32>
    %325 = arith.addf %322, %324 : vector<2x32xf32>
    %326 = math.tanh %325 : vector<2x32xf32>
    %327 = arith.subf %307, %326 : vector<2x32xf32>
    %328 = arith.mulf %321, %327 : vector<2x32xf32>
    %329 = arith.addf %326, %328 : vector<2x32xf32>
    %330 = vector.extract_strided_slice %218 {offsets = [10, 0], sizes = [2, 96], strides = [1, 1]} : vector<96x96xf32> to vector<2x96xf32>
    %cst_149 = arith.constant dense<0.000000e+00> : vector<2x96xf32>
    %331 = tpu.matmul %329, %33, %cst_149 {dimension_numbers = #tpu.dot_dimension_numbers<[1], [0], [0], [1], [0, 0, 1, 1], [], []>} : vector<2x32xf32>, vector<32x96xf32>, vector<2x96xf32> -> vector<2x96xf32>
    %332 = vector.broadcast %34 : vector<1x96xf32> to vector<2x96xf32>
    %333 = arith.addf %331, %332 : vector<2x96xf32>
    %334 = vector.extract_strided_slice %330 {offsets = [0, 0], sizes = [2, 64], strides = [1, 1]} : vector<2x96xf32> to vector<2x64xf32>
    %335 = vector.extract_strided_slice %333 {offsets = [0, 0], sizes = [2, 64], strides = [1, 1]} : vector<2x96xf32> to vector<2x64xf32>
    %336 = arith.addf %334, %335 : vector<2x64xf32>
    %337 = arith.negf %336 : vector<2x64xf32>
    %338 = math.exp %337 : vector<2x64xf32>
    %cst_150 = arith.constant 1.000000e+00 : f32
    %339 = vector.broadcast %cst_150 : f32 to vector<2x64xf32>
    %340 = arith.addf %339, %338 : vector<2x64xf32>
    %341 = arith.divf %339, %340 : vector<2x64xf32>
    %342 = vector.extract_strided_slice %341 {offsets = [0, 0], sizes = [2, 32], strides = [1, 1]} : vector<2x64xf32> to vector<2x32xf32>
    %343 = vector.extract_strided_slice %341 {offsets = [0, 32], sizes = [2, 32], strides = [1, 1]} : vector<2x64xf32> to vector<2x32xf32>
    %344 = vector.extract_strided_slice %330 {offsets = [0, 64], sizes = [2, 32], strides = [1, 1]} : vector<2x96xf32> to vector<2x32xf32>
    %345 = vector.extract_strided_slice %333 {offsets = [0, 64], sizes = [2, 32], strides = [1, 1]} : vector<2x96xf32> to vector<2x32xf32>
    %346 = arith.mulf %342, %345 : vector<2x32xf32>
    %347 = arith.addf %344, %346 : vector<2x32xf32>
    %348 = math.tanh %347 : vector<2x32xf32>
    %349 = arith.subf %329, %348 : vector<2x32xf32>
    %350 = arith.mulf %343, %349 : vector<2x32xf32>
    %351 = arith.addf %348, %350 : vector<2x32xf32>
    %352 = vector.extract_strided_slice %218 {offsets = [12, 0], sizes = [2, 96], strides = [1, 1]} : vector<96x96xf32> to vector<2x96xf32>
    %cst_151 = arith.constant dense<0.000000e+00> : vector<2x96xf32>
    %353 = tpu.matmul %351, %33, %cst_151 {dimension_numbers = #tpu.dot_dimension_numbers<[1], [0], [0], [1], [0, 0, 1, 1], [], []>} : vector<2x32xf32>, vector<32x96xf32>, vector<2x96xf32> -> vector<2x96xf32>
    %354 = vector.broadcast %34 : vector<1x96xf32> to vector<2x96xf32>
    %355 = arith.addf %353, %354 : vector<2x96xf32>
    %356 = vector.extract_strided_slice %352 {offsets = [0, 0], sizes = [2, 64], strides = [1, 1]} : vector<2x96xf32> to vector<2x64xf32>
    %357 = vector.extract_strided_slice %355 {offsets = [0, 0], sizes = [2, 64], strides = [1, 1]} : vector<2x96xf32> to vector<2x64xf32>
    %358 = arith.addf %356, %357 : vector<2x64xf32>
    %359 = arith.negf %358 : vector<2x64xf32>
    %360 = math.exp %359 : vector<2x64xf32>
    %cst_152 = arith.constant 1.000000e+00 : f32
    %361 = vector.broadcast %cst_152 : f32 to vector<2x64xf32>
    %362 = arith.addf %361, %360 : vector<2x64xf32>
    %363 = arith.divf %361, %362 : vector<2x64xf32>
    %364 = vector.extract_strided_slice %363 {offsets = [0, 0], sizes = [2, 32], strides = [1, 1]} : vector<2x64xf32> to vector<2x32xf32>
    %365 = vector.extract_strided_slice %363 {offsets = [0, 32], sizes = [2, 32], strides = [1, 1]} : vector<2x64xf32> to vector<2x32xf32>
    %366 = vector.extract_strided_slice %352 {offsets = [0, 64], sizes = [2, 32], strides = [1, 1]} : vector<2x96xf32> to vector<2x32xf32>
    %367 = vector.extract_strided_slice %355 {offsets = [0, 64], sizes = [2, 32], strides = [1, 1]} : vector<2x96xf32> to vector<2x32xf32>
    %368 = arith.mulf %364, %367 : vector<2x32xf32>
    %369 = arith.addf %366, %368 : vector<2x32xf32>
    %370 = math.tanh %369 : vector<2x32xf32>
    %371 = arith.subf %351, %370 : vector<2x32xf32>
    %372 = arith.mulf %365, %371 : vector<2x32xf32>
    %373 = arith.addf %370, %372 : vector<2x32xf32>
    %374 = vector.extract_strided_slice %218 {offsets = [14, 0], sizes = [2, 96], strides = [1, 1]} : vector<96x96xf32> to vector<2x96xf32>
    %cst_153 = arith.constant dense<0.000000e+00> : vector<2x96xf32>
    %375 = tpu.matmul %373, %33, %cst_153 {dimension_numbers = #tpu.dot_dimension_numbers<[1], [0], [0], [1], [0, 0, 1, 1], [], []>} : vector<2x32xf32>, vector<32x96xf32>, vector<2x96xf32> -> vector<2x96xf32>
    %376 = vector.broadcast %34 : vector<1x96xf32> to vector<2x96xf32>
    %377 = arith.addf %375, %376 : vector<2x96xf32>
    %378 = vector.extract_strided_slice %374 {offsets = [0, 0], sizes = [2, 64], strides = [1, 1]} : vector<2x96xf32> to vector<2x64xf32>
    %379 = vector.extract_strided_slice %377 {offsets = [0, 0], sizes = [2, 64], strides = [1, 1]} : vector<2x96xf32> to vector<2x64xf32>
    %380 = arith.addf %378, %379 : vector<2x64xf32>
    %381 = arith.negf %380 : vector<2x64xf32>
    %382 = math.exp %381 : vector<2x64xf32>
    %cst_154 = arith.constant 1.000000e+00 : f32
    %383 = vector.broadcast %cst_154 : f32 to vector<2x64xf32>
    %384 = arith.addf %383, %382 : vector<2x64xf32>
    %385 = arith.divf %383, %384 : vector<2x64xf32>
    %386 = vector.extract_strided_slice %385 {offsets = [0, 0], sizes = [2, 32], strides = [1, 1]} : vector<2x64xf32> to vector<2x32xf32>
    %387 = vector.extract_strided_slice %385 {offsets = [0, 32], sizes = [2, 32], strides = [1, 1]} : vector<2x64xf32> to vector<2x32xf32>
    %388 = vector.extract_strided_slice %374 {offsets = [0, 64], sizes = [2, 32], strides = [1, 1]} : vector<2x96xf32> to vector<2x32xf32>
    %389 = vector.extract_strided_slice %377 {offsets = [0, 64], sizes = [2, 32], strides = [1, 1]} : vector<2x96xf32> to vector<2x32xf32>
    %390 = arith.mulf %386, %389 : vector<2x32xf32>
    %391 = arith.addf %388, %390 : vector<2x32xf32>
    %392 = math.tanh %391 : vector<2x32xf32>
    %393 = arith.subf %373, %392 : vector<2x32xf32>
    %394 = arith.mulf %387, %393 : vector<2x32xf32>
    %395 = arith.addf %392, %394 : vector<2x32xf32>
    %396 = vector.extract_strided_slice %218 {offsets = [16, 0], sizes = [2, 96], strides = [1, 1]} : vector<96x96xf32> to vector<2x96xf32>
    %cst_155 = arith.constant dense<0.000000e+00> : vector<2x96xf32>
    %397 = tpu.matmul %395, %33, %cst_155 {dimension_numbers = #tpu.dot_dimension_numbers<[1], [0], [0], [1], [0, 0, 1, 1], [], []>} : vector<2x32xf32>, vector<32x96xf32>, vector<2x96xf32> -> vector<2x96xf32>
    %398 = vector.broadcast %34 : vector<1x96xf32> to vector<2x96xf32>
    %399 = arith.addf %397, %398 : vector<2x96xf32>
    %400 = vector.extract_strided_slice %396 {offsets = [0, 0], sizes = [2, 64], strides = [1, 1]} : vector<2x96xf32> to vector<2x64xf32>
    %401 = vector.extract_strided_slice %399 {offsets = [0, 0], sizes = [2, 64], strides = [1, 1]} : vector<2x96xf32> to vector<2x64xf32>
    %402 = arith.addf %400, %401 : vector<2x64xf32>
    %403 = arith.negf %402 : vector<2x64xf32>
    %404 = math.exp %403 : vector<2x64xf32>
    %cst_156 = arith.constant 1.000000e+00 : f32
    %405 = vector.broadcast %cst_156 : f32 to vector<2x64xf32>
    %406 = arith.addf %405, %404 : vector<2x64xf32>
    %407 = arith.divf %405, %406 : vector<2x64xf32>
    %408 = vector.extract_strided_slice %407 {offsets = [0, 0], sizes = [2, 32], strides = [1, 1]} : vector<2x64xf32> to vector<2x32xf32>
    %409 = vector.extract_strided_slice %407 {offsets = [0, 32], sizes = [2, 32], strides = [1, 1]} : vector<2x64xf32> to vector<2x32xf32>
    %410 = vector.extract_strided_slice %396 {offsets = [0, 64], sizes = [2, 32], strides = [1, 1]} : vector<2x96xf32> to vector<2x32xf32>
    %411 = vector.extract_strided_slice %399 {offsets = [0, 64], sizes = [2, 32], strides = [1, 1]} : vector<2x96xf32> to vector<2x32xf32>
    %412 = arith.mulf %408, %411 : vector<2x32xf32>
    %413 = arith.addf %410, %412 : vector<2x32xf32>
    %414 = math.tanh %413 : vector<2x32xf32>
    %415 = arith.subf %395, %414 : vector<2x32xf32>
    %416 = arith.mulf %409, %415 : vector<2x32xf32>
    %417 = arith.addf %414, %416 : vector<2x32xf32>
    %418 = vector.extract_strided_slice %218 {offsets = [18, 0], sizes = [2, 96], strides = [1, 1]} : vector<96x96xf32> to vector<2x96xf32>
    %cst_157 = arith.constant dense<0.000000e+00> : vector<2x96xf32>
    %419 = tpu.matmul %417, %33, %cst_157 {dimension_numbers = #tpu.dot_dimension_numbers<[1], [0], [0], [1], [0, 0, 1, 1], [], []>} : vector<2x32xf32>, vector<32x96xf32>, vector<2x96xf32> -> vector<2x96xf32>
    %420 = vector.broadcast %34 : vector<1x96xf32> to vector<2x96xf32>
    %421 = arith.addf %419, %420 : vector<2x96xf32>
    %422 = vector.extract_strided_slice %418 {offsets = [0, 0], sizes = [2, 64], strides = [1, 1]} : vector<2x96xf32> to vector<2x64xf32>
    %423 = vector.extract_strided_slice %421 {offsets = [0, 0], sizes = [2, 64], strides = [1, 1]} : vector<2x96xf32> to vector<2x64xf32>
    %424 = arith.addf %422, %423 : vector<2x64xf32>
    %425 = arith.negf %424 : vector<2x64xf32>
    %426 = math.exp %425 : vector<2x64xf32>
    %cst_158 = arith.constant 1.000000e+00 : f32
    %427 = vector.broadcast %cst_158 : f32 to vector<2x64xf32>
    %428 = arith.addf %427, %426 : vector<2x64xf32>
    %429 = arith.divf %427, %428 : vector<2x64xf32>
    %430 = vector.extract_strided_slice %429 {offsets = [0, 0], sizes = [2, 32], strides = [1, 1]} : vector<2x64xf32> to vector<2x32xf32>
    %431 = vector.extract_strided_slice %429 {offsets = [0, 32], sizes = [2, 32], strides = [1, 1]} : vector<2x64xf32> to vector<2x32xf32>
    %432 = vector.extract_strided_slice %418 {offsets = [0, 64], sizes = [2, 32], strides = [1, 1]} : vector<2x96xf32> to vector<2x32xf32>
    %433 = vector.extract_strided_slice %421 {offsets = [0, 64], sizes = [2, 32], strides = [1, 1]} : vector<2x96xf32> to vector<2x32xf32>
    %434 = arith.mulf %430, %433 : vector<2x32xf32>
    %435 = arith.addf %432, %434 : vector<2x32xf32>
    %436 = math.tanh %435 : vector<2x32xf32>
    %437 = arith.subf %417, %436 : vector<2x32xf32>
    %438 = arith.mulf %431, %437 : vector<2x32xf32>
    %439 = arith.addf %436, %438 : vector<2x32xf32>
    %440 = vector.extract_strided_slice %218 {offsets = [20, 0], sizes = [2, 96], strides = [1, 1]} : vector<96x96xf32> to vector<2x96xf32>
    %cst_159 = arith.constant dense<0.000000e+00> : vector<2x96xf32>
    %441 = tpu.matmul %439, %33, %cst_159 {dimension_numbers = #tpu.dot_dimension_numbers<[1], [0], [0], [1], [0, 0, 1, 1], [], []>} : vector<2x32xf32>, vector<32x96xf32>, vector<2x96xf32> -> vector<2x96xf32>
    %442 = vector.broadcast %34 : vector<1x96xf32> to vector<2x96xf32>
    %443 = arith.addf %441, %442 : vector<2x96xf32>
    %444 = vector.extract_strided_slice %440 {offsets = [0, 0], sizes = [2, 64], strides = [1, 1]} : vector<2x96xf32> to vector<2x64xf32>
    %445 = vector.extract_strided_slice %443 {offsets = [0, 0], sizes = [2, 64], strides = [1, 1]} : vector<2x96xf32> to vector<2x64xf32>
    %446 = arith.addf %444, %445 : vector<2x64xf32>
    %447 = arith.negf %446 : vector<2x64xf32>
    %448 = math.exp %447 : vector<2x64xf32>
    %cst_160 = arith.constant 1.000000e+00 : f32
    %449 = vector.broadcast %cst_160 : f32 to vector<2x64xf32>
    %450 = arith.addf %449, %448 : vector<2x64xf32>
    %451 = arith.divf %449, %450 : vector<2x64xf32>
    %452 = vector.extract_strided_slice %451 {offsets = [0, 0], sizes = [2, 32], strides = [1, 1]} : vector<2x64xf32> to vector<2x32xf32>
    %453 = vector.extract_strided_slice %451 {offsets = [0, 32], sizes = [2, 32], strides = [1, 1]} : vector<2x64xf32> to vector<2x32xf32>
    %454 = vector.extract_strided_slice %440 {offsets = [0, 64], sizes = [2, 32], strides = [1, 1]} : vector<2x96xf32> to vector<2x32xf32>
    %455 = vector.extract_strided_slice %443 {offsets = [0, 64], sizes = [2, 32], strides = [1, 1]} : vector<2x96xf32> to vector<2x32xf32>
    %456 = arith.mulf %452, %455 : vector<2x32xf32>
    %457 = arith.addf %454, %456 : vector<2x32xf32>
    %458 = math.tanh %457 : vector<2x32xf32>
    %459 = arith.subf %439, %458 : vector<2x32xf32>
    %460 = arith.mulf %453, %459 : vector<2x32xf32>
    %461 = arith.addf %458, %460 : vector<2x32xf32>
    %462 = vector.extract_strided_slice %218 {offsets = [22, 0], sizes = [2, 96], strides = [1, 1]} : vector<96x96xf32> to vector<2x96xf32>
    %cst_161 = arith.constant dense<0.000000e+00> : vector<2x96xf32>
    %463 = tpu.matmul %461, %33, %cst_161 {dimension_numbers = #tpu.dot_dimension_numbers<[1], [0], [0], [1], [0, 0, 1, 1], [], []>} : vector<2x32xf32>, vector<32x96xf32>, vector<2x96xf32> -> vector<2x96xf32>
    %464 = vector.broadcast %34 : vector<1x96xf32> to vector<2x96xf32>
    %465 = arith.addf %463, %464 : vector<2x96xf32>
    %466 = vector.extract_strided_slice %462 {offsets = [0, 0], sizes = [2, 64], strides = [1, 1]} : vector<2x96xf32> to vector<2x64xf32>
    %467 = vector.extract_strided_slice %465 {offsets = [0, 0], sizes = [2, 64], strides = [1, 1]} : vector<2x96xf32> to vector<2x64xf32>
    %468 = arith.addf %466, %467 : vector<2x64xf32>
    %469 = arith.negf %468 : vector<2x64xf32>
    %470 = math.exp %469 : vector<2x64xf32>
    %cst_162 = arith.constant 1.000000e+00 : f32
    %471 = vector.broadcast %cst_162 : f32 to vector<2x64xf32>
    %472 = arith.addf %471, %470 : vector<2x64xf32>
    %473 = arith.divf %471, %472 : vector<2x64xf32>
    %474 = vector.extract_strided_slice %473 {offsets = [0, 0], sizes = [2, 32], strides = [1, 1]} : vector<2x64xf32> to vector<2x32xf32>
    %475 = vector.extract_strided_slice %473 {offsets = [0, 32], sizes = [2, 32], strides = [1, 1]} : vector<2x64xf32> to vector<2x32xf32>
    %476 = vector.extract_strided_slice %462 {offsets = [0, 64], sizes = [2, 32], strides = [1, 1]} : vector<2x96xf32> to vector<2x32xf32>
    %477 = vector.extract_strided_slice %465 {offsets = [0, 64], sizes = [2, 32], strides = [1, 1]} : vector<2x96xf32> to vector<2x32xf32>
    %478 = arith.mulf %474, %477 : vector<2x32xf32>
    %479 = arith.addf %476, %478 : vector<2x32xf32>
    %480 = math.tanh %479 : vector<2x32xf32>
    %481 = arith.subf %461, %480 : vector<2x32xf32>
    %482 = arith.mulf %475, %481 : vector<2x32xf32>
    %483 = arith.addf %480, %482 : vector<2x32xf32>
    %484 = vector.extract_strided_slice %218 {offsets = [24, 0], sizes = [2, 96], strides = [1, 1]} : vector<96x96xf32> to vector<2x96xf32>
    %cst_163 = arith.constant dense<0.000000e+00> : vector<2x96xf32>
    %485 = tpu.matmul %483, %33, %cst_163 {dimension_numbers = #tpu.dot_dimension_numbers<[1], [0], [0], [1], [0, 0, 1, 1], [], []>} : vector<2x32xf32>, vector<32x96xf32>, vector<2x96xf32> -> vector<2x96xf32>
    %486 = vector.broadcast %34 : vector<1x96xf32> to vector<2x96xf32>
    %487 = arith.addf %485, %486 : vector<2x96xf32>
    %488 = vector.extract_strided_slice %484 {offsets = [0, 0], sizes = [2, 64], strides = [1, 1]} : vector<2x96xf32> to vector<2x64xf32>
    %489 = vector.extract_strided_slice %487 {offsets = [0, 0], sizes = [2, 64], strides = [1, 1]} : vector<2x96xf32> to vector<2x64xf32>
    %490 = arith.addf %488, %489 : vector<2x64xf32>
    %491 = arith.negf %490 : vector<2x64xf32>
    %492 = math.exp %491 : vector<2x64xf32>
    %cst_164 = arith.constant 1.000000e+00 : f32
    %493 = vector.broadcast %cst_164 : f32 to vector<2x64xf32>
    %494 = arith.addf %493, %492 : vector<2x64xf32>
    %495 = arith.divf %493, %494 : vector<2x64xf32>
    %496 = vector.extract_strided_slice %495 {offsets = [0, 0], sizes = [2, 32], strides = [1, 1]} : vector<2x64xf32> to vector<2x32xf32>
    %497 = vector.extract_strided_slice %495 {offsets = [0, 32], sizes = [2, 32], strides = [1, 1]} : vector<2x64xf32> to vector<2x32xf32>
    %498 = vector.extract_strided_slice %484 {offsets = [0, 64], sizes = [2, 32], strides = [1, 1]} : vector<2x96xf32> to vector<2x32xf32>
    %499 = vector.extract_strided_slice %487 {offsets = [0, 64], sizes = [2, 32], strides = [1, 1]} : vector<2x96xf32> to vector<2x32xf32>
    %500 = arith.mulf %496, %499 : vector<2x32xf32>
    %501 = arith.addf %498, %500 : vector<2x32xf32>
    %502 = math.tanh %501 : vector<2x32xf32>
    %503 = arith.subf %483, %502 : vector<2x32xf32>
    %504 = arith.mulf %497, %503 : vector<2x32xf32>
    %505 = arith.addf %502, %504 : vector<2x32xf32>
    %506 = vector.extract_strided_slice %218 {offsets = [26, 0], sizes = [2, 96], strides = [1, 1]} : vector<96x96xf32> to vector<2x96xf32>
    %cst_165 = arith.constant dense<0.000000e+00> : vector<2x96xf32>
    %507 = tpu.matmul %505, %33, %cst_165 {dimension_numbers = #tpu.dot_dimension_numbers<[1], [0], [0], [1], [0, 0, 1, 1], [], []>} : vector<2x32xf32>, vector<32x96xf32>, vector<2x96xf32> -> vector<2x96xf32>
    %508 = vector.broadcast %34 : vector<1x96xf32> to vector<2x96xf32>
    %509 = arith.addf %507, %508 : vector<2x96xf32>
    %510 = vector.extract_strided_slice %506 {offsets = [0, 0], sizes = [2, 64], strides = [1, 1]} : vector<2x96xf32> to vector<2x64xf32>
    %511 = vector.extract_strided_slice %509 {offsets = [0, 0], sizes = [2, 64], strides = [1, 1]} : vector<2x96xf32> to vector<2x64xf32>
    %512 = arith.addf %510, %511 : vector<2x64xf32>
    %513 = arith.negf %512 : vector<2x64xf32>
    %514 = math.exp %513 : vector<2x64xf32>
    %cst_166 = arith.constant 1.000000e+00 : f32
    %515 = vector.broadcast %cst_166 : f32 to vector<2x64xf32>
    %516 = arith.addf %515, %514 : vector<2x64xf32>
    %517 = arith.divf %515, %516 : vector<2x64xf32>
    %518 = vector.extract_strided_slice %517 {offsets = [0, 0], sizes = [2, 32], strides = [1, 1]} : vector<2x64xf32> to vector<2x32xf32>
    %519 = vector.extract_strided_slice %517 {offsets = [0, 32], sizes = [2, 32], strides = [1, 1]} : vector<2x64xf32> to vector<2x32xf32>
    %520 = vector.extract_strided_slice %506 {offsets = [0, 64], sizes = [2, 32], strides = [1, 1]} : vector<2x96xf32> to vector<2x32xf32>
    %521 = vector.extract_strided_slice %509 {offsets = [0, 64], sizes = [2, 32], strides = [1, 1]} : vector<2x96xf32> to vector<2x32xf32>
    %522 = arith.mulf %518, %521 : vector<2x32xf32>
    %523 = arith.addf %520, %522 : vector<2x32xf32>
    %524 = math.tanh %523 : vector<2x32xf32>
    %525 = arith.subf %505, %524 : vector<2x32xf32>
    %526 = arith.mulf %519, %525 : vector<2x32xf32>
    %527 = arith.addf %524, %526 : vector<2x32xf32>
    %528 = vector.extract_strided_slice %218 {offsets = [28, 0], sizes = [2, 96], strides = [1, 1]} : vector<96x96xf32> to vector<2x96xf32>
    %cst_167 = arith.constant dense<0.000000e+00> : vector<2x96xf32>
    %529 = tpu.matmul %527, %33, %cst_167 {dimension_numbers = #tpu.dot_dimension_numbers<[1], [0], [0], [1], [0, 0, 1, 1], [], []>} : vector<2x32xf32>, vector<32x96xf32>, vector<2x96xf32> -> vector<2x96xf32>
    %530 = vector.broadcast %34 : vector<1x96xf32> to vector<2x96xf32>
    %531 = arith.addf %529, %530 : vector<2x96xf32>
    %532 = vector.extract_strided_slice %528 {offsets = [0, 0], sizes = [2, 64], strides = [1, 1]} : vector<2x96xf32> to vector<2x64xf32>
    %533 = vector.extract_strided_slice %531 {offsets = [0, 0], sizes = [2, 64], strides = [1, 1]} : vector<2x96xf32> to vector<2x64xf32>
    %534 = arith.addf %532, %533 : vector<2x64xf32>
    %535 = arith.negf %534 : vector<2x64xf32>
    %536 = math.exp %535 : vector<2x64xf32>
    %cst_168 = arith.constant 1.000000e+00 : f32
    %537 = vector.broadcast %cst_168 : f32 to vector<2x64xf32>
    %538 = arith.addf %537, %536 : vector<2x64xf32>
    %539 = arith.divf %537, %538 : vector<2x64xf32>
    %540 = vector.extract_strided_slice %539 {offsets = [0, 0], sizes = [2, 32], strides = [1, 1]} : vector<2x64xf32> to vector<2x32xf32>
    %541 = vector.extract_strided_slice %539 {offsets = [0, 32], sizes = [2, 32], strides = [1, 1]} : vector<2x64xf32> to vector<2x32xf32>
    %542 = vector.extract_strided_slice %528 {offsets = [0, 64], sizes = [2, 32], strides = [1, 1]} : vector<2x96xf32> to vector<2x32xf32>
    %543 = vector.extract_strided_slice %531 {offsets = [0, 64], sizes = [2, 32], strides = [1, 1]} : vector<2x96xf32> to vector<2x32xf32>
    %544 = arith.mulf %540, %543 : vector<2x32xf32>
    %545 = arith.addf %542, %544 : vector<2x32xf32>
    %546 = math.tanh %545 : vector<2x32xf32>
    %547 = arith.subf %527, %546 : vector<2x32xf32>
    %548 = arith.mulf %541, %547 : vector<2x32xf32>
    %549 = arith.addf %546, %548 : vector<2x32xf32>
    %550 = vector.extract_strided_slice %218 {offsets = [30, 0], sizes = [2, 96], strides = [1, 1]} : vector<96x96xf32> to vector<2x96xf32>
    %cst_169 = arith.constant dense<0.000000e+00> : vector<2x96xf32>
    %551 = tpu.matmul %549, %33, %cst_169 {dimension_numbers = #tpu.dot_dimension_numbers<[1], [0], [0], [1], [0, 0, 1, 1], [], []>} : vector<2x32xf32>, vector<32x96xf32>, vector<2x96xf32> -> vector<2x96xf32>
    %552 = vector.broadcast %34 : vector<1x96xf32> to vector<2x96xf32>
    %553 = arith.addf %551, %552 : vector<2x96xf32>
    %554 = vector.extract_strided_slice %550 {offsets = [0, 0], sizes = [2, 64], strides = [1, 1]} : vector<2x96xf32> to vector<2x64xf32>
    %555 = vector.extract_strided_slice %553 {offsets = [0, 0], sizes = [2, 64], strides = [1, 1]} : vector<2x96xf32> to vector<2x64xf32>
    %556 = arith.addf %554, %555 : vector<2x64xf32>
    %557 = arith.negf %556 : vector<2x64xf32>
    %558 = math.exp %557 : vector<2x64xf32>
    %cst_170 = arith.constant 1.000000e+00 : f32
    %559 = vector.broadcast %cst_170 : f32 to vector<2x64xf32>
    %560 = arith.addf %559, %558 : vector<2x64xf32>
    %561 = arith.divf %559, %560 : vector<2x64xf32>
    %562 = vector.extract_strided_slice %561 {offsets = [0, 0], sizes = [2, 32], strides = [1, 1]} : vector<2x64xf32> to vector<2x32xf32>
    %563 = vector.extract_strided_slice %561 {offsets = [0, 32], sizes = [2, 32], strides = [1, 1]} : vector<2x64xf32> to vector<2x32xf32>
    %564 = vector.extract_strided_slice %550 {offsets = [0, 64], sizes = [2, 32], strides = [1, 1]} : vector<2x96xf32> to vector<2x32xf32>
    %565 = vector.extract_strided_slice %553 {offsets = [0, 64], sizes = [2, 32], strides = [1, 1]} : vector<2x96xf32> to vector<2x32xf32>
    %566 = arith.mulf %562, %565 : vector<2x32xf32>
    %567 = arith.addf %564, %566 : vector<2x32xf32>
    %568 = math.tanh %567 : vector<2x32xf32>
    %569 = arith.subf %549, %568 : vector<2x32xf32>
    %570 = arith.mulf %563, %569 : vector<2x32xf32>
    %571 = arith.addf %568, %570 : vector<2x32xf32>
    %572 = vector.extract_strided_slice %218 {offsets = [32, 0], sizes = [2, 96], strides = [1, 1]} : vector<96x96xf32> to vector<2x96xf32>
    %cst_171 = arith.constant dense<0.000000e+00> : vector<2x96xf32>
    %573 = tpu.matmul %571, %33, %cst_171 {dimension_numbers = #tpu.dot_dimension_numbers<[1], [0], [0], [1], [0, 0, 1, 1], [], []>} : vector<2x32xf32>, vector<32x96xf32>, vector<2x96xf32> -> vector<2x96xf32>
    %574 = vector.broadcast %34 : vector<1x96xf32> to vector<2x96xf32>
    %575 = arith.addf %573, %574 : vector<2x96xf32>
    %576 = vector.extract_strided_slice %572 {offsets = [0, 0], sizes = [2, 64], strides = [1, 1]} : vector<2x96xf32> to vector<2x64xf32>
    %577 = vector.extract_strided_slice %575 {offsets = [0, 0], sizes = [2, 64], strides = [1, 1]} : vector<2x96xf32> to vector<2x64xf32>
    %578 = arith.addf %576, %577 : vector<2x64xf32>
    %579 = arith.negf %578 : vector<2x64xf32>
    %580 = math.exp %579 : vector<2x64xf32>
    %cst_172 = arith.constant 1.000000e+00 : f32
    %581 = vector.broadcast %cst_172 : f32 to vector<2x64xf32>
    %582 = arith.addf %581, %580 : vector<2x64xf32>
    %583 = arith.divf %581, %582 : vector<2x64xf32>
    %584 = vector.extract_strided_slice %583 {offsets = [0, 0], sizes = [2, 32], strides = [1, 1]} : vector<2x64xf32> to vector<2x32xf32>
    %585 = vector.extract_strided_slice %583 {offsets = [0, 32], sizes = [2, 32], strides = [1, 1]} : vector<2x64xf32> to vector<2x32xf32>
    %586 = vector.extract_strided_slice %572 {offsets = [0, 64], sizes = [2, 32], strides = [1, 1]} : vector<2x96xf32> to vector<2x32xf32>
    %587 = vector.extract_strided_slice %575 {offsets = [0, 64], sizes = [2, 32], strides = [1, 1]} : vector<2x96xf32> to vector<2x32xf32>
    %588 = arith.mulf %584, %587 : vector<2x32xf32>
    %589 = arith.addf %586, %588 : vector<2x32xf32>
    %590 = math.tanh %589 : vector<2x32xf32>
    %591 = arith.subf %571, %590 : vector<2x32xf32>
    %592 = arith.mulf %585, %591 : vector<2x32xf32>
    %593 = arith.addf %590, %592 : vector<2x32xf32>
    %594 = vector.extract_strided_slice %218 {offsets = [34, 0], sizes = [2, 96], strides = [1, 1]} : vector<96x96xf32> to vector<2x96xf32>
    %cst_173 = arith.constant dense<0.000000e+00> : vector<2x96xf32>
    %595 = tpu.matmul %593, %33, %cst_173 {dimension_numbers = #tpu.dot_dimension_numbers<[1], [0], [0], [1], [0, 0, 1, 1], [], []>} : vector<2x32xf32>, vector<32x96xf32>, vector<2x96xf32> -> vector<2x96xf32>
    %596 = vector.broadcast %34 : vector<1x96xf32> to vector<2x96xf32>
    %597 = arith.addf %595, %596 : vector<2x96xf32>
    %598 = vector.extract_strided_slice %594 {offsets = [0, 0], sizes = [2, 64], strides = [1, 1]} : vector<2x96xf32> to vector<2x64xf32>
    %599 = vector.extract_strided_slice %597 {offsets = [0, 0], sizes = [2, 64], strides = [1, 1]} : vector<2x96xf32> to vector<2x64xf32>
    %600 = arith.addf %598, %599 : vector<2x64xf32>
    %601 = arith.negf %600 : vector<2x64xf32>
    %602 = math.exp %601 : vector<2x64xf32>
    %cst_174 = arith.constant 1.000000e+00 : f32
    %603 = vector.broadcast %cst_174 : f32 to vector<2x64xf32>
    %604 = arith.addf %603, %602 : vector<2x64xf32>
    %605 = arith.divf %603, %604 : vector<2x64xf32>
    %606 = vector.extract_strided_slice %605 {offsets = [0, 0], sizes = [2, 32], strides = [1, 1]} : vector<2x64xf32> to vector<2x32xf32>
    %607 = vector.extract_strided_slice %605 {offsets = [0, 32], sizes = [2, 32], strides = [1, 1]} : vector<2x64xf32> to vector<2x32xf32>
    %608 = vector.extract_strided_slice %594 {offsets = [0, 64], sizes = [2, 32], strides = [1, 1]} : vector<2x96xf32> to vector<2x32xf32>
    %609 = vector.extract_strided_slice %597 {offsets = [0, 64], sizes = [2, 32], strides = [1, 1]} : vector<2x96xf32> to vector<2x32xf32>
    %610 = arith.mulf %606, %609 : vector<2x32xf32>
    %611 = arith.addf %608, %610 : vector<2x32xf32>
    %612 = math.tanh %611 : vector<2x32xf32>
    %613 = arith.subf %593, %612 : vector<2x32xf32>
    %614 = arith.mulf %607, %613 : vector<2x32xf32>
    %615 = arith.addf %612, %614 : vector<2x32xf32>
    %616 = vector.extract_strided_slice %218 {offsets = [36, 0], sizes = [2, 96], strides = [1, 1]} : vector<96x96xf32> to vector<2x96xf32>
    %cst_175 = arith.constant dense<0.000000e+00> : vector<2x96xf32>
    %617 = tpu.matmul %615, %33, %cst_175 {dimension_numbers = #tpu.dot_dimension_numbers<[1], [0], [0], [1], [0, 0, 1, 1], [], []>} : vector<2x32xf32>, vector<32x96xf32>, vector<2x96xf32> -> vector<2x96xf32>
    %618 = vector.broadcast %34 : vector<1x96xf32> to vector<2x96xf32>
    %619 = arith.addf %617, %618 : vector<2x96xf32>
    %620 = vector.extract_strided_slice %616 {offsets = [0, 0], sizes = [2, 64], strides = [1, 1]} : vector<2x96xf32> to vector<2x64xf32>
    %621 = vector.extract_strided_slice %619 {offsets = [0, 0], sizes = [2, 64], strides = [1, 1]} : vector<2x96xf32> to vector<2x64xf32>
    %622 = arith.addf %620, %621 : vector<2x64xf32>
    %623 = arith.negf %622 : vector<2x64xf32>
    %624 = math.exp %623 : vector<2x64xf32>
    %cst_176 = arith.constant 1.000000e+00 : f32
    %625 = vector.broadcast %cst_176 : f32 to vector<2x64xf32>
    %626 = arith.addf %625, %624 : vector<2x64xf32>
    %627 = arith.divf %625, %626 : vector<2x64xf32>
    %628 = vector.extract_strided_slice %627 {offsets = [0, 0], sizes = [2, 32], strides = [1, 1]} : vector<2x64xf32> to vector<2x32xf32>
    %629 = vector.extract_strided_slice %627 {offsets = [0, 32], sizes = [2, 32], strides = [1, 1]} : vector<2x64xf32> to vector<2x32xf32>
    %630 = vector.extract_strided_slice %616 {offsets = [0, 64], sizes = [2, 32], strides = [1, 1]} : vector<2x96xf32> to vector<2x32xf32>
    %631 = vector.extract_strided_slice %619 {offsets = [0, 64], sizes = [2, 32], strides = [1, 1]} : vector<2x96xf32> to vector<2x32xf32>
    %632 = arith.mulf %628, %631 : vector<2x32xf32>
    %633 = arith.addf %630, %632 : vector<2x32xf32>
    %634 = math.tanh %633 : vector<2x32xf32>
    %635 = arith.subf %615, %634 : vector<2x32xf32>
    %636 = arith.mulf %629, %635 : vector<2x32xf32>
    %637 = arith.addf %634, %636 : vector<2x32xf32>
    %638 = vector.extract_strided_slice %218 {offsets = [38, 0], sizes = [2, 96], strides = [1, 1]} : vector<96x96xf32> to vector<2x96xf32>
    %cst_177 = arith.constant dense<0.000000e+00> : vector<2x96xf32>
    %639 = tpu.matmul %637, %33, %cst_177 {dimension_numbers = #tpu.dot_dimension_numbers<[1], [0], [0], [1], [0, 0, 1, 1], [], []>} : vector<2x32xf32>, vector<32x96xf32>, vector<2x96xf32> -> vector<2x96xf32>
    %640 = vector.broadcast %34 : vector<1x96xf32> to vector<2x96xf32>
    %641 = arith.addf %639, %640 : vector<2x96xf32>
    %642 = vector.extract_strided_slice %638 {offsets = [0, 0], sizes = [2, 64], strides = [1, 1]} : vector<2x96xf32> to vector<2x64xf32>
    %643 = vector.extract_strided_slice %641 {offsets = [0, 0], sizes = [2, 64], strides = [1, 1]} : vector<2x96xf32> to vector<2x64xf32>
    %644 = arith.addf %642, %643 : vector<2x64xf32>
    %645 = arith.negf %644 : vector<2x64xf32>
    %646 = math.exp %645 : vector<2x64xf32>
    %cst_178 = arith.constant 1.000000e+00 : f32
    %647 = vector.broadcast %cst_178 : f32 to vector<2x64xf32>
    %648 = arith.addf %647, %646 : vector<2x64xf32>
    %649 = arith.divf %647, %648 : vector<2x64xf32>
    %650 = vector.extract_strided_slice %649 {offsets = [0, 0], sizes = [2, 32], strides = [1, 1]} : vector<2x64xf32> to vector<2x32xf32>
    %651 = vector.extract_strided_slice %649 {offsets = [0, 32], sizes = [2, 32], strides = [1, 1]} : vector<2x64xf32> to vector<2x32xf32>
    %652 = vector.extract_strided_slice %638 {offsets = [0, 64], sizes = [2, 32], strides = [1, 1]} : vector<2x96xf32> to vector<2x32xf32>
    %653 = vector.extract_strided_slice %641 {offsets = [0, 64], sizes = [2, 32], strides = [1, 1]} : vector<2x96xf32> to vector<2x32xf32>
    %654 = arith.mulf %650, %653 : vector<2x32xf32>
    %655 = arith.addf %652, %654 : vector<2x32xf32>
    %656 = math.tanh %655 : vector<2x32xf32>
    %657 = arith.subf %637, %656 : vector<2x32xf32>
    %658 = arith.mulf %651, %657 : vector<2x32xf32>
    %659 = arith.addf %656, %658 : vector<2x32xf32>
    %660 = vector.extract_strided_slice %218 {offsets = [40, 0], sizes = [2, 96], strides = [1, 1]} : vector<96x96xf32> to vector<2x96xf32>
    %cst_179 = arith.constant dense<0.000000e+00> : vector<2x96xf32>
    %661 = tpu.matmul %659, %33, %cst_179 {dimension_numbers = #tpu.dot_dimension_numbers<[1], [0], [0], [1], [0, 0, 1, 1], [], []>} : vector<2x32xf32>, vector<32x96xf32>, vector<2x96xf32> -> vector<2x96xf32>
    %662 = vector.broadcast %34 : vector<1x96xf32> to vector<2x96xf32>
    %663 = arith.addf %661, %662 : vector<2x96xf32>
    %664 = vector.extract_strided_slice %660 {offsets = [0, 0], sizes = [2, 64], strides = [1, 1]} : vector<2x96xf32> to vector<2x64xf32>
    %665 = vector.extract_strided_slice %663 {offsets = [0, 0], sizes = [2, 64], strides = [1, 1]} : vector<2x96xf32> to vector<2x64xf32>
    %666 = arith.addf %664, %665 : vector<2x64xf32>
    %667 = arith.negf %666 : vector<2x64xf32>
    %668 = math.exp %667 : vector<2x64xf32>
    %cst_180 = arith.constant 1.000000e+00 : f32
    %669 = vector.broadcast %cst_180 : f32 to vector<2x64xf32>
    %670 = arith.addf %669, %668 : vector<2x64xf32>
    %671 = arith.divf %669, %670 : vector<2x64xf32>
    %672 = vector.extract_strided_slice %671 {offsets = [0, 0], sizes = [2, 32], strides = [1, 1]} : vector<2x64xf32> to vector<2x32xf32>
    %673 = vector.extract_strided_slice %671 {offsets = [0, 32], sizes = [2, 32], strides = [1, 1]} : vector<2x64xf32> to vector<2x32xf32>
    %674 = vector.extract_strided_slice %660 {offsets = [0, 64], sizes = [2, 32], strides = [1, 1]} : vector<2x96xf32> to vector<2x32xf32>
    %675 = vector.extract_strided_slice %663 {offsets = [0, 64], sizes = [2, 32], strides = [1, 1]} : vector<2x96xf32> to vector<2x32xf32>
    %676 = arith.mulf %672, %675 : vector<2x32xf32>
    %677 = arith.addf %674, %676 : vector<2x32xf32>
    %678 = math.tanh %677 : vector<2x32xf32>
    %679 = arith.subf %659, %678 : vector<2x32xf32>
    %680 = arith.mulf %673, %679 : vector<2x32xf32>
    %681 = arith.addf %678, %680 : vector<2x32xf32>
    %682 = vector.extract_strided_slice %218 {offsets = [42, 0], sizes = [2, 96], strides = [1, 1]} : vector<96x96xf32> to vector<2x96xf32>
    %cst_181 = arith.constant dense<0.000000e+00> : vector<2x96xf32>
    %683 = tpu.matmul %681, %33, %cst_181 {dimension_numbers = #tpu.dot_dimension_numbers<[1], [0], [0], [1], [0, 0, 1, 1], [], []>} : vector<2x32xf32>, vector<32x96xf32>, vector<2x96xf32> -> vector<2x96xf32>
    %684 = vector.broadcast %34 : vector<1x96xf32> to vector<2x96xf32>
    %685 = arith.addf %683, %684 : vector<2x96xf32>
    %686 = vector.extract_strided_slice %682 {offsets = [0, 0], sizes = [2, 64], strides = [1, 1]} : vector<2x96xf32> to vector<2x64xf32>
    %687 = vector.extract_strided_slice %685 {offsets = [0, 0], sizes = [2, 64], strides = [1, 1]} : vector<2x96xf32> to vector<2x64xf32>
    %688 = arith.addf %686, %687 : vector<2x64xf32>
    %689 = arith.negf %688 : vector<2x64xf32>
    %690 = math.exp %689 : vector<2x64xf32>
    %cst_182 = arith.constant 1.000000e+00 : f32
    %691 = vector.broadcast %cst_182 : f32 to vector<2x64xf32>
    %692 = arith.addf %691, %690 : vector<2x64xf32>
    %693 = arith.divf %691, %692 : vector<2x64xf32>
    %694 = vector.extract_strided_slice %693 {offsets = [0, 0], sizes = [2, 32], strides = [1, 1]} : vector<2x64xf32> to vector<2x32xf32>
    %695 = vector.extract_strided_slice %693 {offsets = [0, 32], sizes = [2, 32], strides = [1, 1]} : vector<2x64xf32> to vector<2x32xf32>
    %696 = vector.extract_strided_slice %682 {offsets = [0, 64], sizes = [2, 32], strides = [1, 1]} : vector<2x96xf32> to vector<2x32xf32>
    %697 = vector.extract_strided_slice %685 {offsets = [0, 64], sizes = [2, 32], strides = [1, 1]} : vector<2x96xf32> to vector<2x32xf32>
    %698 = arith.mulf %694, %697 : vector<2x32xf32>
    %699 = arith.addf %696, %698 : vector<2x32xf32>
    %700 = math.tanh %699 : vector<2x32xf32>
    %701 = arith.subf %681, %700 : vector<2x32xf32>
    %702 = arith.mulf %695, %701 : vector<2x32xf32>
    %703 = arith.addf %700, %702 : vector<2x32xf32>
    %704 = vector.extract_strided_slice %218 {offsets = [44, 0], sizes = [2, 96], strides = [1, 1]} : vector<96x96xf32> to vector<2x96xf32>
    %cst_183 = arith.constant dense<0.000000e+00> : vector<2x96xf32>
    %705 = tpu.matmul %703, %33, %cst_183 {dimension_numbers = #tpu.dot_dimension_numbers<[1], [0], [0], [1], [0, 0, 1, 1], [], []>} : vector<2x32xf32>, vector<32x96xf32>, vector<2x96xf32> -> vector<2x96xf32>
    %706 = vector.broadcast %34 : vector<1x96xf32> to vector<2x96xf32>
    %707 = arith.addf %705, %706 : vector<2x96xf32>
    %708 = vector.extract_strided_slice %704 {offsets = [0, 0], sizes = [2, 64], strides = [1, 1]} : vector<2x96xf32> to vector<2x64xf32>
    %709 = vector.extract_strided_slice %707 {offsets = [0, 0], sizes = [2, 64], strides = [1, 1]} : vector<2x96xf32> to vector<2x64xf32>
    %710 = arith.addf %708, %709 : vector<2x64xf32>
    %711 = arith.negf %710 : vector<2x64xf32>
    %712 = math.exp %711 : vector<2x64xf32>
    %cst_184 = arith.constant 1.000000e+00 : f32
    %713 = vector.broadcast %cst_184 : f32 to vector<2x64xf32>
    %714 = arith.addf %713, %712 : vector<2x64xf32>
    %715 = arith.divf %713, %714 : vector<2x64xf32>
    %716 = vector.extract_strided_slice %715 {offsets = [0, 0], sizes = [2, 32], strides = [1, 1]} : vector<2x64xf32> to vector<2x32xf32>
    %717 = vector.extract_strided_slice %715 {offsets = [0, 32], sizes = [2, 32], strides = [1, 1]} : vector<2x64xf32> to vector<2x32xf32>
    %718 = vector.extract_strided_slice %704 {offsets = [0, 64], sizes = [2, 32], strides = [1, 1]} : vector<2x96xf32> to vector<2x32xf32>
    %719 = vector.extract_strided_slice %707 {offsets = [0, 64], sizes = [2, 32], strides = [1, 1]} : vector<2x96xf32> to vector<2x32xf32>
    %720 = arith.mulf %716, %719 : vector<2x32xf32>
    %721 = arith.addf %718, %720 : vector<2x32xf32>
    %722 = math.tanh %721 : vector<2x32xf32>
    %723 = arith.subf %703, %722 : vector<2x32xf32>
    %724 = arith.mulf %717, %723 : vector<2x32xf32>
    %725 = arith.addf %722, %724 : vector<2x32xf32>
    %726 = vector.extract_strided_slice %218 {offsets = [46, 0], sizes = [2, 96], strides = [1, 1]} : vector<96x96xf32> to vector<2x96xf32>
    %cst_185 = arith.constant dense<0.000000e+00> : vector<2x96xf32>
    %727 = tpu.matmul %725, %33, %cst_185 {dimension_numbers = #tpu.dot_dimension_numbers<[1], [0], [0], [1], [0, 0, 1, 1], [], []>} : vector<2x32xf32>, vector<32x96xf32>, vector<2x96xf32> -> vector<2x96xf32>
    %728 = vector.broadcast %34 : vector<1x96xf32> to vector<2x96xf32>
    %729 = arith.addf %727, %728 : vector<2x96xf32>
    %730 = vector.extract_strided_slice %726 {offsets = [0, 0], sizes = [2, 64], strides = [1, 1]} : vector<2x96xf32> to vector<2x64xf32>
    %731 = vector.extract_strided_slice %729 {offsets = [0, 0], sizes = [2, 64], strides = [1, 1]} : vector<2x96xf32> to vector<2x64xf32>
    %732 = arith.addf %730, %731 : vector<2x64xf32>
    %733 = arith.negf %732 : vector<2x64xf32>
    %734 = math.exp %733 : vector<2x64xf32>
    %cst_186 = arith.constant 1.000000e+00 : f32
    %735 = vector.broadcast %cst_186 : f32 to vector<2x64xf32>
    %736 = arith.addf %735, %734 : vector<2x64xf32>
    %737 = arith.divf %735, %736 : vector<2x64xf32>
    %738 = vector.extract_strided_slice %737 {offsets = [0, 0], sizes = [2, 32], strides = [1, 1]} : vector<2x64xf32> to vector<2x32xf32>
    %739 = vector.extract_strided_slice %737 {offsets = [0, 32], sizes = [2, 32], strides = [1, 1]} : vector<2x64xf32> to vector<2x32xf32>
    %740 = vector.extract_strided_slice %726 {offsets = [0, 64], sizes = [2, 32], strides = [1, 1]} : vector<2x96xf32> to vector<2x32xf32>
    %741 = vector.extract_strided_slice %729 {offsets = [0, 64], sizes = [2, 32], strides = [1, 1]} : vector<2x96xf32> to vector<2x32xf32>
    %742 = arith.mulf %738, %741 : vector<2x32xf32>
    %743 = arith.addf %740, %742 : vector<2x32xf32>
    %744 = math.tanh %743 : vector<2x32xf32>
    %745 = arith.subf %725, %744 : vector<2x32xf32>
    %746 = arith.mulf %739, %745 : vector<2x32xf32>
    %747 = arith.addf %744, %746 : vector<2x32xf32>
    %748 = vector.extract_strided_slice %218 {offsets = [48, 0], sizes = [2, 96], strides = [1, 1]} : vector<96x96xf32> to vector<2x96xf32>
    %cst_187 = arith.constant dense<0.000000e+00> : vector<2x96xf32>
    %749 = tpu.matmul %747, %33, %cst_187 {dimension_numbers = #tpu.dot_dimension_numbers<[1], [0], [0], [1], [0, 0, 1, 1], [], []>} : vector<2x32xf32>, vector<32x96xf32>, vector<2x96xf32> -> vector<2x96xf32>
    %750 = vector.broadcast %34 : vector<1x96xf32> to vector<2x96xf32>
    %751 = arith.addf %749, %750 : vector<2x96xf32>
    %752 = vector.extract_strided_slice %748 {offsets = [0, 0], sizes = [2, 64], strides = [1, 1]} : vector<2x96xf32> to vector<2x64xf32>
    %753 = vector.extract_strided_slice %751 {offsets = [0, 0], sizes = [2, 64], strides = [1, 1]} : vector<2x96xf32> to vector<2x64xf32>
    %754 = arith.addf %752, %753 : vector<2x64xf32>
    %755 = arith.negf %754 : vector<2x64xf32>
    %756 = math.exp %755 : vector<2x64xf32>
    %cst_188 = arith.constant 1.000000e+00 : f32
    %757 = vector.broadcast %cst_188 : f32 to vector<2x64xf32>
    %758 = arith.addf %757, %756 : vector<2x64xf32>
    %759 = arith.divf %757, %758 : vector<2x64xf32>
    %760 = vector.extract_strided_slice %759 {offsets = [0, 0], sizes = [2, 32], strides = [1, 1]} : vector<2x64xf32> to vector<2x32xf32>
    %761 = vector.extract_strided_slice %759 {offsets = [0, 32], sizes = [2, 32], strides = [1, 1]} : vector<2x64xf32> to vector<2x32xf32>
    %762 = vector.extract_strided_slice %748 {offsets = [0, 64], sizes = [2, 32], strides = [1, 1]} : vector<2x96xf32> to vector<2x32xf32>
    %763 = vector.extract_strided_slice %751 {offsets = [0, 64], sizes = [2, 32], strides = [1, 1]} : vector<2x96xf32> to vector<2x32xf32>
    %764 = arith.mulf %760, %763 : vector<2x32xf32>
    %765 = arith.addf %762, %764 : vector<2x32xf32>
    %766 = math.tanh %765 : vector<2x32xf32>
    %767 = arith.subf %747, %766 : vector<2x32xf32>
    %768 = arith.mulf %761, %767 : vector<2x32xf32>
    %769 = arith.addf %766, %768 : vector<2x32xf32>
    %770 = vector.extract_strided_slice %218 {offsets = [50, 0], sizes = [2, 96], strides = [1, 1]} : vector<96x96xf32> to vector<2x96xf32>
    %cst_189 = arith.constant dense<0.000000e+00> : vector<2x96xf32>
    %771 = tpu.matmul %769, %33, %cst_189 {dimension_numbers = #tpu.dot_dimension_numbers<[1], [0], [0], [1], [0, 0, 1, 1], [], []>} : vector<2x32xf32>, vector<32x96xf32>, vector<2x96xf32> -> vector<2x96xf32>
    %772 = vector.broadcast %34 : vector<1x96xf32> to vector<2x96xf32>
    %773 = arith.addf %771, %772 : vector<2x96xf32>
    %774 = vector.extract_strided_slice %770 {offsets = [0, 0], sizes = [2, 64], strides = [1, 1]} : vector<2x96xf32> to vector<2x64xf32>
    %775 = vector.extract_strided_slice %773 {offsets = [0, 0], sizes = [2, 64], strides = [1, 1]} : vector<2x96xf32> to vector<2x64xf32>
    %776 = arith.addf %774, %775 : vector<2x64xf32>
    %777 = arith.negf %776 : vector<2x64xf32>
    %778 = math.exp %777 : vector<2x64xf32>
    %cst_190 = arith.constant 1.000000e+00 : f32
    %779 = vector.broadcast %cst_190 : f32 to vector<2x64xf32>
    %780 = arith.addf %779, %778 : vector<2x64xf32>
    %781 = arith.divf %779, %780 : vector<2x64xf32>
    %782 = vector.extract_strided_slice %781 {offsets = [0, 0], sizes = [2, 32], strides = [1, 1]} : vector<2x64xf32> to vector<2x32xf32>
    %783 = vector.extract_strided_slice %781 {offsets = [0, 32], sizes = [2, 32], strides = [1, 1]} : vector<2x64xf32> to vector<2x32xf32>
    %784 = vector.extract_strided_slice %770 {offsets = [0, 64], sizes = [2, 32], strides = [1, 1]} : vector<2x96xf32> to vector<2x32xf32>
    %785 = vector.extract_strided_slice %773 {offsets = [0, 64], sizes = [2, 32], strides = [1, 1]} : vector<2x96xf32> to vector<2x32xf32>
    %786 = arith.mulf %782, %785 : vector<2x32xf32>
    %787 = arith.addf %784, %786 : vector<2x32xf32>
    %788 = math.tanh %787 : vector<2x32xf32>
    %789 = arith.subf %769, %788 : vector<2x32xf32>
    %790 = arith.mulf %783, %789 : vector<2x32xf32>
    %791 = arith.addf %788, %790 : vector<2x32xf32>
    %792 = vector.extract_strided_slice %218 {offsets = [52, 0], sizes = [2, 96], strides = [1, 1]} : vector<96x96xf32> to vector<2x96xf32>
    %cst_191 = arith.constant dense<0.000000e+00> : vector<2x96xf32>
    %793 = tpu.matmul %791, %33, %cst_191 {dimension_numbers = #tpu.dot_dimension_numbers<[1], [0], [0], [1], [0, 0, 1, 1], [], []>} : vector<2x32xf32>, vector<32x96xf32>, vector<2x96xf32> -> vector<2x96xf32>
    %794 = vector.broadcast %34 : vector<1x96xf32> to vector<2x96xf32>
    %795 = arith.addf %793, %794 : vector<2x96xf32>
    %796 = vector.extract_strided_slice %792 {offsets = [0, 0], sizes = [2, 64], strides = [1, 1]} : vector<2x96xf32> to vector<2x64xf32>
    %797 = vector.extract_strided_slice %795 {offsets = [0, 0], sizes = [2, 64], strides = [1, 1]} : vector<2x96xf32> to vector<2x64xf32>
    %798 = arith.addf %796, %797 : vector<2x64xf32>
    %799 = arith.negf %798 : vector<2x64xf32>
    %800 = math.exp %799 : vector<2x64xf32>
    %cst_192 = arith.constant 1.000000e+00 : f32
    %801 = vector.broadcast %cst_192 : f32 to vector<2x64xf32>
    %802 = arith.addf %801, %800 : vector<2x64xf32>
    %803 = arith.divf %801, %802 : vector<2x64xf32>
    %804 = vector.extract_strided_slice %803 {offsets = [0, 0], sizes = [2, 32], strides = [1, 1]} : vector<2x64xf32> to vector<2x32xf32>
    %805 = vector.extract_strided_slice %803 {offsets = [0, 32], sizes = [2, 32], strides = [1, 1]} : vector<2x64xf32> to vector<2x32xf32>
    %806 = vector.extract_strided_slice %792 {offsets = [0, 64], sizes = [2, 32], strides = [1, 1]} : vector<2x96xf32> to vector<2x32xf32>
    %807 = vector.extract_strided_slice %795 {offsets = [0, 64], sizes = [2, 32], strides = [1, 1]} : vector<2x96xf32> to vector<2x32xf32>
    %808 = arith.mulf %804, %807 : vector<2x32xf32>
    %809 = arith.addf %806, %808 : vector<2x32xf32>
    %810 = math.tanh %809 : vector<2x32xf32>
    %811 = arith.subf %791, %810 : vector<2x32xf32>
    %812 = arith.mulf %805, %811 : vector<2x32xf32>
    %813 = arith.addf %810, %812 : vector<2x32xf32>
    %814 = vector.extract_strided_slice %218 {offsets = [54, 0], sizes = [2, 96], strides = [1, 1]} : vector<96x96xf32> to vector<2x96xf32>
    %cst_193 = arith.constant dense<0.000000e+00> : vector<2x96xf32>
    %815 = tpu.matmul %813, %33, %cst_193 {dimension_numbers = #tpu.dot_dimension_numbers<[1], [0], [0], [1], [0, 0, 1, 1], [], []>} : vector<2x32xf32>, vector<32x96xf32>, vector<2x96xf32> -> vector<2x96xf32>
    %816 = vector.broadcast %34 : vector<1x96xf32> to vector<2x96xf32>
    %817 = arith.addf %815, %816 : vector<2x96xf32>
    %818 = vector.extract_strided_slice %814 {offsets = [0, 0], sizes = [2, 64], strides = [1, 1]} : vector<2x96xf32> to vector<2x64xf32>
    %819 = vector.extract_strided_slice %817 {offsets = [0, 0], sizes = [2, 64], strides = [1, 1]} : vector<2x96xf32> to vector<2x64xf32>
    %820 = arith.addf %818, %819 : vector<2x64xf32>
    %821 = arith.negf %820 : vector<2x64xf32>
    %822 = math.exp %821 : vector<2x64xf32>
    %cst_194 = arith.constant 1.000000e+00 : f32
    %823 = vector.broadcast %cst_194 : f32 to vector<2x64xf32>
    %824 = arith.addf %823, %822 : vector<2x64xf32>
    %825 = arith.divf %823, %824 : vector<2x64xf32>
    %826 = vector.extract_strided_slice %825 {offsets = [0, 0], sizes = [2, 32], strides = [1, 1]} : vector<2x64xf32> to vector<2x32xf32>
    %827 = vector.extract_strided_slice %825 {offsets = [0, 32], sizes = [2, 32], strides = [1, 1]} : vector<2x64xf32> to vector<2x32xf32>
    %828 = vector.extract_strided_slice %814 {offsets = [0, 64], sizes = [2, 32], strides = [1, 1]} : vector<2x96xf32> to vector<2x32xf32>
    %829 = vector.extract_strided_slice %817 {offsets = [0, 64], sizes = [2, 32], strides = [1, 1]} : vector<2x96xf32> to vector<2x32xf32>
    %830 = arith.mulf %826, %829 : vector<2x32xf32>
    %831 = arith.addf %828, %830 : vector<2x32xf32>
    %832 = math.tanh %831 : vector<2x32xf32>
    %833 = arith.subf %813, %832 : vector<2x32xf32>
    %834 = arith.mulf %827, %833 : vector<2x32xf32>
    %835 = arith.addf %832, %834 : vector<2x32xf32>
    %836 = vector.extract_strided_slice %218 {offsets = [56, 0], sizes = [2, 96], strides = [1, 1]} : vector<96x96xf32> to vector<2x96xf32>
    %cst_195 = arith.constant dense<0.000000e+00> : vector<2x96xf32>
    %837 = tpu.matmul %835, %33, %cst_195 {dimension_numbers = #tpu.dot_dimension_numbers<[1], [0], [0], [1], [0, 0, 1, 1], [], []>} : vector<2x32xf32>, vector<32x96xf32>, vector<2x96xf32> -> vector<2x96xf32>
    %838 = vector.broadcast %34 : vector<1x96xf32> to vector<2x96xf32>
    %839 = arith.addf %837, %838 : vector<2x96xf32>
    %840 = vector.extract_strided_slice %836 {offsets = [0, 0], sizes = [2, 64], strides = [1, 1]} : vector<2x96xf32> to vector<2x64xf32>
    %841 = vector.extract_strided_slice %839 {offsets = [0, 0], sizes = [2, 64], strides = [1, 1]} : vector<2x96xf32> to vector<2x64xf32>
    %842 = arith.addf %840, %841 : vector<2x64xf32>
    %843 = arith.negf %842 : vector<2x64xf32>
    %844 = math.exp %843 : vector<2x64xf32>
    %cst_196 = arith.constant 1.000000e+00 : f32
    %845 = vector.broadcast %cst_196 : f32 to vector<2x64xf32>
    %846 = arith.addf %845, %844 : vector<2x64xf32>
    %847 = arith.divf %845, %846 : vector<2x64xf32>
    %848 = vector.extract_strided_slice %847 {offsets = [0, 0], sizes = [2, 32], strides = [1, 1]} : vector<2x64xf32> to vector<2x32xf32>
    %849 = vector.extract_strided_slice %847 {offsets = [0, 32], sizes = [2, 32], strides = [1, 1]} : vector<2x64xf32> to vector<2x32xf32>
    %850 = vector.extract_strided_slice %836 {offsets = [0, 64], sizes = [2, 32], strides = [1, 1]} : vector<2x96xf32> to vector<2x32xf32>
    %851 = vector.extract_strided_slice %839 {offsets = [0, 64], sizes = [2, 32], strides = [1, 1]} : vector<2x96xf32> to vector<2x32xf32>
    %852 = arith.mulf %848, %851 : vector<2x32xf32>
    %853 = arith.addf %850, %852 : vector<2x32xf32>
    %854 = math.tanh %853 : vector<2x32xf32>
    %855 = arith.subf %835, %854 : vector<2x32xf32>
    %856 = arith.mulf %849, %855 : vector<2x32xf32>
    %857 = arith.addf %854, %856 : vector<2x32xf32>
    %858 = vector.extract_strided_slice %218 {offsets = [58, 0], sizes = [2, 96], strides = [1, 1]} : vector<96x96xf32> to vector<2x96xf32>
    %cst_197 = arith.constant dense<0.000000e+00> : vector<2x96xf32>
    %859 = tpu.matmul %857, %33, %cst_197 {dimension_numbers = #tpu.dot_dimension_numbers<[1], [0], [0], [1], [0, 0, 1, 1], [], []>} : vector<2x32xf32>, vector<32x96xf32>, vector<2x96xf32> -> vector<2x96xf32>
    %860 = vector.broadcast %34 : vector<1x96xf32> to vector<2x96xf32>
    %861 = arith.addf %859, %860 : vector<2x96xf32>
    %862 = vector.extract_strided_slice %858 {offsets = [0, 0], sizes = [2, 64], strides = [1, 1]} : vector<2x96xf32> to vector<2x64xf32>
    %863 = vector.extract_strided_slice %861 {offsets = [0, 0], sizes = [2, 64], strides = [1, 1]} : vector<2x96xf32> to vector<2x64xf32>
    %864 = arith.addf %862, %863 : vector<2x64xf32>
    %865 = arith.negf %864 : vector<2x64xf32>
    %866 = math.exp %865 : vector<2x64xf32>
    %cst_198 = arith.constant 1.000000e+00 : f32
    %867 = vector.broadcast %cst_198 : f32 to vector<2x64xf32>
    %868 = arith.addf %867, %866 : vector<2x64xf32>
    %869 = arith.divf %867, %868 : vector<2x64xf32>
    %870 = vector.extract_strided_slice %869 {offsets = [0, 0], sizes = [2, 32], strides = [1, 1]} : vector<2x64xf32> to vector<2x32xf32>
    %871 = vector.extract_strided_slice %869 {offsets = [0, 32], sizes = [2, 32], strides = [1, 1]} : vector<2x64xf32> to vector<2x32xf32>
    %872 = vector.extract_strided_slice %858 {offsets = [0, 64], sizes = [2, 32], strides = [1, 1]} : vector<2x96xf32> to vector<2x32xf32>
    %873 = vector.extract_strided_slice %861 {offsets = [0, 64], sizes = [2, 32], strides = [1, 1]} : vector<2x96xf32> to vector<2x32xf32>
    %874 = arith.mulf %870, %873 : vector<2x32xf32>
    %875 = arith.addf %872, %874 : vector<2x32xf32>
    %876 = math.tanh %875 : vector<2x32xf32>
    %877 = arith.subf %857, %876 : vector<2x32xf32>
    %878 = arith.mulf %871, %877 : vector<2x32xf32>
    %879 = arith.addf %876, %878 : vector<2x32xf32>
    %880 = vector.extract_strided_slice %218 {offsets = [60, 0], sizes = [2, 96], strides = [1, 1]} : vector<96x96xf32> to vector<2x96xf32>
    %cst_199 = arith.constant dense<0.000000e+00> : vector<2x96xf32>
    %881 = tpu.matmul %879, %33, %cst_199 {dimension_numbers = #tpu.dot_dimension_numbers<[1], [0], [0], [1], [0, 0, 1, 1], [], []>} : vector<2x32xf32>, vector<32x96xf32>, vector<2x96xf32> -> vector<2x96xf32>
    %882 = vector.broadcast %34 : vector<1x96xf32> to vector<2x96xf32>
    %883 = arith.addf %881, %882 : vector<2x96xf32>
    %884 = vector.extract_strided_slice %880 {offsets = [0, 0], sizes = [2, 64], strides = [1, 1]} : vector<2x96xf32> to vector<2x64xf32>
    %885 = vector.extract_strided_slice %883 {offsets = [0, 0], sizes = [2, 64], strides = [1, 1]} : vector<2x96xf32> to vector<2x64xf32>
    %886 = arith.addf %884, %885 : vector<2x64xf32>
    %887 = arith.negf %886 : vector<2x64xf32>
    %888 = math.exp %887 : vector<2x64xf32>
    %cst_200 = arith.constant 1.000000e+00 : f32
    %889 = vector.broadcast %cst_200 : f32 to vector<2x64xf32>
    %890 = arith.addf %889, %888 : vector<2x64xf32>
    %891 = arith.divf %889, %890 : vector<2x64xf32>
    %892 = vector.extract_strided_slice %891 {offsets = [0, 0], sizes = [2, 32], strides = [1, 1]} : vector<2x64xf32> to vector<2x32xf32>
    %893 = vector.extract_strided_slice %891 {offsets = [0, 32], sizes = [2, 32], strides = [1, 1]} : vector<2x64xf32> to vector<2x32xf32>
    %894 = vector.extract_strided_slice %880 {offsets = [0, 64], sizes = [2, 32], strides = [1, 1]} : vector<2x96xf32> to vector<2x32xf32>
    %895 = vector.extract_strided_slice %883 {offsets = [0, 64], sizes = [2, 32], strides = [1, 1]} : vector<2x96xf32> to vector<2x32xf32>
    %896 = arith.mulf %892, %895 : vector<2x32xf32>
    %897 = arith.addf %894, %896 : vector<2x32xf32>
    %898 = math.tanh %897 : vector<2x32xf32>
    %899 = arith.subf %879, %898 : vector<2x32xf32>
    %900 = arith.mulf %893, %899 : vector<2x32xf32>
    %901 = arith.addf %898, %900 : vector<2x32xf32>
    %902 = vector.extract_strided_slice %218 {offsets = [62, 0], sizes = [2, 96], strides = [1, 1]} : vector<96x96xf32> to vector<2x96xf32>
    %cst_201 = arith.constant dense<0.000000e+00> : vector<2x96xf32>
    %903 = tpu.matmul %901, %33, %cst_201 {dimension_numbers = #tpu.dot_dimension_numbers<[1], [0], [0], [1], [0, 0, 1, 1], [], []>} : vector<2x32xf32>, vector<32x96xf32>, vector<2x96xf32> -> vector<2x96xf32>
    %904 = vector.broadcast %34 : vector<1x96xf32> to vector<2x96xf32>
    %905 = arith.addf %903, %904 : vector<2x96xf32>
    %906 = vector.extract_strided_slice %902 {offsets = [0, 0], sizes = [2, 64], strides = [1, 1]} : vector<2x96xf32> to vector<2x64xf32>
    %907 = vector.extract_strided_slice %905 {offsets = [0, 0], sizes = [2, 64], strides = [1, 1]} : vector<2x96xf32> to vector<2x64xf32>
    %908 = arith.addf %906, %907 : vector<2x64xf32>
    %909 = arith.negf %908 : vector<2x64xf32>
    %910 = math.exp %909 : vector<2x64xf32>
    %cst_202 = arith.constant 1.000000e+00 : f32
    %911 = vector.broadcast %cst_202 : f32 to vector<2x64xf32>
    %912 = arith.addf %911, %910 : vector<2x64xf32>
    %913 = arith.divf %911, %912 : vector<2x64xf32>
    %914 = vector.extract_strided_slice %913 {offsets = [0, 0], sizes = [2, 32], strides = [1, 1]} : vector<2x64xf32> to vector<2x32xf32>
    %915 = vector.extract_strided_slice %913 {offsets = [0, 32], sizes = [2, 32], strides = [1, 1]} : vector<2x64xf32> to vector<2x32xf32>
    %916 = vector.extract_strided_slice %902 {offsets = [0, 64], sizes = [2, 32], strides = [1, 1]} : vector<2x96xf32> to vector<2x32xf32>
    %917 = vector.extract_strided_slice %905 {offsets = [0, 64], sizes = [2, 32], strides = [1, 1]} : vector<2x96xf32> to vector<2x32xf32>
    %918 = arith.mulf %914, %917 : vector<2x32xf32>
    %919 = arith.addf %916, %918 : vector<2x32xf32>
    %920 = math.tanh %919 : vector<2x32xf32>
    %921 = arith.subf %901, %920 : vector<2x32xf32>
    %922 = arith.mulf %915, %921 : vector<2x32xf32>
    %923 = arith.addf %920, %922 : vector<2x32xf32>
    %924 = vector.extract_strided_slice %218 {offsets = [64, 0], sizes = [2, 96], strides = [1, 1]} : vector<96x96xf32> to vector<2x96xf32>
    %cst_203 = arith.constant dense<0.000000e+00> : vector<2x96xf32>
    %925 = tpu.matmul %923, %33, %cst_203 {dimension_numbers = #tpu.dot_dimension_numbers<[1], [0], [0], [1], [0, 0, 1, 1], [], []>} : vector<2x32xf32>, vector<32x96xf32>, vector<2x96xf32> -> vector<2x96xf32>
    %926 = vector.broadcast %34 : vector<1x96xf32> to vector<2x96xf32>
    %927 = arith.addf %925, %926 : vector<2x96xf32>
    %928 = vector.extract_strided_slice %924 {offsets = [0, 0], sizes = [2, 64], strides = [1, 1]} : vector<2x96xf32> to vector<2x64xf32>
    %929 = vector.extract_strided_slice %927 {offsets = [0, 0], sizes = [2, 64], strides = [1, 1]} : vector<2x96xf32> to vector<2x64xf32>
    %930 = arith.addf %928, %929 : vector<2x64xf32>
    %931 = arith.negf %930 : vector<2x64xf32>
    %932 = math.exp %931 : vector<2x64xf32>
    %cst_204 = arith.constant 1.000000e+00 : f32
    %933 = vector.broadcast %cst_204 : f32 to vector<2x64xf32>
    %934 = arith.addf %933, %932 : vector<2x64xf32>
    %935 = arith.divf %933, %934 : vector<2x64xf32>
    %936 = vector.extract_strided_slice %935 {offsets = [0, 0], sizes = [2, 32], strides = [1, 1]} : vector<2x64xf32> to vector<2x32xf32>
    %937 = vector.extract_strided_slice %935 {offsets = [0, 32], sizes = [2, 32], strides = [1, 1]} : vector<2x64xf32> to vector<2x32xf32>
    %938 = vector.extract_strided_slice %924 {offsets = [0, 64], sizes = [2, 32], strides = [1, 1]} : vector<2x96xf32> to vector<2x32xf32>
    %939 = vector.extract_strided_slice %927 {offsets = [0, 64], sizes = [2, 32], strides = [1, 1]} : vector<2x96xf32> to vector<2x32xf32>
    %940 = arith.mulf %936, %939 : vector<2x32xf32>
    %941 = arith.addf %938, %940 : vector<2x32xf32>
    %942 = math.tanh %941 : vector<2x32xf32>
    %943 = arith.subf %923, %942 : vector<2x32xf32>
    %944 = arith.mulf %937, %943 : vector<2x32xf32>
    %945 = arith.addf %942, %944 : vector<2x32xf32>
    %946 = vector.extract_strided_slice %218 {offsets = [66, 0], sizes = [2, 96], strides = [1, 1]} : vector<96x96xf32> to vector<2x96xf32>
    %cst_205 = arith.constant dense<0.000000e+00> : vector<2x96xf32>
    %947 = tpu.matmul %945, %33, %cst_205 {dimension_numbers = #tpu.dot_dimension_numbers<[1], [0], [0], [1], [0, 0, 1, 1], [], []>} : vector<2x32xf32>, vector<32x96xf32>, vector<2x96xf32> -> vector<2x96xf32>
    %948 = vector.broadcast %34 : vector<1x96xf32> to vector<2x96xf32>
    %949 = arith.addf %947, %948 : vector<2x96xf32>
    %950 = vector.extract_strided_slice %946 {offsets = [0, 0], sizes = [2, 64], strides = [1, 1]} : vector<2x96xf32> to vector<2x64xf32>
    %951 = vector.extract_strided_slice %949 {offsets = [0, 0], sizes = [2, 64], strides = [1, 1]} : vector<2x96xf32> to vector<2x64xf32>
    %952 = arith.addf %950, %951 : vector<2x64xf32>
    %953 = arith.negf %952 : vector<2x64xf32>
    %954 = math.exp %953 : vector<2x64xf32>
    %cst_206 = arith.constant 1.000000e+00 : f32
    %955 = vector.broadcast %cst_206 : f32 to vector<2x64xf32>
    %956 = arith.addf %955, %954 : vector<2x64xf32>
    %957 = arith.divf %955, %956 : vector<2x64xf32>
    %958 = vector.extract_strided_slice %957 {offsets = [0, 0], sizes = [2, 32], strides = [1, 1]} : vector<2x64xf32> to vector<2x32xf32>
    %959 = vector.extract_strided_slice %957 {offsets = [0, 32], sizes = [2, 32], strides = [1, 1]} : vector<2x64xf32> to vector<2x32xf32>
    %960 = vector.extract_strided_slice %946 {offsets = [0, 64], sizes = [2, 32], strides = [1, 1]} : vector<2x96xf32> to vector<2x32xf32>
    %961 = vector.extract_strided_slice %949 {offsets = [0, 64], sizes = [2, 32], strides = [1, 1]} : vector<2x96xf32> to vector<2x32xf32>
    %962 = arith.mulf %958, %961 : vector<2x32xf32>
    %963 = arith.addf %960, %962 : vector<2x32xf32>
    %964 = math.tanh %963 : vector<2x32xf32>
    %965 = arith.subf %945, %964 : vector<2x32xf32>
    %966 = arith.mulf %959, %965 : vector<2x32xf32>
    %967 = arith.addf %964, %966 : vector<2x32xf32>
    %968 = vector.extract_strided_slice %218 {offsets = [68, 0], sizes = [2, 96], strides = [1, 1]} : vector<96x96xf32> to vector<2x96xf32>
    %cst_207 = arith.constant dense<0.000000e+00> : vector<2x96xf32>
    %969 = tpu.matmul %967, %33, %cst_207 {dimension_numbers = #tpu.dot_dimension_numbers<[1], [0], [0], [1], [0, 0, 1, 1], [], []>} : vector<2x32xf32>, vector<32x96xf32>, vector<2x96xf32> -> vector<2x96xf32>
    %970 = vector.broadcast %34 : vector<1x96xf32> to vector<2x96xf32>
    %971 = arith.addf %969, %970 : vector<2x96xf32>
    %972 = vector.extract_strided_slice %968 {offsets = [0, 0], sizes = [2, 64], strides = [1, 1]} : vector<2x96xf32> to vector<2x64xf32>
    %973 = vector.extract_strided_slice %971 {offsets = [0, 0], sizes = [2, 64], strides = [1, 1]} : vector<2x96xf32> to vector<2x64xf32>
    %974 = arith.addf %972, %973 : vector<2x64xf32>
    %975 = arith.negf %974 : vector<2x64xf32>
    %976 = math.exp %975 : vector<2x64xf32>
    %cst_208 = arith.constant 1.000000e+00 : f32
    %977 = vector.broadcast %cst_208 : f32 to vector<2x64xf32>
    %978 = arith.addf %977, %976 : vector<2x64xf32>
    %979 = arith.divf %977, %978 : vector<2x64xf32>
    %980 = vector.extract_strided_slice %979 {offsets = [0, 0], sizes = [2, 32], strides = [1, 1]} : vector<2x64xf32> to vector<2x32xf32>
    %981 = vector.extract_strided_slice %979 {offsets = [0, 32], sizes = [2, 32], strides = [1, 1]} : vector<2x64xf32> to vector<2x32xf32>
    %982 = vector.extract_strided_slice %968 {offsets = [0, 64], sizes = [2, 32], strides = [1, 1]} : vector<2x96xf32> to vector<2x32xf32>
    %983 = vector.extract_strided_slice %971 {offsets = [0, 64], sizes = [2, 32], strides = [1, 1]} : vector<2x96xf32> to vector<2x32xf32>
    %984 = arith.mulf %980, %983 : vector<2x32xf32>
    %985 = arith.addf %982, %984 : vector<2x32xf32>
    %986 = math.tanh %985 : vector<2x32xf32>
    %987 = arith.subf %967, %986 : vector<2x32xf32>
    %988 = arith.mulf %981, %987 : vector<2x32xf32>
    %989 = arith.addf %986, %988 : vector<2x32xf32>
    %990 = vector.extract_strided_slice %218 {offsets = [70, 0], sizes = [2, 96], strides = [1, 1]} : vector<96x96xf32> to vector<2x96xf32>
    %cst_209 = arith.constant dense<0.000000e+00> : vector<2x96xf32>
    %991 = tpu.matmul %989, %33, %cst_209 {dimension_numbers = #tpu.dot_dimension_numbers<[1], [0], [0], [1], [0, 0, 1, 1], [], []>} : vector<2x32xf32>, vector<32x96xf32>, vector<2x96xf32> -> vector<2x96xf32>
    %992 = vector.broadcast %34 : vector<1x96xf32> to vector<2x96xf32>
    %993 = arith.addf %991, %992 : vector<2x96xf32>
    %994 = vector.extract_strided_slice %990 {offsets = [0, 0], sizes = [2, 64], strides = [1, 1]} : vector<2x96xf32> to vector<2x64xf32>
    %995 = vector.extract_strided_slice %993 {offsets = [0, 0], sizes = [2, 64], strides = [1, 1]} : vector<2x96xf32> to vector<2x64xf32>
    %996 = arith.addf %994, %995 : vector<2x64xf32>
    %997 = arith.negf %996 : vector<2x64xf32>
    %998 = math.exp %997 : vector<2x64xf32>
    %cst_210 = arith.constant 1.000000e+00 : f32
    %999 = vector.broadcast %cst_210 : f32 to vector<2x64xf32>
    %1000 = arith.addf %999, %998 : vector<2x64xf32>
    %1001 = arith.divf %999, %1000 : vector<2x64xf32>
    %1002 = vector.extract_strided_slice %1001 {offsets = [0, 0], sizes = [2, 32], strides = [1, 1]} : vector<2x64xf32> to vector<2x32xf32>
    %1003 = vector.extract_strided_slice %1001 {offsets = [0, 32], sizes = [2, 32], strides = [1, 1]} : vector<2x64xf32> to vector<2x32xf32>
    %1004 = vector.extract_strided_slice %990 {offsets = [0, 64], sizes = [2, 32], strides = [1, 1]} : vector<2x96xf32> to vector<2x32xf32>
    %1005 = vector.extract_strided_slice %993 {offsets = [0, 64], sizes = [2, 32], strides = [1, 1]} : vector<2x96xf32> to vector<2x32xf32>
    %1006 = arith.mulf %1002, %1005 : vector<2x32xf32>
    %1007 = arith.addf %1004, %1006 : vector<2x32xf32>
    %1008 = math.tanh %1007 : vector<2x32xf32>
    %1009 = arith.subf %989, %1008 : vector<2x32xf32>
    %1010 = arith.mulf %1003, %1009 : vector<2x32xf32>
    %1011 = arith.addf %1008, %1010 : vector<2x32xf32>
    %1012 = vector.extract_strided_slice %218 {offsets = [72, 0], sizes = [2, 96], strides = [1, 1]} : vector<96x96xf32> to vector<2x96xf32>
    %cst_211 = arith.constant dense<0.000000e+00> : vector<2x96xf32>
    %1013 = tpu.matmul %1011, %33, %cst_211 {dimension_numbers = #tpu.dot_dimension_numbers<[1], [0], [0], [1], [0, 0, 1, 1], [], []>} : vector<2x32xf32>, vector<32x96xf32>, vector<2x96xf32> -> vector<2x96xf32>
    %1014 = vector.broadcast %34 : vector<1x96xf32> to vector<2x96xf32>
    %1015 = arith.addf %1013, %1014 : vector<2x96xf32>
    %1016 = vector.extract_strided_slice %1012 {offsets = [0, 0], sizes = [2, 64], strides = [1, 1]} : vector<2x96xf32> to vector<2x64xf32>
    %1017 = vector.extract_strided_slice %1015 {offsets = [0, 0], sizes = [2, 64], strides = [1, 1]} : vector<2x96xf32> to vector<2x64xf32>
    %1018 = arith.addf %1016, %1017 : vector<2x64xf32>
    %1019 = arith.negf %1018 : vector<2x64xf32>
    %1020 = math.exp %1019 : vector<2x64xf32>
    %cst_212 = arith.constant 1.000000e+00 : f32
    %1021 = vector.broadcast %cst_212 : f32 to vector<2x64xf32>
    %1022 = arith.addf %1021, %1020 : vector<2x64xf32>
    %1023 = arith.divf %1021, %1022 : vector<2x64xf32>
    %1024 = vector.extract_strided_slice %1023 {offsets = [0, 0], sizes = [2, 32], strides = [1, 1]} : vector<2x64xf32> to vector<2x32xf32>
    %1025 = vector.extract_strided_slice %1023 {offsets = [0, 32], sizes = [2, 32], strides = [1, 1]} : vector<2x64xf32> to vector<2x32xf32>
    %1026 = vector.extract_strided_slice %1012 {offsets = [0, 64], sizes = [2, 32], strides = [1, 1]} : vector<2x96xf32> to vector<2x32xf32>
    %1027 = vector.extract_strided_slice %1015 {offsets = [0, 64], sizes = [2, 32], strides = [1, 1]} : vector<2x96xf32> to vector<2x32xf32>
    %1028 = arith.mulf %1024, %1027 : vector<2x32xf32>
    %1029 = arith.addf %1026, %1028 : vector<2x32xf32>
    %1030 = math.tanh %1029 : vector<2x32xf32>
    %1031 = arith.subf %1011, %1030 : vector<2x32xf32>
    %1032 = arith.mulf %1025, %1031 : vector<2x32xf32>
    %1033 = arith.addf %1030, %1032 : vector<2x32xf32>
    %1034 = vector.extract_strided_slice %218 {offsets = [74, 0], sizes = [2, 96], strides = [1, 1]} : vector<96x96xf32> to vector<2x96xf32>
    %cst_213 = arith.constant dense<0.000000e+00> : vector<2x96xf32>
    %1035 = tpu.matmul %1033, %33, %cst_213 {dimension_numbers = #tpu.dot_dimension_numbers<[1], [0], [0], [1], [0, 0, 1, 1], [], []>} : vector<2x32xf32>, vector<32x96xf32>, vector<2x96xf32> -> vector<2x96xf32>
    %1036 = vector.broadcast %34 : vector<1x96xf32> to vector<2x96xf32>
    %1037 = arith.addf %1035, %1036 : vector<2x96xf32>
    %1038 = vector.extract_strided_slice %1034 {offsets = [0, 0], sizes = [2, 64], strides = [1, 1]} : vector<2x96xf32> to vector<2x64xf32>
    %1039 = vector.extract_strided_slice %1037 {offsets = [0, 0], sizes = [2, 64], strides = [1, 1]} : vector<2x96xf32> to vector<2x64xf32>
    %1040 = arith.addf %1038, %1039 : vector<2x64xf32>
    %1041 = arith.negf %1040 : vector<2x64xf32>
    %1042 = math.exp %1041 : vector<2x64xf32>
    %cst_214 = arith.constant 1.000000e+00 : f32
    %1043 = vector.broadcast %cst_214 : f32 to vector<2x64xf32>
    %1044 = arith.addf %1043, %1042 : vector<2x64xf32>
    %1045 = arith.divf %1043, %1044 : vector<2x64xf32>
    %1046 = vector.extract_strided_slice %1045 {offsets = [0, 0], sizes = [2, 32], strides = [1, 1]} : vector<2x64xf32> to vector<2x32xf32>
    %1047 = vector.extract_strided_slice %1045 {offsets = [0, 32], sizes = [2, 32], strides = [1, 1]} : vector<2x64xf32> to vector<2x32xf32>
    %1048 = vector.extract_strided_slice %1034 {offsets = [0, 64], sizes = [2, 32], strides = [1, 1]} : vector<2x96xf32> to vector<2x32xf32>
    %1049 = vector.extract_strided_slice %1037 {offsets = [0, 64], sizes = [2, 32], strides = [1, 1]} : vector<2x96xf32> to vector<2x32xf32>
    %1050 = arith.mulf %1046, %1049 : vector<2x32xf32>
    %1051 = arith.addf %1048, %1050 : vector<2x32xf32>
    %1052 = math.tanh %1051 : vector<2x32xf32>
    %1053 = arith.subf %1033, %1052 : vector<2x32xf32>
    %1054 = arith.mulf %1047, %1053 : vector<2x32xf32>
    %1055 = arith.addf %1052, %1054 : vector<2x32xf32>
    %1056 = vector.extract_strided_slice %218 {offsets = [76, 0], sizes = [2, 96], strides = [1, 1]} : vector<96x96xf32> to vector<2x96xf32>
    %cst_215 = arith.constant dense<0.000000e+00> : vector<2x96xf32>
    %1057 = tpu.matmul %1055, %33, %cst_215 {dimension_numbers = #tpu.dot_dimension_numbers<[1], [0], [0], [1], [0, 0, 1, 1], [], []>} : vector<2x32xf32>, vector<32x96xf32>, vector<2x96xf32> -> vector<2x96xf32>
    %1058 = vector.broadcast %34 : vector<1x96xf32> to vector<2x96xf32>
    %1059 = arith.addf %1057, %1058 : vector<2x96xf32>
    %1060 = vector.extract_strided_slice %1056 {offsets = [0, 0], sizes = [2, 64], strides = [1, 1]} : vector<2x96xf32> to vector<2x64xf32>
    %1061 = vector.extract_strided_slice %1059 {offsets = [0, 0], sizes = [2, 64], strides = [1, 1]} : vector<2x96xf32> to vector<2x64xf32>
    %1062 = arith.addf %1060, %1061 : vector<2x64xf32>
    %1063 = arith.negf %1062 : vector<2x64xf32>
    %1064 = math.exp %1063 : vector<2x64xf32>
    %cst_216 = arith.constant 1.000000e+00 : f32
    %1065 = vector.broadcast %cst_216 : f32 to vector<2x64xf32>
    %1066 = arith.addf %1065, %1064 : vector<2x64xf32>
    %1067 = arith.divf %1065, %1066 : vector<2x64xf32>
    %1068 = vector.extract_strided_slice %1067 {offsets = [0, 0], sizes = [2, 32], strides = [1, 1]} : vector<2x64xf32> to vector<2x32xf32>
    %1069 = vector.extract_strided_slice %1067 {offsets = [0, 32], sizes = [2, 32], strides = [1, 1]} : vector<2x64xf32> to vector<2x32xf32>
    %1070 = vector.extract_strided_slice %1056 {offsets = [0, 64], sizes = [2, 32], strides = [1, 1]} : vector<2x96xf32> to vector<2x32xf32>
    %1071 = vector.extract_strided_slice %1059 {offsets = [0, 64], sizes = [2, 32], strides = [1, 1]} : vector<2x96xf32> to vector<2x32xf32>
    %1072 = arith.mulf %1068, %1071 : vector<2x32xf32>
    %1073 = arith.addf %1070, %1072 : vector<2x32xf32>
    %1074 = math.tanh %1073 : vector<2x32xf32>
    %1075 = arith.subf %1055, %1074 : vector<2x32xf32>
    %1076 = arith.mulf %1069, %1075 : vector<2x32xf32>
    %1077 = arith.addf %1074, %1076 : vector<2x32xf32>
    %1078 = vector.extract_strided_slice %218 {offsets = [78, 0], sizes = [2, 96], strides = [1, 1]} : vector<96x96xf32> to vector<2x96xf32>
    %cst_217 = arith.constant dense<0.000000e+00> : vector<2x96xf32>
    %1079 = tpu.matmul %1077, %33, %cst_217 {dimension_numbers = #tpu.dot_dimension_numbers<[1], [0], [0], [1], [0, 0, 1, 1], [], []>} : vector<2x32xf32>, vector<32x96xf32>, vector<2x96xf32> -> vector<2x96xf32>
    %1080 = vector.broadcast %34 : vector<1x96xf32> to vector<2x96xf32>
    %1081 = arith.addf %1079, %1080 : vector<2x96xf32>
    %1082 = vector.extract_strided_slice %1078 {offsets = [0, 0], sizes = [2, 64], strides = [1, 1]} : vector<2x96xf32> to vector<2x64xf32>
    %1083 = vector.extract_strided_slice %1081 {offsets = [0, 0], sizes = [2, 64], strides = [1, 1]} : vector<2x96xf32> to vector<2x64xf32>
    %1084 = arith.addf %1082, %1083 : vector<2x64xf32>
    %1085 = arith.negf %1084 : vector<2x64xf32>
    %1086 = math.exp %1085 : vector<2x64xf32>
    %cst_218 = arith.constant 1.000000e+00 : f32
    %1087 = vector.broadcast %cst_218 : f32 to vector<2x64xf32>
    %1088 = arith.addf %1087, %1086 : vector<2x64xf32>
    %1089 = arith.divf %1087, %1088 : vector<2x64xf32>
    %1090 = vector.extract_strided_slice %1089 {offsets = [0, 0], sizes = [2, 32], strides = [1, 1]} : vector<2x64xf32> to vector<2x32xf32>
    %1091 = vector.extract_strided_slice %1089 {offsets = [0, 32], sizes = [2, 32], strides = [1, 1]} : vector<2x64xf32> to vector<2x32xf32>
    %1092 = vector.extract_strided_slice %1078 {offsets = [0, 64], sizes = [2, 32], strides = [1, 1]} : vector<2x96xf32> to vector<2x32xf32>
    %1093 = vector.extract_strided_slice %1081 {offsets = [0, 64], sizes = [2, 32], strides = [1, 1]} : vector<2x96xf32> to vector<2x32xf32>
    %1094 = arith.mulf %1090, %1093 : vector<2x32xf32>
    %1095 = arith.addf %1092, %1094 : vector<2x32xf32>
    %1096 = math.tanh %1095 : vector<2x32xf32>
    %1097 = arith.subf %1077, %1096 : vector<2x32xf32>
    %1098 = arith.mulf %1091, %1097 : vector<2x32xf32>
    %1099 = arith.addf %1096, %1098 : vector<2x32xf32>
    %1100 = vector.extract_strided_slice %218 {offsets = [80, 0], sizes = [2, 96], strides = [1, 1]} : vector<96x96xf32> to vector<2x96xf32>
    %cst_219 = arith.constant dense<0.000000e+00> : vector<2x96xf32>
    %1101 = tpu.matmul %1099, %33, %cst_219 {dimension_numbers = #tpu.dot_dimension_numbers<[1], [0], [0], [1], [0, 0, 1, 1], [], []>} : vector<2x32xf32>, vector<32x96xf32>, vector<2x96xf32> -> vector<2x96xf32>
    %1102 = vector.broadcast %34 : vector<1x96xf32> to vector<2x96xf32>
    %1103 = arith.addf %1101, %1102 : vector<2x96xf32>
    %1104 = vector.extract_strided_slice %1100 {offsets = [0, 0], sizes = [2, 64], strides = [1, 1]} : vector<2x96xf32> to vector<2x64xf32>
    %1105 = vector.extract_strided_slice %1103 {offsets = [0, 0], sizes = [2, 64], strides = [1, 1]} : vector<2x96xf32> to vector<2x64xf32>
    %1106 = arith.addf %1104, %1105 : vector<2x64xf32>
    %1107 = arith.negf %1106 : vector<2x64xf32>
    %1108 = math.exp %1107 : vector<2x64xf32>
    %cst_220 = arith.constant 1.000000e+00 : f32
    %1109 = vector.broadcast %cst_220 : f32 to vector<2x64xf32>
    %1110 = arith.addf %1109, %1108 : vector<2x64xf32>
    %1111 = arith.divf %1109, %1110 : vector<2x64xf32>
    %1112 = vector.extract_strided_slice %1111 {offsets = [0, 0], sizes = [2, 32], strides = [1, 1]} : vector<2x64xf32> to vector<2x32xf32>
    %1113 = vector.extract_strided_slice %1111 {offsets = [0, 32], sizes = [2, 32], strides = [1, 1]} : vector<2x64xf32> to vector<2x32xf32>
    %1114 = vector.extract_strided_slice %1100 {offsets = [0, 64], sizes = [2, 32], strides = [1, 1]} : vector<2x96xf32> to vector<2x32xf32>
    %1115 = vector.extract_strided_slice %1103 {offsets = [0, 64], sizes = [2, 32], strides = [1, 1]} : vector<2x96xf32> to vector<2x32xf32>
    %1116 = arith.mulf %1112, %1115 : vector<2x32xf32>
    %1117 = arith.addf %1114, %1116 : vector<2x32xf32>
    %1118 = math.tanh %1117 : vector<2x32xf32>
    %1119 = arith.subf %1099, %1118 : vector<2x32xf32>
    %1120 = arith.mulf %1113, %1119 : vector<2x32xf32>
    %1121 = arith.addf %1118, %1120 : vector<2x32xf32>
    %1122 = vector.extract_strided_slice %218 {offsets = [82, 0], sizes = [2, 96], strides = [1, 1]} : vector<96x96xf32> to vector<2x96xf32>
    %cst_221 = arith.constant dense<0.000000e+00> : vector<2x96xf32>
    %1123 = tpu.matmul %1121, %33, %cst_221 {dimension_numbers = #tpu.dot_dimension_numbers<[1], [0], [0], [1], [0, 0, 1, 1], [], []>} : vector<2x32xf32>, vector<32x96xf32>, vector<2x96xf32> -> vector<2x96xf32>
    %1124 = vector.broadcast %34 : vector<1x96xf32> to vector<2x96xf32>
    %1125 = arith.addf %1123, %1124 : vector<2x96xf32>
    %1126 = vector.extract_strided_slice %1122 {offsets = [0, 0], sizes = [2, 64], strides = [1, 1]} : vector<2x96xf32> to vector<2x64xf32>
    %1127 = vector.extract_strided_slice %1125 {offsets = [0, 0], sizes = [2, 64], strides = [1, 1]} : vector<2x96xf32> to vector<2x64xf32>
    %1128 = arith.addf %1126, %1127 : vector<2x64xf32>
    %1129 = arith.negf %1128 : vector<2x64xf32>
    %1130 = math.exp %1129 : vector<2x64xf32>
    %cst_222 = arith.constant 1.000000e+00 : f32
    %1131 = vector.broadcast %cst_222 : f32 to vector<2x64xf32>
    %1132 = arith.addf %1131, %1130 : vector<2x64xf32>
    %1133 = arith.divf %1131, %1132 : vector<2x64xf32>
    %1134 = vector.extract_strided_slice %1133 {offsets = [0, 0], sizes = [2, 32], strides = [1, 1]} : vector<2x64xf32> to vector<2x32xf32>
    %1135 = vector.extract_strided_slice %1133 {offsets = [0, 32], sizes = [2, 32], strides = [1, 1]} : vector<2x64xf32> to vector<2x32xf32>
    %1136 = vector.extract_strided_slice %1122 {offsets = [0, 64], sizes = [2, 32], strides = [1, 1]} : vector<2x96xf32> to vector<2x32xf32>
    %1137 = vector.extract_strided_slice %1125 {offsets = [0, 64], sizes = [2, 32], strides = [1, 1]} : vector<2x96xf32> to vector<2x32xf32>
    %1138 = arith.mulf %1134, %1137 : vector<2x32xf32>
    %1139 = arith.addf %1136, %1138 : vector<2x32xf32>
    %1140 = math.tanh %1139 : vector<2x32xf32>
    %1141 = arith.subf %1121, %1140 : vector<2x32xf32>
    %1142 = arith.mulf %1135, %1141 : vector<2x32xf32>
    %1143 = arith.addf %1140, %1142 : vector<2x32xf32>
    %1144 = vector.extract_strided_slice %218 {offsets = [84, 0], sizes = [2, 96], strides = [1, 1]} : vector<96x96xf32> to vector<2x96xf32>
    %cst_223 = arith.constant dense<0.000000e+00> : vector<2x96xf32>
    %1145 = tpu.matmul %1143, %33, %cst_223 {dimension_numbers = #tpu.dot_dimension_numbers<[1], [0], [0], [1], [0, 0, 1, 1], [], []>} : vector<2x32xf32>, vector<32x96xf32>, vector<2x96xf32> -> vector<2x96xf32>
    %1146 = vector.broadcast %34 : vector<1x96xf32> to vector<2x96xf32>
    %1147 = arith.addf %1145, %1146 : vector<2x96xf32>
    %1148 = vector.extract_strided_slice %1144 {offsets = [0, 0], sizes = [2, 64], strides = [1, 1]} : vector<2x96xf32> to vector<2x64xf32>
    %1149 = vector.extract_strided_slice %1147 {offsets = [0, 0], sizes = [2, 64], strides = [1, 1]} : vector<2x96xf32> to vector<2x64xf32>
    %1150 = arith.addf %1148, %1149 : vector<2x64xf32>
    %1151 = arith.negf %1150 : vector<2x64xf32>
    %1152 = math.exp %1151 : vector<2x64xf32>
    %cst_224 = arith.constant 1.000000e+00 : f32
    %1153 = vector.broadcast %cst_224 : f32 to vector<2x64xf32>
    %1154 = arith.addf %1153, %1152 : vector<2x64xf32>
    %1155 = arith.divf %1153, %1154 : vector<2x64xf32>
    %1156 = vector.extract_strided_slice %1155 {offsets = [0, 0], sizes = [2, 32], strides = [1, 1]} : vector<2x64xf32> to vector<2x32xf32>
    %1157 = vector.extract_strided_slice %1155 {offsets = [0, 32], sizes = [2, 32], strides = [1, 1]} : vector<2x64xf32> to vector<2x32xf32>
    %1158 = vector.extract_strided_slice %1144 {offsets = [0, 64], sizes = [2, 32], strides = [1, 1]} : vector<2x96xf32> to vector<2x32xf32>
    %1159 = vector.extract_strided_slice %1147 {offsets = [0, 64], sizes = [2, 32], strides = [1, 1]} : vector<2x96xf32> to vector<2x32xf32>
    %1160 = arith.mulf %1156, %1159 : vector<2x32xf32>
    %1161 = arith.addf %1158, %1160 : vector<2x32xf32>
    %1162 = math.tanh %1161 : vector<2x32xf32>
    %1163 = arith.subf %1143, %1162 : vector<2x32xf32>
    %1164 = arith.mulf %1157, %1163 : vector<2x32xf32>
    %1165 = arith.addf %1162, %1164 : vector<2x32xf32>
    %1166 = vector.extract_strided_slice %218 {offsets = [86, 0], sizes = [2, 96], strides = [1, 1]} : vector<96x96xf32> to vector<2x96xf32>
    %cst_225 = arith.constant dense<0.000000e+00> : vector<2x96xf32>
    %1167 = tpu.matmul %1165, %33, %cst_225 {dimension_numbers = #tpu.dot_dimension_numbers<[1], [0], [0], [1], [0, 0, 1, 1], [], []>} : vector<2x32xf32>, vector<32x96xf32>, vector<2x96xf32> -> vector<2x96xf32>
    %1168 = vector.broadcast %34 : vector<1x96xf32> to vector<2x96xf32>
    %1169 = arith.addf %1167, %1168 : vector<2x96xf32>
    %1170 = vector.extract_strided_slice %1166 {offsets = [0, 0], sizes = [2, 64], strides = [1, 1]} : vector<2x96xf32> to vector<2x64xf32>
    %1171 = vector.extract_strided_slice %1169 {offsets = [0, 0], sizes = [2, 64], strides = [1, 1]} : vector<2x96xf32> to vector<2x64xf32>
    %1172 = arith.addf %1170, %1171 : vector<2x64xf32>
    %1173 = arith.negf %1172 : vector<2x64xf32>
    %1174 = math.exp %1173 : vector<2x64xf32>
    %cst_226 = arith.constant 1.000000e+00 : f32
    %1175 = vector.broadcast %cst_226 : f32 to vector<2x64xf32>
    %1176 = arith.addf %1175, %1174 : vector<2x64xf32>
    %1177 = arith.divf %1175, %1176 : vector<2x64xf32>
    %1178 = vector.extract_strided_slice %1177 {offsets = [0, 0], sizes = [2, 32], strides = [1, 1]} : vector<2x64xf32> to vector<2x32xf32>
    %1179 = vector.extract_strided_slice %1177 {offsets = [0, 32], sizes = [2, 32], strides = [1, 1]} : vector<2x64xf32> to vector<2x32xf32>
    %1180 = vector.extract_strided_slice %1166 {offsets = [0, 64], sizes = [2, 32], strides = [1, 1]} : vector<2x96xf32> to vector<2x32xf32>
    %1181 = vector.extract_strided_slice %1169 {offsets = [0, 64], sizes = [2, 32], strides = [1, 1]} : vector<2x96xf32> to vector<2x32xf32>
    %1182 = arith.mulf %1178, %1181 : vector<2x32xf32>
    %1183 = arith.addf %1180, %1182 : vector<2x32xf32>
    %1184 = math.tanh %1183 : vector<2x32xf32>
    %1185 = arith.subf %1165, %1184 : vector<2x32xf32>
    %1186 = arith.mulf %1179, %1185 : vector<2x32xf32>
    %1187 = arith.addf %1184, %1186 : vector<2x32xf32>
    %1188 = vector.extract_strided_slice %218 {offsets = [88, 0], sizes = [2, 96], strides = [1, 1]} : vector<96x96xf32> to vector<2x96xf32>
    %cst_227 = arith.constant dense<0.000000e+00> : vector<2x96xf32>
    %1189 = tpu.matmul %1187, %33, %cst_227 {dimension_numbers = #tpu.dot_dimension_numbers<[1], [0], [0], [1], [0, 0, 1, 1], [], []>} : vector<2x32xf32>, vector<32x96xf32>, vector<2x96xf32> -> vector<2x96xf32>
    %1190 = vector.broadcast %34 : vector<1x96xf32> to vector<2x96xf32>
    %1191 = arith.addf %1189, %1190 : vector<2x96xf32>
    %1192 = vector.extract_strided_slice %1188 {offsets = [0, 0], sizes = [2, 64], strides = [1, 1]} : vector<2x96xf32> to vector<2x64xf32>
    %1193 = vector.extract_strided_slice %1191 {offsets = [0, 0], sizes = [2, 64], strides = [1, 1]} : vector<2x96xf32> to vector<2x64xf32>
    %1194 = arith.addf %1192, %1193 : vector<2x64xf32>
    %1195 = arith.negf %1194 : vector<2x64xf32>
    %1196 = math.exp %1195 : vector<2x64xf32>
    %cst_228 = arith.constant 1.000000e+00 : f32
    %1197 = vector.broadcast %cst_228 : f32 to vector<2x64xf32>
    %1198 = arith.addf %1197, %1196 : vector<2x64xf32>
    %1199 = arith.divf %1197, %1198 : vector<2x64xf32>
    %1200 = vector.extract_strided_slice %1199 {offsets = [0, 0], sizes = [2, 32], strides = [1, 1]} : vector<2x64xf32> to vector<2x32xf32>
    %1201 = vector.extract_strided_slice %1199 {offsets = [0, 32], sizes = [2, 32], strides = [1, 1]} : vector<2x64xf32> to vector<2x32xf32>
    %1202 = vector.extract_strided_slice %1188 {offsets = [0, 64], sizes = [2, 32], strides = [1, 1]} : vector<2x96xf32> to vector<2x32xf32>
    %1203 = vector.extract_strided_slice %1191 {offsets = [0, 64], sizes = [2, 32], strides = [1, 1]} : vector<2x96xf32> to vector<2x32xf32>
    %1204 = arith.mulf %1200, %1203 : vector<2x32xf32>
    %1205 = arith.addf %1202, %1204 : vector<2x32xf32>
    %1206 = math.tanh %1205 : vector<2x32xf32>
    %1207 = arith.subf %1187, %1206 : vector<2x32xf32>
    %1208 = arith.mulf %1201, %1207 : vector<2x32xf32>
    %1209 = arith.addf %1206, %1208 : vector<2x32xf32>
    %1210 = vector.extract_strided_slice %218 {offsets = [90, 0], sizes = [2, 96], strides = [1, 1]} : vector<96x96xf32> to vector<2x96xf32>
    %cst_229 = arith.constant dense<0.000000e+00> : vector<2x96xf32>
    %1211 = tpu.matmul %1209, %33, %cst_229 {dimension_numbers = #tpu.dot_dimension_numbers<[1], [0], [0], [1], [0, 0, 1, 1], [], []>} : vector<2x32xf32>, vector<32x96xf32>, vector<2x96xf32> -> vector<2x96xf32>
    %1212 = vector.broadcast %34 : vector<1x96xf32> to vector<2x96xf32>
    %1213 = arith.addf %1211, %1212 : vector<2x96xf32>
    %1214 = vector.extract_strided_slice %1210 {offsets = [0, 0], sizes = [2, 64], strides = [1, 1]} : vector<2x96xf32> to vector<2x64xf32>
    %1215 = vector.extract_strided_slice %1213 {offsets = [0, 0], sizes = [2, 64], strides = [1, 1]} : vector<2x96xf32> to vector<2x64xf32>
    %1216 = arith.addf %1214, %1215 : vector<2x64xf32>
    %1217 = arith.negf %1216 : vector<2x64xf32>
    %1218 = math.exp %1217 : vector<2x64xf32>
    %cst_230 = arith.constant 1.000000e+00 : f32
    %1219 = vector.broadcast %cst_230 : f32 to vector<2x64xf32>
    %1220 = arith.addf %1219, %1218 : vector<2x64xf32>
    %1221 = arith.divf %1219, %1220 : vector<2x64xf32>
    %1222 = vector.extract_strided_slice %1221 {offsets = [0, 0], sizes = [2, 32], strides = [1, 1]} : vector<2x64xf32> to vector<2x32xf32>
    %1223 = vector.extract_strided_slice %1221 {offsets = [0, 32], sizes = [2, 32], strides = [1, 1]} : vector<2x64xf32> to vector<2x32xf32>
    %1224 = vector.extract_strided_slice %1210 {offsets = [0, 64], sizes = [2, 32], strides = [1, 1]} : vector<2x96xf32> to vector<2x32xf32>
    %1225 = vector.extract_strided_slice %1213 {offsets = [0, 64], sizes = [2, 32], strides = [1, 1]} : vector<2x96xf32> to vector<2x32xf32>
    %1226 = arith.mulf %1222, %1225 : vector<2x32xf32>
    %1227 = arith.addf %1224, %1226 : vector<2x32xf32>
    %1228 = math.tanh %1227 : vector<2x32xf32>
    %1229 = arith.subf %1209, %1228 : vector<2x32xf32>
    %1230 = arith.mulf %1223, %1229 : vector<2x32xf32>
    %1231 = arith.addf %1228, %1230 : vector<2x32xf32>
    %1232 = vector.extract_strided_slice %218 {offsets = [92, 0], sizes = [2, 96], strides = [1, 1]} : vector<96x96xf32> to vector<2x96xf32>
    %cst_231 = arith.constant dense<0.000000e+00> : vector<2x96xf32>
    %1233 = tpu.matmul %1231, %33, %cst_231 {dimension_numbers = #tpu.dot_dimension_numbers<[1], [0], [0], [1], [0, 0, 1, 1], [], []>} : vector<2x32xf32>, vector<32x96xf32>, vector<2x96xf32> -> vector<2x96xf32>
    %1234 = vector.broadcast %34 : vector<1x96xf32> to vector<2x96xf32>
    %1235 = arith.addf %1233, %1234 : vector<2x96xf32>
    %1236 = vector.extract_strided_slice %1232 {offsets = [0, 0], sizes = [2, 64], strides = [1, 1]} : vector<2x96xf32> to vector<2x64xf32>
    %1237 = vector.extract_strided_slice %1235 {offsets = [0, 0], sizes = [2, 64], strides = [1, 1]} : vector<2x96xf32> to vector<2x64xf32>
    %1238 = arith.addf %1236, %1237 : vector<2x64xf32>
    %1239 = arith.negf %1238 : vector<2x64xf32>
    %1240 = math.exp %1239 : vector<2x64xf32>
    %cst_232 = arith.constant 1.000000e+00 : f32
    %1241 = vector.broadcast %cst_232 : f32 to vector<2x64xf32>
    %1242 = arith.addf %1241, %1240 : vector<2x64xf32>
    %1243 = arith.divf %1241, %1242 : vector<2x64xf32>
    %1244 = vector.extract_strided_slice %1243 {offsets = [0, 0], sizes = [2, 32], strides = [1, 1]} : vector<2x64xf32> to vector<2x32xf32>
    %1245 = vector.extract_strided_slice %1243 {offsets = [0, 32], sizes = [2, 32], strides = [1, 1]} : vector<2x64xf32> to vector<2x32xf32>
    %1246 = vector.extract_strided_slice %1232 {offsets = [0, 64], sizes = [2, 32], strides = [1, 1]} : vector<2x96xf32> to vector<2x32xf32>
    %1247 = vector.extract_strided_slice %1235 {offsets = [0, 64], sizes = [2, 32], strides = [1, 1]} : vector<2x96xf32> to vector<2x32xf32>
    %1248 = arith.mulf %1244, %1247 : vector<2x32xf32>
    %1249 = arith.addf %1246, %1248 : vector<2x32xf32>
    %1250 = math.tanh %1249 : vector<2x32xf32>
    %1251 = arith.subf %1231, %1250 : vector<2x32xf32>
    %1252 = arith.mulf %1245, %1251 : vector<2x32xf32>
    %1253 = arith.addf %1250, %1252 : vector<2x32xf32>
    %1254 = vector.extract_strided_slice %218 {offsets = [94, 0], sizes = [2, 96], strides = [1, 1]} : vector<96x96xf32> to vector<2x96xf32>
    %cst_233 = arith.constant dense<0.000000e+00> : vector<2x96xf32>
    %1255 = tpu.matmul %1253, %33, %cst_233 {dimension_numbers = #tpu.dot_dimension_numbers<[1], [0], [0], [1], [0, 0, 1, 1], [], []>} : vector<2x32xf32>, vector<32x96xf32>, vector<2x96xf32> -> vector<2x96xf32>
    %1256 = vector.broadcast %34 : vector<1x96xf32> to vector<2x96xf32>
    %1257 = arith.addf %1255, %1256 : vector<2x96xf32>
    %1258 = vector.extract_strided_slice %1254 {offsets = [0, 0], sizes = [2, 64], strides = [1, 1]} : vector<2x96xf32> to vector<2x64xf32>
    %1259 = vector.extract_strided_slice %1257 {offsets = [0, 0], sizes = [2, 64], strides = [1, 1]} : vector<2x96xf32> to vector<2x64xf32>
    %1260 = arith.addf %1258, %1259 : vector<2x64xf32>
    %1261 = arith.negf %1260 : vector<2x64xf32>
    %1262 = math.exp %1261 : vector<2x64xf32>
    %cst_234 = arith.constant 1.000000e+00 : f32
    %1263 = vector.broadcast %cst_234 : f32 to vector<2x64xf32>
    %1264 = arith.addf %1263, %1262 : vector<2x64xf32>
    %1265 = arith.divf %1263, %1264 : vector<2x64xf32>
    %1266 = vector.extract_strided_slice %1265 {offsets = [0, 0], sizes = [2, 32], strides = [1, 1]} : vector<2x64xf32> to vector<2x32xf32>
    %1267 = vector.extract_strided_slice %1265 {offsets = [0, 32], sizes = [2, 32], strides = [1, 1]} : vector<2x64xf32> to vector<2x32xf32>
    %1268 = vector.extract_strided_slice %1254 {offsets = [0, 64], sizes = [2, 32], strides = [1, 1]} : vector<2x96xf32> to vector<2x32xf32>
    %1269 = vector.extract_strided_slice %1257 {offsets = [0, 64], sizes = [2, 32], strides = [1, 1]} : vector<2x96xf32> to vector<2x32xf32>
    %1270 = arith.mulf %1266, %1269 : vector<2x32xf32>
    %1271 = arith.addf %1268, %1270 : vector<2x32xf32>
    %1272 = math.tanh %1271 : vector<2x32xf32>
    %1273 = arith.subf %1253, %1272 : vector<2x32xf32>
    %1274 = arith.mulf %1267, %1273 : vector<2x32xf32>
    %1275 = arith.addf %1272, %1274 : vector<2x32xf32>
    %1276 = tpu.concatenate %241, %263, %285, %307, %329, %351, %373, %395, %417, %439, %461, %483, %505, %527, %549, %571 in 0 : vector<2x32xf32>, vector<2x32xf32>, vector<2x32xf32>, vector<2x32xf32>, vector<2x32xf32>, vector<2x32xf32>, vector<2x32xf32>, vector<2x32xf32>, vector<2x32xf32>, vector<2x32xf32>, vector<2x32xf32>, vector<2x32xf32>, vector<2x32xf32>, vector<2x32xf32>, vector<2x32xf32>, vector<2x32xf32> -> vector<32x32xf32>
    %1277 = tpu.concatenate %593, %615, %637, %659, %681, %703, %725, %747, %769, %791, %813, %835, %857, %879, %901, %923 in 0 : vector<2x32xf32>, vector<2x32xf32>, vector<2x32xf32>, vector<2x32xf32>, vector<2x32xf32>, vector<2x32xf32>, vector<2x32xf32>, vector<2x32xf32>, vector<2x32xf32>, vector<2x32xf32>, vector<2x32xf32>, vector<2x32xf32>, vector<2x32xf32>, vector<2x32xf32>, vector<2x32xf32>, vector<2x32xf32> -> vector<32x32xf32>
    %1278 = tpu.concatenate %945, %967, %989, %1011, %1033, %1055, %1077, %1099, %1121, %1143, %1165, %1187, %1209, %1231, %1253, %1275 in 0 : vector<2x32xf32>, vector<2x32xf32>, vector<2x32xf32>, vector<2x32xf32>, vector<2x32xf32>, vector<2x32xf32>, vector<2x32xf32>, vector<2x32xf32>, vector<2x32xf32>, vector<2x32xf32>, vector<2x32xf32>, vector<2x32xf32>, vector<2x32xf32>, vector<2x32xf32>, vector<2x32xf32>, vector<2x32xf32> -> vector<32x32xf32>
    %1279 = tpu.concatenate %1276, %1277, %1278 in 0 : vector<32x32xf32>, vector<32x32xf32>, vector<32x32xf32> -> vector<96x32xf32>
    %cst_235 = arith.constant dense<0.000000e+00> : vector<4x96xf32>
    %1280 = tpu.matmul %35, %1279, %cst_235 {dimension_numbers = #tpu.dot_dimension_numbers<[1], [1], [0], [0], [0, 0, 1, 0], [], []>} : vector<4x32xf32>, vector<96x32xf32>, vector<4x96xf32> -> vector<4x96xf32>
    %1281 = vector.broadcast %36 : vector<4x1xf32> to vector<4x96xf32>
    %1282 = arith.addf %1280, %1281 : vector<4x96xf32>
    %1283 = arith.negf %1282 : vector<4x96xf32>
    %1284 = math.exp %1283 : vector<4x96xf32>
    %cst_236 = arith.constant 1.000000e+00 : f32
    %1285 = vector.broadcast %cst_236 : f32 to vector<4x96xf32>
    %1286 = arith.addf %1285, %1284 : vector<4x96xf32>
    %1287 = arith.divf %1285, %1286 : vector<4x96xf32>
    %1288 = arith.mulf %1287, %37 : vector<4x96xf32>
    %1289 = arith.addf %1288, %215 : vector<4x96xf32>
    %c0_237 = arith.constant 0 : index
    %c0_238 = arith.constant 0 : index
    %1290 = vector.load %arg39[%c0_237, %c0_238] : memref<4x96xf32, #tpu.memory_space<vmem>>, vector<4x96xf32>
    tpu.vector_store %arg39[%c0_237, %c0_238], %1289 {strides = array<i32>} : memref<4x96xf32, #tpu.memory_space<vmem>>, vector<4x96xf32>,
    return
  }
  func.func @transform_0(%arg0: i32) -> (i32, i32) {
    %c0_i32 = arith.constant 0 : i32
    %c0_i32_0 = arith.constant 0 : i32
    %c0_i32_1 = arith.constant 0 : i32
    return %c0_i32, %c0_i32_0 : i32, i32
  }
  func.func @transform_1(%arg0: i32) -> (i32, i32) {
    %c0_i32 = arith.constant 0 : i32
    %c0_i32_0 = arith.constant 0 : i32
    %c0_i32_1 = arith.constant 0 : i32
    return %c0_i32, %c0_i32_0 : i32, i32
  }
  func.func @transform_2(%arg0: i32) -> (i32, i32) {
    %c0_i32 = arith.constant 0 : i32
    %c0_i32_0 = arith.constant 0 : i32
    %c0_i32_1 = arith.constant 0 : i32
    return %c0_i32, %c0_i32_0 : i32, i32
  }
  func.func @transform_3(%arg0: i32) -> (i32, i32) {
    %c0_i32 = arith.constant 0 : i32
    %c0_i32_0 = arith.constant 0 : i32
    %c0_i32_1 = arith.constant 0 : i32
    return %c0_i32, %c0_i32_0 : i32, i32
  }
  func.func @transform_4(%arg0: i32) -> (i32, i32) {
    %c0_i32 = arith.constant 0 : i32
    %c0_i32_0 = arith.constant 0 : i32
    %c0_i32_1 = arith.constant 0 : i32
    return %c0_i32, %c0_i32_0 : i32, i32
  }
  func.func @transform_5(%arg0: i32) -> (i32, i32) {
    %c0_i32 = arith.constant 0 : i32
    %c0_i32_0 = arith.constant 0 : i32
    %c0_i32_1 = arith.constant 0 : i32
    return %c0_i32, %c0_i32_0 : i32, i32
  }
  func.func @transform_6(%arg0: i32) -> (i32, i32) {
    %c0_i32 = arith.constant 0 : i32
    %c0_i32_0 = arith.constant 0 : i32
    %c0_i32_1 = arith.constant 0 : i32
    return %c0_i32, %c0_i32_0 : i32, i32
  }
  func.func @transform_7(%arg0: i32) -> (i32, i32) {
    %c0_i32 = arith.constant 0 : i32
    %c0_i32_0 = arith.constant 0 : i32
    %c0_i32_1 = arith.constant 0 : i32
    return %c0_i32, %c0_i32_0 : i32, i32
  }
  func.func @transform_8(%arg0: i32) -> (i32, i32) {
    %c0_i32 = arith.constant 0 : i32
    %c0_i32_0 = arith.constant 0 : i32
    %c0_i32_1 = arith.constant 0 : i32
    return %c0_i32, %c0_i32_0 : i32, i32
  }
  func.func @transform_9(%arg0: i32) -> (i32, i32) {
    %c0_i32 = arith.constant 0 : i32
    %c0_i32_0 = arith.constant 0 : i32
    %c0_i32_1 = arith.constant 0 : i32
    return %c0_i32, %c0_i32_0 : i32, i32
  }
  func.func @transform_10(%arg0: i32) -> (i32, i32) {
    %c0_i32 = arith.constant 0 : i32
    %c0_i32_0 = arith.constant 0 : i32
    %c0_i32_1 = arith.constant 0 : i32
    return %c0_i32, %c0_i32_0 : i32, i32
  }
  func.func @transform_11(%arg0: i32) -> (i32, i32) {
    %c0_i32 = arith.constant 0 : i32
    %c0_i32_0 = arith.constant 0 : i32
    %c0_i32_1 = arith.constant 0 : i32
    return %c0_i32, %c0_i32_0 : i32, i32
  }
  func.func @transform_12(%arg0: i32) -> (i32, i32) {
    %c0_i32 = arith.constant 0 : i32
    %c0_i32_0 = arith.constant 0 : i32
    %c0_i32_1 = arith.constant 0 : i32
    return %c0_i32, %c0_i32_0 : i32, i32
  }
  func.func @transform_13(%arg0: i32) -> (i32, i32) {
    %c0_i32 = arith.constant 0 : i32
    %c0_i32_0 = arith.constant 0 : i32
    %c0_i32_1 = arith.constant 0 : i32
    return %c0_i32, %c0_i32_0 : i32, i32
  }
  func.func @transform_14(%arg0: i32) -> (i32, i32) {
    %c0_i32 = arith.constant 0 : i32
    %c0_i32_0 = arith.constant 0 : i32
    %c0_i32_1 = arith.constant 0 : i32
    return %c0_i32, %c0_i32_0 : i32, i32
  }
  func.func @transform_15(%arg0: i32) -> (i32, i32) {
    %c0_i32 = arith.constant 0 : i32
    %c0_i32_0 = arith.constant 0 : i32
    %c0_i32_1 = arith.constant 0 : i32
    return %c0_i32, %c0_i32_0 : i32, i32
  }
  func.func @transform_16(%arg0: i32) -> (i32, i32) {
    %c0_i32 = arith.constant 0 : i32
    %c0_i32_0 = arith.constant 0 : i32
    %c0_i32_1 = arith.constant 0 : i32
    return %c0_i32, %c0_i32_0 : i32, i32
  }
  func.func @transform_17(%arg0: i32) -> (i32, i32) {
    %c0_i32 = arith.constant 0 : i32
    %c0_i32_0 = arith.constant 0 : i32
    %c0_i32_1 = arith.constant 0 : i32
    return %c0_i32, %c0_i32_0 : i32, i32
  }
  func.func @transform_18(%arg0: i32) -> (i32, i32) {
    %c0_i32 = arith.constant 0 : i32
    %c0_i32_0 = arith.constant 0 : i32
    %c0_i32_1 = arith.constant 0 : i32
    return %c0_i32, %c0_i32_0 : i32, i32
  }
  func.func @transform_19(%arg0: i32) -> (i32, i32) {
    %c0_i32 = arith.constant 0 : i32
    %c0_i32_0 = arith.constant 0 : i32
    %c0_i32_1 = arith.constant 0 : i32
    return %c0_i32, %c0_i32_0 : i32, i32
  }
  func.func @transform_20(%arg0: i32) -> (i32, i32) {
    %c0_i32 = arith.constant 0 : i32
    %c0_i32_0 = arith.constant 0 : i32
    %c0_i32_1 = arith.constant 0 : i32
    return %c0_i32, %c0_i32_0 : i32, i32
  }
  func.func @transform_21(%arg0: i32) -> (i32, i32) {
    %c0_i32 = arith.constant 0 : i32
    %c0_i32_0 = arith.constant 0 : i32
    %c0_i32_1 = arith.constant 0 : i32
    return %c0_i32, %c0_i32_0 : i32, i32
  }
  func.func @transform_22(%arg0: i32) -> (i32, i32) {
    %c0_i32 = arith.constant 0 : i32
    %c0_i32_0 = arith.constant 0 : i32
    %c0_i32_1 = arith.constant 0 : i32
    return %c0_i32, %c0_i32_0 : i32, i32
  }
  func.func @transform_23(%arg0: i32) -> (i32, i32) {
    %c0_i32 = arith.constant 0 : i32
    %c0_i32_0 = arith.constant 0 : i32
    %c0_i32_1 = arith.constant 0 : i32
    return %c0_i32, %c0_i32_0 : i32, i32
  }
  func.func @transform_24(%arg0: i32) -> (i32, i32) {
    %c0_i32 = arith.constant 0 : i32
    %c0_i32_0 = arith.constant 0 : i32
    %c0_i32_1 = arith.constant 0 : i32
    return %c0_i32, %c0_i32_0 : i32, i32
  }
  func.func @transform_25(%arg0: i32) -> (i32, i32) {
    %c0_i32 = arith.constant 0 : i32
    %c0_i32_0 = arith.constant 0 : i32
    %c0_i32_1 = arith.constant 0 : i32
    return %c0_i32, %c0_i32_0 : i32, i32
  }
  func.func @transform_26(%arg0: i32) -> (i32, i32) {
    %c0_i32 = arith.constant 0 : i32
    %c0_i32_0 = arith.constant 0 : i32
    %c0_i32_1 = arith.constant 0 : i32
    return %c0_i32, %c0_i32_0 : i32, i32
  }
  func.func @transform_27(%arg0: i32) -> (i32, i32) {
    %c0_i32 = arith.constant 0 : i32
    %c0_i32_0 = arith.constant 0 : i32
    %c0_i32_1 = arith.constant 0 : i32
    return %c0_i32, %c0_i32_0 : i32, i32
  }
  func.func @transform_28(%arg0: i32) -> (i32, i32) {
    %c0_i32 = arith.constant 0 : i32
    %c0_i32_0 = arith.constant 0 : i32
    %c0_i32_1 = arith.constant 0 : i32
    return %c0_i32, %c0_i32_0 : i32, i32
  }
  func.func @transform_29(%arg0: i32) -> (i32, i32) {
    %c0_i32 = arith.constant 0 : i32
    %c0_i32_0 = arith.constant 0 : i32
    %c0_i32_1 = arith.constant 0 : i32
    return %c0_i32, %c0_i32_0 : i32, i32
  }
  func.func @transform_30(%arg0: i32) -> (i32, i32) {
    %c0_i32 = arith.constant 0 : i32
    %c0_i32_0 = arith.constant 0 : i32
    %c0_i32_1 = arith.constant 0 : i32
    return %c0_i32, %c0_i32_0 : i32, i32
  }
  func.func @transform_31(%arg0: i32) -> (i32, i32) {
    %c0_i32 = arith.constant 0 : i32
    %c0_i32_0 = arith.constant 0 : i32
    %c0_i32_1 = arith.constant 0 : i32
    return %c0_i32, %c0_i32_0 : i32, i32
  }
  func.func @transform_32(%arg0: i32) -> (i32, i32) {
    %c0_i32 = arith.constant 0 : i32
    %c0_i32_0 = arith.constant 0 : i32
    %c0_i32_1 = arith.constant 0 : i32
    return %c0_i32, %c0_i32_0 : i32, i32
  }
  func.func @transform_33(%arg0: i32) -> (i32, i32) {
    %c0_i32 = arith.constant 0 : i32
    %c0_i32_0 = arith.constant 0 : i32
    %c0_i32_1 = arith.constant 0 : i32
    return %c0_i32, %c0_i32_0 : i32, i32
  }
  func.func @transform_34(%arg0: i32) -> (i32, i32) {
    %c0_i32 = arith.constant 0 : i32
    %c0_i32_0 = arith.constant 0 : i32
    %c0_i32_1 = arith.constant 0 : i32
    return %c0_i32, %c0_i32_0 : i32, i32
  }
  func.func @transform_35(%arg0: i32) -> (i32, i32) {
    %c0_i32 = arith.constant 0 : i32
    %c0_i32_0 = arith.constant 0 : i32
    %c0_i32_1 = arith.constant 0 : i32
    return %c0_i32, %c0_i32_0 : i32, i32
  }
  func.func @transform_36(%arg0: i32) -> (i32, i32) {
    %c0_i32 = arith.constant 0 : i32
    %c0_i32_0 = arith.constant 0 : i32
    %c0_i32_1 = arith.constant 0 : i32
    return %c0_i32, %c0_i32_0 : i32, i32
  }
  func.func @transform_37(%arg0: i32) -> (i32, i32) {
    %c0_i32 = arith.constant 0 : i32
    %c0_i32_0 = arith.constant 0 : i32
    %c0_i32_1 = arith.constant 0 : i32
    return %c0_i32, %c0_i32_0 : i32, i32
  }
  func.func @transform_38(%arg0: i32) -> (i32, i32) {
    %c0_i32 = arith.constant 0 : i32
    %c0_i32_0 = arith.constant 0 : i32
    %c0_i32_1 = arith.constant 0 : i32
    return %c0_i32, %c0_i32_0 : i32, i32
  }
}

</mosaic_0001>

<llo_original>
// kernel: heterogeneous_forward.1
$region0: #{heterogeneous_forward.1}
  #allocation0 [shape = 'u32[]', space=smem, size = 0x4, offset = 0x4, fixed_abs, tag = 'smem constant byte address 0x4 - core index']
  #allocation1 [shape = 'u32[72,128]{1,0:T(1,128)}', space=vmem, size = 0x9000, scoped, tag = 'internal scratch']
  %s0 = inlined_call_operand.smem [shape: u32[39], index: -1, kind: input, shape index: {}]
  %s1 = sld [smem:[%s0]]
  %s2 = scalar_lea.smem %s0, 1
  %s3 = sld [smem:[%s2]]
  %s4 = scalar_lea.smem %s0, 2
  %s5 = sld [smem:[%s4]]
  %s6 = scalar_lea.smem %s0, 3
  %s7 = sld [smem:[%s6]]
  %s8 = scalar_lea.smem %s0, 4
  %s9 = sld [smem:[%s8]]
  %s10 = scalar_lea.smem %s0, 5
  %s11 = sld [smem:[%s10]]
  %s12 = scalar_lea.smem %s0, 6
  %s13 = sld [smem:[%s12]]
  %s14 = scalar_lea.smem %s0, 7
  %s15 = sld [smem:[%s14]]
  %s16 = scalar_lea.smem %s0, 8
  %s17 = sld [smem:[%s16]]
  %s18 = scalar_lea.smem %s0, 9
  %s19 = sld [smem:[%s18]]
  %s20 = scalar_lea.smem %s0, 10
  %s21 = sld [smem:[%s20]]
  %s22 = scalar_lea.smem %s0, 11
  %s23 = sld [smem:[%s22]]
  %s24 = scalar_lea.smem %s0, 12
  %s25 = sld [smem:[%s24]]
  %s26 = scalar_lea.smem %s0, 13
  %s27 = sld [smem:[%s26]]
  %s28 = scalar_lea.smem %s0, 14
  %s29 = sld [smem:[%s28]]
  %s30 = scalar_lea.smem %s0, 15
  %s31 = sld [smem:[%s30]]
  %s32 = scalar_lea.smem %s0, 16
  %s33 = sld [smem:[%s32]]
  %s34 = scalar_lea.smem %s0, 17
  %s35 = sld [smem:[%s34]]
  %s36 = scalar_lea.smem %s0, 18
  %s37 = sld [smem:[%s36]]
  %s38 = scalar_lea.smem %s0, 19
  %s39 = sld [smem:[%s38]]
  %s40 = scalar_lea.smem %s0, 20
  %s41 = sld [smem:[%s40]]
  %s42 = scalar_lea.smem %s0, 21
  %s43 = sld [smem:[%s42]]
  %s44 = scalar_lea.smem %s0, 22
  %s45 = sld [smem:[%s44]]
  %s46 = scalar_lea.smem %s0, 23
  %s47 = sld [smem:[%s46]]
  %s48 = scalar_lea.smem %s0, 24
  %s49 = sld [smem:[%s48]]
  %s50 = scalar_lea.smem %s0, 25
  %s51 = sld [smem:[%s50]]
  %s52 = scalar_lea.smem %s0, 26
  %s53 = sld [smem:[%s52]]
  %s54 = scalar_lea.smem %s0, 27
  %s55 = sld [smem:[%s54]]
  %s56 = scalar_lea.smem %s0, 28
  %s57 = sld [smem:[%s56]]
  %s58 = scalar_lea.smem %s0, 29
  %s59 = sld [smem:[%s58]]
  %s60 = scalar_lea.smem %s0, 30
  %s61 = sld [smem:[%s60]]
  %s62 = scalar_lea.smem %s0, 31
  %s63 = sld [smem:[%s62]]
  %s64 = scalar_lea.smem %s0, 32
  %s65 = sld [smem:[%s64]]
  %s66 = scalar_lea.smem %s0, 33
  %s67 = sld [smem:[%s66]]
  %s68 = scalar_lea.smem %s0, 34
  %s69 = sld [smem:[%s68]]
  %s70 = scalar_lea.smem %s0, 35
  %s71 = sld [smem:[%s70]]
  %s72 = scalar_lea.smem %s0, 36
  %s73 = sld [smem:[%s72]]
  %s74 = scalar_lea.smem %s0, 37
  %s75 = sld [smem:[%s74]]
  %s76 = scalar_lea.smem %s0, 38
  %s77 = sld [smem:[%s76]]
  %s78 = sld [smem:[#allocation0]]
  $region162: #{heterogeneous_forward.1} parent=0
    _
  %s80 = ssub.s32 1, %s78
  %s81 = scalar_select 0, %s80, %s78
  // Predicated region
  $region2: #{heterogeneous_forward.1} parent=0 // pred_check
    _
  $region3: #{heterogeneous_forward.1} parent=0 // pred_check_branch
    %83 = sbr.rel (0) target = $region5
  $region4: #{heterogeneous_forward.1} parent=0 // pred_region
    _
  $region5: #{heterogeneous_forward.1} parent=0 // pred_fallthru
    _
  // Predicated region
  $region6: #{heterogeneous_forward.1} parent=0 // pred_check
    _
  $region7: #{heterogeneous_forward.1} parent=0 // pred_check_branch
    %85 = sbr.rel (0) target = $region9
  $region8: #{heterogeneous_forward.1} parent=0 // pred_region
    _
  $region9: #{heterogeneous_forward.1} parent=0 // pred_fallthru
    _
  // Predicated region
  $region10: #{heterogeneous_forward.1} parent=0 // pred_check
    _
  $region11: #{heterogeneous_forward.1} parent=0 // pred_check_branch
    %87 = sbr.rel (0) target = $region13
  $region12: #{heterogeneous_forward.1} parent=0 // pred_region
    _
  $region13: #{heterogeneous_forward.1} parent=0 // pred_fallthru
    _
  // Predicated region
  $region14: #{heterogeneous_forward.1} parent=0 // pred_check
    _
  $region15: #{heterogeneous_forward.1} parent=0 // pred_check_branch
    %89 = sbr.rel (0) target = $region17
  $region16: #{heterogeneous_forward.1} parent=0 // pred_region
    _
  $region17: #{heterogeneous_forward.1} parent=0 // pred_fallthru
    _
  // Predicated region
  $region18: #{heterogeneous_forward.1} parent=0 // pred_check
    _
  $region19: #{heterogeneous_forward.1} parent=0 // pred_check_branch
    %91 = sbr.rel (0) target = $region21
  $region20: #{heterogeneous_forward.1} parent=0 // pred_region
    _
  $region21: #{heterogeneous_forward.1} parent=0 // pred_fallthru
    _
  // Predicated region
  $region22: #{heterogeneous_forward.1} parent=0 // pred_check
    _
  $region23: #{heterogeneous_forward.1} parent=0 // pred_check_branch
    %93 = sbr.rel (0) target = $region25
  $region24: #{heterogeneous_forward.1} parent=0 // pred_region
    _
  $region25: #{heterogeneous_forward.1} parent=0 // pred_fallthru
    _
  // Predicated region
  $region26: #{heterogeneous_forward.1} parent=0 // pred_check
    _
  $region27: #{heterogeneous_forward.1} parent=0 // pred_check_branch
    %95 = sbr.rel (0) target = $region29
  $region28: #{heterogeneous_forward.1} parent=0 // pred_region
    _
  $region29: #{heterogeneous_forward.1} parent=0 // pred_fallthru
    _
  // Predicated region
  $region30: #{heterogeneous_forward.1} parent=0 // pred_check
    _
  $region31: #{heterogeneous_forward.1} parent=0 // pred_check_branch
    %97 = sbr.rel (0) target = $region33
  $region32: #{heterogeneous_forward.1} parent=0 // pred_region
    _
  $region33: #{heterogeneous_forward.1} parent=0 // pred_fallthru
    _
  // Predicated region
  $region34: #{heterogeneous_forward.1} parent=0 // pred_check
    _
  $region35: #{heterogeneous_forward.1} parent=0 // pred_check_branch
    %99 = sbr.rel (0) target = $region37
  $region36: #{heterogeneous_forward.1} parent=0 // pred_region
    _
  $region37: #{heterogeneous_forward.1} parent=0 // pred_fallthru
    _
  // Predicated region
  $region38: #{heterogeneous_forward.1} parent=0 // pred_check
    _
  $region39: #{heterogeneous_forward.1} parent=0 // pred_check_branch
    %101 = sbr.rel (0) target = $region41
  $region40: #{heterogeneous_forward.1} parent=0 // pred_region
    _
  $region41: #{heterogeneous_forward.1} parent=0 // pred_fallthru
    _
  // Predicated region
  $region42: #{heterogeneous_forward.1} parent=0 // pred_check
    _
  $region43: #{heterogeneous_forward.1} parent=0 // pred_check_branch
    %103 = sbr.rel (0) target = $region45
  $region44: #{heterogeneous_forward.1} parent=0 // pred_region
    _
  $region45: #{heterogeneous_forward.1} parent=0 // pred_fallthru
    _
  // Predicated region
  $region46: #{heterogeneous_forward.1} parent=0 // pred_check
    _
  $region47: #{heterogeneous_forward.1} parent=0 // pred_check_branch
    %105 = sbr.rel (0) target = $region49
  $region48: #{heterogeneous_forward.1} parent=0 // pred_region
    _
  $region49: #{heterogeneous_forward.1} parent=0 // pred_fallthru
    _
  // Predicated region
  $region50: #{heterogeneous_forward.1} parent=0 // pred_check
    _
  $region51: #{heterogeneous_forward.1} parent=0 // pred_check_branch
    %107 = sbr.rel (0) target = $region53
  $region52: #{heterogeneous_forward.1} parent=0 // pred_region
    _
  $region53: #{heterogeneous_forward.1} parent=0 // pred_fallthru
    _
  // Predicated region
  $region54: #{heterogeneous_forward.1} parent=0 // pred_check
    _
  $region55: #{heterogeneous_forward.1} parent=0 // pred_check_branch
    %109 = sbr.rel (0) target = $region57
  $region56: #{heterogeneous_forward.1} parent=0 // pred_region
    _
  $region57: #{heterogeneous_forward.1} parent=0 // pred_fallthru
    _
  // Predicated region
  $region58: #{heterogeneous_forward.1} parent=0 // pred_check
    _
  $region59: #{heterogeneous_forward.1} parent=0 // pred_check_branch
    %111 = sbr.rel (0) target = $region61
  $region60: #{heterogeneous_forward.1} parent=0 // pred_region
    _
  $region61: #{heterogeneous_forward.1} parent=0 // pred_fallthru
    _
  // Predicated region
  $region62: #{heterogeneous_forward.1} parent=0 // pred_check
    _
  $region63: #{heterogeneous_forward.1} parent=0 // pred_check_branch
    %113 = sbr.rel (0) target = $region65
  $region64: #{heterogeneous_forward.1} parent=0 // pred_region
    _
  $region65: #{heterogeneous_forward.1} parent=0 // pred_fallthru
    _
  // Predicated region
  $region66: #{heterogeneous_forward.1} parent=0 // pred_check
    _
  $region67: #{heterogeneous_forward.1} parent=0 // pred_check_branch
    %115 = sbr.rel (0) target = $region69
  $region68: #{heterogeneous_forward.1} parent=0 // pred_region
    _
  $region69: #{heterogeneous_forward.1} parent=0 // pred_fallthru
    _
  // Predicated region
  $region70: #{heterogeneous_forward.1} parent=0 // pred_check
    _
  $region71: #{heterogeneous_forward.1} parent=0 // pred_check_branch
    %117 = sbr.rel (0) target = $region73
  $region72: #{heterogeneous_forward.1} parent=0 // pred_region
    _
  $region73: #{heterogeneous_forward.1} parent=0 // pred_fallthru
    _
  // Predicated region
  $region74: #{heterogeneous_forward.1} parent=0 // pred_check
    _
  $region75: #{heterogeneous_forward.1} parent=0 // pred_check_branch
    %119 = sbr.rel (0) target = $region77
  $region76: #{heterogeneous_forward.1} parent=0 // pred_region
    _
  $region77: #{heterogeneous_forward.1} parent=0 // pred_fallthru
    _
  // Predicated region
  $region78: #{heterogeneous_forward.1} parent=0 // pred_check
    _
  $region79: #{heterogeneous_forward.1} parent=0 // pred_check_branch
    %121 = sbr.rel (0) target = $region81
  $region80: #{heterogeneous_forward.1} parent=0 // pred_region
    _
  $region81: #{heterogeneous_forward.1} parent=0 // pred_fallthru
    _
  // Predicated region
  $region82: #{heterogeneous_forward.1} parent=0 // pred_check
    _
  $region83: #{heterogeneous_forward.1} parent=0 // pred_check_branch
    %123 = sbr.rel (0) target = $region85
  $region84: #{heterogeneous_forward.1} parent=0 // pred_region
    _
  $region85: #{heterogeneous_forward.1} parent=0 // pred_fallthru
    _
  // Predicated region
  $region86: #{heterogeneous_forward.1} parent=0 // pred_check
    _
  $region87: #{heterogeneous_forward.1} parent=0 // pred_check_branch
    %125 = sbr.rel (0) target = $region89
  $region88: #{heterogeneous_forward.1} parent=0 // pred_region
    _
  $region89: #{heterogeneous_forward.1} parent=0 // pred_fallthru
    _
  // Predicated region
  $region90: #{heterogeneous_forward.1} parent=0 // pred_check
    _
  $region91: #{heterogeneous_forward.1} parent=0 // pred_check_branch
    %127 = sbr.rel (0) target = $region93
  $region92: #{heterogeneous_forward.1} parent=0 // pred_region
    _
  $region93: #{heterogeneous_forward.1} parent=0 // pred_fallthru
    _
  // Predicated region
  $region94: #{heterogeneous_forward.1} parent=0 // pred_check
    _
  $region95: #{heterogeneous_forward.1} parent=0 // pred_check_branch
    %129 = sbr.rel (0) target = $region97
  $region96: #{heterogeneous_forward.1} parent=0 // pred_region
    _
  $region97: #{heterogeneous_forward.1} parent=0 // pred_fallthru
    _
  // Predicated region
  $region98: #{heterogeneous_forward.1} parent=0 // pred_check
    _
  $region99: #{heterogeneous_forward.1} parent=0 // pred_check_branch
    %131 = sbr.rel (0) target = $region101
  $region100: #{heterogeneous_forward.1} parent=0 // pred_region
    _
  $region101: #{heterogeneous_forward.1} parent=0 // pred_fallthru
    _
  // Predicated region
  $region102: #{heterogeneous_forward.1} parent=0 // pred_check
    _
  $region103: #{heterogeneous_forward.1} parent=0 // pred_check_branch
    %133 = sbr.rel (0) target = $region105
  $region104: #{heterogeneous_forward.1} parent=0 // pred_region
    _
  $region105: #{heterogeneous_forward.1} parent=0 // pred_fallthru
    _
  // Predicated region
  $region106: #{heterogeneous_forward.1} parent=0 // pred_check
    _
  $region107: #{heterogeneous_forward.1} parent=0 // pred_check_branch
    %135 = sbr.rel (0) target = $region109
  $region108: #{heterogeneous_forward.1} parent=0 // pred_region
    _
  $region109: #{heterogeneous_forward.1} parent=0 // pred_fallthru
    _
  // Predicated region
  $region110: #{heterogeneous_forward.1} parent=0 // pred_check
    _
  $region111: #{heterogeneous_forward.1} parent=0 // pred_check_branch
    %137 = sbr.rel (0) target = $region113
  $region112: #{heterogeneous_forward.1} parent=0 // pred_region
    _
  $region113: #{heterogeneous_forward.1} parent=0 // pred_fallthru
    _
  // Predicated region
  $region114: #{heterogeneous_forward.1} parent=0 // pred_check
    _
  $region115: #{heterogeneous_forward.1} parent=0 // pred_check_branch
    %139 = sbr.rel (0) target = $region117
  $region116: #{heterogeneous_forward.1} parent=0 // pred_region
    _
  $region117: #{heterogeneous_forward.1} parent=0 // pred_fallthru
    _
  // Predicated region
  $region118: #{heterogeneous_forward.1} parent=0 // pred_check
    _
  $region119: #{heterogeneous_forward.1} parent=0 // pred_check_branch
    %141 = sbr.rel (0) target = $region121
  $region120: #{heterogeneous_forward.1} parent=0 // pred_region
    _
  $region121: #{heterogeneous_forward.1} parent=0 // pred_fallthru
    _
  // Predicated region
  $region122: #{heterogeneous_forward.1} parent=0 // pred_check
    _
  $region123: #{heterogeneous_forward.1} parent=0 // pred_check_branch
    %143 = sbr.rel (0) target = $region125
  $region124: #{heterogeneous_forward.1} parent=0 // pred_region
    _
  $region125: #{heterogeneous_forward.1} parent=0 // pred_fallthru
    _
  // Predicated region
  $region126: #{heterogeneous_forward.1} parent=0 // pred_check
    _
  $region127: #{heterogeneous_forward.1} parent=0 // pred_check_branch
    %145 = sbr.rel (0) target = $region129
  $region128: #{heterogeneous_forward.1} parent=0 // pred_region
    _
  $region129: #{heterogeneous_forward.1} parent=0 // pred_fallthru
    _
  // Predicated region
  $region130: #{heterogeneous_forward.1} parent=0 // pred_check
    _
  $region131: #{heterogeneous_forward.1} parent=0 // pred_check_branch
    %147 = sbr.rel (0) target = $region133
  $region132: #{heterogeneous_forward.1} parent=0 // pred_region
    _
  $region133: #{heterogeneous_forward.1} parent=0 // pred_fallthru
    _
  // Predicated region
  $region134: #{heterogeneous_forward.1} parent=0 // pred_check
    _
  $region135: #{heterogeneous_forward.1} parent=0 // pred_check_branch
    %149 = sbr.rel (0) target = $region137
  $region136: #{heterogeneous_forward.1} parent=0 // pred_region
    _
  $region137: #{heterogeneous_forward.1} parent=0 // pred_fallthru
    _
  // Predicated region
  $region138: #{heterogeneous_forward.1} parent=0 // pred_check
    _
  $region139: #{heterogeneous_forward.1} parent=0 // pred_check_branch
    %151 = sbr.rel (0) target = $region141
  $region140: #{heterogeneous_forward.1} parent=0 // pred_region
    _
  $region141: #{heterogeneous_forward.1} parent=0 // pred_fallthru
    _
  // Predicated region
  $region142: #{heterogeneous_forward.1} parent=0 // pred_check
    _
  $region143: #{heterogeneous_forward.1} parent=0 // pred_check_branch
    %153 = sbr.rel (0) target = $region145
  $region144: #{heterogeneous_forward.1} parent=0 // pred_region
    _
  $region145: #{heterogeneous_forward.1} parent=0 // pred_fallthru
    _
  // Predicated region
  $region146: #{heterogeneous_forward.1} parent=0 // pred_check
    _
  $region147: #{heterogeneous_forward.1} parent=0 // pred_check_branch
    %155 = sbr.rel (0) target = $region149
  $region148: #{heterogeneous_forward.1} parent=0 // pred_region
    _
  $region149: #{heterogeneous_forward.1} parent=0 // pred_fallthru
    _
  // Predicated region
  $region150: #{heterogeneous_forward.1} parent=0 // pred_check
    _
  $region151: #{heterogeneous_forward.1} parent=0 // pred_check_branch
    %157 = sbr.rel (0) target = $region153
  $region152: #{heterogeneous_forward.1} parent=0 // pred_region
    _
  $region153: #{heterogeneous_forward.1} parent=0 // pred_fallthru
    _
  %v158 = vld [vmem:[%s1] sm:$0xff]
  %v159 = vld [vmem:[%s1 + $0x8] sm:$0xff]
  %v160 = vld [vmem:[%s3] sm:$0xff]
  %v161 = vld [vmem:[%s3 + $0x8] sm:$0xff]
  %v162 = vld [vmem:[%s3 + $0x10] sm:$0xff]
  %v163 = vld [vmem:[%s3 + $0x18] sm:$0xff]
  %v164 = vld [vmem:[%s3 + $0x20] sm:$0xff]
  %v165 = vld [vmem:[%s3 + $0x28] sm:$0xff]
  %v166 = vld [vmem:[%s3 + $0x30] sm:$0xff]
  %v167 = vld [vmem:[%s3 + $0x38] sm:$0xff]
  %v168 = vld [vmem:[%s3 + $0x40] sm:$0xff]
  %v169 = vld [vmem:[%s3 + $0x48] sm:$0xff]
  %v170 = vld [vmem:[%s3 + $0x50] sm:$0xff]
  %v171 = vld [vmem:[%s3 + $0x58] sm:$0xff]
  %v172 = vld [vmem:[%s5] sm:$0xff]
  %v173 = vld [vmem:[%s5 + $0x8] sm:$0xff]
  %v174 = vld [vmem:[%s5 + $0x10] sm:$0xff]
  %v175 = vld [vmem:[%s5 + $0x18] sm:$0xff]
  %v176 = vld [vmem:[%s5 + $0x20] sm:$0xff]
  %v177 = vld [vmem:[%s5 + $0x28] sm:$0xff]
  %v178 = vld [vmem:[%s5 + $0x30] sm:$0xff]
  %v179 = vld [vmem:[%s5 + $0x38] sm:$0xff]
  %v180 = vld [vmem:[%s5 + $0x40] sm:$0xff]
  %v181 = vld [vmem:[%s5 + $0x48] sm:$0xff]
  %v182 = vld [vmem:[%s5 + $0x50] sm:$0xff]
  %v183 = vld [vmem:[%s5 + $0x58] sm:$0xff]
  %v184 = vld [vmem:[%s5 + $0x60] sm:$0xff]
  %v185 = vld [vmem:[%s5 + $0x68] sm:$0xff]
  %v186 = vld [vmem:[%s5 + $0x70] sm:$0xff]
  %v187 = vld [vmem:[%s5 + $0x78] sm:$0xff]
  %v188 = vld [vmem:[%s5 + $0x80] sm:$0xff]
  %v189 = vld [vmem:[%s5 + $0x88] sm:$0xff]
  %v190 = vld [vmem:[%s5 + $0x90] sm:$0xff]
  %v191 = vld [vmem:[%s5 + $0x98] sm:$0xff]
  %v192 = vld [vmem:[%s5 + $0xa0] sm:$0xff]
  %v193 = vld [vmem:[%s5 + $0xa8] sm:$0xff]
  %v194 = vld [vmem:[%s5 + $0xb0] sm:$0xff]
  %v195 = vld [vmem:[%s5 + $0xb8] sm:$0xff]
  %v196 = vld [vmem:[%s5 + $0xc0] sm:$0xff]
  %v197 = vld [vmem:[%s5 + $0xc8] sm:$0xff]
  %v198 = vld [vmem:[%s5 + $0xd0] sm:$0xff]
  %v199 = vld [vmem:[%s5 + $0xd8] sm:$0xff]
  %v200 = vld [vmem:[%s5 + $0xe0] sm:$0xff]
  %v201 = vld [vmem:[%s5 + $0xe8] sm:$0xff]
  %v202 = vld [vmem:[%s5 + $0xf0] sm:$0xff]
  %v203 = vld [vmem:[%s5 + $0xf8] sm:$0xff]
  %v204 = vld [vmem:[%s7] sm:$0xff]
  %v205 = vld [vmem:[%s7 + $0x8] sm:$0xff]
  %v206 = vld [vmem:[%s7 + $0x10] sm:$0xff]
  %v207 = vld [vmem:[%s7 + $0x18] sm:$0xff]
  %v208 = vld [vmem:[%s7 + $0x20] sm:$0xff]
  %v209 = vld [vmem:[%s7 + $0x28] sm:$0xff]
  %v210 = vld [vmem:[%s7 + $0x30] sm:$0xff]
  %v211 = vld [vmem:[%s7 + $0x38] sm:$0xff]
  %v212 = vld [vmem:[%s7 + $0x40] sm:$0xff]
  %v213 = vld [vmem:[%s7 + $0x48] sm:$0xff]
  %v214 = vld [vmem:[%s7 + $0x50] sm:$0xff]
  %v215 = vld [vmem:[%s7 + $0x58] sm:$0xff]
  %v216 = vld [vmem:[%s7 + $0x60] sm:$0xff]
  %v217 = vld [vmem:[%s7 + $0x68] sm:$0xff]
  %v218 = vld [vmem:[%s7 + $0x70] sm:$0xff]
  %v219 = vld [vmem:[%s7 + $0x78] sm:$0xff]
  %v220 = vld [vmem:[%s7 + $0x80] sm:$0xff]
  %v221 = vld [vmem:[%s7 + $0x88] sm:$0xff]
  %v222 = vld [vmem:[%s7 + $0x90] sm:$0xff]
  %v223 = vld [vmem:[%s7 + $0x98] sm:$0xff]
  %v224 = vld [vmem:[%s7 + $0xa0] sm:$0xff]
  %v225 = vld [vmem:[%s7 + $0xa8] sm:$0xff]
  %v226 = vld [vmem:[%s7 + $0xb0] sm:$0xff]
  %v227 = vld [vmem:[%s7 + $0xb8] sm:$0xff]
  %v228 = vld [vmem:[%s7 + $0xc0] sm:$0xff]
  %v229 = vld [vmem:[%s7 + $0xc8] sm:$0xff]
  %v230 = vld [vmem:[%s7 + $0xd0] sm:$0xff]
  %v231 = vld [vmem:[%s7 + $0xd8] sm:$0xff]
  %v232 = vld [vmem:[%s7 + $0xe0] sm:$0xff]
  %v233 = vld [vmem:[%s7 + $0xe8] sm:$0xff]
  %v234 = vld [vmem:[%s7 + $0xf0] sm:$0xff]
  %v235 = vld [vmem:[%s7 + $0xf8] sm:$0xff]
  %v236 = vld [vmem:[%s9] sm:$0xff]
  %v237 = vld [vmem:[%s9 + $0x8] sm:$0xff]
  %v238 = vld [vmem:[%s9 + $0x10] sm:$0xff]
  %v239 = vld [vmem:[%s9 + $0x18] sm:$0xff]
  %v240 = vld [vmem:[%s9 + $0x20] sm:$0xff]
  %v241 = vld [vmem:[%s9 + $0x28] sm:$0xff]
  %v242 = vld [vmem:[%s9 + $0x30] sm:$0xff]
  %v243 = vld [vmem:[%s9 + $0x38] sm:$0xff]
  %v244 = vld [vmem:[%s9 + $0x40] sm:$0xff]
  %v245 = vld [vmem:[%s9 + $0x48] sm:$0xff]
  %v246 = vld [vmem:[%s9 + $0x50] sm:$0xff]
  %v247 = vld [vmem:[%s9 + $0x58] sm:$0xff]
  %v248 = vld [vmem:[%s9 + $0x60] sm:$0xff]
  %v249 = vld [vmem:[%s9 + $0x68] sm:$0xff]
  %v250 = vld [vmem:[%s9 + $0x70] sm:$0xff]
  %v251 = vld [vmem:[%s9 + $0x78] sm:$0xff]
  %v252 = vld [vmem:[%s9 + $0x80] sm:$0xff]
  %v253 = vld [vmem:[%s9 + $0x88] sm:$0xff]
  %v254 = vld [vmem:[%s9 + $0x90] sm:$0xff]
  %v255 = vld [vmem:[%s9 + $0x98] sm:$0xff]
  %v256 = vld [vmem:[%s9 + $0xa0] sm:$0xff]
  %v257 = vld [vmem:[%s9 + $0xa8] sm:$0xff]
  %v258 = vld [vmem:[%s9 + $0xb0] sm:$0xff]
  %v259 = vld [vmem:[%s9 + $0xb8] sm:$0xff]
  %v260 = vld [vmem:[%s9 + $0xc0] sm:$0xff]
  %v261 = vld [vmem:[%s9 + $0xc8] sm:$0xff]
  %v262 = vld [vmem:[%s9 + $0xd0] sm:$0xff]
  %v263 = vld [vmem:[%s9 + $0xd8] sm:$0xff]
  %v264 = vld [vmem:[%s9 + $0xe0] sm:$0xff]
  %v265 = vld [vmem:[%s9 + $0xe8] sm:$0xff]
  %v266 = vld [vmem:[%s9 + $0xf0] sm:$0xff]
  %v267 = vld [vmem:[%s9 + $0xf8] sm:$0xff]
  %v268 = vld [vmem:[%s9 + $0x100] sm:$0xff]
  %v269 = vld [vmem:[%s9 + $0x108] sm:$0xff]
  %v270 = vld [vmem:[%s9 + $0x110] sm:$0xff]
  %v271 = vld [vmem:[%s9 + $0x118] sm:$0xff]
  %v272 = vld [vmem:[%s9 + $0x120] sm:$0xff]
  %v273 = vld [vmem:[%s9 + $0x128] sm:$0xff]
  %v274 = vld [vmem:[%s9 + $0x130] sm:$0xff]
  %v275 = vld [vmem:[%s9 + $0x138] sm:$0xff]
  %v276 = vld [vmem:[%s9 + $0x140] sm:$0xff]
  %v277 = vld [vmem:[%s9 + $0x148] sm:$0xff]
  %v278 = vld [vmem:[%s9 + $0x150] sm:$0xff]
  %v279 = vld [vmem:[%s9 + $0x158] sm:$0xff]
  %v280 = vld [vmem:[%s9 + $0x160] sm:$0xff]
  %v281 = vld [vmem:[%s9 + $0x168] sm:$0xff]
  %v282 = vld [vmem:[%s9 + $0x170] sm:$0xff]
  %v283 = vld [vmem:[%s9 + $0x178] sm:$0xff]
  %v284 = vld [vmem:[%s9 + $0x180] sm:$0xff]
  %v285 = vld [vmem:[%s9 + $0x188] sm:$0xff]
  %v286 = vld [vmem:[%s9 + $0x190] sm:$0xff]
  %v287 = vld [vmem:[%s9 + $0x198] sm:$0xff]
  %v288 = vld [vmem:[%s9 + $0x1a0] sm:$0xff]
  %v289 = vld [vmem:[%s9 + $0x1a8] sm:$0xff]
  %v290 = vld [vmem:[%s9 + $0x1b0] sm:$0xff]
  %v291 = vld [vmem:[%s9 + $0x1b8] sm:$0xff]
  %v292 = vld [vmem:[%s9 + $0x1c0] sm:$0xff]
  %v293 = vld [vmem:[%s9 + $0x1c8] sm:$0xff]
  %v294 = vld [vmem:[%s9 + $0x1d0] sm:$0xff]
  %v295 = vld [vmem:[%s9 + $0x1d8] sm:$0xff]
  %v296 = vld [vmem:[%s9 + $0x1e0] sm:$0xff]
  %v297 = vld [vmem:[%s9 + $0x1e8] sm:$0xff]
  %v298 = vld [vmem:[%s9 + $0x1f0] sm:$0xff]
  %v299 = vld [vmem:[%s9 + $0x1f8] sm:$0xff]
  %v300 = vld [vmem:[%s11] sm:$0xff]
  %v301 = vld [vmem:[%s11 + $0x8] sm:$0xff]
  %v302 = vld [vmem:[%s11 + $0x10] sm:$0xff]
  %v303 = vld [vmem:[%s11 + $0x18] sm:$0xff]
  %v304 = vld [vmem:[%s11 + $0x20] sm:$0xff]
  %v305 = vld [vmem:[%s11 + $0x28] sm:$0xff]
  %v306 = vld [vmem:[%s11 + $0x30] sm:$0xff]
  %v307 = vld [vmem:[%s11 + $0x38] sm:$0xff]
  %v308 = vld [vmem:[%s11 + $0x40] sm:$0xff]
  %v309 = vld [vmem:[%s11 + $0x48] sm:$0xff]
  %v310 = vld [vmem:[%s11 + $0x50] sm:$0xff]
  %v311 = vld [vmem:[%s11 + $0x58] sm:$0xff]
  %v312 = vld [vmem:[%s11 + $0x60] sm:$0xff]
  %v313 = vld [vmem:[%s11 + $0x68] sm:$0xff]
  %v314 = vld [vmem:[%s11 + $0x70] sm:$0xff]
  %v315 = vld [vmem:[%s11 + $0x78] sm:$0xff]
  %v316 = vld [vmem:[%s11 + $0x80] sm:$0xff]
  %v317 = vld [vmem:[%s11 + $0x88] sm:$0xff]
  %v318 = vld [vmem:[%s11 + $0x90] sm:$0xff]
  %v319 = vld [vmem:[%s11 + $0x98] sm:$0xff]
  %v320 = vld [vmem:[%s11 + $0xa0] sm:$0xff]
  %v321 = vld [vmem:[%s11 + $0xa8] sm:$0xff]
  %v322 = vld [vmem:[%s11 + $0xb0] sm:$0xff]
  %v323 = vld [vmem:[%s11 + $0xb8] sm:$0xff]
  %v324 = vld [vmem:[%s11 + $0xc0] sm:$0xff]
  %v325 = vld [vmem:[%s11 + $0xc8] sm:$0xff]
  %v326 = vld [vmem:[%s11 + $0xd0] sm:$0xff]
  %v327 = vld [vmem:[%s11 + $0xd8] sm:$0xff]
  %v328 = vld [vmem:[%s11 + $0xe0] sm:$0xff]
  %v329 = vld [vmem:[%s11 + $0xe8] sm:$0xff]
  %v330 = vld [vmem:[%s11 + $0xf0] sm:$0xff]
  %v331 = vld [vmem:[%s11 + $0xf8] sm:$0xff]
  %v332 = vld [vmem:[%s13] sm:$0xff]
  %v333 = vld [vmem:[%s13 + $0x8] sm:$0xff]
  %v334 = vld [vmem:[%s13 + $0x10] sm:$0xff]
  %v335 = vld [vmem:[%s13 + $0x18] sm:$0xff]
  %v336 = vld [vmem:[%s13 + $0x20] sm:$0xff]
  %v337 = vld [vmem:[%s13 + $0x28] sm:$0xff]
  %v338 = vld [vmem:[%s13 + $0x30] sm:$0xff]
  %v339 = vld [vmem:[%s13 + $0x38] sm:$0xff]
  %v340 = vld [vmem:[%s13 + $0x40] sm:$0xff]
  %v341 = vld [vmem:[%s13 + $0x48] sm:$0xff]
  %v342 = vld [vmem:[%s13 + $0x50] sm:$0xff]
  %v343 = vld [vmem:[%s13 + $0x58] sm:$0xff]
  %v344 = vld [vmem:[%s13 + $0x60] sm:$0xff]
  %v345 = vld [vmem:[%s13 + $0x68] sm:$0xff]
  %v346 = vld [vmem:[%s13 + $0x70] sm:$0xff]
  %v347 = vld [vmem:[%s13 + $0x78] sm:$0xff]
  %v348 = vld [vmem:[%s13 + $0x80] sm:$0xff]
  %v349 = vld [vmem:[%s13 + $0x88] sm:$0xff]
  %v350 = vld [vmem:[%s13 + $0x90] sm:$0xff]
  %v351 = vld [vmem:[%s13 + $0x98] sm:$0xff]
  %v352 = vld [vmem:[%s13 + $0xa0] sm:$0xff]
  %v353 = vld [vmem:[%s13 + $0xa8] sm:$0xff]
  %v354 = vld [vmem:[%s13 + $0xb0] sm:$0xff]
  %v355 = vld [vmem:[%s13 + $0xb8] sm:$0xff]
  %v356 = vld [vmem:[%s13 + $0xc0] sm:$0xff]
  %v357 = vld [vmem:[%s13 + $0xc8] sm:$0xff]
  %v358 = vld [vmem:[%s13 + $0xd0] sm:$0xff]
  %v359 = vld [vmem:[%s13 + $0xd8] sm:$0xff]
  %v360 = vld [vmem:[%s13 + $0xe0] sm:$0xff]
  %v361 = vld [vmem:[%s13 + $0xe8] sm:$0xff]
  %v362 = vld [vmem:[%s13 + $0xf0] sm:$0xff]
  %v363 = vld [vmem:[%s13 + $0xf8] sm:$0xff]
  %v364 = vld [vmem:[%s15] sm:$0xff]
  %v365 = vld [vmem:[%s15 + $0x8] sm:$0xff]
  %v366 = vld [vmem:[%s15 + $0x10] sm:$0xff]
  %v367 = vld [vmem:[%s15 + $0x18] sm:$0xff]
  %v368 = vld [vmem:[%s15 + $0x20] sm:$0xff]
  %v369 = vld [vmem:[%s15 + $0x28] sm:$0xff]
  %v370 = vld [vmem:[%s15 + $0x30] sm:$0xff]
  %v371 = vld [vmem:[%s15 + $0x38] sm:$0xff]
  %v372 = vld [vmem:[%s15 + $0x40] sm:$0xff]
  %v373 = vld [vmem:[%s15 + $0x48] sm:$0xff]
  %v374 = vld [vmem:[%s15 + $0x50] sm:$0xff]
  %v375 = vld [vmem:[%s15 + $0x58] sm:$0xff]
  %v376 = vld [vmem:[%s15 + $0x60] sm:$0xff]
  %v377 = vld [vmem:[%s15 + $0x68] sm:$0xff]
  %v378 = vld [vmem:[%s15 + $0x70] sm:$0xff]
  %v379 = vld [vmem:[%s15 + $0x78] sm:$0xff]
  %v380 = vld [vmem:[%s17] sm:$0xff]
  %v381 = vld [vmem:[%s17 + $0x8] sm:$0xff]
  %v382 = vld [vmem:[%s17 + $0x10] sm:$0xff]
  %v383 = vld [vmem:[%s17 + $0x18] sm:$0xff]
  %v384 = vld [vmem:[%s17 + $0x20] sm:$0xff]
  %v385 = vld [vmem:[%s17 + $0x28] sm:$0xff]
  %v386 = vld [vmem:[%s17 + $0x30] sm:$0xff]
  %v387 = vld [vmem:[%s17 + $0x38] sm:$0xff]
  %v388 = vld [vmem:[%s17 + $0x40] sm:$0xff]
  %v389 = vld [vmem:[%s17 + $0x48] sm:$0xff]
  %v390 = vld [vmem:[%s17 + $0x50] sm:$0xff]
  %v391 = vld [vmem:[%s17 + $0x58] sm:$0xff]
  %v392 = vld [vmem:[%s17 + $0x60] sm:$0xff]
  %v393 = vld [vmem:[%s17 + $0x68] sm:$0xff]
  %v394 = vld [vmem:[%s17 + $0x70] sm:$0xff]
  %v395 = vld [vmem:[%s17 + $0x78] sm:$0xff]
  %v396 = vld [vmem:[%s19] sm:$0xff]
  %v397 = vld [vmem:[%s19 + $0x8] sm:$0xff]
  %v398 = vld [vmem:[%s19 + $0x10] sm:$0xff]
  %v399 = vld [vmem:[%s19 + $0x18] sm:$0xff]
  %v400 = vld [vmem:[%s19 + $0x20] sm:$0xff]
  %v401 = vld [vmem:[%s19 + $0x28] sm:$0xff]
  %v402 = vld [vmem:[%s19 + $0x30] sm:$0xff]
  %v403 = vld [vmem:[%s19 + $0x38] sm:$0xff]
  %v404 = vld [vmem:[%s19 + $0x40] sm:$0xff]
  %v405 = vld [vmem:[%s19 + $0x48] sm:$0xff]
  %v406 = vld [vmem:[%s19 + $0x50] sm:$0xff]
  %v407 = vld [vmem:[%s19 + $0x58] sm:$0xff]
  %v408 = vld [vmem:[%s19 + $0x60] sm:$0xff]
  %v409 = vld [vmem:[%s19 + $0x68] sm:$0xff]
  %v410 = vld [vmem:[%s19 + $0x70] sm:$0xff]
  %v411 = vld [vmem:[%s19 + $0x78] sm:$0xff]
  %v412 = vld [vmem:[%s21] sm:$0xff]
  %v413 = vld [vmem:[%s21 + $0x8] sm:$0xff]
  %v414 = vld [vmem:[%s21 + $0x10] sm:$0xff]
  %v415 = vld [vmem:[%s21 + $0x18] sm:$0xff]
  %v416 = vld [vmem:[%s21 + $0x20] sm:$0xff]
  %v417 = vld [vmem:[%s21 + $0x28] sm:$0xff]
  %v418 = vld [vmem:[%s21 + $0x30] sm:$0xff]
  %v419 = vld [vmem:[%s21 + $0x38] sm:$0xff]
  %v420 = vld [vmem:[%s21 + $0x40] sm:$0xff]
  %v421 = vld [vmem:[%s21 + $0x48] sm:$0xff]
  %v422 = vld [vmem:[%s21 + $0x50] sm:$0xff]
  %v423 = vld [vmem:[%s21 + $0x58] sm:$0xff]
  %v424 = vld [vmem:[%s21 + $0x60] sm:$0xff]
  %v425 = vld [vmem:[%s21 + $0x68] sm:$0xff]
  %v426 = vld [vmem:[%s21 + $0x70] sm:$0xff]
  %v427 = vld [vmem:[%s21 + $0x78] sm:$0xff]
  %v428 = vld [vmem:[%s23] sm:$0xff]
  %v429 = vld [vmem:[%s23 + $0x8] sm:$0xff]
  %v430 = vld [vmem:[%s23 + $0x10] sm:$0xff]
  %v431 = vld [vmem:[%s23 + $0x18] sm:$0xff]
  %v432 = vld [vmem:[%s23 + $0x20] sm:$0xff]
  %v433 = vld [vmem:[%s23 + $0x28] sm:$0xff]
  %v434 = vld [vmem:[%s23 + $0x30] sm:$0xff]
  %v435 = vld [vmem:[%s23 + $0x38] sm:$0xff]
  %v436 = vld [vmem:[%s23 + $0x40] sm:$0xff]
  %v437 = vld [vmem:[%s23 + $0x48] sm:$0xff]
  %v438 = vld [vmem:[%s23 + $0x50] sm:$0xff]
  %v439 = vld [vmem:[%s23 + $0x58] sm:$0xff]
  %v440 = vld [vmem:[%s23 + $0x60] sm:$0xff]
  %v441 = vld [vmem:[%s23 + $0x68] sm:$0xff]
  %v442 = vld [vmem:[%s23 + $0x70] sm:$0xff]
  %v443 = vld [vmem:[%s23 + $0x78] sm:$0xff]
  %v444 = vld [vmem:[%s25] sm:$0xff]
  %v445 = vld [vmem:[%s25 + $0x8] sm:$0xff]
  %v446 = vld [vmem:[%s25 + $0x10] sm:$0xff]
  %v447 = vld [vmem:[%s25 + $0x18] sm:$0xff]
  %v448 = vld [vmem:[%s25 + $0x20] sm:$0xff]
  %v449 = vld [vmem:[%s25 + $0x28] sm:$0xff]
  %v450 = vld [vmem:[%s25 + $0x30] sm:$0xff]
  %v451 = vld [vmem:[%s25 + $0x38] sm:$0xff]
  %v452 = vld [vmem:[%s27] sm:$0xff]
  %v453 = vld [vmem:[%s27 + $0x8] sm:$0xff]
  %v454 = vld [vmem:[%s27 + $0x10] sm:$0xff]
  %v455 = vld [vmem:[%s27 + $0x18] sm:$0xff]
  %v456 = vld [vmem:[%s27 + $0x20] sm:$0xff]
  %v457 = vld [vmem:[%s27 + $0x28] sm:$0xff]
  %v458 = vld [vmem:[%s27 + $0x30] sm:$0xff]
  %v459 = vld [vmem:[%s27 + $0x38] sm:$0xff]
  %v460 = vld [vmem:[%s29] sm:$0xff]
  %v461 = vld [vmem:[%s29 + $0x8] sm:$0xff]
  %v462 = vld [vmem:[%s29 + $0x10] sm:$0xff]
  %v463 = vld [vmem:[%s29 + $0x18] sm:$0xff]
  %v464 = vld [vmem:[%s29 + $0x20] sm:$0xff]
  %v465 = vld [vmem:[%s29 + $0x28] sm:$0xff]
  %v466 = vld [vmem:[%s29 + $0x30] sm:$0xff]
  %v467 = vld [vmem:[%s29 + $0x38] sm:$0xff]
  %v468 = vld [vmem:[%s31] sm:$0xff]
  %v469 = vld [vmem:[%s31 + $0x8] sm:$0xff]
  %v470 = vld [vmem:[%s31 + $0x10] sm:$0xff]
  %v471 = vld [vmem:[%s31 + $0x18] sm:$0xff]
  %v472 = vld [vmem:[%s33] sm:$0xff]
  %v473 = vld [vmem:[%s33 + $0x8] sm:$0xff]
  %v474 = vld [vmem:[%s33 + $0x10] sm:$0xff]
  %v475 = vld [vmem:[%s33 + $0x18] sm:$0xff]
  %v476 = vld [vmem:[%s35] sm:$0xff]
  %v477 = vld [vmem:[%s35 + $0x8] sm:$0xff]
  %v478 = vld [vmem:[%s35 + $0x10] sm:$0xff]
  %v479 = vld [vmem:[%s35 + $0x18] sm:$0xff]
  %v480 = vld [vmem:[%s37] sm:$0xff]
  %v481 = vld [vmem:[%s37 + $0x8] sm:$0xff]
  %v482 = vld [vmem:[%s37 + $0x10] sm:$0xff]
  %v483 = vld [vmem:[%s37 + $0x18] sm:$0xff]
  %v484 = vld [vmem:[%s39] sm:$0xff]
  %v485 = vld [vmem:[%s39 + $0x8] sm:$0xff]
  %v486 = vld [vmem:[%s39 + $0x10] sm:$0xff]
  %v487 = vld [vmem:[%s39 + $0x18] sm:$0xff]
  %v488 = vld [vmem:[%s41] sm:$0xff]
  %v489 = vld [vmem:[%s41 + $0x8] sm:$0xff]
  %v490 = vld [vmem:[%s41 + $0x10] sm:$0xff]
  %v491 = vld [vmem:[%s41 + $0x18] sm:$0xff]
  %v492 = vld [vmem:[%s43] sm:$0xff]
  %v493 = vld [vmem:[%s43 + $0x8] sm:$0xff]
  %v494 = vld [vmem:[%s43 + $0x10] sm:$0xff]
  %v495 = vld [vmem:[%s43 + $0x18] sm:$0xff]
  %v496 = vld [vmem:[%s45] sm:$0xff]
  %v497 = vld [vmem:[%s45 + $0x8] sm:$0xff]
  %v498 = vld [vmem:[%s45 + $0x10] sm:$0xff]
  %v499 = vld [vmem:[%s45 + $0x18] sm:$0xff]
  %v500 = vld [vmem:[%s47] sm:$0xff]
  %v501 = vld [vmem:[%s47 + $0x8] sm:$0xff]
  %v502 = vld [vmem:[%s47 + $0x10] sm:$0xff]
  %v503 = vld [vmem:[%s47 + $0x18] sm:$0xff]
  %v504 = vld [vmem:[%s49] sm:$0xff]
  %v505 = vld [vmem:[%s49 + $0x8] sm:$0xff]
  %v506 = vld [vmem:[%s49 + $0x10] sm:$0xff]
  %v507 = vld [vmem:[%s49 + $0x18] sm:$0xff]
  %v508 = vld [vmem:[%s51] sm:$0xff]
  %v509 = vld [vmem:[%s51 + $0x8] sm:$0xff]
  %v510 = vld [vmem:[%s51 + $0x10] sm:$0xff]
  %v511 = vld [vmem:[%s51 + $0x18] sm:$0xff]
  %v512 = vld [vmem:[%s53] sm:$0xff]
  %v513 = vld [vmem:[%s53 + $0x8] sm:$0xff]
  %v514 = vld [vmem:[%s53 + $0x10] sm:$0xff]
  %v515 = vld [vmem:[%s53 + $0x18] sm:$0xff]
  %v516 = vld [vmem:[%s55] sm:$0xff]
  %v517 = vld [vmem:[%s55 + $0x8] sm:$0xff]
  %v518 = vld [vmem:[%s55 + $0x10] sm:$0xff]
  %v519 = vld [vmem:[%s55 + $0x18] sm:$0xff]
  %v520 = vld [vmem:[%s57] sm:$0xf]
  %v521 = vld [vmem:[%s59] sm:$0xf]
  %v522 = vld [vmem:[%s61] sm:$0xf]
  %v523 = vld [vmem:[%s63] sm:$0xff]
  %v524 = vld [vmem:[%s63 + $0x8] sm:$0xff]
  %v525 = vld [vmem:[%s65] sm:$0x1]
  %v526 = vld [vmem:[%s67] sm:$0xff]
  %v527 = vld [vmem:[%s67 + $0x8] sm:$0xff]
  %v528 = vld [vmem:[%s67 + $0x10] sm:$0xff]
  %v529 = vld [vmem:[%s67 + $0x18] sm:$0xff]
  %v530 = vld [vmem:[%s69] sm:$0x1]
  %v531 = vld [vmem:[%s71] sm:$0xf]
  %v532 = vld [vmem:[%s73] sm:$0xf]
  %v533 = vld [vmem:[%s75] sm:$0xf]
  %535 = vset.pattern.permute.xlu0 0
  %536 = vperm.xlu0 %535, %v204
  %v537 = vpop.permute.xlu0 %536
  %540 = vset.pattern.permute.xlu0 0
  %541 = vperm.xlu0 %540, %v205
  %v542 = vpop.permute.xlu0 %541
  %545 = vset.pattern.permute.xlu0 0
  %546 = vperm.xlu0 %545, %v206
  %v547 = vpop.permute.xlu0 %546
  %550 = vset.pattern.permute.xlu0 0
  %551 = vperm.xlu0 %550, %v207
  %v552 = vpop.permute.xlu0 %551
  %555 = vset.pattern.permute.xlu0 0
  %556 = vperm.xlu0 %555, %v208
  %v557 = vpop.permute.xlu0 %556
  %560 = vset.pattern.permute.xlu0 0
  %561 = vperm.xlu0 %560, %v209
  %v562 = vpop.permute.xlu0 %561
  %565 = vset.pattern.permute.xlu0 0
  %566 = vperm.xlu0 %565, %v210
  %v567 = vpop.permute.xlu0 %566
  %570 = vset.pattern.permute.xlu0 0
  %571 = vperm.xlu0 %570, %v211
  %v572 = vpop.permute.xlu0 %571
  %575 = vset.pattern.permute.xlu0 0
  %576 = vperm.xlu0 %575, %v212
  %v577 = vpop.permute.xlu0 %576
  %580 = vset.pattern.permute.xlu0 0
  %581 = vperm.xlu0 %580, %v213
  %v582 = vpop.permute.xlu0 %581
  %585 = vset.pattern.permute.xlu0 0
  %586 = vperm.xlu0 %585, %v214
  %v587 = vpop.permute.xlu0 %586
  %590 = vset.pattern.permute.xlu0 0
  %591 = vperm.xlu0 %590, %v215
  %v592 = vpop.permute.xlu0 %591
  %595 = vset.pattern.permute.xlu0 0
  %596 = vperm.xlu0 %595, %v216
  %v597 = vpop.permute.xlu0 %596
  %600 = vset.pattern.permute.xlu0 0
  %601 = vperm.xlu0 %600, %v217
  %v602 = vpop.permute.xlu0 %601
  %605 = vset.pattern.permute.xlu0 0
  %606 = vperm.xlu0 %605, %v218
  %v607 = vpop.permute.xlu0 %606
  %610 = vset.pattern.permute.xlu0 0
  %611 = vperm.xlu0 %610, %v219
  %v612 = vpop.permute.xlu0 %611
  %615 = vset.pattern.permute.xlu0 0
  %616 = vperm.xlu0 %615, %v220
  %v617 = vpop.permute.xlu0 %616
  %620 = vset.pattern.permute.xlu0 0
  %621 = vperm.xlu0 %620, %v221
  %v622 = vpop.permute.xlu0 %621
  %625 = vset.pattern.permute.xlu0 0
  %626 = vperm.xlu0 %625, %v222
  %v627 = vpop.permute.xlu0 %626
  %630 = vset.pattern.permute.xlu0 0
  %631 = vperm.xlu0 %630, %v223
  %v632 = vpop.permute.xlu0 %631
  %635 = vset.pattern.permute.xlu0 0
  %636 = vperm.xlu0 %635, %v224
  %v637 = vpop.permute.xlu0 %636
  %640 = vset.pattern.permute.xlu0 0
  %641 = vperm.xlu0 %640, %v225
  %v642 = vpop.permute.xlu0 %641
  %645 = vset.pattern.permute.xlu0 0
  %646 = vperm.xlu0 %645, %v226
  %v647 = vpop.permute.xlu0 %646
  %650 = vset.pattern.permute.xlu0 0
  %651 = vperm.xlu0 %650, %v227
  %v652 = vpop.permute.xlu0 %651
  %655 = vset.pattern.permute.xlu0 0
  %656 = vperm.xlu0 %655, %v228
  %v657 = vpop.permute.xlu0 %656
  %660 = vset.pattern.permute.xlu0 0
  %661 = vperm.xlu0 %660, %v229
  %v662 = vpop.permute.xlu0 %661
  %665 = vset.pattern.permute.xlu0 0
  %666 = vperm.xlu0 %665, %v230
  %v667 = vpop.permute.xlu0 %666
  %670 = vset.pattern.permute.xlu0 0
  %671 = vperm.xlu0 %670, %v231
  %v672 = vpop.permute.xlu0 %671
  %675 = vset.pattern.permute.xlu0 0
  %676 = vperm.xlu0 %675, %v232
  %v677 = vpop.permute.xlu0 %676
  %680 = vset.pattern.permute.xlu0 0
  %681 = vperm.xlu0 %680, %v233
  %v682 = vpop.permute.xlu0 %681
  %685 = vset.pattern.permute.xlu0 0
  %686 = vperm.xlu0 %685, %v234
  %v687 = vpop.permute.xlu0 %686
  %690 = vset.pattern.permute.xlu0 0
  %691 = vperm.xlu0 %690, %v235
  %v692 = vpop.permute.xlu0 %691
  %vm694 = vcmask 130048
  %v696 = vsel %vm694, %v172, 0
  %v699 = vsel %vm694, %v173, 0
  %v702 = vsel %vm694, %v174, 0
  %v705 = vsel %vm694, %v175, 0
  %v708 = vsel %vm694, %v176, 0
  %v711 = vsel %vm694, %v177, 0
  %v714 = vsel %vm694, %v178, 0
  %v717 = vsel %vm694, %v179, 0
  %v720 = vsel %vm694, %v180, 0
  %v723 = vsel %vm694, %v181, 0
  %v726 = vsel %vm694, %v182, 0
  %v729 = vsel %vm694, %v183, 0
  %v732 = vsel %vm694, %v184, 0
  %v735 = vsel %vm694, %v185, 0
  %v738 = vsel %vm694, %v186, 0
  %v741 = vsel %vm694, %v187, 0
  %v744 = vsel %vm694, %v188, 0
  %v747 = vsel %vm694, %v189, 0
  %v750 = vsel %vm694, %v190, 0
  %v753 = vsel %vm694, %v191, 0
  %v756 = vsel %vm694, %v192, 0
  %v759 = vsel %vm694, %v193, 0
  %v762 = vsel %vm694, %v194, 0
  %v765 = vsel %vm694, %v195, 0
  %v768 = vsel %vm694, %v196, 0
  %v771 = vsel %vm694, %v197, 0
  %v774 = vsel %vm694, %v198, 0
  %v777 = vsel %vm694, %v199, 0
  %v780 = vsel %vm694, %v200, 0
  %v783 = vsel %vm694, %v201, 0
  %v786 = vsel %vm694, %v202, 0
  %v789 = vsel %vm694, %v203, 0
  %791 = vmatpush.msra.mxu0 0.0
  %792 = vmatpush.msra.mxu0 0.0
  %793 = vmatpush.msra.mxu0 0.0
  %794 = vmatpush.msra.mxu0 0.0
  %795 = vmatpush.msra.mxu0 0.0
  %796 = vmatpush.msra.mxu0 0.0
  %797 = vmatpush.msra.mxu0 0.0
  %798 = vmatpush.msra.mxu0 0.0
  %799 = vmatpush.msra.mxu0 0.0
  %800 = vmatpush.msra.mxu0 0.0
  %801 = vmatpush.msra.mxu0 0.0
  %802 = vmatpush.msra.mxu0 0.0
  %803 = vmatpush.msra.mxu0 0.0
  %804 = vmatpush.msra.mxu0 0.0
  %805 = vmatpush.msra.mxu0 %v159
  %806 = vmatpush.msra.mxu0 %v158
  %807 = vmatmul.f32.gmra.mxu0 %v696
  %v808 = vpop.f32.mrf.mxu0
  %v809 = vadd.f32 %v537, %v808
  %810 = vmatmul.f32.gmra.mxu0 %v699
  %v811 = vpop.f32.mrf.mxu0
  %v812 = vadd.f32 %v542, %v811
  %813 = vmatmul.f32.gmra.mxu0 %v702
  %v814 = vpop.f32.mrf.mxu0
  %v815 = vadd.f32 %v547, %v814
  %816 = vmatmul.f32.gmra.mxu0 %v705
  %v817 = vpop.f32.mrf.mxu0
  %v818 = vadd.f32 %v552, %v817
  %819 = vmatmul.f32.gmra.mxu0 %v708
  %v820 = vpop.f32.mrf.mxu0
  %v821 = vadd.f32 %v557, %v820
  %822 = vmatmul.f32.gmra.mxu0 %v711
  %v823 = vpop.f32.mrf.mxu0
  %v824 = vadd.f32 %v562, %v823
  %825 = vmatmul.f32.gmra.mxu0 %v714
  %v826 = vpop.f32.mrf.mxu0
  %v827 = vadd.f32 %v567, %v826
  %828 = vmatmul.f32.gmra.mxu0 %v717
  %v829 = vpop.f32.mrf.mxu0
  %v830 = vadd.f32 %v572, %v829
  %831 = vmatmul.f32.gmra.mxu0 %v720
  %v832 = vpop.f32.mrf.mxu0
  %v833 = vadd.f32 %v577, %v832
  %834 = vmatmul.f32.gmra.mxu0 %v723
  %v835 = vpop.f32.mrf.mxu0
  %v836 = vadd.f32 %v582, %v835
  %837 = vmatmul.f32.gmra.mxu0 %v726
  %v838 = vpop.f32.mrf.mxu0
  %v839 = vadd.f32 %v587, %v838
  %840 = vmatmul.f32.gmra.mxu0 %v729
  %v841 = vpop.f32.mrf.mxu0
  %v842 = vadd.f32 %v592, %v841
  %843 = vmatmul.f32.gmra.mxu0 %v732
  %v844 = vpop.f32.mrf.mxu0
  %v845 = vadd.f32 %v597, %v844
  %846 = vmatmul.f32.gmra.mxu0 %v735
  %v847 = vpop.f32.mrf.mxu0
  %v848 = vadd.f32 %v602, %v847
  %849 = vmatmul.f32.gmra.mxu0 %v738
  %v850 = vpop.f32.mrf.mxu0
  %v851 = vadd.f32 %v607, %v850
  %852 = vmatmul.f32.gmra.mxu0 %v741
  %v853 = vpop.f32.mrf.mxu0
  %v854 = vadd.f32 %v612, %v853
  %855 = vmatmul.f32.gmra.mxu0 %v744
  %v856 = vpop.f32.mrf.mxu0
  %v857 = vadd.f32 %v617, %v856
  %858 = vmatmul.f32.gmra.mxu0 %v747
  %v859 = vpop.f32.mrf.mxu0
  %v860 = vadd.f32 %v622, %v859
  %861 = vmatmul.f32.gmra.mxu0 %v750
  %v862 = vpop.f32.mrf.mxu0
  %v863 = vadd.f32 %v627, %v862
  %864 = vmatmul.f32.gmra.mxu0 %v753
  %v865 = vpop.f32.mrf.mxu0
  %v866 = vadd.f32 %v632, %v865
  %867 = vmatmul.f32.gmra.mxu0 %v756
  %v868 = vpop.f32.mrf.mxu0
  %v869 = vadd.f32 %v637, %v868
  %870 = vmatmul.f32.gmra.mxu0 %v759
  %v871 = vpop.f32.mrf.mxu0
  %v872 = vadd.f32 %v642, %v871
  %873 = vmatmul.f32.gmra.mxu0 %v762
  %v874 = vpop.f32.mrf.mxu0
  %v875 = vadd.f32 %v647, %v874
  %876 = vmatmul.f32.gmra.mxu0 %v765
  %v877 = vpop.f32.mrf.mxu0
  %v878 = vadd.f32 %v652, %v877
  %879 = vmatmul.f32.gmra.mxu0 %v768
  %v880 = vpop.f32.mrf.mxu0
  %v881 = vadd.f32 %v657, %v880
  %882 = vmatmul.f32.gmra.mxu0 %v771
  %v883 = vpop.f32.mrf.mxu0
  %v884 = vadd.f32 %v662, %v883
  %885 = vmatmul.f32.gmra.mxu0 %v774
  %v886 = vpop.f32.mrf.mxu0
  %v887 = vadd.f32 %v667, %v886
  %888 = vmatmul.f32.gmra.mxu0 %v777
  %v889 = vpop.f32.mrf.mxu0
  %v890 = vadd.f32 %v672, %v889
  %891 = vmatmul.f32.gmra.mxu0 %v780
  %v892 = vpop.f32.mrf.mxu0
  %v893 = vadd.f32 %v677, %v892
  %894 = vmatmul.f32.gmra.mxu0 %v783
  %v895 = vpop.f32.mrf.mxu0
  %v896 = vadd.f32 %v682, %v895
  %897 = vmatmul.f32.gmra.mxu0 %v786
  %v898 = vpop.f32.mrf.mxu0
  %v899 = vadd.f32 %v687, %v898
  %900 = vmatmul.f32.gmra.mxu0 %v789
  %v901 = vpop.f32.mrf.mxu0
  %v902 = vadd.f32 %v692, %v901
  %903 = vdwg.mxu0
  %905 = vset.pattern.permute.xlu0 0
  %906 = vperm.xlu0 %905, %v300
  %v907 = vpop.permute.xlu0 %906
  %910 = vset.pattern.permute.xlu0 0
  %911 = vperm.xlu0 %910, %v301
  %v912 = vpop.permute.xlu0 %911
  %915 = vset.pattern.permute.xlu0 0
  %916 = vperm.xlu0 %915, %v302
  %v917 = vpop.permute.xlu0 %916
  %920 = vset.pattern.permute.xlu0 0
  %921 = vperm.xlu0 %920, %v303
  %v922 = vpop.permute.xlu0 %921
  %925 = vset.pattern.permute.xlu0 0
  %926 = vperm.xlu0 %925, %v304
  %v927 = vpop.permute.xlu0 %926
  %930 = vset.pattern.permute.xlu0 0
  %931 = vperm.xlu0 %930, %v305
  %v932 = vpop.permute.xlu0 %931
  %935 = vset.pattern.permute.xlu0 0
  %936 = vperm.xlu0 %935, %v306
  %v937 = vpop.permute.xlu0 %936
  %940 = vset.pattern.permute.xlu0 0
  %941 = vperm.xlu0 %940, %v307
  %v942 = vpop.permute.xlu0 %941
  %945 = vset.pattern.permute.xlu0 0
  %946 = vperm.xlu0 %945, %v308
  %v947 = vpop.permute.xlu0 %946
  %950 = vset.pattern.permute.xlu0 0
  %951 = vperm.xlu0 %950, %v309
  %v952 = vpop.permute.xlu0 %951
  %955 = vset.pattern.permute.xlu0 0
  %956 = vperm.xlu0 %955, %v310
  %v957 = vpop.permute.xlu0 %956
  %960 = vset.pattern.permute.xlu0 0
  %961 = vperm.xlu0 %960, %v311
  %v962 = vpop.permute.xlu0 %961
  %965 = vset.pattern.permute.xlu0 0
  %966 = vperm.xlu0 %965, %v312
  %v967 = vpop.permute.xlu0 %966
  %970 = vset.pattern.permute.xlu0 0
  %971 = vperm.xlu0 %970, %v313
  %v972 = vpop.permute.xlu0 %971
  %975 = vset.pattern.permute.xlu0 0
  %976 = vperm.xlu0 %975, %v314
  %v977 = vpop.permute.xlu0 %976
  %980 = vset.pattern.permute.xlu0 0
  %981 = vperm.xlu0 %980, %v315
  %v982 = vpop.permute.xlu0 %981
  %985 = vset.pattern.permute.xlu0 0
  %986 = vperm.xlu0 %985, %v316
  %v987 = vpop.permute.xlu0 %986
  %990 = vset.pattern.permute.xlu0 0
  %991 = vperm.xlu0 %990, %v317
  %v992 = vpop.permute.xlu0 %991
  %995 = vset.pattern.permute.xlu0 0
  %996 = vperm.xlu0 %995, %v318
  %v997 = vpop.permute.xlu0 %996
  %1000 = vset.pattern.permute.xlu0 0
  %1001 = vperm.xlu0 %1000, %v319
  %v1002 = vpop.permute.xlu0 %1001
  %1005 = vset.pattern.permute.xlu0 0
  %1006 = vperm.xlu0 %1005, %v320
  %v1007 = vpop.permute.xlu0 %1006
  %1010 = vset.pattern.permute.xlu0 0
  %1011 = vperm.xlu0 %1010, %v321
  %v1012 = vpop.permute.xlu0 %1011
  %1015 = vset.pattern.permute.xlu0 0
  %1016 = vperm.xlu0 %1015, %v322
  %v1017 = vpop.permute.xlu0 %1016
  %1020 = vset.pattern.permute.xlu0 0
  %1021 = vperm.xlu0 %1020, %v323
  %v1022 = vpop.permute.xlu0 %1021
  %1025 = vset.pattern.permute.xlu0 0
  %1026 = vperm.xlu0 %1025, %v324
  %v1027 = vpop.permute.xlu0 %1026
  %1030 = vset.pattern.permute.xlu0 0
  %1031 = vperm.xlu0 %1030, %v325
  %v1032 = vpop.permute.xlu0 %1031
  %1035 = vset.pattern.permute.xlu0 0
  %1036 = vperm.xlu0 %1035, %v326
  %v1037 = vpop.permute.xlu0 %1036
  %1040 = vset.pattern.permute.xlu0 0
  %1041 = vperm.xlu0 %1040, %v327
  %v1042 = vpop.permute.xlu0 %1041
  %1045 = vset.pattern.permute.xlu0 0
  %1046 = vperm.xlu0 %1045, %v328
  %v1047 = vpop.permute.xlu0 %1046
  %1050 = vset.pattern.permute.xlu0 0
  %1051 = vperm.xlu0 %1050, %v329
  %v1052 = vpop.permute.xlu0 %1051
  %1055 = vset.pattern.permute.xlu0 0
  %1056 = vperm.xlu0 %1055, %v330
  %v1057 = vpop.permute.xlu0 %1056
  %1060 = vset.pattern.permute.xlu0 0
  %1061 = vperm.xlu0 %1060, %v331
  %v1062 = vpop.permute.xlu0 %1061
  %1064 = vmatpush.msra.mxu0 %v854
  %1065 = vmatpush.msra.mxu0 %v851
  %1066 = vmatpush.msra.mxu0 %v848
  %1067 = vmatpush.msra.mxu0 %v845
  %1068 = vmatpush.msra.mxu0 %v842
  %1069 = vmatpush.msra.mxu0 %v839
  %1070 = vmatpush.msra.mxu0 %v836
  %1071 = vmatpush.msra.mxu0 %v833
  %1072 = vmatpush.msra.mxu0 %v830
  %1073 = vmatpush.msra.mxu0 %v827
  %1074 = vmatpush.msra.mxu0 %v824
  %1075 = vmatpush.msra.mxu0 %v821
  %1076 = vmatpush.msra.mxu0 %v818
  %1077 = vmatpush.msra.mxu0 %v815
  %1078 = vmatpush.msra.mxu0 %v812
  %1079 = vmatpush.msra.mxu0 %v809
  %1080 = vmatmul.f32.gmra.mxu0 %v236
  %v1081 = vpop.f32.mrf.mxu0
  %v1082 = vadd.f32 %v907, %v1081
  %1083 = vmatmul.f32.gmra.mxu0 %v238
  %v1084 = vpop.f32.mrf.mxu0
  %v1085 = vadd.f32 %v912, %v1084
  %1086 = vmatmul.f32.gmra.mxu0 %v240
  %v1087 = vpop.f32.mrf.mxu0
  %v1088 = vadd.f32 %v917, %v1087
  %1089 = vmatmul.f32.gmra.mxu0 %v242
  %v1090 = vpop.f32.mrf.mxu0
  %v1091 = vadd.f32 %v922, %v1090
  %1092 = vmatmul.f32.gmra.mxu0 %v244
  %v1093 = vpop.f32.mrf.mxu0
  %v1094 = vadd.f32 %v927, %v1093
  %1095 = vmatmul.f32.gmra.mxu0 %v246
  %v1096 = vpop.f32.mrf.mxu0
  %v1097 = vadd.f32 %v932, %v1096
  %1098 = vmatmul.f32.gmra.mxu0 %v248
  %v1099 = vpop.f32.mrf.mxu0
  %v1100 = vadd.f32 %v937, %v1099
  %1101 = vmatmul.f32.gmra.mxu0 %v250
  %v1102 = vpop.f32.mrf.mxu0
  %v1103 = vadd.f32 %v942, %v1102
  %1104 = vmatmul.f32.gmra.mxu0 %v252
  %v1105 = vpop.f32.mrf.mxu0
  %v1106 = vadd.f32 %v947, %v1105
  %1107 = vmatmul.f32.gmra.mxu0 %v254
  %v1108 = vpop.f32.mrf.mxu0
  %v1109 = vadd.f32 %v952, %v1108
  %1110 = vmatmul.f32.gmra.mxu0 %v256
  %v1111 = vpop.f32.mrf.mxu0
  %v1112 = vadd.f32 %v957, %v1111
  %1113 = vmatmul.f32.gmra.mxu0 %v258
  %v1114 = vpop.f32.mrf.mxu0
  %v1115 = vadd.f32 %v962, %v1114
  %1116 = vmatmul.f32.gmra.mxu0 %v260
  %v1117 = vpop.f32.mrf.mxu0
  %v1118 = vadd.f32 %v967, %v1117
  %1119 = vmatmul.f32.gmra.mxu0 %v262
  %v1120 = vpop.f32.mrf.mxu0
  %v1121 = vadd.f32 %v972, %v1120
  %1122 = vmatmul.f32.gmra.mxu0 %v264
  %v1123 = vpop.f32.mrf.mxu0
  %v1124 = vadd.f32 %v977, %v1123
  %1125 = vmatmul.f32.gmra.mxu0 %v266
  %v1126 = vpop.f32.mrf.mxu0
  %v1127 = vadd.f32 %v982, %v1126
  %1128 = vmatmul.f32.gmra.mxu0 %v268
  %v1129 = vpop.f32.mrf.mxu0
  %v1130 = vadd.f32 %v987, %v1129
  %1131 = vmatmul.f32.gmra.mxu0 %v270
  %v1132 = vpop.f32.mrf.mxu0
  %v1133 = vadd.f32 %v992, %v1132
  %1134 = vmatmul.f32.gmra.mxu0 %v272
  %v1135 = vpop.f32.mrf.mxu0
  %v1136 = vadd.f32 %v997, %v1135
  %1137 = vmatmul.f32.gmra.mxu0 %v274
  %v1138 = vpop.f32.mrf.mxu0
  %v1139 = vadd.f32 %v1002, %v1138
  %1140 = vmatmul.f32.gmra.mxu0 %v276
  %v1141 = vpop.f32.mrf.mxu0
  %v1142 = vadd.f32 %v1007, %v1141
  %1143 = vmatmul.f32.gmra.mxu0 %v278
  %v1144 = vpop.f32.mrf.mxu0
  %v1145 = vadd.f32 %v1012, %v1144
  %1146 = vmatmul.f32.gmra.mxu0 %v280
  %v1147 = vpop.f32.mrf.mxu0
  %v1148 = vadd.f32 %v1017, %v1147
  %1149 = vmatmul.f32.gmra.mxu0 %v282
  %v1150 = vpop.f32.mrf.mxu0
  %v1151 = vadd.f32 %v1022, %v1150
  %1152 = vmatmul.f32.gmra.mxu0 %v284
  %v1153 = vpop.f32.mrf.mxu0
  %v1154 = vadd.f32 %v1027, %v1153
  %1155 = vmatmul.f32.gmra.mxu0 %v286
  %v1156 = vpop.f32.mrf.mxu0
  %v1157 = vadd.f32 %v1032, %v1156
  %1158 = vmatmul.f32.gmra.mxu0 %v288
  %v1159 = vpop.f32.mrf.mxu0
  %v1160 = vadd.f32 %v1037, %v1159
  %1161 = vmatmul.f32.gmra.mxu0 %v290
  %v1162 = vpop.f32.mrf.mxu0
  %v1163 = vadd.f32 %v1042, %v1162
  %1164 = vmatmul.f32.gmra.mxu0 %v292
  %v1165 = vpop.f32.mrf.mxu0
  %v1166 = vadd.f32 %v1047, %v1165
  %1167 = vmatmul.f32.gmra.mxu0 %v294
  %v1168 = vpop.f32.mrf.mxu0
  %v1169 = vadd.f32 %v1052, %v1168
  %1170 = vmatmul.f32.gmra.mxu0 %v296
  %v1171 = vpop.f32.mrf.mxu0
  %v1172 = vadd.f32 %v1057, %v1171
  %1173 = vmatmul.f32.gmra.mxu0 %v298
  %v1174 = vpop.f32.mrf.mxu0
  %v1175 = vadd.f32 %v1062, %v1174
  %1176 = vdwg.mxu0
  %1177 = vmatpush.msra.mxu0 %v902
  %1178 = vmatpush.msra.mxu0 %v899
  %1179 = vmatpush.msra.mxu0 %v896
  %1180 = vmatpush.msra.mxu0 %v893
  %1181 = vmatpush.msra.mxu0 %v890
  %1182 = vmatpush.msra.mxu0 %v887
  %1183 = vmatpush.msra.mxu0 %v884
  %1184 = vmatpush.msra.mxu0 %v881
  %1185 = vmatpush.msra.mxu0 %v878
  %1186 = vmatpush.msra.mxu0 %v875
  %1187 = vmatpush.msra.mxu0 %v872
  %1188 = vmatpush.msra.mxu0 %v869
  %1189 = vmatpush.msra.mxu0 %v866
  %1190 = vmatpush.msra.mxu0 %v863
  %1191 = vmatpush.msra.mxu0 %v860
  %1192 = vmatpush.msra.mxu0 %v857
  %1193 = vmatmul.f32.gmra.mxu0 %v237
  %v1194 = vpop.f32.mrf.mxu0
  %v1195 = vadd.f32 %v1082, %v1194
  %1196 = vmatmul.f32.gmra.mxu0 %v239
  %v1197 = vpop.f32.mrf.mxu0
  %v1198 = vadd.f32 %v1085, %v1197
  %1199 = vmatmul.f32.gmra.mxu0 %v241
  %v1200 = vpop.f32.mrf.mxu0
  %v1201 = vadd.f32 %v1088, %v1200
  %1202 = vmatmul.f32.gmra.mxu0 %v243
  %v1203 = vpop.f32.mrf.mxu0
  %v1204 = vadd.f32 %v1091, %v1203
  %1205 = vmatmul.f32.gmra.mxu0 %v245
  %v1206 = vpop.f32.mrf.mxu0
  %v1207 = vadd.f32 %v1094, %v1206
  %1208 = vmatmul.f32.gmra.mxu0 %v247
  %v1209 = vpop.f32.mrf.mxu0
  %v1210 = vadd.f32 %v1097, %v1209
  %1211 = vmatmul.f32.gmra.mxu0 %v249
  %v1212 = vpop.f32.mrf.mxu0
  %v1213 = vadd.f32 %v1100, %v1212
  %1214 = vmatmul.f32.gmra.mxu0 %v251
  %v1215 = vpop.f32.mrf.mxu0
  %v1216 = vadd.f32 %v1103, %v1215
  %1217 = vmatmul.f32.gmra.mxu0 %v253
  %v1218 = vpop.f32.mrf.mxu0
  %v1219 = vadd.f32 %v1106, %v1218
  %1220 = vmatmul.f32.gmra.mxu0 %v255
  %v1221 = vpop.f32.mrf.mxu0
  %v1222 = vadd.f32 %v1109, %v1221
  %1223 = vmatmul.f32.gmra.mxu0 %v257
  %v1224 = vpop.f32.mrf.mxu0
  %v1225 = vadd.f32 %v1112, %v1224
  %1226 = vmatmul.f32.gmra.mxu0 %v259
  %v1227 = vpop.f32.mrf.mxu0
  %v1228 = vadd.f32 %v1115, %v1227
  %1229 = vmatmul.f32.gmra.mxu0 %v261
  %v1230 = vpop.f32.mrf.mxu0
  %v1231 = vadd.f32 %v1118, %v1230
  %1232 = vmatmul.f32.gmra.mxu0 %v263
  %v1233 = vpop.f32.mrf.mxu0
  %v1234 = vadd.f32 %v1121, %v1233
  %1235 = vmatmul.f32.gmra.mxu0 %v265
  %v1236 = vpop.f32.mrf.mxu0
  %v1237 = vadd.f32 %v1124, %v1236
  %1238 = vmatmul.f32.gmra.mxu0 %v267
  %v1239 = vpop.f32.mrf.mxu0
  %v1240 = vadd.f32 %v1127, %v1239
  %1241 = vmatmul.f32.gmra.mxu0 %v269
  %v1242 = vpop.f32.mrf.mxu0
  %v1243 = vadd.f32 %v1130, %v1242
  %1244 = vmatmul.f32.gmra.mxu0 %v271
  %v1245 = vpop.f32.mrf.mxu0
  %v1246 = vadd.f32 %v1133, %v1245
  %1247 = vmatmul.f32.gmra.mxu0 %v273
  %v1248 = vpop.f32.mrf.mxu0
  %v1249 = vadd.f32 %v1136, %v1248
  %1250 = vmatmul.f32.gmra.mxu0 %v275
  %v1251 = vpop.f32.mrf.mxu0
  %v1252 = vadd.f32 %v1139, %v1251
  %1253 = vmatmul.f32.gmra.mxu0 %v277
  %v1254 = vpop.f32.mrf.mxu0
  %v1255 = vadd.f32 %v1142, %v1254
  %1256 = vmatmul.f32.gmra.mxu0 %v279
  %v1257 = vpop.f32.mrf.mxu0
  %v1258 = vadd.f32 %v1145, %v1257
  %1259 = vmatmul.f32.gmra.mxu0 %v281
  %v1260 = vpop.f32.mrf.mxu0
  %v1261 = vadd.f32 %v1148, %v1260
  %1262 = vmatmul.f32.gmra.mxu0 %v283
  %v1263 = vpop.f32.mrf.mxu0
  %v1264 = vadd.f32 %v1151, %v1263
  %1265 = vmatmul.f32.gmra.mxu0 %v285
  %v1266 = vpop.f32.mrf.mxu0
  %v1267 = vadd.f32 %v1154, %v1266
  %1268 = vmatmul.f32.gmra.mxu0 %v287
  %v1269 = vpop.f32.mrf.mxu0
  %v1270 = vadd.f32 %v1157, %v1269
  %1271 = vmatmul.f32.gmra.mxu0 %v289
  %v1272 = vpop.f32.mrf.mxu0
  %v1273 = vadd.f32 %v1160, %v1272
  %1274 = vmatmul.f32.gmra.mxu0 %v291
  %v1275 = vpop.f32.mrf.mxu0
  %v1276 = vadd.f32 %v1163, %v1275
  %1277 = vmatmul.f32.gmra.mxu0 %v293
  %v1278 = vpop.f32.mrf.mxu0
  %v1279 = vadd.f32 %v1166, %v1278
  %1280 = vmatmul.f32.gmra.mxu0 %v295
  %v1281 = vpop.f32.mrf.mxu0
  %v1282 = vadd.f32 %v1169, %v1281
  %1283 = vmatmul.f32.gmra.mxu0 %v297
  %v1284 = vpop.f32.mrf.mxu0
  %v1285 = vadd.f32 %v1172, %v1284
  %1286 = vmatmul.f32.gmra.mxu0 %v299
  %v1287 = vpop.f32.mrf.mxu0
  %v1288 = vadd.f32 %v1175, %v1287
  %1289 = vdwg.mxu0
  %vm1290 = vcmp.gt.f32.partialorder %v1195, 0.0
  %vm1291 = vcmp.gt.f32.partialorder %v1198, 0.0
  %vm1292 = vcmp.gt.f32.partialorder %v1201, 0.0
  %vm1293 = vcmp.gt.f32.partialorder %v1204, 0.0
  %vm1294 = vcmp.gt.f32.partialorder %v1207, 0.0
  %vm1295 = vcmp.gt.f32.partialorder %v1210, 0.0
  %vm1296 = vcmp.gt.f32.partialorder %v1213, 0.0
  %vm1297 = vcmp.gt.f32.partialorder %v1216, 0.0
  %vm1298 = vcmp.gt.f32.partialorder %v1219, 0.0
  %vm1299 = vcmp.gt.f32.partialorder %v1222, 0.0
  %vm1300 = vcmp.gt.f32.partialorder %v1225, 0.0
  %vm1301 = vcmp.gt.f32.partialorder %v1228, 0.0
  %vm1302 = vcmp.gt.f32.partialorder %v1231, 0.0
  %vm1303 = vcmp.gt.f32.partialorder %v1234, 0.0
  %vm1304 = vcmp.gt.f32.partialorder %v1237, 0.0
  %vm1305 = vcmp.gt.f32.partialorder %v1240, 0.0
  %vm1306 = vcmp.gt.f32.partialorder %v1243, 0.0
  %vm1307 = vcmp.gt.f32.partialorder %v1246, 0.0
  %vm1308 = vcmp.gt.f32.partialorder %v1249, 0.0
  %vm1309 = vcmp.gt.f32.partialorder %v1252, 0.0
  %vm1310 = vcmp.gt.f32.partialorder %v1255, 0.0
  %vm1311 = vcmp.gt.f32.partialorder %v1258, 0.0
  %vm1312 = vcmp.gt.f32.partialorder %v1261, 0.0
  %vm1313 = vcmp.gt.f32.partialorder %v1264, 0.0
  %vm1314 = vcmp.gt.f32.partialorder %v1267, 0.0
  %vm1315 = vcmp.gt.f32.partialorder %v1270, 0.0
  %vm1316 = vcmp.gt.f32.partialorder %v1273, 0.0
  %vm1317 = vcmp.gt.f32.partialorder %v1276, 0.0
  %vm1318 = vcmp.gt.f32.partialorder %v1279, 0.0
  %vm1319 = vcmp.gt.f32.partialorder %v1282, 0.0
  %vm1320 = vcmp.gt.f32.partialorder %v1285, 0.0
  %vm1321 = vcmp.gt.f32.partialorder %v1288, 0.0
  %v1322 = vmin.f32 %v1195, 0.0
  %v1323 = vmin.f32 %v1198, 0.0
  %v1324 = vmin.f32 %v1201, 0.0
  %v1325 = vmin.f32 %v1204, 0.0
  %v1326 = vmin.f32 %v1207, 0.0
  %v1327 = vmin.f32 %v1210, 0.0
  %v1328 = vmin.f32 %v1213, 0.0
  %v1329 = vmin.f32 %v1216, 0.0
  %v1330 = vmin.f32 %v1219, 0.0
  %v1331 = vmin.f32 %v1222, 0.0
  %v1332 = vmin.f32 %v1225, 0.0
  %v1333 = vmin.f32 %v1228, 0.0
  %v1334 = vmin.f32 %v1231, 0.0
  %v1335 = vmin.f32 %v1234, 0.0
  %v1336 = vmin.f32 %v1237, 0.0
  %v1337 = vmin.f32 %v1240, 0.0
  %v1338 = vmin.f32 %v1243, 0.0
  %v1339 = vmin.f32 %v1246, 0.0
  %v1340 = vmin.f32 %v1249, 0.0
  %v1341 = vmin.f32 %v1252, 0.0
  %v1342 = vmin.f32 %v1255, 0.0
  %v1343 = vmin.f32 %v1258, 0.0
  %v1344 = vmin.f32 %v1261, 0.0
  %v1345 = vmin.f32 %v1264, 0.0
  %v1346 = vmin.f32 %v1267, 0.0
  %v1347 = vmin.f32 %v1270, 0.0
  %v1348 = vmin.f32 %v1273, 0.0
  %v1349 = vmin.f32 %v1276, 0.0
  %v1350 = vmin.f32 %v1279, 0.0
  %v1351 = vmin.f32 %v1282, 0.0
  %v1352 = vmin.f32 %v1285, 0.0
  %v1353 = vmin.f32 %v1288, 0.0
  %v1354 = vmul.f32 %v1322, 1.442695
  %v1355 = vpow.pop %v1354
  %v1356 = vmul.f32 %v1323, 1.442695
  %v1357 = vpow.pop %v1356
  %v1358 = vmul.f32 %v1324, 1.442695
  %v1359 = vpow.pop %v1358
  %v1360 = vmul.f32 %v1325, 1.442695
  %v1361 = vpow.pop %v1360
  %v1362 = vmul.f32 %v1326, 1.442695
  %v1363 = vpow.pop %v1362
  %v1364 = vmul.f32 %v1327, 1.442695
  %v1365 = vpow.pop %v1364
  %v1366 = vmul.f32 %v1328, 1.442695
  %v1367 = vpow.pop %v1366
  %v1368 = vmul.f32 %v1329, 1.442695
  %v1369 = vpow.pop %v1368
  %v1370 = vmul.f32 %v1330, 1.442695
  %v1371 = vpow.pop %v1370
  %v1372 = vmul.f32 %v1331, 1.442695
  %v1373 = vpow.pop %v1372
  %v1374 = vmul.f32 %v1332, 1.442695
  %v1375 = vpow.pop %v1374
  %v1376 = vmul.f32 %v1333, 1.442695
  %v1377 = vpow.pop %v1376
  %v1378 = vmul.f32 %v1334, 1.442695
  %v1379 = vpow.pop %v1378
  %v1380 = vmul.f32 %v1335, 1.442695
  %v1381 = vpow.pop %v1380
  %v1382 = vmul.f32 %v1336, 1.442695
  %v1383 = vpow.pop %v1382
  %v1384 = vmul.f32 %v1337, 1.442695
  %v1385 = vpow.pop %v1384
  %v1386 = vmul.f32 %v1338, 1.442695
  %v1387 = vpow.pop %v1386
  %v1388 = vmul.f32 %v1339, 1.442695
  %v1389 = vpow.pop %v1388
  %v1390 = vmul.f32 %v1340, 1.442695
  %v1391 = vpow.pop %v1390
  %v1392 = vmul.f32 %v1341, 1.442695
  %v1393 = vpow.pop %v1392
  %v1394 = vmul.f32 %v1342, 1.442695
  %v1395 = vpow.pop %v1394
  %v1396 = vmul.f32 %v1343, 1.442695
  %v1397 = vpow.pop %v1396
  %v1398 = vmul.f32 %v1344, 1.442695
  %v1399 = vpow.pop %v1398
  %v1400 = vmul.f32 %v1345, 1.442695
  %v1401 = vpow.pop %v1400
  %v1402 = vmul.f32 %v1346, 1.442695
  %v1403 = vpow.pop %v1402
  %v1404 = vmul.f32 %v1347, 1.442695
  %v1405 = vpow.pop %v1404
  %v1406 = vmul.f32 %v1348, 1.442695
  %v1407 = vpow.pop %v1406
  %v1408 = vmul.f32 %v1349, 1.442695
  %v1409 = vpow.pop %v1408
  %v1410 = vmul.f32 %v1350, 1.442695
  %v1411 = vpow.pop %v1410
  %v1412 = vmul.f32 %v1351, 1.442695
  %v1413 = vpow.pop %v1412
  %v1414 = vmul.f32 %v1352, 1.442695
  %v1415 = vpow.pop %v1414
  %v1416 = vmul.f32 %v1353, 1.442695
  %v1417 = vpow.pop %v1416
  %v1418 = vsub.f32 %v1355, 1.0
  %v1419 = vsub.f32 %v1357, 1.0
  %v1420 = vsub.f32 %v1359, 1.0
  %v1421 = vsub.f32 %v1361, 1.0
  %v1422 = vsub.f32 %v1363, 1.0
  %v1423 = vsub.f32 %v1365, 1.0
  %v1424 = vsub.f32 %v1367, 1.0
  %v1425 = vsub.f32 %v1369, 1.0
  %v1426 = vsub.f32 %v1371, 1.0
  %v1427 = vsub.f32 %v1373, 1.0
  %v1428 = vsub.f32 %v1375, 1.0
  %v1429 = vsub.f32 %v1377, 1.0
  %v1430 = vsub.f32 %v1379, 1.0
  %v1431 = vsub.f32 %v1381, 1.0
  %v1432 = vsub.f32 %v1383, 1.0
  %v1433 = vsub.f32 %v1385, 1.0
  %v1434 = vsub.f32 %v1387, 1.0
  %v1435 = vsub.f32 %v1389, 1.0
  %v1436 = vsub.f32 %v1391, 1.0
  %v1437 = vsub.f32 %v1393, 1.0
  %v1438 = vsub.f32 %v1395, 1.0
  %v1439 = vsub.f32 %v1397, 1.0
  %v1440 = vsub.f32 %v1399, 1.0
  %v1441 = vsub.f32 %v1401, 1.0
  %v1442 = vsub.f32 %v1403, 1.0
  %v1443 = vsub.f32 %v1405, 1.0
  %v1444 = vsub.f32 %v1407, 1.0
  %v1445 = vsub.f32 %v1409, 1.0
  %v1446 = vsub.f32 %v1411, 1.0
  %v1447 = vsub.f32 %v1413, 1.0
  %v1448 = vsub.f32 %v1415, 1.0
  %v1449 = vsub.f32 %v1417, 1.0
  %v1450 = vsel %vm1290, %v1195, %v1418
  %v1451 = vsel %vm1291, %v1198, %v1419
  %v1452 = vsel %vm1292, %v1201, %v1420
  %v1453 = vsel %vm1293, %v1204, %v1421
  %v1454 = vsel %vm1294, %v1207, %v1422
  %v1455 = vsel %vm1295, %v1210, %v1423
  %v1456 = vsel %vm1296, %v1213, %v1424
  %v1457 = vsel %vm1297, %v1216, %v1425
  %v1458 = vsel %vm1298, %v1219, %v1426
  %v1459 = vsel %vm1299, %v1222, %v1427
  %v1460 = vsel %vm1300, %v1225, %v1428
  %v1461 = vsel %vm1301, %v1228, %v1429
  %v1462 = vsel %vm1302, %v1231, %v1430
  %v1463 = vsel %vm1303, %v1234, %v1431
  %v1464 = vsel %vm1304, %v1237, %v1432
  %v1465 = vsel %vm1305, %v1240, %v1433
  %v1466 = vsel %vm1306, %v1243, %v1434
  %v1467 = vsel %vm1307, %v1246, %v1435
  %v1468 = vsel %vm1308, %v1249, %v1436
  %v1469 = vsel %vm1309, %v1252, %v1437
  %v1470 = vsel %vm1310, %v1255, %v1438
  %v1471 = vsel %vm1311, %v1258, %v1439
  %v1472 = vsel %vm1312, %v1261, %v1440
  %v1473 = vsel %vm1313, %v1264, %v1441
  %v1474 = vsel %vm1314, %v1267, %v1442
  %v1475 = vsel %vm1315, %v1270, %v1443
  %v1476 = vsel %vm1316, %v1273, %v1444
  %v1477 = vsel %vm1317, %v1276, %v1445
  %v1478 = vsel %vm1318, %v1279, %v1446
  %v1479 = vsel %vm1319, %v1282, %v1447
  %v1480 = vsel %vm1320, %v1285, %v1448
  %v1481 = vsel %vm1321, %v1288, %v1449
  %1483 = vset.pattern.permute.xlu0 0
  %1484 = vperm.xlu0 %1483, %v364
  %v1485 = vpop.permute.xlu0 %1484
  %1488 = vset.pattern.permute.xlu0 0
  %1489 = vperm.xlu0 %1488, %v365
  %v1490 = vpop.permute.xlu0 %1489
  %1493 = vset.pattern.permute.xlu0 0
  %1494 = vperm.xlu0 %1493, %v366
  %v1495 = vpop.permute.xlu0 %1494
  %1498 = vset.pattern.permute.xlu0 0
  %1499 = vperm.xlu0 %1498, %v367
  %v1500 = vpop.permute.xlu0 %1499
  %1503 = vset.pattern.permute.xlu0 0
  %1504 = vperm.xlu0 %1503, %v368
  %v1505 = vpop.permute.xlu0 %1504
  %1508 = vset.pattern.permute.xlu0 0
  %1509 = vperm.xlu0 %1508, %v369
  %v1510 = vpop.permute.xlu0 %1509
  %1513 = vset.pattern.permute.xlu0 0
  %1514 = vperm.xlu0 %1513, %v370
  %v1515 = vpop.permute.xlu0 %1514
  %1518 = vset.pattern.permute.xlu0 0
  %1519 = vperm.xlu0 %1518, %v371
  %v1520 = vpop.permute.xlu0 %1519
  %1523 = vset.pattern.permute.xlu0 0
  %1524 = vperm.xlu0 %1523, %v372
  %v1525 = vpop.permute.xlu0 %1524
  %1528 = vset.pattern.permute.xlu0 0
  %1529 = vperm.xlu0 %1528, %v373
  %v1530 = vpop.permute.xlu0 %1529
  %1533 = vset.pattern.permute.xlu0 0
  %1534 = vperm.xlu0 %1533, %v374
  %v1535 = vpop.permute.xlu0 %1534
  %1538 = vset.pattern.permute.xlu0 0
  %1539 = vperm.xlu0 %1538, %v375
  %v1540 = vpop.permute.xlu0 %1539
  %1543 = vset.pattern.permute.xlu0 0
  %1544 = vperm.xlu0 %1543, %v376
  %v1545 = vpop.permute.xlu0 %1544
  %1548 = vset.pattern.permute.xlu0 0
  %1549 = vperm.xlu0 %1548, %v377
  %v1550 = vpop.permute.xlu0 %1549
  %1553 = vset.pattern.permute.xlu0 0
  %1554 = vperm.xlu0 %1553, %v378
  %v1555 = vpop.permute.xlu0 %1554
  %1558 = vset.pattern.permute.xlu0 0
  %1559 = vperm.xlu0 %1558, %v379
  %v1560 = vpop.permute.xlu0 %1559
  %1562 = vmatpush.msra.mxu0 %v1465
  %1563 = vmatpush.msra.mxu0 %v1464
  %1564 = vmatpush.msra.mxu0 %v1463
  %1565 = vmatpush.msra.mxu0 %v1462
  %1566 = vmatpush.msra.mxu0 %v1461
  %1567 = vmatpush.msra.mxu0 %v1460
  %1568 = vmatpush.msra.mxu0 %v1459
  %1569 = vmatpush.msra.mxu0 %v1458
  %1570 = vmatpush.msra.mxu0 %v1457
  %1571 = vmatpush.msra.mxu0 %v1456
  %1572 = vmatpush.msra.mxu0 %v1455
  %1573 = vmatpush.msra.mxu0 %v1454
  %1574 = vmatpush.msra.mxu0 %v1453
  %1575 = vmatpush.msra.mxu0 %v1452
  %1576 = vmatpush.msra.mxu0 %v1451
  %1577 = vmatpush.msra.mxu0 %v1450
  %1578 = vmatmul.f32.gmra.mxu0 %v332
  %v1579 = vpop.f32.mrf.mxu0
  %v1580 = vadd.f32 %v1485, %v1579
  %1581 = vmatmul.f32.gmra.mxu0 %v334
  %v1582 = vpop.f32.mrf.mxu0
  %v1583 = vadd.f32 %v1490, %v1582
  %1584 = vmatmul.f32.gmra.mxu0 %v336
  %v1585 = vpop.f32.mrf.mxu0
  %v1586 = vadd.f32 %v1495, %v1585
  %1587 = vmatmul.f32.gmra.mxu0 %v338
  %v1588 = vpop.f32.mrf.mxu0
  %v1589 = vadd.f32 %v1500, %v1588
  %1590 = vmatmul.f32.gmra.mxu0 %v340
  %v1591 = vpop.f32.mrf.mxu0
  %v1592 = vadd.f32 %v1505, %v1591
  %1593 = vmatmul.f32.gmra.mxu0 %v342
  %v1594 = vpop.f32.mrf.mxu0
  %v1595 = vadd.f32 %v1510, %v1594
  %1596 = vmatmul.f32.gmra.mxu0 %v344
  %v1597 = vpop.f32.mrf.mxu0
  %v1598 = vadd.f32 %v1515, %v1597
  %1599 = vmatmul.f32.gmra.mxu0 %v346
  %v1600 = vpop.f32.mrf.mxu0
  %v1601 = vadd.f32 %v1520, %v1600
  %1602 = vmatmul.f32.gmra.mxu0 %v348
  %v1603 = vpop.f32.mrf.mxu0
  %v1604 = vadd.f32 %v1525, %v1603
  %1605 = vmatmul.f32.gmra.mxu0 %v350
  %v1606 = vpop.f32.mrf.mxu0
  %v1607 = vadd.f32 %v1530, %v1606
  %1608 = vmatmul.f32.gmra.mxu0 %v352
  %v1609 = vpop.f32.mrf.mxu0
  %v1610 = vadd.f32 %v1535, %v1609
  %1611 = vmatmul.f32.gmra.mxu0 %v354
  %v1612 = vpop.f32.mrf.mxu0
  %v1613 = vadd.f32 %v1540, %v1612
  %1614 = vmatmul.f32.gmra.mxu0 %v356
  %v1615 = vpop.f32.mrf.mxu0
  %v1616 = vadd.f32 %v1545, %v1615
  %1617 = vmatmul.f32.gmra.mxu0 %v358
  %v1618 = vpop.f32.mrf.mxu0
  %v1619 = vadd.f32 %v1550, %v1618
  %1620 = vmatmul.f32.gmra.mxu0 %v360
  %v1621 = vpop.f32.mrf.mxu0
  %v1622 = vadd.f32 %v1555, %v1621
  %1623 = vmatmul.f32.gmra.mxu0 %v362
  %v1624 = vpop.f32.mrf.mxu0
  %v1625 = vadd.f32 %v1560, %v1624
  %1626 = vdwg.mxu0
  %1627 = vmatpush.msra.mxu0 %v1481
  %1628 = vmatpush.msra.mxu0 %v1480
  %1629 = vmatpush.msra.mxu0 %v1479
  %1630 = vmatpush.msra.mxu0 %v1478
  %1631 = vmatpush.msra.mxu0 %v1477
  %1632 = vmatpush.msra.mxu0 %v1476
  %1633 = vmatpush.msra.mxu0 %v1475
  %1634 = vmatpush.msra.mxu0 %v1474
  %1635 = vmatpush.msra.mxu0 %v1473
  %1636 = vmatpush.msra.mxu0 %v1472
  %1637 = vmatpush.msra.mxu0 %v1471
  %1638 = vmatpush.msra.mxu0 %v1470
  %1639 = vmatpush.msra.mxu0 %v1469
  %1640 = vmatpush.msra.mxu0 %v1468
  %1641 = vmatpush.msra.mxu0 %v1467
  %1642 = vmatpush.msra.mxu0 %v1466
  %1643 = vmatmul.f32.gmra.mxu0 %v333
  %v1644 = vpop.f32.mrf.mxu0
  %v1645 = vadd.f32 %v1580, %v1644
  %1646 = vmatmul.f32.gmra.mxu0 %v335
  %v1647 = vpop.f32.mrf.mxu0
  %v1648 = vadd.f32 %v1583, %v1647
  %1649 = vmatmul.f32.gmra.mxu0 %v337
  %v1650 = vpop.f32.mrf.mxu0
  %v1651 = vadd.f32 %v1586, %v1650
  %1652 = vmatmul.f32.gmra.mxu0 %v339
  %v1653 = vpop.f32.mrf.mxu0
  %v1654 = vadd.f32 %v1589, %v1653
  %1655 = vmatmul.f32.gmra.mxu0 %v341
  %v1656 = vpop.f32.mrf.mxu0
  %v1657 = vadd.f32 %v1592, %v1656
  %1658 = vmatmul.f32.gmra.mxu0 %v343
  %v1659 = vpop.f32.mrf.mxu0
  %v1660 = vadd.f32 %v1595, %v1659
  %1661 = vmatmul.f32.gmra.mxu0 %v345
  %v1662 = vpop.f32.mrf.mxu0
  %v1663 = vadd.f32 %v1598, %v1662
  %1664 = vmatmul.f32.gmra.mxu0 %v347
  %v1665 = vpop.f32.mrf.mxu0
  %v1666 = vadd.f32 %v1601, %v1665
  %1667 = vmatmul.f32.gmra.mxu0 %v349
  %v1668 = vpop.f32.mrf.mxu0
  %v1669 = vadd.f32 %v1604, %v1668
  %1670 = vmatmul.f32.gmra.mxu0 %v351
  %v1671 = vpop.f32.mrf.mxu0
  %v1672 = vadd.f32 %v1607, %v1671
  %1673 = vmatmul.f32.gmra.mxu0 %v353
  %v1674 = vpop.f32.mrf.mxu0
  %v1675 = vadd.f32 %v1610, %v1674
  %1676 = vmatmul.f32.gmra.mxu0 %v355
  %v1677 = vpop.f32.mrf.mxu0
  %v1678 = vadd.f32 %v1613, %v1677
  %1679 = vmatmul.f32.gmra.mxu0 %v357
  %v1680 = vpop.f32.mrf.mxu0
  %v1681 = vadd.f32 %v1616, %v1680
  %1682 = vmatmul.f32.gmra.mxu0 %v359
  %v1683 = vpop.f32.mrf.mxu0
  %v1684 = vadd.f32 %v1619, %v1683
  %1685 = vmatmul.f32.gmra.mxu0 %v361
  %v1686 = vpop.f32.mrf.mxu0
  %v1687 = vadd.f32 %v1622, %v1686
  %1688 = vmatmul.f32.gmra.mxu0 %v363
  %v1689 = vpop.f32.mrf.mxu0
  %v1690 = vadd.f32 %v1625, %v1689
  %1691 = vdwg.mxu0
  %vm1692 = vcmp.gt.f32.partialorder %v1645, 0.0
  %vm1693 = vcmp.gt.f32.partialorder %v1648, 0.0
  %vm1694 = vcmp.gt.f32.partialorder %v1651, 0.0
  %vm1695 = vcmp.gt.f32.partialorder %v1654, 0.0
  %vm1696 = vcmp.gt.f32.partialorder %v1657, 0.0
  %vm1697 = vcmp.gt.f32.partialorder %v1660, 0.0
  %vm1698 = vcmp.gt.f32.partialorder %v1663, 0.0
  %vm1699 = vcmp.gt.f32.partialorder %v1666, 0.0
  %vm1700 = vcmp.gt.f32.partialorder %v1669, 0.0
  %vm1701 = vcmp.gt.f32.partialorder %v1672, 0.0
  %vm1702 = vcmp.gt.f32.partialorder %v1675, 0.0
  %vm1703 = vcmp.gt.f32.partialorder %v1678, 0.0
  %vm1704 = vcmp.gt.f32.partialorder %v1681, 0.0
  %vm1705 = vcmp.gt.f32.partialorder %v1684, 0.0
  %vm1706 = vcmp.gt.f32.partialorder %v1687, 0.0
  %vm1707 = vcmp.gt.f32.partialorder %v1690, 0.0
  %v1708 = vmin.f32 %v1645, 0.0
  %v1709 = vmin.f32 %v1648, 0.0
  %v1710 = vmin.f32 %v1651, 0.0
  %v1711 = vmin.f32 %v1654, 0.0
  %v1712 = vmin.f32 %v1657, 0.0
  %v1713 = vmin.f32 %v1660, 0.0
  %v1714 = vmin.f32 %v1663, 0.0
  %v1715 = vmin.f32 %v1666, 0.0
  %v1716 = vmin.f32 %v1669, 0.0
  %v1717 = vmin.f32 %v1672, 0.0
  %v1718 = vmin.f32 %v1675, 0.0
  %v1719 = vmin.f32 %v1678, 0.0
  %v1720 = vmin.f32 %v1681, 0.0
  %v1721 = vmin.f32 %v1684, 0.0
  %v1722 = vmin.f32 %v1687, 0.0
  %v1723 = vmin.f32 %v1690, 0.0
  %v1724 = vmul.f32 %v1708, 1.442695
  %v1725 = vpow.pop %v1724
  %v1726 = vmul.f32 %v1709, 1.442695
  %v1727 = vpow.pop %v1726
  %v1728 = vmul.f32 %v1710, 1.442695
  %v1729 = vpow.pop %v1728
  %v1730 = vmul.f32 %v1711, 1.442695
  %v1731 = vpow.pop %v1730
  %v1732 = vmul.f32 %v1712, 1.442695
  %v1733 = vpow.pop %v1732
  %v1734 = vmul.f32 %v1713, 1.442695
  %v1735 = vpow.pop %v1734
  %v1736 = vmul.f32 %v1714, 1.442695
  %v1737 = vpow.pop %v1736
  %v1738 = vmul.f32 %v1715, 1.442695
  %v1739 = vpow.pop %v1738
  %v1740 = vmul.f32 %v1716, 1.442695
  %v1741 = vpow.pop %v1740
  %v1742 = vmul.f32 %v1717, 1.442695
  %v1743 = vpow.pop %v1742
  %v1744 = vmul.f32 %v1718, 1.442695
  %v1745 = vpow.pop %v1744
  %v1746 = vmul.f32 %v1719, 1.442695
  %v1747 = vpow.pop %v1746
  %v1748 = vmul.f32 %v1720, 1.442695
  %v1749 = vpow.pop %v1748
  %v1750 = vmul.f32 %v1721, 1.442695
  %v1751 = vpow.pop %v1750
  %v1752 = vmul.f32 %v1722, 1.442695
  %v1753 = vpow.pop %v1752
  %v1754 = vmul.f32 %v1723, 1.442695
  %v1755 = vpow.pop %v1754
  %v1756 = vsub.f32 %v1725, 1.0
  %v1757 = vsub.f32 %v1727, 1.0
  %v1758 = vsub.f32 %v1729, 1.0
  %v1759 = vsub.f32 %v1731, 1.0
  %v1760 = vsub.f32 %v1733, 1.0
  %v1761 = vsub.f32 %v1735, 1.0
  %v1762 = vsub.f32 %v1737, 1.0
  %v1763 = vsub.f32 %v1739, 1.0
  %v1764 = vsub.f32 %v1741, 1.0
  %v1765 = vsub.f32 %v1743, 1.0
  %v1766 = vsub.f32 %v1745, 1.0
  %v1767 = vsub.f32 %v1747, 1.0
  %v1768 = vsub.f32 %v1749, 1.0
  %v1769 = vsub.f32 %v1751, 1.0
  %v1770 = vsub.f32 %v1753, 1.0
  %v1771 = vsub.f32 %v1755, 1.0
  %v1772 = vsel %vm1692, %v1645, %v1756
  %v1773 = vsel %vm1693, %v1648, %v1757
  %v1774 = vsel %vm1694, %v1651, %v1758
  %v1775 = vsel %vm1695, %v1654, %v1759
  %v1776 = vsel %vm1696, %v1657, %v1760
  %v1777 = vsel %vm1697, %v1660, %v1761
  %v1778 = vsel %vm1698, %v1663, %v1762
  %v1779 = vsel %vm1699, %v1666, %v1763
  %v1780 = vsel %vm1700, %v1669, %v1764
  %v1781 = vsel %vm1701, %v1672, %v1765
  %v1782 = vsel %vm1702, %v1675, %v1766
  %v1783 = vsel %vm1703, %v1678, %v1767
  %v1784 = vsel %vm1704, %v1681, %v1768
  %v1785 = vsel %vm1705, %v1684, %v1769
  %v1786 = vsel %vm1706, %v1687, %v1770
  %v1787 = vsel %vm1707, %v1690, %v1771
  %1789 = vset.pattern.permute.xlu0 0
  %1790 = vperm.xlu0 %1789, %v396
  %v1791 = vpop.permute.xlu0 %1790
  %1794 = vset.pattern.permute.xlu0 0
  %1795 = vperm.xlu0 %1794, %v397
  %v1796 = vpop.permute.xlu0 %1795
  %1799 = vset.pattern.permute.xlu0 0
  %1800 = vperm.xlu0 %1799, %v398
  %v1801 = vpop.permute.xlu0 %1800
  %1804 = vset.pattern.permute.xlu0 0
  %1805 = vperm.xlu0 %1804, %v399
  %v1806 = vpop.permute.xlu0 %1805
  %1809 = vset.pattern.permute.xlu0 0
  %1810 = vperm.xlu0 %1809, %v400
  %v1811 = vpop.permute.xlu0 %1810
  %1814 = vset.pattern.permute.xlu0 0
  %1815 = vperm.xlu0 %1814, %v401
  %v1816 = vpop.permute.xlu0 %1815
  %1819 = vset.pattern.permute.xlu0 0
  %1820 = vperm.xlu0 %1819, %v402
  %v1821 = vpop.permute.xlu0 %1820
  %1824 = vset.pattern.permute.xlu0 0
  %1825 = vperm.xlu0 %1824, %v403
  %v1826 = vpop.permute.xlu0 %1825
  %1829 = vset.pattern.permute.xlu0 0
  %1830 = vperm.xlu0 %1829, %v404
  %v1831 = vpop.permute.xlu0 %1830
  %1834 = vset.pattern.permute.xlu0 0
  %1835 = vperm.xlu0 %1834, %v405
  %v1836 = vpop.permute.xlu0 %1835
  %1839 = vset.pattern.permute.xlu0 0
  %1840 = vperm.xlu0 %1839, %v406
  %v1841 = vpop.permute.xlu0 %1840
  %1844 = vset.pattern.permute.xlu0 0
  %1845 = vperm.xlu0 %1844, %v407
  %v1846 = vpop.permute.xlu0 %1845
  %1849 = vset.pattern.permute.xlu0 0
  %1850 = vperm.xlu0 %1849, %v408
  %v1851 = vpop.permute.xlu0 %1850
  %1854 = vset.pattern.permute.xlu0 0
  %1855 = vperm.xlu0 %1854, %v409
  %v1856 = vpop.permute.xlu0 %1855
  %1859 = vset.pattern.permute.xlu0 0
  %1860 = vperm.xlu0 %1859, %v410
  %v1861 = vpop.permute.xlu0 %1860
  %1864 = vset.pattern.permute.xlu0 0
  %1865 = vperm.xlu0 %1864, %v411
  %v1866 = vpop.permute.xlu0 %1865
  %1868 = vmatpush.msra.mxu0 %v1787
  %1869 = vmatpush.msra.mxu0 %v1786
  %1870 = vmatpush.msra.mxu0 %v1785
  %1871 = vmatpush.msra.mxu0 %v1784
  %1872 = vmatpush.msra.mxu0 %v1783
  %1873 = vmatpush.msra.mxu0 %v1782
  %1874 = vmatpush.msra.mxu0 %v1781
  %1875 = vmatpush.msra.mxu0 %v1780
  %1876 = vmatpush.msra.mxu0 %v1779
  %1877 = vmatpush.msra.mxu0 %v1778
  %1878 = vmatpush.msra.mxu0 %v1777
  %1879 = vmatpush.msra.mxu0 %v1776
  %1880 = vmatpush.msra.mxu0 %v1775
  %1881 = vmatpush.msra.mxu0 %v1774
  %1882 = vmatpush.msra.mxu0 %v1773
  %1883 = vmatpush.msra.mxu0 %v1772
  %1884 = vmatmul.f32.gmra.mxu0 %v380
  %v1885 = vpop.f32.mrf.mxu0
  %v1886 = vadd.f32 %v1791, %v1885
  %1887 = vmatmul.f32.gmra.mxu0 %v381
  %v1888 = vpop.f32.mrf.mxu0
  %v1889 = vadd.f32 %v1796, %v1888
  %1890 = vmatmul.f32.gmra.mxu0 %v382
  %v1891 = vpop.f32.mrf.mxu0
  %v1892 = vadd.f32 %v1801, %v1891
  %1893 = vmatmul.f32.gmra.mxu0 %v383
  %v1894 = vpop.f32.mrf.mxu0
  %v1895 = vadd.f32 %v1806, %v1894
  %1896 = vmatmul.f32.gmra.mxu0 %v384
  %v1897 = vpop.f32.mrf.mxu0
  %v1898 = vadd.f32 %v1811, %v1897
  %1899 = vmatmul.f32.gmra.mxu0 %v385
  %v1900 = vpop.f32.mrf.mxu0
  %v1901 = vadd.f32 %v1816, %v1900
  %1902 = vmatmul.f32.gmra.mxu0 %v386
  %v1903 = vpop.f32.mrf.mxu0
  %v1904 = vadd.f32 %v1821, %v1903
  %1905 = vmatmul.f32.gmra.mxu0 %v387
  %v1906 = vpop.f32.mrf.mxu0
  %v1907 = vadd.f32 %v1826, %v1906
  %1908 = vmatmul.f32.gmra.mxu0 %v388
  %v1909 = vpop.f32.mrf.mxu0
  %v1910 = vadd.f32 %v1831, %v1909
  %1911 = vmatmul.f32.gmra.mxu0 %v389
  %v1912 = vpop.f32.mrf.mxu0
  %v1913 = vadd.f32 %v1836, %v1912
  %1914 = vmatmul.f32.gmra.mxu0 %v390
  %v1915 = vpop.f32.mrf.mxu0
  %v1916 = vadd.f32 %v1841, %v1915
  %1917 = vmatmul.f32.gmra.mxu0 %v391
  %v1918 = vpop.f32.mrf.mxu0
  %v1919 = vadd.f32 %v1846, %v1918
  %1920 = vmatmul.f32.gmra.mxu0 %v392
  %v1921 = vpop.f32.mrf.mxu0
  %v1922 = vadd.f32 %v1851, %v1921
  %1923 = vmatmul.f32.gmra.mxu0 %v393
  %v1924 = vpop.f32.mrf.mxu0
  %v1925 = vadd.f32 %v1856, %v1924
  %1926 = vmatmul.f32.gmra.mxu0 %v394
  %v1927 = vpop.f32.mrf.mxu0
  %v1928 = vadd.f32 %v1861, %v1927
  %1929 = vmatmul.f32.gmra.mxu0 %v395
  %v1930 = vpop.f32.mrf.mxu0
  %v1931 = vadd.f32 %v1866, %v1930
  %1932 = vdwg.mxu0
  %vm1933 = vcmp.gt.f32.partialorder %v1886, 0.0
  %vm1934 = vcmp.gt.f32.partialorder %v1889, 0.0
  %vm1935 = vcmp.gt.f32.partialorder %v1892, 0.0
  %vm1936 = vcmp.gt.f32.partialorder %v1895, 0.0
  %vm1937 = vcmp.gt.f32.partialorder %v1898, 0.0
  %vm1938 = vcmp.gt.f32.partialorder %v1901, 0.0
  %vm1939 = vcmp.gt.f32.partialorder %v1904, 0.0
  %vm1940 = vcmp.gt.f32.partialorder %v1907, 0.0
  %vm1941 = vcmp.gt.f32.partialorder %v1910, 0.0
  %vm1942 = vcmp.gt.f32.partialorder %v1913, 0.0
  %vm1943 = vcmp.gt.f32.partialorder %v1916, 0.0
  %vm1944 = vcmp.gt.f32.partialorder %v1919, 0.0
  %vm1945 = vcmp.gt.f32.partialorder %v1922, 0.0
  %vm1946 = vcmp.gt.f32.partialorder %v1925, 0.0
  %vm1947 = vcmp.gt.f32.partialorder %v1928, 0.0
  %vm1948 = vcmp.gt.f32.partialorder %v1931, 0.0
  %v1949 = vmin.f32 %v1886, 0.0
  %v1950 = vmin.f32 %v1889, 0.0
  %v1951 = vmin.f32 %v1892, 0.0
  %v1952 = vmin.f32 %v1895, 0.0
  %v1953 = vmin.f32 %v1898, 0.0
  %v1954 = vmin.f32 %v1901, 0.0
  %v1955 = vmin.f32 %v1904, 0.0
  %v1956 = vmin.f32 %v1907, 0.0
  %v1957 = vmin.f32 %v1910, 0.0
  %v1958 = vmin.f32 %v1913, 0.0
  %v1959 = vmin.f32 %v1916, 0.0
  %v1960 = vmin.f32 %v1919, 0.0
  %v1961 = vmin.f32 %v1922, 0.0
  %v1962 = vmin.f32 %v1925, 0.0
  %v1963 = vmin.f32 %v1928, 0.0
  %v1964 = vmin.f32 %v1931, 0.0
  %v1965 = vmul.f32 %v1949, 1.442695
  %v1966 = vpow.pop %v1965
  %v1967 = vmul.f32 %v1950, 1.442695
  %v1968 = vpow.pop %v1967
  %v1969 = vmul.f32 %v1951, 1.442695
  %v1970 = vpow.pop %v1969
  %v1971 = vmul.f32 %v1952, 1.442695
  %v1972 = vpow.pop %v1971
  %v1973 = vmul.f32 %v1953, 1.442695
  %v1974 = vpow.pop %v1973
  %v1975 = vmul.f32 %v1954, 1.442695
  %v1976 = vpow.pop %v1975
  %v1977 = vmul.f32 %v1955, 1.442695
  %v1978 = vpow.pop %v1977
  %v1979 = vmul.f32 %v1956, 1.442695
  %v1980 = vpow.pop %v1979
  %v1981 = vmul.f32 %v1957, 1.442695
  %v1982 = vpow.pop %v1981
  %v1983 = vmul.f32 %v1958, 1.442695
  %v1984 = vpow.pop %v1983
  %v1985 = vmul.f32 %v1959, 1.442695
  %v1986 = vpow.pop %v1985
  %v1987 = vmul.f32 %v1960, 1.442695
  %v1988 = vpow.pop %v1987
  %v1989 = vmul.f32 %v1961, 1.442695
  %v1990 = vpow.pop %v1989
  %v1991 = vmul.f32 %v1962, 1.442695
  %v1992 = vpow.pop %v1991
  %v1993 = vmul.f32 %v1963, 1.442695
  %v1994 = vpow.pop %v1993
  %v1995 = vmul.f32 %v1964, 1.442695
  %v1996 = vpow.pop %v1995
  %v1997 = vsub.f32 %v1966, 1.0
  %v1998 = vsub.f32 %v1968, 1.0
  %v1999 = vsub.f32 %v1970, 1.0
  %v2000 = vsub.f32 %v1972, 1.0
  %v2001 = vsub.f32 %v1974, 1.0
  %v2002 = vsub.f32 %v1976, 1.0
  %v2003 = vsub.f32 %v1978, 1.0
  %v2004 = vsub.f32 %v1980, 1.0
  %v2005 = vsub.f32 %v1982, 1.0
  %v2006 = vsub.f32 %v1984, 1.0
  %v2007 = vsub.f32 %v1986, 1.0
  %v2008 = vsub.f32 %v1988, 1.0
  %v2009 = vsub.f32 %v1990, 1.0
  %v2010 = vsub.f32 %v1992, 1.0
  %v2011 = vsub.f32 %v1994, 1.0
  %v2012 = vsub.f32 %v1996, 1.0
  %v2013 = vsel %vm1933, %v1886, %v1997
  %v2014 = vsel %vm1934, %v1889, %v1998
  %v2015 = vsel %vm1935, %v1892, %v1999
  %v2016 = vsel %vm1936, %v1895, %v2000
  %v2017 = vsel %vm1937, %v1898, %v2001
  %v2018 = vsel %vm1938, %v1901, %v2002
  %v2019 = vsel %vm1939, %v1904, %v2003
  %v2020 = vsel %vm1940, %v1907, %v2004
  %v2021 = vsel %vm1941, %v1910, %v2005
  %v2022 = vsel %vm1942, %v1913, %v2006
  %v2023 = vsel %vm1943, %v1916, %v2007
  %v2024 = vsel %vm1944, %v1919, %v2008
  %v2025 = vsel %vm1945, %v1922, %v2009
  %v2026 = vsel %vm1946, %v1925, %v2010
  %v2027 = vsel %vm1947, %v1928, %v2011
  %v2028 = vsel %vm1948, %v1931, %v2012
  %2030 = vset.pattern.permute.xlu0 0
  %2031 = vperm.xlu0 %2030, %v428
  %v2032 = vpop.permute.xlu0 %2031
  %2035 = vset.pattern.permute.xlu0 0
  %2036 = vperm.xlu0 %2035, %v429
  %v2037 = vpop.permute.xlu0 %2036
  %2040 = vset.pattern.permute.xlu0 0
  %2041 = vperm.xlu0 %2040, %v430
  %v2042 = vpop.permute.xlu0 %2041
  %2045 = vset.pattern.permute.xlu0 0
  %2046 = vperm.xlu0 %2045, %v431
  %v2047 = vpop.permute.xlu0 %2046
  %2050 = vset.pattern.permute.xlu0 0
  %2051 = vperm.xlu0 %2050, %v432
  %v2052 = vpop.permute.xlu0 %2051
  %2055 = vset.pattern.permute.xlu0 0
  %2056 = vperm.xlu0 %2055, %v433
  %v2057 = vpop.permute.xlu0 %2056
  %2060 = vset.pattern.permute.xlu0 0
  %2061 = vperm.xlu0 %2060, %v434
  %v2062 = vpop.permute.xlu0 %2061
  %2065 = vset.pattern.permute.xlu0 0
  %2066 = vperm.xlu0 %2065, %v435
  %v2067 = vpop.permute.xlu0 %2066
  %2070 = vset.pattern.permute.xlu0 0
  %2071 = vperm.xlu0 %2070, %v436
  %v2072 = vpop.permute.xlu0 %2071
  %2075 = vset.pattern.permute.xlu0 0
  %2076 = vperm.xlu0 %2075, %v437
  %v2077 = vpop.permute.xlu0 %2076
  %2080 = vset.pattern.permute.xlu0 0
  %2081 = vperm.xlu0 %2080, %v438
  %v2082 = vpop.permute.xlu0 %2081
  %2085 = vset.pattern.permute.xlu0 0
  %2086 = vperm.xlu0 %2085, %v439
  %v2087 = vpop.permute.xlu0 %2086
  %2090 = vset.pattern.permute.xlu0 0
  %2091 = vperm.xlu0 %2090, %v440
  %v2092 = vpop.permute.xlu0 %2091
  %2095 = vset.pattern.permute.xlu0 0
  %2096 = vperm.xlu0 %2095, %v441
  %v2097 = vpop.permute.xlu0 %2096
  %2100 = vset.pattern.permute.xlu0 0
  %2101 = vperm.xlu0 %2100, %v442
  %v2102 = vpop.permute.xlu0 %2101
  %2105 = vset.pattern.permute.xlu0 0
  %2106 = vperm.xlu0 %2105, %v443
  %v2107 = vpop.permute.xlu0 %2106
  %2109 = vmatpush.msra.mxu0 %v2028
  %2110 = vmatpush.msra.mxu0 %v2027
  %2111 = vmatpush.msra.mxu0 %v2026
  %2112 = vmatpush.msra.mxu0 %v2025
  %2113 = vmatpush.msra.mxu0 %v2024
  %2114 = vmatpush.msra.mxu0 %v2023
  %2115 = vmatpush.msra.mxu0 %v2022
  %2116 = vmatpush.msra.mxu0 %v2021
  %2117 = vmatpush.msra.mxu0 %v2020
  %2118 = vmatpush.msra.mxu0 %v2019
  %2119 = vmatpush.msra.mxu0 %v2018
  %2120 = vmatpush.msra.mxu0 %v2017
  %2121 = vmatpush.msra.mxu0 %v2016
  %2122 = vmatpush.msra.mxu0 %v2015
  %2123 = vmatpush.msra.mxu0 %v2014
  %2124 = vmatpush.msra.mxu0 %v2013
  %2125 = vmatmul.f32.gmra.mxu0 %v412
  %v2126 = vpop.f32.mrf.mxu0
  %v2127 = vadd.f32 %v2032, %v2126
  %2128 = vmatmul.f32.gmra.mxu0 %v413
  %v2129 = vpop.f32.mrf.mxu0
  %v2130 = vadd.f32 %v2037, %v2129
  %2131 = vmatmul.f32.gmra.mxu0 %v414
  %v2132 = vpop.f32.mrf.mxu0
  %v2133 = vadd.f32 %v2042, %v2132
  %2134 = vmatmul.f32.gmra.mxu0 %v415
  %v2135 = vpop.f32.mrf.mxu0
  %v2136 = vadd.f32 %v2047, %v2135
  %2137 = vmatmul.f32.gmra.mxu0 %v416
  %v2138 = vpop.f32.mrf.mxu0
  %v2139 = vadd.f32 %v2052, %v2138
  %2140 = vmatmul.f32.gmra.mxu0 %v417
  %v2141 = vpop.f32.mrf.mxu0
  %v2142 = vadd.f32 %v2057, %v2141
  %2143 = vmatmul.f32.gmra.mxu0 %v418
  %v2144 = vpop.f32.mrf.mxu0
  %v2145 = vadd.f32 %v2062, %v2144
  %2146 = vmatmul.f32.gmra.mxu0 %v419
  %v2147 = vpop.f32.mrf.mxu0
  %v2148 = vadd.f32 %v2067, %v2147
  %2149 = vmatmul.f32.gmra.mxu0 %v420
  %v2150 = vpop.f32.mrf.mxu0
  %v2151 = vadd.f32 %v2072, %v2150
  %2152 = vmatmul.f32.gmra.mxu0 %v421
  %v2153 = vpop.f32.mrf.mxu0
  %v2154 = vadd.f32 %v2077, %v2153
  %2155 = vmatmul.f32.gmra.mxu0 %v422
  %v2156 = vpop.f32.mrf.mxu0
  %v2157 = vadd.f32 %v2082, %v2156
  %2158 = vmatmul.f32.gmra.mxu0 %v423
  %v2159 = vpop.f32.mrf.mxu0
  %v2160 = vadd.f32 %v2087, %v2159
  %2161 = vmatmul.f32.gmra.mxu0 %v424
  %v2162 = vpop.f32.mrf.mxu0
  %v2163 = vadd.f32 %v2092, %v2162
  %2164 = vmatmul.f32.gmra.mxu0 %v425
  %v2165 = vpop.f32.mrf.mxu0
  %v2166 = vadd.f32 %v2097, %v2165
  %2167 = vmatmul.f32.gmra.mxu0 %v426
  %v2168 = vpop.f32.mrf.mxu0
  %v2169 = vadd.f32 %v2102, %v2168
  %2170 = vmatmul.f32.gmra.mxu0 %v427
  %v2171 = vpop.f32.mrf.mxu0
  %v2172 = vadd.f32 %v2107, %v2171
  %2173 = vdwg.mxu0
  %vm2174 = vcmp.gt.f32.partialorder %v2127, 0.0
  %vm2175 = vcmp.gt.f32.partialorder %v2130, 0.0
  %vm2176 = vcmp.gt.f32.partialorder %v2133, 0.0
  %vm2177 = vcmp.gt.f32.partialorder %v2136, 0.0
  %vm2178 = vcmp.gt.f32.partialorder %v2139, 0.0
  %vm2179 = vcmp.gt.f32.partialorder %v2142, 0.0
  %vm2180 = vcmp.gt.f32.partialorder %v2145, 0.0
  %vm2181 = vcmp.gt.f32.partialorder %v2148, 0.0
  %vm2182 = vcmp.gt.f32.partialorder %v2151, 0.0
  %vm2183 = vcmp.gt.f32.partialorder %v2154, 0.0
  %vm2184 = vcmp.gt.f32.partialorder %v2157, 0.0
  %vm2185 = vcmp.gt.f32.partialorder %v2160, 0.0
  %vm2186 = vcmp.gt.f32.partialorder %v2163, 0.0
  %vm2187 = vcmp.gt.f32.partialorder %v2166, 0.0
  %vm2188 = vcmp.gt.f32.partialorder %v2169, 0.0
  %vm2189 = vcmp.gt.f32.partialorder %v2172, 0.0
  %v2190 = vmin.f32 %v2127, 0.0
  %v2191 = vmin.f32 %v2130, 0.0
  %v2192 = vmin.f32 %v2133, 0.0
  %v2193 = vmin.f32 %v2136, 0.0
  %v2194 = vmin.f32 %v2139, 0.0
  %v2195 = vmin.f32 %v2142, 0.0
  %v2196 = vmin.f32 %v2145, 0.0
  %v2197 = vmin.f32 %v2148, 0.0
  %v2198 = vmin.f32 %v2151, 0.0
  %v2199 = vmin.f32 %v2154, 0.0
  %v2200 = vmin.f32 %v2157, 0.0
  %v2201 = vmin.f32 %v2160, 0.0
  %v2202 = vmin.f32 %v2163, 0.0
  %v2203 = vmin.f32 %v2166, 0.0
  %v2204 = vmin.f32 %v2169, 0.0
  %v2205 = vmin.f32 %v2172, 0.0
  %v2206 = vmul.f32 %v2190, 1.442695
  %v2207 = vpow.pop %v2206
  %v2208 = vmul.f32 %v2191, 1.442695
  %v2209 = vpow.pop %v2208
  %v2210 = vmul.f32 %v2192, 1.442695
  %v2211 = vpow.pop %v2210
  %v2212 = vmul.f32 %v2193, 1.442695
  %v2213 = vpow.pop %v2212
  %v2214 = vmul.f32 %v2194, 1.442695
  %v2215 = vpow.pop %v2214
  %v2216 = vmul.f32 %v2195, 1.442695
  %v2217 = vpow.pop %v2216
  %v2218 = vmul.f32 %v2196, 1.442695
  %v2219 = vpow.pop %v2218
  %v2220 = vmul.f32 %v2197, 1.442695
  %v2221 = vpow.pop %v2220
  %v2222 = vmul.f32 %v2198, 1.442695
  %v2223 = vpow.pop %v2222
  %v2224 = vmul.f32 %v2199, 1.442695
  %v2225 = vpow.pop %v2224
  %v2226 = vmul.f32 %v2200, 1.442695
  %v2227 = vpow.pop %v2226
  %v2228 = vmul.f32 %v2201, 1.442695
  %v2229 = vpow.pop %v2228
  %v2230 = vmul.f32 %v2202, 1.442695
  %v2231 = vpow.pop %v2230
  %v2232 = vmul.f32 %v2203, 1.442695
  %v2233 = vpow.pop %v2232
  %v2234 = vmul.f32 %v2204, 1.442695
  %v2235 = vpow.pop %v2234
  %v2236 = vmul.f32 %v2205, 1.442695
  %v2237 = vpow.pop %v2236
  %v2238 = vsub.f32 %v2207, 1.0
  %v2239 = vsub.f32 %v2209, 1.0
  %v2240 = vsub.f32 %v2211, 1.0
  %v2241 = vsub.f32 %v2213, 1.0
  %v2242 = vsub.f32 %v2215, 1.0
  %v2243 = vsub.f32 %v2217, 1.0
  %v2244 = vsub.f32 %v2219, 1.0
  %v2245 = vsub.f32 %v2221, 1.0
  %v2246 = vsub.f32 %v2223, 1.0
  %v2247 = vsub.f32 %v2225, 1.0
  %v2248 = vsub.f32 %v2227, 1.0
  %v2249 = vsub.f32 %v2229, 1.0
  %v2250 = vsub.f32 %v2231, 1.0
  %v2251 = vsub.f32 %v2233, 1.0
  %v2252 = vsub.f32 %v2235, 1.0
  %v2253 = vsub.f32 %v2237, 1.0
  %v2254 = vsel %vm2174, %v2127, %v2238
  %v2255 = vsel %vm2175, %v2130, %v2239
  %v2256 = vsel %vm2176, %v2133, %v2240
  %v2257 = vsel %vm2177, %v2136, %v2241
  %v2258 = vsel %vm2178, %v2139, %v2242
  %v2259 = vsel %vm2179, %v2142, %v2243
  %v2260 = vsel %vm2180, %v2145, %v2244
  %v2261 = vsel %vm2181, %v2148, %v2245
  %v2262 = vsel %vm2182, %v2151, %v2246
  %v2263 = vsel %vm2183, %v2154, %v2247
  %v2264 = vsel %vm2184, %v2157, %v2248
  %v2265 = vsel %vm2185, %v2160, %v2249
  %v2266 = vsel %vm2186, %v2163, %v2250
  %v2267 = vsel %vm2187, %v2166, %v2251
  %v2268 = vsel %vm2188, %v2169, %v2252
  %v2269 = vsel %vm2189, %v2172, %v2253
  %2271 = vset.pattern.permute.xlu0 0
  %2272 = vperm.xlu0 %2271, %v452
  %v2273 = vpop.permute.xlu0 %2272
  %2276 = vset.pattern.permute.xlu0 0
  %2277 = vperm.xlu0 %2276, %v453
  %v2278 = vpop.permute.xlu0 %2277
  %2281 = vset.pattern.permute.xlu0 0
  %2282 = vperm.xlu0 %2281, %v454
  %v2283 = vpop.permute.xlu0 %2282
  %2286 = vset.pattern.permute.xlu0 0
  %2287 = vperm.xlu0 %2286, %v455
  %v2288 = vpop.permute.xlu0 %2287
  %2291 = vset.pattern.permute.xlu0 0
  %2292 = vperm.xlu0 %2291, %v456
  %v2293 = vpop.permute.xlu0 %2292
  %2296 = vset.pattern.permute.xlu0 0
  %2297 = vperm.xlu0 %2296, %v457
  %v2298 = vpop.permute.xlu0 %2297
  %2301 = vset.pattern.permute.xlu0 0
  %2302 = vperm.xlu0 %2301, %v458
  %v2303 = vpop.permute.xlu0 %2302
  %2306 = vset.pattern.permute.xlu0 0
  %2307 = vperm.xlu0 %2306, %v459
  %v2308 = vpop.permute.xlu0 %2307
  %2310 = vmatpush.msra.mxu0 %v2269
  %2311 = vmatpush.msra.mxu0 %v2268
  %2312 = vmatpush.msra.mxu0 %v2267
  %2313 = vmatpush.msra.mxu0 %v2266
  %2314 = vmatpush.msra.mxu0 %v2265
  %2315 = vmatpush.msra.mxu0 %v2264
  %2316 = vmatpush.msra.mxu0 %v2263
  %2317 = vmatpush.msra.mxu0 %v2262
  %2318 = vmatpush.msra.mxu0 %v2261
  %2319 = vmatpush.msra.mxu0 %v2260
  %2320 = vmatpush.msra.mxu0 %v2259
  %2321 = vmatpush.msra.mxu0 %v2258
  %2322 = vmatpush.msra.mxu0 %v2257
  %2323 = vmatpush.msra.mxu0 %v2256
  %2324 = vmatpush.msra.mxu0 %v2255
  %2325 = vmatpush.msra.mxu0 %v2254
  %2326 = vmatmul.f32.gmra.mxu0 %v444
  %v2327 = vpop.f32.mrf.mxu0
  %v2328 = vadd.f32 %v2273, %v2327
  %2329 = vmatmul.f32.gmra.mxu0 %v445
  %v2330 = vpop.f32.mrf.mxu0
  %v2331 = vadd.f32 %v2278, %v2330
  %2332 = vmatmul.f32.gmra.mxu0 %v446
  %v2333 = vpop.f32.mrf.mxu0
  %v2334 = vadd.f32 %v2283, %v2333
  %2335 = vmatmul.f32.gmra.mxu0 %v447
  %v2336 = vpop.f32.mrf.mxu0
  %v2337 = vadd.f32 %v2288, %v2336
  %2338 = vmatmul.f32.gmra.mxu0 %v448
  %v2339 = vpop.f32.mrf.mxu0
  %v2340 = vadd.f32 %v2293, %v2339
  %2341 = vmatmul.f32.gmra.mxu0 %v449
  %v2342 = vpop.f32.mrf.mxu0
  %v2343 = vadd.f32 %v2298, %v2342
  %2344 = vmatmul.f32.gmra.mxu0 %v450
  %v2345 = vpop.f32.mrf.mxu0
  %v2346 = vadd.f32 %v2303, %v2345
  %2347 = vmatmul.f32.gmra.mxu0 %v451
  %v2348 = vpop.f32.mrf.mxu0
  %v2349 = vadd.f32 %v2308, %v2348
  %2350 = vdwg.mxu0
  %vm2351 = vcmp.gt.f32.partialorder %v2328, 0.0
  %vm2352 = vcmp.gt.f32.partialorder %v2331, 0.0
  %vm2353 = vcmp.gt.f32.partialorder %v2334, 0.0
  %vm2354 = vcmp.gt.f32.partialorder %v2337, 0.0
  %vm2355 = vcmp.gt.f32.partialorder %v2340, 0.0
  %vm2356 = vcmp.gt.f32.partialorder %v2343, 0.0
  %vm2357 = vcmp.gt.f32.partialorder %v2346, 0.0
  %vm2358 = vcmp.gt.f32.partialorder %v2349, 0.0
  %v2359 = vmin.f32 %v2328, 0.0
  %v2360 = vmin.f32 %v2331, 0.0
  %v2361 = vmin.f32 %v2334, 0.0
  %v2362 = vmin.f32 %v2337, 0.0
  %v2363 = vmin.f32 %v2340, 0.0
  %v2364 = vmin.f32 %v2343, 0.0
  %v2365 = vmin.f32 %v2346, 0.0
  %v2366 = vmin.f32 %v2349, 0.0
  %v2367 = vmul.f32 %v2359, 1.442695
  %v2368 = vpow.pop %v2367
  %v2369 = vmul.f32 %v2360, 1.442695
  %v2370 = vpow.pop %v2369
  %v2371 = vmul.f32 %v2361, 1.442695
  %v2372 = vpow.pop %v2371
  %v2373 = vmul.f32 %v2362, 1.442695
  %v2374 = vpow.pop %v2373
  %v2375 = vmul.f32 %v2363, 1.442695
  %v2376 = vpow.pop %v2375
  %v2377 = vmul.f32 %v2364, 1.442695
  %v2378 = vpow.pop %v2377
  %v2379 = vmul.f32 %v2365, 1.442695
  %v2380 = vpow.pop %v2379
  %v2381 = vmul.f32 %v2366, 1.442695
  %v2382 = vpow.pop %v2381
  %v2383 = vsub.f32 %v2368, 1.0
  %v2384 = vsub.f32 %v2370, 1.0
  %v2385 = vsub.f32 %v2372, 1.0
  %v2386 = vsub.f32 %v2374, 1.0
  %v2387 = vsub.f32 %v2376, 1.0
  %v2388 = vsub.f32 %v2378, 1.0
  %v2389 = vsub.f32 %v2380, 1.0
  %v2390 = vsub.f32 %v2382, 1.0
  %v2391 = vsel %vm2351, %v2328, %v2383
  %v2392 = vsel %vm2352, %v2331, %v2384
  %v2393 = vsel %vm2353, %v2334, %v2385
  %v2394 = vsel %vm2354, %v2337, %v2386
  %v2395 = vsel %vm2355, %v2340, %v2387
  %v2396 = vsel %vm2356, %v2343, %v2388
  %v2397 = vsel %vm2357, %v2346, %v2389
  %v2398 = vsel %vm2358, %v2349, %v2390
  %v2399 = vlaneseq
  %v2400 = vand.u32 %v2399, 127
  %vm2401 = vcmp.lt.s32.totalorder %v2400, 96
  %v2402 = vsel %vm2401, 1, 0
  %vm2403 = vcmp.eq.s32.totalorder %v2402, 1
  %v2404 = vsel %vm2403, %v2391, 0.0
  %v2405 = vsel %vm2403, %v2392, 0.0
  %v2406 = vsel %vm2403, %v2393, 0.0
  %v2407 = vsel %vm2403, %v2394, 0.0
  %v2408 = vsel %vm2403, %v2395, 0.0
  %v2409 = vsel %vm2403, %v2396, 0.0
  %v2410 = vsel %vm2403, %v2397, 0.0
  %v2411 = vsel %vm2403, %v2398, 0.0
  %2412 = vrot.lane.b32.xlu0 %v2404, 2
  %v2413 = vpop.permute.xlu0 %2412
  %2414 = vrot.lane.b32.xlu0 %v2405, 2
  %v2415 = vpop.permute.xlu0 %2414
  %2416 = vrot.lane.b32.xlu0 %v2406, 2
  %v2417 = vpop.permute.xlu0 %2416
  %2418 = vrot.lane.b32.xlu0 %v2407, 2
  %v2419 = vpop.permute.xlu0 %2418
  %2420 = vrot.lane.b32.xlu0 %v2408, 2
  %v2421 = vpop.permute.xlu0 %2420
  %2422 = vrot.lane.b32.xlu0 %v2409, 2
  %v2423 = vpop.permute.xlu0 %2422
  %2424 = vrot.lane.b32.xlu0 %v2410, 2
  %v2425 = vpop.permute.xlu0 %2424
  %2426 = vrot.lane.b32.xlu0 %v2411, 2
  %v2427 = vpop.permute.xlu0 %2426
  %2428 = vrot.lane.b32.xlu0 %v2404, 126
  %v2429 = vpop.permute.xlu0 %2428
  %2430 = vrot.lane.b32.xlu0 %v2405, 126
  %v2431 = vpop.permute.xlu0 %2430
  %2432 = vrot.lane.b32.xlu0 %v2406, 126
  %v2433 = vpop.permute.xlu0 %2432
  %2434 = vrot.lane.b32.xlu0 %v2407, 126
  %v2435 = vpop.permute.xlu0 %2434
  %2436 = vrot.lane.b32.xlu0 %v2408, 126
  %v2437 = vpop.permute.xlu0 %2436
  %2438 = vrot.lane.b32.xlu0 %v2409, 126
  %v2439 = vpop.permute.xlu0 %2438
  %2440 = vrot.lane.b32.xlu0 %v2410, 126
  %v2441 = vpop.permute.xlu0 %2440
  %2442 = vrot.lane.b32.xlu0 %v2411, 126
  %v2443 = vpop.permute.xlu0 %2442
  %2445 = vset.pattern.permute.xlu0 0
  %2446 = vperm.xlu0 %2445, %v468
  %v2447 = vpop.permute.xlu0 %2446
  %2450 = vset.pattern.permute.xlu0 0
  %2451 = vperm.xlu0 %2450, %v469
  %v2452 = vpop.permute.xlu0 %2451
  %2455 = vset.pattern.permute.xlu0 0
  %2456 = vperm.xlu0 %2455, %v470
  %v2457 = vpop.permute.xlu0 %2456
  %2460 = vset.pattern.permute.xlu0 0
  %2461 = vperm.xlu0 %2460, %v471
  %v2462 = vpop.permute.xlu0 %2461
  %vm2464 = vcmask 523264
  %v2466 = vsel %vm2464, %v461, 0
  %v2469 = vsel %vm2464, %v463, 0
  %v2472 = vsel %vm2464, %v465, 0
  %v2475 = vsel %vm2464, %v467, 0
  %2477 = vmatpush.msra.mxu0 %v2411
  %2478 = vmatpush.msra.mxu0 %v2410
  %2479 = vmatpush.msra.mxu0 %v2409
  %2480 = vmatpush.msra.mxu0 %v2408
  %2481 = vmatpush.msra.mxu0 %v2407
  %2482 = vmatpush.msra.mxu0 %v2406
  %2483 = vmatpush.msra.mxu0 %v2405
  %2484 = vmatpush.msra.mxu0 %v2404
  %2485 = vmatpush.msra.mxu0 %v2427
  %2486 = vmatpush.msra.mxu0 %v2425
  %2487 = vmatpush.msra.mxu0 %v2423
  %2488 = vmatpush.msra.mxu0 %v2421
  %2489 = vmatpush.msra.mxu0 %v2419
  %2490 = vmatpush.msra.mxu0 %v2417
  %2491 = vmatpush.msra.mxu0 %v2415
  %2492 = vmatpush.msra.mxu0 %v2413
  %2493 = vmatmul.f32.gmra.mxu0 %v460
  %v2494 = vpop.f32.mrf.mxu0
  %v2495 = vadd.f32 %v2447, %v2494
  %2496 = vmatmul.f32.gmra.mxu0 %v462
  %v2497 = vpop.f32.mrf.mxu0
  %v2498 = vadd.f32 %v2452, %v2497
  %2499 = vmatmul.f32.gmra.mxu0 %v464
  %v2500 = vpop.f32.mrf.mxu0
  %v2501 = vadd.f32 %v2457, %v2500
  %2502 = vmatmul.f32.gmra.mxu0 %v466
  %v2503 = vpop.f32.mrf.mxu0
  %v2504 = vadd.f32 %v2462, %v2503
  %2505 = vdwg.mxu0
  %2506 = vmatpush.msra.mxu0 0.0
  %2507 = vmatpush.msra.mxu0 0.0
  %2508 = vmatpush.msra.mxu0 0.0
  %2509 = vmatpush.msra.mxu0 0.0
  %2510 = vmatpush.msra.mxu0 0.0
  %2511 = vmatpush.msra.mxu0 0.0
  %2512 = vmatpush.msra.mxu0 0.0
  %2513 = vmatpush.msra.mxu0 0.0
  %2514 = vmatpush.msra.mxu0 %v2443
  %2515 = vmatpush.msra.mxu0 %v2441
  %2516 = vmatpush.msra.mxu0 %v2439
  %2517 = vmatpush.msra.mxu0 %v2437
  %2518 = vmatpush.msra.mxu0 %v2435
  %2519 = vmatpush.msra.mxu0 %v2433
  %2520 = vmatpush.msra.mxu0 %v2431
  %2521 = vmatpush.msra.mxu0 %v2429
  %2522 = vmatmul.f32.gmra.mxu0 %v2466
  %v2523 = vpop.f32.mrf.mxu0
  %v2524 = vadd.f32 %v2495, %v2523
  %2525 = vmatmul.f32.gmra.mxu0 %v2469
  %v2526 = vpop.f32.mrf.mxu0
  %v2527 = vadd.f32 %v2498, %v2526
  %2528 = vmatmul.f32.gmra.mxu0 %v2472
  %v2529 = vpop.f32.mrf.mxu0
  %v2530 = vadd.f32 %v2501, %v2529
  %2531 = vmatmul.f32.gmra.mxu0 %v2475
  %v2532 = vpop.f32.mrf.mxu0
  %v2533 = vadd.f32 %v2504, %v2532
  %2534 = vdwg.mxu0
  %vm2535 = vcmp.gt.f32.partialorder %v2524, 0.0
  %vm2536 = vcmp.gt.f32.partialorder %v2527, 0.0
  %vm2537 = vcmp.gt.f32.partialorder %v2530, 0.0
  %vm2538 = vcmp.gt.f32.partialorder %v2533, 0.0
  %v2539 = vmin.f32 %v2524, 0.0
  %v2540 = vmin.f32 %v2527, 0.0
  %v2541 = vmin.f32 %v2530, 0.0
  %v2542 = vmin.f32 %v2533, 0.0
  %v2543 = vmul.f32 %v2539, 1.442695
  %v2544 = vpow.pop %v2543
  %v2545 = vmul.f32 %v2540, 1.442695
  %v2546 = vpow.pop %v2545
  %v2547 = vmul.f32 %v2541, 1.442695
  %v2548 = vpow.pop %v2547
  %v2549 = vmul.f32 %v2542, 1.442695
  %v2550 = vpow.pop %v2549
  %v2551 = vsub.f32 %v2544, 1.0
  %v2552 = vsub.f32 %v2546, 1.0
  %v2553 = vsub.f32 %v2548, 1.0
  %v2554 = vsub.f32 %v2550, 1.0
  %v2555 = vsel %vm2535, %v2524, %v2551
  %v2556 = vsel %vm2536, %v2527, %v2552
  %v2557 = vsel %vm2537, %v2530, %v2553
  %v2558 = vsel %vm2538, %v2533, %v2554
  %v2559 = vsel %vm2403, %v2555, 0.0
  %v2560 = vsel %vm2403, %v2556, 0.0
  %v2561 = vsel %vm2403, %v2557, 0.0
  %v2562 = vsel %vm2403, %v2558, 0.0
  %2563 = vrot.lane.b32.xlu0 %v2559, 2
  %v2564 = vpop.permute.xlu0 %2563
  %2565 = vrot.lane.b32.xlu0 %v2560, 2
  %v2566 = vpop.permute.xlu0 %2565
  %2567 = vrot.lane.b32.xlu0 %v2561, 2
  %v2568 = vpop.permute.xlu0 %2567
  %2569 = vrot.lane.b32.xlu0 %v2562, 2
  %v2570 = vpop.permute.xlu0 %2569
  %2571 = vrot.lane.b32.xlu0 %v2559, 126
  %v2572 = vpop.permute.xlu0 %2571
  %2573 = vrot.lane.b32.xlu0 %v2560, 126
  %v2574 = vpop.permute.xlu0 %2573
  %2575 = vrot.lane.b32.xlu0 %v2561, 126
  %v2576 = vpop.permute.xlu0 %2575
  %2577 = vrot.lane.b32.xlu0 %v2562, 126
  %v2578 = vpop.permute.xlu0 %2577
  %2580 = vset.pattern.permute.xlu0 0
  %2581 = vperm.xlu0 %2580, %v476
  %v2582 = vpop.permute.xlu0 %2581
  %2585 = vset.pattern.permute.xlu0 0
  %2586 = vperm.xlu0 %2585, %v477
  %v2587 = vpop.permute.xlu0 %2586
  %2590 = vset.pattern.permute.xlu0 0
  %2591 = vperm.xlu0 %2590, %v478
  %v2592 = vpop.permute.xlu0 %2591
  %2595 = vset.pattern.permute.xlu0 0
  %2596 = vperm.xlu0 %2595, %v479
  %v2597 = vpop.permute.xlu0 %2596
  %vm2599 = vcmask 785408
  %v2601 = vsel %vm2599, %v472, 0
  %v2604 = vsel %vm2599, %v473, 0
  %v2607 = vsel %vm2599, %v474, 0
  %v2610 = vsel %vm2599, %v475, 0
  %2612 = vmatpush.msra.mxu0 0.0
  %2613 = vmatpush.msra.mxu0 0.0
  %2614 = vmatpush.msra.mxu0 0.0
  %2615 = vmatpush.msra.mxu0 0.0
  %2616 = vmatpush.msra.mxu0 %v2578
  %2617 = vmatpush.msra.mxu0 %v2576
  %2618 = vmatpush.msra.mxu0 %v2574
  %2619 = vmatpush.msra.mxu0 %v2572
  %2620 = vmatpush.msra.mxu0 %v2562
  %2621 = vmatpush.msra.mxu0 %v2561
  %2622 = vmatpush.msra.mxu0 %v2560
  %2623 = vmatpush.msra.mxu0 %v2559
  %2624 = vmatpush.msra.mxu0 %v2570
  %2625 = vmatpush.msra.mxu0 %v2568
  %2626 = vmatpush.msra.mxu0 %v2566
  %2627 = vmatpush.msra.mxu0 %v2564
  %2628 = vmatmul.f32.gmra.mxu0 %v2601
  %v2629 = vpop.f32.mrf.mxu0
  %v2630 = vadd.f32 %v2582, %v2629
  %2631 = vmatmul.f32.gmra.mxu0 %v2604
  %v2632 = vpop.f32.mrf.mxu0
  %v2633 = vadd.f32 %v2587, %v2632
  %2634 = vmatmul.f32.gmra.mxu0 %v2607
  %v2635 = vpop.f32.mrf.mxu0
  %v2636 = vadd.f32 %v2592, %v2635
  %2637 = vmatmul.f32.gmra.mxu0 %v2610
  %v2638 = vpop.f32.mrf.mxu0
  %v2639 = vadd.f32 %v2597, %v2638
  %2640 = vdwg.mxu0
  %vm2641 = vcmp.gt.f32.partialorder %v2630, 0.0
  %vm2642 = vcmp.gt.f32.partialorder %v2633, 0.0
  %vm2643 = vcmp.gt.f32.partialorder %v2636, 0.0
  %vm2644 = vcmp.gt.f32.partialorder %v2639, 0.0
  %v2645 = vmin.f32 %v2630, 0.0
  %v2646 = vmin.f32 %v2633, 0.0
  %v2647 = vmin.f32 %v2636, 0.0
  %v2648 = vmin.f32 %v2639, 0.0
  %v2649 = vmul.f32 %v2645, 1.442695
  %v2650 = vpow.pop %v2649
  %v2651 = vmul.f32 %v2646, 1.442695
  %v2652 = vpow.pop %v2651
  %v2653 = vmul.f32 %v2647, 1.442695
  %v2654 = vpow.pop %v2653
  %v2655 = vmul.f32 %v2648, 1.442695
  %v2656 = vpow.pop %v2655
  %v2657 = vsub.f32 %v2650, 1.0
  %v2658 = vsub.f32 %v2652, 1.0
  %v2659 = vsub.f32 %v2654, 1.0
  %v2660 = vsub.f32 %v2656, 1.0
  %v2661 = vsel %vm2641, %v2630, %v2657
  %v2662 = vsel %vm2642, %v2633, %v2658
  %v2663 = vsel %vm2643, %v2636, %v2659
  %v2664 = vsel %vm2644, %v2639, %v2660
  %v2665 = vsel %vm2403, %v2661, 0.0
  %v2666 = vsel %vm2403, %v2662, 0.0
  %v2667 = vsel %vm2403, %v2663, 0.0
  %v2668 = vsel %vm2403, %v2664, 0.0
  %2669 = vrot.lane.b32.xlu0 %v2665, 2
  %v2670 = vpop.permute.xlu0 %2669
  %2671 = vrot.lane.b32.xlu0 %v2666, 2
  %v2672 = vpop.permute.xlu0 %2671
  %2673 = vrot.lane.b32.xlu0 %v2667, 2
  %v2674 = vpop.permute.xlu0 %2673
  %2675 = vrot.lane.b32.xlu0 %v2668, 2
  %v2676 = vpop.permute.xlu0 %2675
  %2677 = vrot.lane.b32.xlu0 %v2665, 126
  %v2678 = vpop.permute.xlu0 %2677
  %2679 = vrot.lane.b32.xlu0 %v2666, 126
  %v2680 = vpop.permute.xlu0 %2679
  %2681 = vrot.lane.b32.xlu0 %v2667, 126
  %v2682 = vpop.permute.xlu0 %2681
  %2683 = vrot.lane.b32.xlu0 %v2668, 126
  %v2684 = vpop.permute.xlu0 %2683
  %2686 = vset.pattern.permute.xlu0 0
  %2687 = vperm.xlu0 %2686, %v484
  %v2688 = vpop.permute.xlu0 %2687
  %2691 = vset.pattern.permute.xlu0 0
  %2692 = vperm.xlu0 %2691, %v485
  %v2693 = vpop.permute.xlu0 %2692
  %2696 = vset.pattern.permute.xlu0 0
  %2697 = vperm.xlu0 %2696, %v486
  %v2698 = vpop.permute.xlu0 %2697
  %2701 = vset.pattern.permute.xlu0 0
  %2702 = vperm.xlu0 %2701, %v487
  %v2703 = vpop.permute.xlu0 %2702
  %v2706 = vsel %vm2599, %v480, 0
  %v2709 = vsel %vm2599, %v481, 0
  %v2712 = vsel %vm2599, %v482, 0
  %v2715 = vsel %vm2599, %v483, 0
  %2717 = vmatpush.msra.mxu0 0.0
  %2718 = vmatpush.msra.mxu0 0.0
  %2719 = vmatpush.msra.mxu0 0.0
  %2720 = vmatpush.msra.mxu0 0.0
  %2721 = vmatpush.msra.mxu0 %v2684
  %2722 = vmatpush.msra.mxu0 %v2682
  %2723 = vmatpush.msra.mxu0 %v2680
  %2724 = vmatpush.msra.mxu0 %v2678
  %2725 = vmatpush.msra.mxu0 %v2668
  %2726 = vmatpush.msra.mxu0 %v2667
  %2727 = vmatpush.msra.mxu0 %v2666
  %2728 = vmatpush.msra.mxu0 %v2665
  %2729 = vmatpush.msra.mxu0 %v2676
  %2730 = vmatpush.msra.mxu0 %v2674
  %2731 = vmatpush.msra.mxu0 %v2672
  %2732 = vmatpush.msra.mxu0 %v2670
  %2733 = vmatmul.f32.gmra.mxu0 %v2706
  %v2734 = vpop.f32.mrf.mxu0
  %v2735 = vadd.f32 %v2688, %v2734
  %2736 = vmatmul.f32.gmra.mxu0 %v2709
  %v2737 = vpop.f32.mrf.mxu0
  %v2738 = vadd.f32 %v2693, %v2737
  %2739 = vmatmul.f32.gmra.mxu0 %v2712
  %v2740 = vpop.f32.mrf.mxu0
  %v2741 = vadd.f32 %v2698, %v2740
  %2742 = vmatmul.f32.gmra.mxu0 %v2715
  %v2743 = vpop.f32.mrf.mxu0
  %v2744 = vadd.f32 %v2703, %v2743
  %2745 = vdwg.mxu0
  %vm2746 = vcmp.gt.f32.partialorder %v2735, 0.0
  %vm2747 = vcmp.gt.f32.partialorder %v2738, 0.0
  %vm2748 = vcmp.gt.f32.partialorder %v2741, 0.0
  %vm2749 = vcmp.gt.f32.partialorder %v2744, 0.0
  %v2750 = vmin.f32 %v2735, 0.0
  %v2751 = vmin.f32 %v2738, 0.0
  %v2752 = vmin.f32 %v2741, 0.0
  %v2753 = vmin.f32 %v2744, 0.0
  %v2754 = vmul.f32 %v2750, 1.442695
  %v2755 = vpow.pop %v2754
  %v2756 = vmul.f32 %v2751, 1.442695
  %v2757 = vpow.pop %v2756
  %v2758 = vmul.f32 %v2752, 1.442695
  %v2759 = vpow.pop %v2758
  %v2760 = vmul.f32 %v2753, 1.442695
  %v2761 = vpow.pop %v2760
  %v2762 = vsub.f32 %v2755, 1.0
  %v2763 = vsub.f32 %v2757, 1.0
  %v2764 = vsub.f32 %v2759, 1.0
  %v2765 = vsub.f32 %v2761, 1.0
  %v2766 = vsel %vm2746, %v2735, %v2762
  %v2767 = vsel %vm2747, %v2738, %v2763
  %v2768 = vsel %vm2748, %v2741, %v2764
  %v2769 = vsel %vm2749, %v2744, %v2765
  %v2770 = vsel %vm2403, %v2766, 0.0
  %v2771 = vsel %vm2403, %v2767, 0.0
  %v2772 = vsel %vm2403, %v2768, 0.0
  %v2773 = vsel %vm2403, %v2769, 0.0
  %2774 = vrot.lane.b32.xlu0 %v2770, 2
  %v2775 = vpop.permute.xlu0 %2774
  %2776 = vrot.lane.b32.xlu0 %v2771, 2
  %v2777 = vpop.permute.xlu0 %2776
  %2778 = vrot.lane.b32.xlu0 %v2772, 2
  %v2779 = vpop.permute.xlu0 %2778
  %2780 = vrot.lane.b32.xlu0 %v2773, 2
  %v2781 = vpop.permute.xlu0 %2780
  %2782 = vrot.lane.b32.xlu0 %v2770, 126
  %v2783 = vpop.permute.xlu0 %2782
  %2784 = vrot.lane.b32.xlu0 %v2771, 126
  %v2785 = vpop.permute.xlu0 %2784
  %2786 = vrot.lane.b32.xlu0 %v2772, 126
  %v2787 = vpop.permute.xlu0 %2786
  %2788 = vrot.lane.b32.xlu0 %v2773, 126
  %v2789 = vpop.permute.xlu0 %2788
  %2791 = vset.pattern.permute.xlu0 0
  %2792 = vperm.xlu0 %2791, %v492
  %v2793 = vpop.permute.xlu0 %2792
  %2796 = vset.pattern.permute.xlu0 0
  %2797 = vperm.xlu0 %2796, %v493
  %v2798 = vpop.permute.xlu0 %2797
  %2801 = vset.pattern.permute.xlu0 0
  %2802 = vperm.xlu0 %2801, %v494
  %v2803 = vpop.permute.xlu0 %2802
  %2806 = vset.pattern.permute.xlu0 0
  %2807 = vperm.xlu0 %2806, %v495
  %v2808 = vpop.permute.xlu0 %2807
  %v2811 = vsel %vm2599, %v488, 0
  %v2814 = vsel %vm2599, %v489, 0
  %v2817 = vsel %vm2599, %v490, 0
  %v2820 = vsel %vm2599, %v491, 0
  %2822 = vmatpush.msra.mxu0 0.0
  %2823 = vmatpush.msra.mxu0 0.0
  %2824 = vmatpush.msra.mxu0 0.0
  %2825 = vmatpush.msra.mxu0 0.0
  %2826 = vmatpush.msra.mxu0 %v2789
  %2827 = vmatpush.msra.mxu0 %v2787
  %2828 = vmatpush.msra.mxu0 %v2785
  %2829 = vmatpush.msra.mxu0 %v2783
  %2830 = vmatpush.msra.mxu0 %v2773
  %2831 = vmatpush.msra.mxu0 %v2772
  %2832 = vmatpush.msra.mxu0 %v2771
  %2833 = vmatpush.msra.mxu0 %v2770
  %2834 = vmatpush.msra.mxu0 %v2781
  %2835 = vmatpush.msra.mxu0 %v2779
  %2836 = vmatpush.msra.mxu0 %v2777
  %2837 = vmatpush.msra.mxu0 %v2775
  %2838 = vmatmul.f32.gmra.mxu0 %v2811
  %v2839 = vpop.f32.mrf.mxu0
  %v2840 = vadd.f32 %v2793, %v2839
  %2841 = vmatmul.f32.gmra.mxu0 %v2814
  %v2842 = vpop.f32.mrf.mxu0
  %v2843 = vadd.f32 %v2798, %v2842
  %2844 = vmatmul.f32.gmra.mxu0 %v2817
  %v2845 = vpop.f32.mrf.mxu0
  %v2846 = vadd.f32 %v2803, %v2845
  %2847 = vmatmul.f32.gmra.mxu0 %v2820
  %v2848 = vpop.f32.mrf.mxu0
  %v2849 = vadd.f32 %v2808, %v2848
  %2850 = vdwg.mxu0
  %vm2851 = vcmp.gt.f32.partialorder %v2840, 0.0
  %vm2852 = vcmp.gt.f32.partialorder %v2843, 0.0
  %vm2853 = vcmp.gt.f32.partialorder %v2846, 0.0
  %vm2854 = vcmp.gt.f32.partialorder %v2849, 0.0
  %v2855 = vmin.f32 %v2840, 0.0
  %v2856 = vmin.f32 %v2843, 0.0
  %v2857 = vmin.f32 %v2846, 0.0
  %v2858 = vmin.f32 %v2849, 0.0
  %v2859 = vmul.f32 %v2855, 1.442695
  %v2860 = vpow.pop %v2859
  %v2861 = vmul.f32 %v2856, 1.442695
  %v2862 = vpow.pop %v2861
  %v2863 = vmul.f32 %v2857, 1.442695
  %v2864 = vpow.pop %v2863
  %v2865 = vmul.f32 %v2858, 1.442695
  %v2866 = vpow.pop %v2865
  %v2867 = vsub.f32 %v2860, 1.0
  %v2868 = vsub.f32 %v2862, 1.0
  %v2869 = vsub.f32 %v2864, 1.0
  %v2870 = vsub.f32 %v2866, 1.0
  %v2871 = vsel %vm2851, %v2840, %v2867
  %v2872 = vsel %vm2852, %v2843, %v2868
  %v2873 = vsel %vm2853, %v2846, %v2869
  %v2874 = vsel %vm2854, %v2849, %v2870
  %v2875 = vsel %vm2403, %v2871, 0.0
  %v2876 = vsel %vm2403, %v2872, 0.0
  %v2877 = vsel %vm2403, %v2873, 0.0
  %v2878 = vsel %vm2403, %v2874, 0.0
  %2879 = vrot.lane.b32.xlu0 %v2875, 2
  %v2880 = vpop.permute.xlu0 %2879
  %2881 = vrot.lane.b32.xlu0 %v2876, 2
  %v2882 = vpop.permute.xlu0 %2881
  %2883 = vrot.lane.b32.xlu0 %v2877, 2
  %v2884 = vpop.permute.xlu0 %2883
  %2885 = vrot.lane.b32.xlu0 %v2878, 2
  %v2886 = vpop.permute.xlu0 %2885
  %2887 = vrot.lane.b32.xlu0 %v2875, 126
  %v2888 = vpop.permute.xlu0 %2887
  %2889 = vrot.lane.b32.xlu0 %v2876, 126
  %v2890 = vpop.permute.xlu0 %2889
  %2891 = vrot.lane.b32.xlu0 %v2877, 126
  %v2892 = vpop.permute.xlu0 %2891
  %2893 = vrot.lane.b32.xlu0 %v2878, 126
  %v2894 = vpop.permute.xlu0 %2893
  %2896 = vset.pattern.permute.xlu0 0
  %2897 = vperm.xlu0 %2896, %v500
  %v2898 = vpop.permute.xlu0 %2897
  %2901 = vset.pattern.permute.xlu0 0
  %2902 = vperm.xlu0 %2901, %v501
  %v2903 = vpop.permute.xlu0 %2902
  %2906 = vset.pattern.permute.xlu0 0
  %2907 = vperm.xlu0 %2906, %v502
  %v2908 = vpop.permute.xlu0 %2907
  %2911 = vset.pattern.permute.xlu0 0
  %2912 = vperm.xlu0 %2911, %v503
  %v2913 = vpop.permute.xlu0 %2912
  %v2916 = vsel %vm2599, %v496, 0
  %v2919 = vsel %vm2599, %v497, 0
  %v2922 = vsel %vm2599, %v498, 0
  %v2925 = vsel %vm2599, %v499, 0
  %2927 = vmatpush.msra.mxu0 0.0
  %2928 = vmatpush.msra.mxu0 0.0
  %2929 = vmatpush.msra.mxu0 0.0
  %2930 = vmatpush.msra.mxu0 0.0
  %2931 = vmatpush.msra.mxu0 %v2894
  %2932 = vmatpush.msra.mxu0 %v2892
  %2933 = vmatpush.msra.mxu0 %v2890
  %2934 = vmatpush.msra.mxu0 %v2888
  %2935 = vmatpush.msra.mxu0 %v2878
  %2936 = vmatpush.msra.mxu0 %v2877
  %2937 = vmatpush.msra.mxu0 %v2876
  %2938 = vmatpush.msra.mxu0 %v2875
  %2939 = vmatpush.msra.mxu0 %v2886
  %2940 = vmatpush.msra.mxu0 %v2884
  %2941 = vmatpush.msra.mxu0 %v2882
  %2942 = vmatpush.msra.mxu0 %v2880
  %2943 = vmatmul.f32.gmra.mxu0 %v2916
  %v2944 = vpop.f32.mrf.mxu0
  %v2945 = vadd.f32 %v2898, %v2944
  %2946 = vmatmul.f32.gmra.mxu0 %v2919
  %v2947 = vpop.f32.mrf.mxu0
  %v2948 = vadd.f32 %v2903, %v2947
  %2949 = vmatmul.f32.gmra.mxu0 %v2922
  %v2950 = vpop.f32.mrf.mxu0
  %v2951 = vadd.f32 %v2908, %v2950
  %2952 = vmatmul.f32.gmra.mxu0 %v2925
  %v2953 = vpop.f32.mrf.mxu0
  %v2954 = vadd.f32 %v2913, %v2953
  %2955 = vdwg.mxu0
  %vm2956 = vcmp.gt.f32.partialorder %v2945, 0.0
  %vm2957 = vcmp.gt.f32.partialorder %v2948, 0.0
  %vm2958 = vcmp.gt.f32.partialorder %v2951, 0.0
  %vm2959 = vcmp.gt.f32.partialorder %v2954, 0.0
  %v2960 = vmin.f32 %v2945, 0.0
  %v2961 = vmin.f32 %v2948, 0.0
  %v2962 = vmin.f32 %v2951, 0.0
  %v2963 = vmin.f32 %v2954, 0.0
  %v2964 = vmul.f32 %v2960, 1.442695
  %v2965 = vpow.pop %v2964
  %v2966 = vmul.f32 %v2961, 1.442695
  %v2967 = vpow.pop %v2966
  %v2968 = vmul.f32 %v2962, 1.442695
  %v2969 = vpow.pop %v2968
  %v2970 = vmul.f32 %v2963, 1.442695
  %v2971 = vpow.pop %v2970
  %v2972 = vsub.f32 %v2965, 1.0
  %v2973 = vsub.f32 %v2967, 1.0
  %v2974 = vsub.f32 %v2969, 1.0
  %v2975 = vsub.f32 %v2971, 1.0
  %v2976 = vsel %vm2956, %v2945, %v2972
  %v2977 = vsel %vm2957, %v2948, %v2973
  %v2978 = vsel %vm2958, %v2951, %v2974
  %v2979 = vsel %vm2959, %v2954, %v2975
  %2981 = vset.pattern.permute.xlu0 0
  %2982 = vperm.xlu0 %2981, %v508
  %v2983 = vpop.permute.xlu0 %2982
  %2986 = vset.pattern.permute.xlu0 0
  %2987 = vperm.xlu0 %2986, %v509
  %v2988 = vpop.permute.xlu0 %2987
  %2991 = vset.pattern.permute.xlu0 0
  %2992 = vperm.xlu0 %2991, %v510
  %v2993 = vpop.permute.xlu0 %2992
  %2996 = vset.pattern.permute.xlu0 0
  %2997 = vperm.xlu0 %2996, %v511
  %v2998 = vpop.permute.xlu0 %2997
  %vm3000 = vcmask 261120
  %v3002 = vsel %vm3000, %v504, 0
  %v3005 = vsel %vm3000, %v505, 0
  %v3008 = vsel %vm3000, %v506, 0
  %v3011 = vsel %vm3000, %v507, 0
  %3013 = vmatpush.msra.mxu0 0.0
  %3014 = vmatpush.msra.mxu0 0.0
  %3015 = vmatpush.msra.mxu0 0.0
  %3016 = vmatpush.msra.mxu0 0.0
  %3017 = vmatpush.msra.mxu0 0.0
  %3018 = vmatpush.msra.mxu0 0.0
  %3019 = vmatpush.msra.mxu0 0.0
  %3020 = vmatpush.msra.mxu0 0.0
  %3021 = vmatpush.msra.mxu0 0.0
  %3022 = vmatpush.msra.mxu0 0.0
  %3023 = vmatpush.msra.mxu0 0.0
  %3024 = vmatpush.msra.mxu0 0.0
  %3025 = vmatpush.msra.mxu0 %v2979
  %3026 = vmatpush.msra.mxu0 %v2978
  %3027 = vmatpush.msra.mxu0 %v2977
  %3028 = vmatpush.msra.mxu0 %v2976
  %3029 = vmatmul.f32.gmra.mxu0 %v3002
  %v3030 = vpop.f32.mrf.mxu0
  %v3031 = vadd.f32 %v2983, %v3030
  %3032 = vmatmul.f32.gmra.mxu0 %v3005
  %v3033 = vpop.f32.mrf.mxu0
  %v3034 = vadd.f32 %v2988, %v3033
  %3035 = vmatmul.f32.gmra.mxu0 %v3008
  %v3036 = vpop.f32.mrf.mxu0
  %v3037 = vadd.f32 %v2993, %v3036
  %3038 = vmatmul.f32.gmra.mxu0 %v3011
  %v3039 = vpop.f32.mrf.mxu0
  %v3040 = vadd.f32 %v2998, %v3039
  %3041 = vdwg.mxu0
  %vm3042 = vcmp.gt.f32.partialorder %v3031, 0.0
  %vm3043 = vcmp.gt.f32.partialorder %v3034, 0.0
  %vm3044 = vcmp.gt.f32.partialorder %v3037, 0.0
  %vm3045 = vcmp.gt.f32.partialorder %v3040, 0.0
  %v3046 = vmin.f32 %v3031, 0.0
  %v3047 = vmin.f32 %v3034, 0.0
  %v3048 = vmin.f32 %v3037, 0.0
  %v3049 = vmin.f32 %v3040, 0.0
  %v3050 = vmul.f32 %v3046, 1.442695
  %v3051 = vpow.pop %v3050
  %v3052 = vmul.f32 %v3047, 1.442695
  %v3053 = vpow.pop %v3052
  %v3054 = vmul.f32 %v3048, 1.442695
  %v3055 = vpow.pop %v3054
  %v3056 = vmul.f32 %v3049, 1.442695
  %v3057 = vpow.pop %v3056
  %v3058 = vsub.f32 %v3051, 1.0
  %v3059 = vsub.f32 %v3053, 1.0
  %v3060 = vsub.f32 %v3055, 1.0
  %v3061 = vsub.f32 %v3057, 1.0
  %v3062 = vsel %vm3042, %v3031, %v3058
  %v3063 = vsel %vm3043, %v3034, %v3059
  %v3064 = vsel %vm3044, %v3037, %v3060
  %v3065 = vsel %vm3045, %v3040, %v3061
  %3067 = vset.pattern.permute.xlu0 0
  %3068 = vperm.xlu0 %3067, %v516
  %v3069 = vpop.permute.xlu0 %3068
  %3072 = vset.pattern.permute.xlu0 0
  %3073 = vperm.xlu0 %3072, %v517
  %v3074 = vpop.permute.xlu0 %3073
  %3077 = vset.pattern.permute.xlu0 0
  %3078 = vperm.xlu0 %3077, %v518
  %v3079 = vpop.permute.xlu0 %3078
  %3082 = vset.pattern.permute.xlu0 0
  %3083 = vperm.xlu0 %3082, %v519
  %v3084 = vpop.permute.xlu0 %3083
  %v3087 = vsel %vm3000, %v512, 0
  %v3090 = vsel %vm3000, %v513, 0
  %v3093 = vsel %vm3000, %v514, 0
  %v3096 = vsel %vm3000, %v515, 0
  %3098 = vmatpush.msra.mxu0 0.0
  %3099 = vmatpush.msra.mxu0 0.0
  %3100 = vmatpush.msra.mxu0 0.0
  %3101 = vmatpush.msra.mxu0 0.0
  %3102 = vmatpush.msra.mxu0 0.0
  %3103 = vmatpush.msra.mxu0 0.0
  %3104 = vmatpush.msra.mxu0 0.0
  %3105 = vmatpush.msra.mxu0 0.0
  %3106 = vmatpush.msra.mxu0 0.0
  %3107 = vmatpush.msra.mxu0 0.0
  %3108 = vmatpush.msra.mxu0 0.0
  %3109 = vmatpush.msra.mxu0 0.0
  %3110 = vmatpush.msra.mxu0 %v3065
  %3111 = vmatpush.msra.mxu0 %v3064
  %3112 = vmatpush.msra.mxu0 %v3063
  %3113 = vmatpush.msra.mxu0 %v3062
  %3114 = vmatmul.f32.gmra.mxu0 %v3087
  %v3115 = vpop.f32.mrf.mxu0
  %v3116 = vadd.f32 %v3069, %v3115
  %3117 = vmatmul.f32.gmra.mxu0 %v3090
  %v3118 = vpop.f32.mrf.mxu0
  %v3119 = vadd.f32 %v3074, %v3118
  %3120 = vmatmul.f32.gmra.mxu0 %v3093
  %v3121 = vpop.f32.mrf.mxu0
  %v3122 = vadd.f32 %v3079, %v3121
  %3123 = vmatmul.f32.gmra.mxu0 %v3096
  %v3124 = vpop.f32.mrf.mxu0
  %v3125 = vadd.f32 %v3084, %v3124
  %3126 = vdwg.mxu0
  %vm3127 = vcmp.gt.f32.partialorder %v3116, 0.0
  %vm3128 = vcmp.gt.f32.partialorder %v3119, 0.0
  %vm3129 = vcmp.gt.f32.partialorder %v3122, 0.0
  %vm3130 = vcmp.gt.f32.partialorder %v3125, 0.0
  %v3131 = vmin.f32 %v3116, 0.0
  %v3132 = vmin.f32 %v3119, 0.0
  %v3133 = vmin.f32 %v3122, 0.0
  %v3134 = vmin.f32 %v3125, 0.0
  %v3135 = vmul.f32 %v3131, 1.442695
  %v3136 = vpow.pop %v3135
  %v3137 = vmul.f32 %v3132, 1.442695
  %v3138 = vpow.pop %v3137
  %v3139 = vmul.f32 %v3133, 1.442695
  %v3140 = vpow.pop %v3139
  %v3141 = vmul.f32 %v3134, 1.442695
  %v3142 = vpow.pop %v3141
  %v3143 = vsub.f32 %v3136, 1.0
  %v3144 = vsub.f32 %v3138, 1.0
  %v3145 = vsub.f32 %v3140, 1.0
  %v3146 = vsub.f32 %v3142, 1.0
  %v3147 = vsel %vm3127, %v3116, %v3143
  %v3148 = vsel %vm3128, %v3119, %v3144
  %v3149 = vsel %vm3129, %v3122, %v3145
  %v3150 = vsel %vm3130, %v3125, %v3146
  %3152 = vset.pattern.permute.xlu0 0
  %3153 = vperm.xlu0 %3152, %v521
  %v3154 = vpop.permute.xlu0 %3153
  %v3157 = vsel %vm3000, %v520, 0
  %3159 = vmatpush.msra.mxu0 0.0
  %3160 = vmatpush.msra.mxu0 0.0
  %3161 = vmatpush.msra.mxu0 0.0
  %3162 = vmatpush.msra.mxu0 0.0
  %3163 = vmatpush.msra.mxu0 0.0
  %3164 = vmatpush.msra.mxu0 0.0
  %3165 = vmatpush.msra.mxu0 0.0
  %3166 = vmatpush.msra.mxu0 0.0
  %3167 = vmatpush.msra.mxu0 0.0
  %3168 = vmatpush.msra.mxu0 0.0
  %3169 = vmatpush.msra.mxu0 0.0
  %3170 = vmatpush.msra.mxu0 0.0
  %3171 = vmatpush.msra.mxu0 %v3150
  %3172 = vmatpush.msra.mxu0 %v3149
  %3173 = vmatpush.msra.mxu0 %v3148
  %3174 = vmatpush.msra.mxu0 %v3147
  %3175 = vmatmul.f32.gmra.mxu0 %v3157
  %v3176 = vpop.f32.mrf.mxu0
  %v3177 = vadd.f32 %v3154, %v3176
  %3178 = vdwg.mxu0
  %v3179 = vmul.f32 %v3177, %v522
  %v3181 = vperm.slane %v525, 0
  %v3184 = vsel %vm694, %v160, 0
  %v3187 = vsel %vm694, %v161, 0
  %v3190 = vsel %vm694, %v162, 0
  %v3193 = vsel %vm694, %v163, 0
  %v3196 = vsel %vm694, %v164, 0
  %v3199 = vsel %vm694, %v165, 0
  %v3202 = vsel %vm694, %v166, 0
  %v3205 = vsel %vm694, %v167, 0
  %v3208 = vsel %vm694, %v168, 0
  %v3211 = vsel %vm694, %v169, 0
  %v3214 = vsel %vm694, %v170, 0
  %v3217 = vsel %vm694, %v171, 0
  %3219 = vmatpush.msra.mxu0 0.0
  %3220 = vmatpush.msra.mxu0 0.0
  %3221 = vmatpush.msra.mxu0 0.0
  %3222 = vmatpush.msra.mxu0 0.0
  %3223 = vmatpush.msra.mxu0 0.0
  %3224 = vmatpush.msra.mxu0 0.0
  %3225 = vmatpush.msra.mxu0 0.0
  %3226 = vmatpush.msra.mxu0 0.0
  %3227 = vmatpush.msra.mxu0 0.0
  %3228 = vmatpush.msra.mxu0 0.0
  %3229 = vmatpush.msra.mxu0 0.0
  %3230 = vmatpush.msra.mxu0 0.0
  %3231 = vmatpush.msra.mxu0 0.0
  %3232 = vmatpush.msra.mxu0 0.0
  %3233 = vmatpush.msra.mxu0 %v524
  %3234 = vmatpush.msra.mxu0 %v523
  %3235 = vmatmul.f32.gmra.mxu0 %v3184
  %v3236 = vpop.f32.mrf.mxu0
  %v3237 = vadd.f32 %v3181, %v3236
  %3238 = vmatmul.f32.gmra.mxu0 %v3187
  %v3239 = vpop.f32.mrf.mxu0
  %v3240 = vadd.f32 %v3181, %v3239
  %3241 = vmatmul.f32.gmra.mxu0 %v3190
  %v3242 = vpop.f32.mrf.mxu0
  %v3243 = vadd.f32 %v3181, %v3242
  %3244 = vmatmul.f32.gmra.mxu0 %v3193
  %v3245 = vpop.f32.mrf.mxu0
  %v3246 = vadd.f32 %v3181, %v3245
  %3247 = vmatmul.f32.gmra.mxu0 %v3196
  %v3248 = vpop.f32.mrf.mxu0
  %v3249 = vadd.f32 %v3181, %v3248
  %3250 = vmatmul.f32.gmra.mxu0 %v3199
  %v3251 = vpop.f32.mrf.mxu0
  %v3252 = vadd.f32 %v3181, %v3251
  %3253 = vmatmul.f32.gmra.mxu0 %v3202
  %v3254 = vpop.f32.mrf.mxu0
  %v3255 = vadd.f32 %v3181, %v3254
  %3256 = vmatmul.f32.gmra.mxu0 %v3205
  %v3257 = vpop.f32.mrf.mxu0
  %v3258 = vadd.f32 %v3181, %v3257
  %3259 = vmatmul.f32.gmra.mxu0 %v3208
  %v3260 = vpop.f32.mrf.mxu0
  %v3261 = vadd.f32 %v3181, %v3260
  %3262 = vmatmul.f32.gmra.mxu0 %v3211
  %v3263 = vpop.f32.mrf.mxu0
  %v3264 = vadd.f32 %v3181, %v3263
  %3265 = vmatmul.f32.gmra.mxu0 %v3214
  %v3266 = vpop.f32.mrf.mxu0
  %v3267 = vadd.f32 %v3181, %v3266
  %3268 = vmatmul.f32.gmra.mxu0 %v3217
  %v3269 = vpop.f32.mrf.mxu0
  %v3270 = vadd.f32 %v3181, %v3269
  %3271 = vdwg.mxu0
  %v3273 = vperm.slane %v530, 0
  %v3276 = vsel %vm3000, 0.0, 0
  %3278 = vmatpush.msra.mxu0 0.0
  %3279 = vmatpush.msra.mxu0 0.0
  %3280 = vmatpush.msra.mxu0 0.0
  %3281 = vmatpush.msra.mxu0 0.0
  %3282 = vmatpush.msra.mxu0 0.0
  %3283 = vmatpush.msra.mxu0 0.0
  %3284 = vmatpush.msra.mxu0 0.0
  %3285 = vmatpush.msra.mxu0 0.0
  %3286 = vmatpush.msra.mxu0 0.0
  %3287 = vmatpush.msra.mxu0 0.0
  %3288 = vmatpush.msra.mxu0 0.0
  %3289 = vmatpush.msra.mxu0 0.0
  %3290 = vmatpush.msra.mxu0 %v529
  %3291 = vmatpush.msra.mxu0 %v528
  %3292 = vmatpush.msra.mxu0 %v527
  %3293 = vmatpush.msra.mxu0 %v526
  %3294 = vmatmul.f32.gmra.mxu0 %v3276
  %v3295 = vpop.f32.mrf.mxu0
  %v3296 = vadd.f32 %v3273, %v3295
  %3297 = vdwg.mxu0
  %v3298 = vadd.f32 %v3237, %v3296
  %v3299 = vxor.u32 %v3298, 2147483648
  %v3300 = vmul.f32 %v3299, 1.442695
  %v3301 = vpow.pop %v3300
  %v3302 = vadd.f32 %v3301, 1.0
  %v3303 = vrcp.pop %v3302
  %v3304 = vmul.f32 %v3302, %v3303
  %v3305 = vsub.f32 1.0, %v3304
  %v3306 = vmul.f32 %v3303, %v3305
  %v3307 = vadd.f32 %v3303, %v3306
  %vm3308 = vweird.f32 %v3302
  %vm3309 = vweird.f32 %v3303
  %vm3310 = vmor %vm3308, %vm3309
  %v3311 = vsel %vm3310, %v3303, %v3307
  %v3312 = vand.u32 2147483647, %v3302
  %vm3313 = vcmp.eq.f32.partialorder %v3312, 8.507059e+37
  %v3314 = vand.u32 %v3302, 2147483648
  %v3315 = vor.u32 1.1754944e-38, %v3314
  %v3316 = vsel %vm3313, %v3315, %v3311
  %v3317 = vmul.f32 1.0, %v3316
  %3319 = vrot.lane.b32.xlu0 %v3296, 64
  %v3320 = vpop.permute.xlu0 %3319
  %v3322 = vmul.f32 %v3317, %v3320
  %3324 = vrot.lane.b32.xlu0 %v3322, 64
  %v3325 = vpop.permute.xlu0 %3324
  %v3327 = vadd.f32 %v3237, %v3325
  %v3328 = vtanh.pop %v3327
  %v3329 = vsub.f32 0.0, %v3328
  %3331 = vrot.lane.b32.xlu0 %v3329, 96
  %v3332 = vpop.permute.xlu0 %3331
  %v3334 = vmul.f32 %v3317, %v3332
  %3336 = vrot.lane.b32.xlu0 %v3334, 32
  %v3337 = vpop.permute.xlu0 %3336
  %v3339 = vadd.f32 %v3328, %v3337
  %3341 = vrot.lane.b32.xlu0 %v3339, 64
  %v3342 = vpop.permute.xlu0 %3341
  %v3343 = vsel %vm3000, %v3342, 0
  %3345 = vmatpush.msra.mxu0 0.0
  %3346 = vmatpush.msra.mxu0 0.0
  %3347 = vmatpush.msra.mxu0 0.0
  %3348 = vmatpush.msra.mxu0 0.0
  %3349 = vmatpush.msra.mxu0 0.0
  %3350 = vmatpush.msra.mxu0 0.0
  %3351 = vmatpush.msra.mxu0 0.0
  %3352 = vmatpush.msra.mxu0 0.0
  %3353 = vmatpush.msra.mxu0 0.0
  %3354 = vmatpush.msra.mxu0 0.0
  %3355 = vmatpush.msra.mxu0 0.0
  %3356 = vmatpush.msra.mxu0 0.0
  %3357 = vmatpush.msra.mxu0 %v529
  %3358 = vmatpush.msra.mxu0 %v528
  %3359 = vmatpush.msra.mxu0 %v527
  %3360 = vmatpush.msra.mxu0 %v526
  %3361 = vmatmul.f32.gmra.mxu0 %v3343
  %v3362 = vpop.f32.mrf.mxu0
  %v3363 = vadd.f32 %v3273, %v3362
  %3364 = vdwg.mxu0
  %v3366 = vrot.slane %v3363, 6
  %v3368 = vadd.f32 %v3237, %v3366
  %v3369 = vxor.u32 %v3368, 2147483648
  %v3370 = vmul.f32 %v3369, 1.442695
  %v3371 = vpow.pop %v3370
  %v3372 = vadd.f32 %v3371, 1.0
  %v3373 = vrcp.pop %v3372
  %v3374 = vmul.f32 %v3372, %v3373
  %v3375 = vsub.f32 1.0, %v3374
  %v3376 = vmul.f32 %v3373, %v3375
  %v3377 = vadd.f32 %v3373, %v3376
  %vm3378 = vweird.f32 %v3372
  %vm3379 = vweird.f32 %v3373
  %vm3380 = vmor %vm3378, %vm3379
  %v3381 = vsel %vm3380, %v3373, %v3377
  %v3382 = vand.u32 2147483647, %v3372
  %vm3383 = vcmp.eq.f32.partialorder %v3382, 8.507059e+37
  %v3384 = vand.u32 %v3372, 2147483648
  %v3385 = vor.u32 1.1754944e-38, %v3384
  %v3386 = vsel %vm3383, %v3385, %v3381
  %v3387 = vmul.f32 1.0, %v3386
  %3388 = vrot.lane.b32.xlu0 %v3366, 64
  %v3389 = vpop.permute.xlu0 %3388
  %v3391 = vmul.f32 %v3387, %v3389
  %3393 = vrot.lane.b32.xlu0 %v3391, 64
  %v3394 = vpop.permute.xlu0 %3393
  %v3396 = vadd.f32 %v3237, %v3394
  %v3397 = vtanh.pop %v3396
  %v3399 = vrot.slane %v3397, 2
  %v3401 = vsub.f32 %v3339, %v3399
  %v3403 = vrot.slane %v3401, 6
  %3404 = vrot.lane.b32.xlu0 %v3403, 96
  %v3405 = vpop.permute.xlu0 %3404
  %v3407 = vmul.f32 %v3387, %v3405
  %3409 = vrot.lane.b32.xlu0 %v3407, 32
  %v3410 = vpop.permute.xlu0 %3409
  %v3412 = vadd.f32 %v3397, %v3410
  %v3414 = vrot.slane %v3412, 2
  %3415 = vrot.lane.b32.xlu0 %v3414, 64
  %v3416 = vpop.permute.xlu0 %3415
  %v3417 = vsel %vm3000, %v3416, 0
  %3419 = vmatpush.msra.mxu0 0.0
  %3420 = vmatpush.msra.mxu0 0.0
  %3421 = vmatpush.msra.mxu0 0.0
  %3422 = vmatpush.msra.mxu0 0.0
  %3423 = vmatpush.msra.mxu0 0.0
  %3424 = vmatpush.msra.mxu0 0.0
  %3425 = vmatpush.msra.mxu0 0.0
  %3426 = vmatpush.msra.mxu0 0.0
  %3427 = vmatpush.msra.mxu0 0.0
  %3428 = vmatpush.msra.mxu0 0.0
  %3429 = vmatpush.msra.mxu0 0.0
  %3430 = vmatpush.msra.mxu0 0.0
  %3431 = vmatpush.msra.mxu0 %v529
  %3432 = vmatpush.msra.mxu0 %v528
  %3433 = vmatpush.msra.mxu0 %v527
  %3434 = vmatpush.msra.mxu0 %v526
  %3435 = vmatmul.f32.gmra.mxu0 %v3417
  %v3436 = vpop.f32.mrf.mxu0
  %v3437 = vadd.f32 %v3273, %v3436
  %3438 = vdwg.mxu0
  %v3440 = vrot.slane %v3437, 4
  %v3442 = vadd.f32 %v3237, %v3440
  %v3443 = vxor.u32 %v3442, 2147483648
  %v3444 = vmul.f32 %v3443, 1.442695
  %v3445 = vpow.pop %v3444
  %v3446 = vadd.f32 %v3445, 1.0
  %v3447 = vrcp.pop %v3446
  %v3448 = vmul.f32 %v3446, %v3447
  %v3449 = vsub.f32 1.0, %v3448
  %v3450 = vmul.f32 %v3447, %v3449
  %v3451 = vadd.f32 %v3447, %v3450
  %vm3452 = vweird.f32 %v3446
  %vm3453 = vweird.f32 %v3447
  %vm3454 = vmor %vm3452, %vm3453
  %v3455 = vsel %vm3454, %v3447, %v3451
  %v3456 = vand.u32 2147483647, %v3446
  %vm3457 = vcmp.eq.f32.partialorder %v3456, 8.507059e+37
  %v3458 = vand.u32 %v3446, 2147483648
  %v3459 = vor.u32 1.1754944e-38, %v3458
  %v3460 = vsel %vm3457, %v3459, %v3455
  %v3461 = vmul.f32 1.0, %v3460
  %3462 = vrot.lane.b32.xlu0 %v3440, 64
  %v3463 = vpop.permute.xlu0 %3462
  %v3465 = vmul.f32 %v3461, %v3463
  %3467 = vrot.lane.b32.xlu0 %v3465, 64
  %v3468 = vpop.permute.xlu0 %3467
  %v3470 = vadd.f32 %v3237, %v3468
  %v3471 = vtanh.pop %v3470
  %v3473 = vrot.slane %v3471, 2
  %v3475 = vsub.f32 %v3412, %v3473
  %v3477 = vrot.slane %v3475, 6
  %3478 = vrot.lane.b32.xlu0 %v3477, 96
  %v3479 = vpop.permute.xlu0 %3478
  %v3481 = vmul.f32 %v3461, %v3479
  %3483 = vrot.lane.b32.xlu0 %v3481, 32
  %v3484 = vpop.permute.xlu0 %3483
  %v3486 = vadd.f32 %v3471, %v3484
  %v3488 = vrot.slane %v3486, 4
  %3489 = vrot.lane.b32.xlu0 %v3488, 64
  %v3490 = vpop.permute.xlu0 %3489
  %v3491 = vsel %vm3000, %v3490, 0
  %3493 = vmatpush.msra.mxu0 0.0
  %3494 = vmatpush.msra.mxu0 0.0
  %3495 = vmatpush.msra.mxu0 0.0
  %3496 = vmatpush.msra.mxu0 0.0
  %3497 = vmatpush.msra.mxu0 0.0
  %3498 = vmatpush.msra.mxu0 0.0
  %3499 = vmatpush.msra.mxu0 0.0
  %3500 = vmatpush.msra.mxu0 0.0
  %3501 = vmatpush.msra.mxu0 0.0
  %3502 = vmatpush.msra.mxu0 0.0
  %3503 = vmatpush.msra.mxu0 0.0
  %3504 = vmatpush.msra.mxu0 0.0
  %3505 = vmatpush.msra.mxu0 %v529
  %3506 = vmatpush.msra.mxu0 %v528
  %3507 = vmatpush.msra.mxu0 %v527
  %3508 = vmatpush.msra.mxu0 %v526
  %3509 = vmatmul.f32.gmra.mxu0 %v3491
  %v3510 = vpop.f32.mrf.mxu0
  %v3511 = vadd.f32 %v3273, %v3510
  %3512 = vdwg.mxu0
  %v3514 = vrot.slane %v3511, 2
  %v3516 = vadd.f32 %v3237, %v3514
  %v3517 = vxor.u32 %v3516, 2147483648
  %v3518 = vmul.f32 %v3517, 1.442695
  %v3519 = vpow.pop %v3518
  %v3520 = vadd.f32 %v3519, 1.0
  %v3521 = vrcp.pop %v3520
  %v3522 = vmul.f32 %v3520, %v3521
  %v3523 = vsub.f32 1.0, %v3522
  %v3524 = vmul.f32 %v3521, %v3523
  %v3525 = vadd.f32 %v3521, %v3524
  %vm3526 = vweird.f32 %v3520
  %vm3527 = vweird.f32 %v3521
  %vm3528 = vmor %vm3526, %vm3527
  %v3529 = vsel %vm3528, %v3521, %v3525
  %v3530 = vand.u32 2147483647, %v3520
  %vm3531 = vcmp.eq.f32.partialorder %v3530, 8.507059e+37
  %v3532 = vand.u32 %v3520, 2147483648
  %v3533 = vor.u32 1.1754944e-38, %v3532
  %v3534 = vsel %vm3531, %v3533, %v3529
  %v3535 = vmul.f32 1.0, %v3534
  %3536 = vrot.lane.b32.xlu0 %v3514, 64
  %v3537 = vpop.permute.xlu0 %3536
  %v3539 = vmul.f32 %v3535, %v3537
  %3541 = vrot.lane.b32.xlu0 %v3539, 64
  %v3542 = vpop.permute.xlu0 %3541
  %v3544 = vadd.f32 %v3237, %v3542
  %v3545 = vtanh.pop %v3544
  %v3547 = vrot.slane %v3545, 2
  %v3549 = vsub.f32 %v3486, %v3547
  %v3551 = vrot.slane %v3549, 6
  %3552 = vrot.lane.b32.xlu0 %v3551, 96
  %v3553 = vpop.permute.xlu0 %3552
  %v3555 = vmul.f32 %v3535, %v3553
  %3557 = vrot.lane.b32.xlu0 %v3555, 32
  %v3558 = vpop.permute.xlu0 %3557
  %v3560 = vadd.f32 %v3545, %v3558
  %v3562 = vrot.slane %v3560, 6
  %3563 = vrot.lane.b32.xlu0 %v3562, 64
  %v3564 = vpop.permute.xlu0 %3563
  %v3565 = vsel %vm3000, %v3564, 0
  %3567 = vmatpush.msra.mxu0 0.0
  %3568 = vmatpush.msra.mxu0 0.0
  %3569 = vmatpush.msra.mxu0 0.0
  %3570 = vmatpush.msra.mxu0 0.0
  %3571 = vmatpush.msra.mxu0 0.0
  %3572 = vmatpush.msra.mxu0 0.0
  %3573 = vmatpush.msra.mxu0 0.0
  %3574 = vmatpush.msra.mxu0 0.0
  %3575 = vmatpush.msra.mxu0 0.0
  %3576 = vmatpush.msra.mxu0 0.0
  %3577 = vmatpush.msra.mxu0 0.0
  %3578 = vmatpush.msra.mxu0 0.0
  %3579 = vmatpush.msra.mxu0 %v529
  %3580 = vmatpush.msra.mxu0 %v528
  %3581 = vmatpush.msra.mxu0 %v527
  %3582 = vmatpush.msra.mxu0 %v526
  %3583 = vmatmul.f32.gmra.mxu0 %v3565
  %v3584 = vpop.f32.mrf.mxu0
  %v3585 = vadd.f32 %v3273, %v3584
  %3586 = vdwg.mxu0
  %v3587 = vadd.f32 %v3240, %v3585
  %v3588 = vxor.u32 %v3587, 2147483648
  %v3589 = vmul.f32 %v3588, 1.442695
  %v3590 = vpow.pop %v3589
  %v3591 = vadd.f32 %v3590, 1.0
  %v3592 = vrcp.pop %v3591
  %v3593 = vmul.f32 %v3591, %v3592
  %v3594 = vsub.f32 1.0, %v3593
  %v3595 = vmul.f32 %v3592, %v3594
  %v3596 = vadd.f32 %v3592, %v3595
  %vm3597 = vweird.f32 %v3591
  %vm3598 = vweird.f32 %v3592
  %vm3599 = vmor %vm3597, %vm3598
  %v3600 = vsel %vm3599, %v3592, %v3596
  %v3601 = vand.u32 2147483647, %v3591
  %vm3602 = vcmp.eq.f32.partialorder %v3601, 8.507059e+37
  %v3603 = vand.u32 %v3591, 2147483648
  %v3604 = vor.u32 1.1754944e-38, %v3603
  %v3605 = vsel %vm3602, %v3604, %v3600
  %v3606 = vmul.f32 1.0, %v3605
  %3608 = vrot.lane.b32.xlu0 %v3585, 64
  %v3609 = vpop.permute.xlu0 %3608
  %v3611 = vmul.f32 %v3606, %v3609
  %3613 = vrot.lane.b32.xlu0 %v3611, 64
  %v3614 = vpop.permute.xlu0 %3613
  %v3616 = vadd.f32 %v3240, %v3614
  %v3617 = vtanh.pop %v3616
  %v3619 = vrot.slane %v3617, 2
  %v3621 = vsub.f32 %v3560, %v3619
  %v3623 = vrot.slane %v3621, 6
  %3624 = vrot.lane.b32.xlu0 %v3623, 96
  %v3625 = vpop.permute.xlu0 %3624
  %v3627 = vmul.f32 %v3606, %v3625
  %3629 = vrot.lane.b32.xlu0 %v3627, 32
  %v3630 = vpop.permute.xlu0 %3629
  %v3632 = vadd.f32 %v3617, %v3630
  %3634 = vrot.lane.b32.xlu0 %v3632, 64
  %v3635 = vpop.permute.xlu0 %3634
  %v3636 = vsel %vm3000, %v3635, 0
  %3638 = vmatpush.msra.mxu0 0.0
  %3639 = vmatpush.msra.mxu0 0.0
  %3640 = vmatpush.msra.mxu0 0.0
  %3641 = vmatpush.msra.mxu0 0.0
  %3642 = vmatpush.msra.mxu0 0.0
  %3643 = vmatpush.msra.mxu0 0.0
  %3644 = vmatpush.msra.mxu0 0.0
  %3645 = vmatpush.msra.mxu0 0.0
  %3646 = vmatpush.msra.mxu0 0.0
  %3647 = vmatpush.msra.mxu0 0.0
  %3648 = vmatpush.msra.mxu0 0.0
  %3649 = vmatpush.msra.mxu0 0.0
  %3650 = vmatpush.msra.mxu0 %v529
  %3651 = vmatpush.msra.mxu0 %v528
  %3652 = vmatpush.msra.mxu0 %v527
  %3653 = vmatpush.msra.mxu0 %v526
  %3654 = vmatmul.f32.gmra.mxu0 %v3636
  %v3655 = vpop.f32.mrf.mxu0
  %v3656 = vadd.f32 %v3273, %v3655
  %3657 = vdwg.mxu0
  %v3659 = vrot.slane %v3656, 6
  %v3661 = vadd.f32 %v3240, %v3659
  %v3662 = vxor.u32 %v3661, 2147483648
  %v3663 = vmul.f32 %v3662, 1.442695
  %v3664 = vpow.pop %v3663
  %v3665 = vadd.f32 %v3664, 1.0
  %v3666 = vrcp.pop %v3665
  %v3667 = vmul.f32 %v3665, %v3666
  %v3668 = vsub.f32 1.0, %v3667
  %v3669 = vmul.f32 %v3666, %v3668
  %v3670 = vadd.f32 %v3666, %v3669
  %vm3671 = vweird.f32 %v3665
  %vm3672 = vweird.f32 %v3666
  %vm3673 = vmor %vm3671, %vm3672
  %v3674 = vsel %vm3673, %v3666, %v3670
  %v3675 = vand.u32 2147483647, %v3665
  %vm3676 = vcmp.eq.f32.partialorder %v3675, 8.507059e+37
  %v3677 = vand.u32 %v3665, 2147483648
  %v3678 = vor.u32 1.1754944e-38, %v3677
  %v3679 = vsel %vm3676, %v3678, %v3674
  %v3680 = vmul.f32 1.0, %v3679
  %3681 = vrot.lane.b32.xlu0 %v3659, 64
  %v3682 = vpop.permute.xlu0 %3681
  %v3684 = vmul.f32 %v3680, %v3682
  %3686 = vrot.lane.b32.xlu0 %v3684, 64
  %v3687 = vpop.permute.xlu0 %3686
  %v3689 = vadd.f32 %v3240, %v3687
  %v3690 = vtanh.pop %v3689
  %v3692 = vrot.slane %v3690, 2
  %v3694 = vsub.f32 %v3632, %v3692
  %v3696 = vrot.slane %v3694, 6
  %3697 = vrot.lane.b32.xlu0 %v3696, 96
  %v3698 = vpop.permute.xlu0 %3697
  %v3700 = vmul.f32 %v3680, %v3698
  %3702 = vrot.lane.b32.xlu0 %v3700, 32
  %v3703 = vpop.permute.xlu0 %3702
  %v3705 = vadd.f32 %v3690, %v3703
  %v3707 = vrot.slane %v3705, 2
  %3708 = vrot.lane.b32.xlu0 %v3707, 64
  %v3709 = vpop.permute.xlu0 %3708
  %v3710 = vsel %vm3000, %v3709, 0
  %3712 = vmatpush.msra.mxu0 0.0
  %3713 = vmatpush.msra.mxu0 0.0
  %3714 = vmatpush.msra.mxu0 0.0
  %3715 = vmatpush.msra.mxu0 0.0
  %3716 = vmatpush.msra.mxu0 0.0
  %3717 = vmatpush.msra.mxu0 0.0
  %3718 = vmatpush.msra.mxu0 0.0
  %3719 = vmatpush.msra.mxu0 0.0
  %3720 = vmatpush.msra.mxu0 0.0
  %3721 = vmatpush.msra.mxu0 0.0
  %3722 = vmatpush.msra.mxu0 0.0
  %3723 = vmatpush.msra.mxu0 0.0
  %3724 = vmatpush.msra.mxu0 %v529
  %3725 = vmatpush.msra.mxu0 %v528
  %3726 = vmatpush.msra.mxu0 %v527
  %3727 = vmatpush.msra.mxu0 %v526
  %3728 = vmatmul.f32.gmra.mxu0 %v3710
  %v3729 = vpop.f32.mrf.mxu0
  %v3730 = vadd.f32 %v3273, %v3729
  %3731 = vdwg.mxu0
  %v3733 = vrot.slane %v3730, 4
  %v3735 = vadd.f32 %v3240, %v3733
  %v3736 = vxor.u32 %v3735, 2147483648
  %v3737 = vmul.f32 %v3736, 1.442695
  %v3738 = vpow.pop %v3737
  %v3739 = vadd.f32 %v3738, 1.0
  %v3740 = vrcp.pop %v3739
  %v3741 = vmul.f32 %v3739, %v3740
  %v3742 = vsub.f32 1.0, %v3741
  %v3743 = vmul.f32 %v3740, %v3742
  %v3744 = vadd.f32 %v3740, %v3743
  %vm3745 = vweird.f32 %v3739
  %vm3746 = vweird.f32 %v3740
  %vm3747 = vmor %vm3745, %vm3746
  %v3748 = vsel %vm3747, %v3740, %v3744
  %v3749 = vand.u32 2147483647, %v3739
  %vm3750 = vcmp.eq.f32.partialorder %v3749, 8.507059e+37
  %v3751 = vand.u32 %v3739, 2147483648
  %v3752 = vor.u32 1.1754944e-38, %v3751
  %v3753 = vsel %vm3750, %v3752, %v3748
  %v3754 = vmul.f32 1.0, %v3753
  %3755 = vrot.lane.b32.xlu0 %v3733, 64
  %v3756 = vpop.permute.xlu0 %3755
  %v3758 = vmul.f32 %v3754, %v3756
  %3760 = vrot.lane.b32.xlu0 %v3758, 64
  %v3761 = vpop.permute.xlu0 %3760
  %v3763 = vadd.f32 %v3240, %v3761
  %v3764 = vtanh.pop %v3763
  %v3766 = vrot.slane %v3764, 2
  %v3768 = vsub.f32 %v3705, %v3766
  %v3770 = vrot.slane %v3768, 6
  %3771 = vrot.lane.b32.xlu0 %v3770, 96
  %v3772 = vpop.permute.xlu0 %3771
  %v3774 = vmul.f32 %v3754, %v3772
  %3776 = vrot.lane.b32.xlu0 %v3774, 32
  %v3777 = vpop.permute.xlu0 %3776
  %v3779 = vadd.f32 %v3764, %v3777
  %v3781 = vrot.slane %v3779, 4
  %3782 = vrot.lane.b32.xlu0 %v3781, 64
  %v3783 = vpop.permute.xlu0 %3782
  %v3784 = vsel %vm3000, %v3783, 0
  %3786 = vmatpush.msra.mxu0 0.0
  %3787 = vmatpush.msra.mxu0 0.0
  %3788 = vmatpush.msra.mxu0 0.0
  %3789 = vmatpush.msra.mxu0 0.0
  %3790 = vmatpush.msra.mxu0 0.0
  %3791 = vmatpush.msra.mxu0 0.0
  %3792 = vmatpush.msra.mxu0 0.0
  %3793 = vmatpush.msra.mxu0 0.0
  %3794 = vmatpush.msra.mxu0 0.0
  %3795 = vmatpush.msra.mxu0 0.0
  %3796 = vmatpush.msra.mxu0 0.0
  %3797 = vmatpush.msra.mxu0 0.0
  %3798 = vmatpush.msra.mxu0 %v529
  %3799 = vmatpush.msra.mxu0 %v528
  %3800 = vmatpush.msra.mxu0 %v527
  %3801 = vmatpush.msra.mxu0 %v526
  %3802 = vmatmul.f32.gmra.mxu0 %v3784
  %v3803 = vpop.f32.mrf.mxu0
  %v3804 = vadd.f32 %v3273, %v3803
  %3805 = vdwg.mxu0
  %v3807 = vrot.slane %v3804, 2
  %v3809 = vadd.f32 %v3240, %v3807
  %v3810 = vxor.u32 %v3809, 2147483648
  %v3811 = vmul.f32 %v3810, 1.442695
  %v3812 = vpow.pop %v3811
  %v3813 = vadd.f32 %v3812, 1.0
  %v3814 = vrcp.pop %v3813
  %v3815 = vmul.f32 %v3813, %v3814
  %v3816 = vsub.f32 1.0, %v3815
  %v3817 = vmul.f32 %v3814, %v3816
  %v3818 = vadd.f32 %v3814, %v3817
  %vm3819 = vweird.f32 %v3813
  %vm3820 = vweird.f32 %v3814
  %vm3821 = vmor %vm3819, %vm3820
  %v3822 = vsel %vm3821, %v3814, %v3818
  %v3823 = vand.u32 2147483647, %v3813
  %vm3824 = vcmp.eq.f32.partialorder %v3823, 8.507059e+37
  %v3825 = vand.u32 %v3813, 2147483648
  %v3826 = vor.u32 1.1754944e-38, %v3825
  %v3827 = vsel %vm3824, %v3826, %v3822
  %v3828 = vmul.f32 1.0, %v3827
  %3829 = vrot.lane.b32.xlu0 %v3807, 64
  %v3830 = vpop.permute.xlu0 %3829
  %v3832 = vmul.f32 %v3828, %v3830
  %3834 = vrot.lane.b32.xlu0 %v3832, 64
  %v3835 = vpop.permute.xlu0 %3834
  %v3837 = vadd.f32 %v3240, %v3835
  %v3838 = vtanh.pop %v3837
  %v3840 = vrot.slane %v3838, 2
  %v3842 = vsub.f32 %v3779, %v3840
  %v3844 = vrot.slane %v3842, 6
  %3845 = vrot.lane.b32.xlu0 %v3844, 96
  %v3846 = vpop.permute.xlu0 %3845
  %v3848 = vmul.f32 %v3828, %v3846
  %3850 = vrot.lane.b32.xlu0 %v3848, 32
  %v3851 = vpop.permute.xlu0 %3850
  %v3853 = vadd.f32 %v3838, %v3851
  %v3855 = vrot.slane %v3853, 6
  %3856 = vrot.lane.b32.xlu0 %v3855, 64
  %v3857 = vpop.permute.xlu0 %3856
  %v3858 = vsel %vm3000, %v3857, 0
  %3860 = vmatpush.msra.mxu0 0.0
  %3861 = vmatpush.msra.mxu0 0.0
  %3862 = vmatpush.msra.mxu0 0.0
  %3863 = vmatpush.msra.mxu0 0.0
  %3864 = vmatpush.msra.mxu0 0.0
  %3865 = vmatpush.msra.mxu0 0.0
  %3866 = vmatpush.msra.mxu0 0.0
  %3867 = vmatpush.msra.mxu0 0.0
  %3868 = vmatpush.msra.mxu0 0.0
  %3869 = vmatpush.msra.mxu0 0.0
  %3870 = vmatpush.msra.mxu0 0.0
  %3871 = vmatpush.msra.mxu0 0.0
  %3872 = vmatpush.msra.mxu0 %v529
  %3873 = vmatpush.msra.mxu0 %v528
  %3874 = vmatpush.msra.mxu0 %v527
  %3875 = vmatpush.msra.mxu0 %v526
  %3876 = vmatmul.f32.gmra.mxu0 %v3858
  %v3877 = vpop.f32.mrf.mxu0
  %v3878 = vadd.f32 %v3273, %v3877
  %3879 = vdwg.mxu0
  %v3880 = vadd.f32 %v3243, %v3878
  %v3881 = vxor.u32 %v3880, 2147483648
  %v3882 = vmul.f32 %v3881, 1.442695
  %v3883 = vpow.pop %v3882
  %v3884 = vadd.f32 %v3883, 1.0
  %v3885 = vrcp.pop %v3884
  %v3886 = vmul.f32 %v3884, %v3885
  %v3887 = vsub.f32 1.0, %v3886
  %v3888 = vmul.f32 %v3885, %v3887
  %v3889 = vadd.f32 %v3885, %v3888
  %vm3890 = vweird.f32 %v3884
  %vm3891 = vweird.f32 %v3885
  %vm3892 = vmor %vm3890, %vm3891
  %v3893 = vsel %vm3892, %v3885, %v3889
  %v3894 = vand.u32 2147483647, %v3884
  %vm3895 = vcmp.eq.f32.partialorder %v3894, 8.507059e+37
  %v3896 = vand.u32 %v3884, 2147483648
  %v3897 = vor.u32 1.1754944e-38, %v3896
  %v3898 = vsel %vm3895, %v3897, %v3893
  %v3899 = vmul.f32 1.0, %v3898
  %3901 = vrot.lane.b32.xlu0 %v3878, 64
  %v3902 = vpop.permute.xlu0 %3901
  %v3904 = vmul.f32 %v3899, %v3902
  %3906 = vrot.lane.b32.xlu0 %v3904, 64
  %v3907 = vpop.permute.xlu0 %3906
  %v3909 = vadd.f32 %v3243, %v3907
  %v3910 = vtanh.pop %v3909
  %v3912 = vrot.slane %v3910, 2
  %v3914 = vsub.f32 %v3853, %v3912
  %v3916 = vrot.slane %v3914, 6
  %3917 = vrot.lane.b32.xlu0 %v3916, 96
  %v3918 = vpop.permute.xlu0 %3917
  %v3920 = vmul.f32 %v3899, %v3918
  %3922 = vrot.lane.b32.xlu0 %v3920, 32
  %v3923 = vpop.permute.xlu0 %3922
  %v3925 = vadd.f32 %v3910, %v3923
  %3927 = vrot.lane.b32.xlu0 %v3925, 64
  %v3928 = vpop.permute.xlu0 %3927
  %v3929 = vsel %vm3000, %v3928, 0
  %3931 = vmatpush.msra.mxu0 0.0
  %3932 = vmatpush.msra.mxu0 0.0
  %3933 = vmatpush.msra.mxu0 0.0
  %3934 = vmatpush.msra.mxu0 0.0
  %3935 = vmatpush.msra.mxu0 0.0
  %3936 = vmatpush.msra.mxu0 0.0
  %3937 = vmatpush.msra.mxu0 0.0
  %3938 = vmatpush.msra.mxu0 0.0
  %3939 = vmatpush.msra.mxu0 0.0
  %3940 = vmatpush.msra.mxu0 0.0
  %3941 = vmatpush.msra.mxu0 0.0
  %3942 = vmatpush.msra.mxu0 0.0
  %3943 = vmatpush.msra.mxu0 %v529
  %3944 = vmatpush.msra.mxu0 %v528
  %3945 = vmatpush.msra.mxu0 %v527
  %3946 = vmatpush.msra.mxu0 %v526
  %3947 = vmatmul.f32.gmra.mxu0 %v3929
  %v3948 = vpop.f32.mrf.mxu0
  %v3949 = vadd.f32 %v3273, %v3948
  %3950 = vdwg.mxu0
  %v3952 = vrot.slane %v3949, 6
  %v3954 = vadd.f32 %v3243, %v3952
  %v3955 = vxor.u32 %v3954, 2147483648
  %v3956 = vmul.f32 %v3955, 1.442695
  %v3957 = vpow.pop %v3956
  %v3958 = vadd.f32 %v3957, 1.0
  %v3959 = vrcp.pop %v3958
  %v3960 = vmul.f32 %v3958, %v3959
  %v3961 = vsub.f32 1.0, %v3960
  %v3962 = vmul.f32 %v3959, %v3961
  %v3963 = vadd.f32 %v3959, %v3962
  %vm3964 = vweird.f32 %v3958
  %vm3965 = vweird.f32 %v3959
  %vm3966 = vmor %vm3964, %vm3965
  %v3967 = vsel %vm3966, %v3959, %v3963
  %v3968 = vand.u32 2147483647, %v3958
  %vm3969 = vcmp.eq.f32.partialorder %v3968, 8.507059e+37
  %v3970 = vand.u32 %v3958, 2147483648
  %v3971 = vor.u32 1.1754944e-38, %v3970
  %v3972 = vsel %vm3969, %v3971, %v3967
  %v3973 = vmul.f32 1.0, %v3972
  %3974 = vrot.lane.b32.xlu0 %v3952, 64
  %v3975 = vpop.permute.xlu0 %3974
  %v3977 = vmul.f32 %v3973, %v3975
  %3979 = vrot.lane.b32.xlu0 %v3977, 64
  %v3980 = vpop.permute.xlu0 %3979
  %v3982 = vadd.f32 %v3243, %v3980
  %v3983 = vtanh.pop %v3982
  %v3985 = vrot.slane %v3983, 2
  %v3987 = vsub.f32 %v3925, %v3985
  %v3989 = vrot.slane %v3987, 6
  %3990 = vrot.lane.b32.xlu0 %v3989, 96
  %v3991 = vpop.permute.xlu0 %3990
  %v3993 = vmul.f32 %v3973, %v3991
  %3995 = vrot.lane.b32.xlu0 %v3993, 32
  %v3996 = vpop.permute.xlu0 %3995
  %v3998 = vadd.f32 %v3983, %v3996
  %v4000 = vrot.slane %v3998, 2
  %4001 = vrot.lane.b32.xlu0 %v4000, 64
  %v4002 = vpop.permute.xlu0 %4001
  %v4003 = vsel %vm3000, %v4002, 0
  %4005 = vmatpush.msra.mxu0 0.0
  %4006 = vmatpush.msra.mxu0 0.0
  %4007 = vmatpush.msra.mxu0 0.0
  %4008 = vmatpush.msra.mxu0 0.0
  %4009 = vmatpush.msra.mxu0 0.0
  %4010 = vmatpush.msra.mxu0 0.0
  %4011 = vmatpush.msra.mxu0 0.0
  %4012 = vmatpush.msra.mxu0 0.0
  %4013 = vmatpush.msra.mxu0 0.0
  %4014 = vmatpush.msra.mxu0 0.0
  %4015 = vmatpush.msra.mxu0 0.0
  %4016 = vmatpush.msra.mxu0 0.0
  %4017 = vmatpush.msra.mxu0 %v529
  %4018 = vmatpush.msra.mxu0 %v528
  %4019 = vmatpush.msra.mxu0 %v527
  %4020 = vmatpush.msra.mxu0 %v526
  %4021 = vmatmul.f32.gmra.mxu0 %v4003
  %v4022 = vpop.f32.mrf.mxu0
  %v4023 = vadd.f32 %v3273, %v4022
  %4024 = vdwg.mxu0
  %v4026 = vrot.slane %v4023, 4
  %v4028 = vadd.f32 %v3243, %v4026
  %v4029 = vxor.u32 %v4028, 2147483648
  %v4030 = vmul.f32 %v4029, 1.442695
  %v4031 = vpow.pop %v4030
  %v4032 = vadd.f32 %v4031, 1.0
  %v4033 = vrcp.pop %v4032
  %v4034 = vmul.f32 %v4032, %v4033
  %v4035 = vsub.f32 1.0, %v4034
  %v4036 = vmul.f32 %v4033, %v4035
  %v4037 = vadd.f32 %v4033, %v4036
  %vm4038 = vweird.f32 %v4032
  %vm4039 = vweird.f32 %v4033
  %vm4040 = vmor %vm4038, %vm4039
  %v4041 = vsel %vm4040, %v4033, %v4037
  %v4042 = vand.u32 2147483647, %v4032
  %vm4043 = vcmp.eq.f32.partialorder %v4042, 8.507059e+37
  %v4044 = vand.u32 %v4032, 2147483648
  %v4045 = vor.u32 1.1754944e-38, %v4044
  %v4046 = vsel %vm4043, %v4045, %v4041
  %v4047 = vmul.f32 1.0, %v4046
  %4048 = vrot.lane.b32.xlu0 %v4026, 64
  %v4049 = vpop.permute.xlu0 %4048
  %v4051 = vmul.f32 %v4047, %v4049
  %4053 = vrot.lane.b32.xlu0 %v4051, 64
  %v4054 = vpop.permute.xlu0 %4053
  %v4056 = vadd.f32 %v3243, %v4054
  %v4057 = vtanh.pop %v4056
  %v4059 = vrot.slane %v4057, 2
  %v4061 = vsub.f32 %v3998, %v4059
  %v4063 = vrot.slane %v4061, 6
  %4064 = vrot.lane.b32.xlu0 %v4063, 96
  %v4065 = vpop.permute.xlu0 %4064
  %v4067 = vmul.f32 %v4047, %v4065
  %4069 = vrot.lane.b32.xlu0 %v4067, 32
  %v4070 = vpop.permute.xlu0 %4069
  %v4072 = vadd.f32 %v4057, %v4070
  %v4074 = vrot.slane %v4072, 4
  %4075 = vrot.lane.b32.xlu0 %v4074, 64
  %v4076 = vpop.permute.xlu0 %4075
  %v4077 = vsel %vm3000, %v4076, 0
  %4079 = vmatpush.msra.mxu0 0.0
  %4080 = vmatpush.msra.mxu0 0.0
  %4081 = vmatpush.msra.mxu0 0.0
  %4082 = vmatpush.msra.mxu0 0.0
  %4083 = vmatpush.msra.mxu0 0.0
  %4084 = vmatpush.msra.mxu0 0.0
  %4085 = vmatpush.msra.mxu0 0.0
  %4086 = vmatpush.msra.mxu0 0.0
  %4087 = vmatpush.msra.mxu0 0.0
  %4088 = vmatpush.msra.mxu0 0.0
  %4089 = vmatpush.msra.mxu0 0.0
  %4090 = vmatpush.msra.mxu0 0.0
  %4091 = vmatpush.msra.mxu0 %v529
  %4092 = vmatpush.msra.mxu0 %v528
  %4093 = vmatpush.msra.mxu0 %v527
  %4094 = vmatpush.msra.mxu0 %v526
  %4095 = vmatmul.f32.gmra.mxu0 %v4077
  %v4096 = vpop.f32.mrf.mxu0
  %v4097 = vadd.f32 %v3273, %v4096
  %4098 = vdwg.mxu0
  %v4100 = vrot.slane %v4097, 2
  %v4102 = vadd.f32 %v3243, %v4100
  %v4103 = vxor.u32 %v4102, 2147483648
  %v4104 = vmul.f32 %v4103, 1.442695
  %v4105 = vpow.pop %v4104
  %v4106 = vadd.f32 %v4105, 1.0
  %v4107 = vrcp.pop %v4106
  %v4108 = vmul.f32 %v4106, %v4107
  %v4109 = vsub.f32 1.0, %v4108
  %v4110 = vmul.f32 %v4107, %v4109
  %v4111 = vadd.f32 %v4107, %v4110
  %vm4112 = vweird.f32 %v4106
  %vm4113 = vweird.f32 %v4107
  %vm4114 = vmor %vm4112, %vm4113
  %v4115 = vsel %vm4114, %v4107, %v4111
  %v4116 = vand.u32 2147483647, %v4106
  %vm4117 = vcmp.eq.f32.partialorder %v4116, 8.507059e+37
  %v4118 = vand.u32 %v4106, 2147483648
  %v4119 = vor.u32 1.1754944e-38, %v4118
  %v4120 = vsel %vm4117, %v4119, %v4115
  %v4121 = vmul.f32 1.0, %v4120
  %4122 = vrot.lane.b32.xlu0 %v4100, 64
  %v4123 = vpop.permute.xlu0 %4122
  %v4125 = vmul.f32 %v4121, %v4123
  %4127 = vrot.lane.b32.xlu0 %v4125, 64
  %v4128 = vpop.permute.xlu0 %4127
  %v4130 = vadd.f32 %v3243, %v4128
  %v4131 = vtanh.pop %v4130
  %v4133 = vrot.slane %v4131, 2
  %v4135 = vsub.f32 %v4072, %v4133
  %v4137 = vrot.slane %v4135, 6
  %4138 = vrot.lane.b32.xlu0 %v4137, 96
  %v4139 = vpop.permute.xlu0 %4138
  %v4141 = vmul.f32 %v4121, %v4139
  %4143 = vrot.lane.b32.xlu0 %v4141, 32
  %v4144 = vpop.permute.xlu0 %4143
  %v4146 = vadd.f32 %v4131, %v4144
  %v4148 = vrot.slane %v4146, 6
  %4149 = vrot.lane.b32.xlu0 %v4148, 64
  %v4150 = vpop.permute.xlu0 %4149
  %v4151 = vsel %vm3000, %v4150, 0
  %4153 = vmatpush.msra.mxu0 0.0
  %4154 = vmatpush.msra.mxu0 0.0
  %4155 = vmatpush.msra.mxu0 0.0
  %4156 = vmatpush.msra.mxu0 0.0
  %4157 = vmatpush.msra.mxu0 0.0
  %4158 = vmatpush.msra.mxu0 0.0
  %4159 = vmatpush.msra.mxu0 0.0
  %4160 = vmatpush.msra.mxu0 0.0
  %4161 = vmatpush.msra.mxu0 0.0
  %4162 = vmatpush.msra.mxu0 0.0
  %4163 = vmatpush.msra.mxu0 0.0
  %4164 = vmatpush.msra.mxu0 0.0
  %4165 = vmatpush.msra.mxu0 %v529
  %4166 = vmatpush.msra.mxu0 %v528
  %4167 = vmatpush.msra.mxu0 %v527
  %4168 = vmatpush.msra.mxu0 %v526
  %4169 = vmatmul.f32.gmra.mxu0 %v4151
  %v4170 = vpop.f32.mrf.mxu0
  %v4171 = vadd.f32 %v3273, %v4170
  %4172 = vdwg.mxu0
  %v4173 = vadd.f32 %v3246, %v4171
  %v4174 = vxor.u32 %v4173, 2147483648
  %v4175 = vmul.f32 %v4174, 1.442695
  %v4176 = vpow.pop %v4175
  %v4177 = vadd.f32 %v4176, 1.0
  %v4178 = vrcp.pop %v4177
  %v4179 = vmul.f32 %v4177, %v4178
  %v4180 = vsub.f32 1.0, %v4179
  %v4181 = vmul.f32 %v4178, %v4180
  %v4182 = vadd.f32 %v4178, %v4181
  %vm4183 = vweird.f32 %v4177
  %vm4184 = vweird.f32 %v4178
  %vm4185 = vmor %vm4183, %vm4184
  %v4186 = vsel %vm4185, %v4178, %v4182
  %v4187 = vand.u32 2147483647, %v4177
  %vm4188 = vcmp.eq.f32.partialorder %v4187, 8.507059e+37
  %v4189 = vand.u32 %v4177, 2147483648
  %v4190 = vor.u32 1.1754944e-38, %v4189
  %v4191 = vsel %vm4188, %v4190, %v4186
  %v4192 = vmul.f32 1.0, %v4191
  %4194 = vrot.lane.b32.xlu0 %v4171, 64
  %v4195 = vpop.permute.xlu0 %4194
  %v4197 = vmul.f32 %v4192, %v4195
  %4199 = vrot.lane.b32.xlu0 %v4197, 64
  %v4200 = vpop.permute.xlu0 %4199
  %v4202 = vadd.f32 %v3246, %v4200
  %v4203 = vtanh.pop %v4202
  %v4205 = vrot.slane %v4203, 2
  %v4207 = vsub.f32 %v4146, %v4205
  %v4209 = vrot.slane %v4207, 6
  %4210 = vrot.lane.b32.xlu0 %v4209, 96
  %v4211 = vpop.permute.xlu0 %4210
  %v4213 = vmul.f32 %v4192, %v4211
  %4215 = vrot.lane.b32.xlu0 %v4213, 32
  %v4216 = vpop.permute.xlu0 %4215
  %v4218 = vadd.f32 %v4203, %v4216
  %4220 = vrot.lane.b32.xlu0 %v4218, 64
  %v4221 = vpop.permute.xlu0 %4220
  %v4222 = vsel %vm3000, %v4221, 0
  %4224 = vmatpush.msra.mxu0 0.0
  %4225 = vmatpush.msra.mxu0 0.0
  %4226 = vmatpush.msra.mxu0 0.0
  %4227 = vmatpush.msra.mxu0 0.0
  %4228 = vmatpush.msra.mxu0 0.0
  %4229 = vmatpush.msra.mxu0 0.0
  %4230 = vmatpush.msra.mxu0 0.0
  %4231 = vmatpush.msra.mxu0 0.0
  %4232 = vmatpush.msra.mxu0 0.0
  %4233 = vmatpush.msra.mxu0 0.0
  %4234 = vmatpush.msra.mxu0 0.0
  %4235 = vmatpush.msra.mxu0 0.0
  %4236 = vmatpush.msra.mxu0 %v529
  %4237 = vmatpush.msra.mxu0 %v528
  %4238 = vmatpush.msra.mxu0 %v527
  %4239 = vmatpush.msra.mxu0 %v526
  %4240 = vmatmul.f32.gmra.mxu0 %v4222
  %v4241 = vpop.f32.mrf.mxu0
  %v4242 = vadd.f32 %v3273, %v4241
  %4243 = vdwg.mxu0
  %v4245 = vrot.slane %v4242, 6
  %v4247 = vadd.f32 %v3246, %v4245
  %v4248 = vxor.u32 %v4247, 2147483648
  %v4249 = vmul.f32 %v4248, 1.442695
  %v4250 = vpow.pop %v4249
  %v4251 = vadd.f32 %v4250, 1.0
  %v4252 = vrcp.pop %v4251
  %v4253 = vmul.f32 %v4251, %v4252
  %v4254 = vsub.f32 1.0, %v4253
  %v4255 = vmul.f32 %v4252, %v4254
  %v4256 = vadd.f32 %v4252, %v4255
  %vm4257 = vweird.f32 %v4251
  %vm4258 = vweird.f32 %v4252
  %vm4259 = vmor %vm4257, %vm4258
  %v4260 = vsel %vm4259, %v4252, %v4256
  %v4261 = vand.u32 2147483647, %v4251
  %vm4262 = vcmp.eq.f32.partialorder %v4261, 8.507059e+37
  %v4263 = vand.u32 %v4251, 2147483648
  %v4264 = vor.u32 1.1754944e-38, %v4263
  %v4265 = vsel %vm4262, %v4264, %v4260
  %v4266 = vmul.f32 1.0, %v4265
  %4267 = vrot.lane.b32.xlu0 %v4245, 64
  %v4268 = vpop.permute.xlu0 %4267
  %v4270 = vmul.f32 %v4266, %v4268
  %4272 = vrot.lane.b32.xlu0 %v4270, 64
  %v4273 = vpop.permute.xlu0 %4272
  %v4275 = vadd.f32 %v3246, %v4273
  %v4276 = vtanh.pop %v4275
  %v4278 = vrot.slane %v4276, 2
  %v4280 = vsub.f32 %v4218, %v4278
  %v4282 = vrot.slane %v4280, 6
  %4283 = vrot.lane.b32.xlu0 %v4282, 96
  %v4284 = vpop.permute.xlu0 %4283
  %v4286 = vmul.f32 %v4266, %v4284
  %4288 = vrot.lane.b32.xlu0 %v4286, 32
  %v4289 = vpop.permute.xlu0 %4288
  %v4291 = vadd.f32 %v4276, %v4289
  %v4293 = vrot.slane %v4291, 2
  %4294 = vrot.lane.b32.xlu0 %v4293, 64
  %v4295 = vpop.permute.xlu0 %4294
  %v4296 = vsel %vm3000, %v4295, 0
  %4298 = vmatpush.msra.mxu0 0.0
  %4299 = vmatpush.msra.mxu0 0.0
  %4300 = vmatpush.msra.mxu0 0.0
  %4301 = vmatpush.msra.mxu0 0.0
  %4302 = vmatpush.msra.mxu0 0.0
  %4303 = vmatpush.msra.mxu0 0.0
  %4304 = vmatpush.msra.mxu0 0.0
  %4305 = vmatpush.msra.mxu0 0.0
  %4306 = vmatpush.msra.mxu0 0.0
  %4307 = vmatpush.msra.mxu0 0.0
  %4308 = vmatpush.msra.mxu0 0.0
  %4309 = vmatpush.msra.mxu0 0.0
  %4310 = vmatpush.msra.mxu0 %v529
  %4311 = vmatpush.msra.mxu0 %v528
  %4312 = vmatpush.msra.mxu0 %v527
  %4313 = vmatpush.msra.mxu0 %v526
  %4314 = vmatmul.f32.gmra.mxu0 %v4296
  %v4315 = vpop.f32.mrf.mxu0
  %v4316 = vadd.f32 %v3273, %v4315
  %4317 = vdwg.mxu0
  %v4319 = vrot.slane %v4316, 4
  %v4321 = vadd.f32 %v3246, %v4319
  %v4322 = vxor.u32 %v4321, 2147483648
  %v4323 = vmul.f32 %v4322, 1.442695
  %v4324 = vpow.pop %v4323
  %v4325 = vadd.f32 %v4324, 1.0
  %v4326 = vrcp.pop %v4325
  %v4327 = vmul.f32 %v4325, %v4326
  %v4328 = vsub.f32 1.0, %v4327
  %v4329 = vmul.f32 %v4326, %v4328
  %v4330 = vadd.f32 %v4326, %v4329
  %vm4331 = vweird.f32 %v4325
  %vm4332 = vweird.f32 %v4326
  %vm4333 = vmor %vm4331, %vm4332
  %v4334 = vsel %vm4333, %v4326, %v4330
  %v4335 = vand.u32 2147483647, %v4325
  %vm4336 = vcmp.eq.f32.partialorder %v4335, 8.507059e+37
  %v4337 = vand.u32 %v4325, 2147483648
  %v4338 = vor.u32 1.1754944e-38, %v4337
  %v4339 = vsel %vm4336, %v4338, %v4334
  %v4340 = vmul.f32 1.0, %v4339
  %4341 = vrot.lane.b32.xlu0 %v4319, 64
  %v4342 = vpop.permute.xlu0 %4341
  %v4344 = vmul.f32 %v4340, %v4342
  %4346 = vrot.lane.b32.xlu0 %v4344, 64
  %v4347 = vpop.permute.xlu0 %4346
  %v4349 = vadd.f32 %v3246, %v4347
  %v4350 = vtanh.pop %v4349
  %v4352 = vrot.slane %v4350, 2
  %v4354 = vsub.f32 %v4291, %v4352
  %v4356 = vrot.slane %v4354, 6
  %4357 = vrot.lane.b32.xlu0 %v4356, 96
  %v4358 = vpop.permute.xlu0 %4357
  %v4360 = vmul.f32 %v4340, %v4358
  %4362 = vrot.lane.b32.xlu0 %v4360, 32
  %v4363 = vpop.permute.xlu0 %4362
  %v4365 = vadd.f32 %v4350, %v4363
  %v4367 = vrot.slane %v4365, 4
  %4368 = vrot.lane.b32.xlu0 %v4367, 64
  %v4369 = vpop.permute.xlu0 %4368
  %v4370 = vsel %vm3000, %v4369, 0
  %4372 = vmatpush.msra.mxu0 0.0
  %4373 = vmatpush.msra.mxu0 0.0
  %4374 = vmatpush.msra.mxu0 0.0
  %4375 = vmatpush.msra.mxu0 0.0
  %4376 = vmatpush.msra.mxu0 0.0
  %4377 = vmatpush.msra.mxu0 0.0
  %4378 = vmatpush.msra.mxu0 0.0
  %4379 = vmatpush.msra.mxu0 0.0
  %4380 = vmatpush.msra.mxu0 0.0
  %4381 = vmatpush.msra.mxu0 0.0
  %4382 = vmatpush.msra.mxu0 0.0
  %4383 = vmatpush.msra.mxu0 0.0
  %4384 = vmatpush.msra.mxu0 %v529
  %4385 = vmatpush.msra.mxu0 %v528
  %4386 = vmatpush.msra.mxu0 %v527
  %4387 = vmatpush.msra.mxu0 %v526
  %4388 = vmatmul.f32.gmra.mxu0 %v4370
  %v4389 = vpop.f32.mrf.mxu0
  %v4390 = vadd.f32 %v3273, %v4389
  %4391 = vdwg.mxu0
  %v4393 = vrot.slane %v4390, 2
  %v4395 = vadd.f32 %v3246, %v4393
  %v4396 = vxor.u32 %v4395, 2147483648
  %v4397 = vmul.f32 %v4396, 1.442695
  %v4398 = vpow.pop %v4397
  %v4399 = vadd.f32 %v4398, 1.0
  %v4400 = vrcp.pop %v4399
  %v4401 = vmul.f32 %v4399, %v4400
  %v4402 = vsub.f32 1.0, %v4401
  %v4403 = vmul.f32 %v4400, %v4402
  %v4404 = vadd.f32 %v4400, %v4403
  %vm4405 = vweird.f32 %v4399
  %vm4406 = vweird.f32 %v4400
  %vm4407 = vmor %vm4405, %vm4406
  %v4408 = vsel %vm4407, %v4400, %v4404
  %v4409 = vand.u32 2147483647, %v4399
  %vm4410 = vcmp.eq.f32.partialorder %v4409, 8.507059e+37
  %v4411 = vand.u32 %v4399, 2147483648
  %v4412 = vor.u32 1.1754944e-38, %v4411
  %v4413 = vsel %vm4410, %v4412, %v4408
  %v4414 = vmul.f32 1.0, %v4413
  %4415 = vrot.lane.b32.xlu0 %v4393, 64
  %v4416 = vpop.permute.xlu0 %4415
  %v4418 = vmul.f32 %v4414, %v4416
  %4420 = vrot.lane.b32.xlu0 %v4418, 64
  %v4421 = vpop.permute.xlu0 %4420
  %v4423 = vadd.f32 %v3246, %v4421
  %v4424 = vtanh.pop %v4423
  %v4426 = vrot.slane %v4424, 2
  %v4428 = vsub.f32 %v4365, %v4426
  %v4430 = vrot.slane %v4428, 6
  %4431 = vrot.lane.b32.xlu0 %v4430, 96
  %v4432 = vpop.permute.xlu0 %4431
  %v4434 = vmul.f32 %v4414, %v4432
  %4436 = vrot.lane.b32.xlu0 %v4434, 32
  %v4437 = vpop.permute.xlu0 %4436
  %v4439 = vadd.f32 %v4424, %v4437
  %v4441 = vrot.slane %v4439, 6
  %4442 = vrot.lane.b32.xlu0 %v4441, 64
  %v4443 = vpop.permute.xlu0 %4442
  %v4444 = vsel %vm3000, %v4443, 0
  %4446 = vmatpush.msra.mxu0 0.0
  %4447 = vmatpush.msra.mxu0 0.0
  %4448 = vmatpush.msra.mxu0 0.0
  %4449 = vmatpush.msra.mxu0 0.0
  %4450 = vmatpush.msra.mxu0 0.0
  %4451 = vmatpush.msra.mxu0 0.0
  %4452 = vmatpush.msra.mxu0 0.0
  %4453 = vmatpush.msra.mxu0 0.0
  %4454 = vmatpush.msra.mxu0 0.0
  %4455 = vmatpush.msra.mxu0 0.0
  %4456 = vmatpush.msra.mxu0 0.0
  %4457 = vmatpush.msra.mxu0 0.0
  %4458 = vmatpush.msra.mxu0 %v529
  %4459 = vmatpush.msra.mxu0 %v528
  %4460 = vmatpush.msra.mxu0 %v527
  %4461 = vmatpush.msra.mxu0 %v526
  %4462 = vmatmul.f32.gmra.mxu0 %v4444
  %v4463 = vpop.f32.mrf.mxu0
  %v4464 = vadd.f32 %v3273, %v4463
  %4465 = vdwg.mxu0
  %v4466 = vadd.f32 %v3249, %v4464
  %v4467 = vxor.u32 %v4466, 2147483648
  %v4468 = vmul.f32 %v4467, 1.442695
  %v4469 = vpow.pop %v4468
  %v4470 = vadd.f32 %v4469, 1.0
  %v4471 = vrcp.pop %v4470
  %v4472 = vmul.f32 %v4470, %v4471
  %v4473 = vsub.f32 1.0, %v4472
  %v4474 = vmul.f32 %v4471, %v4473
  %v4475 = vadd.f32 %v4471, %v4474
  %vm4476 = vweird.f32 %v4470
  %vm4477 = vweird.f32 %v4471
  %vm4478 = vmor %vm4476, %vm4477
  %v4479 = vsel %vm4478, %v4471, %v4475
  %v4480 = vand.u32 2147483647, %v4470
  %vm4481 = vcmp.eq.f32.partialorder %v4480, 8.507059e+37
  %v4482 = vand.u32 %v4470, 2147483648
  %v4483 = vor.u32 1.1754944e-38, %v4482
  %v4484 = vsel %vm4481, %v4483, %v4479
  %v4485 = vmul.f32 1.0, %v4484
  %4487 = vrot.lane.b32.xlu0 %v4464, 64
  %v4488 = vpop.permute.xlu0 %4487
  %v4490 = vmul.f32 %v4485, %v4488
  %4492 = vrot.lane.b32.xlu0 %v4490, 64
  %v4493 = vpop.permute.xlu0 %4492
  %v4495 = vadd.f32 %v3249, %v4493
  %v4496 = vtanh.pop %v4495
  %v4498 = vrot.slane %v4496, 2
  %v4500 = vsub.f32 %v4439, %v4498
  %v4502 = vrot.slane %v4500, 6
  %4503 = vrot.lane.b32.xlu0 %v4502, 96
  %v4504 = vpop.permute.xlu0 %4503
  %v4506 = vmul.f32 %v4485, %v4504
  %4508 = vrot.lane.b32.xlu0 %v4506, 32
  %v4509 = vpop.permute.xlu0 %4508
  %v4511 = vadd.f32 %v4496, %v4509
  %4513 = vrot.lane.b32.xlu0 %v4511, 64
  %v4514 = vpop.permute.xlu0 %4513
  %v4515 = vsel %vm3000, %v4514, 0
  %4517 = vmatpush.msra.mxu0 0.0
  %4518 = vmatpush.msra.mxu0 0.0
  %4519 = vmatpush.msra.mxu0 0.0
  %4520 = vmatpush.msra.mxu0 0.0
  %4521 = vmatpush.msra.mxu0 0.0
  %4522 = vmatpush.msra.mxu0 0.0
  %4523 = vmatpush.msra.mxu0 0.0
  %4524 = vmatpush.msra.mxu0 0.0
  %4525 = vmatpush.msra.mxu0 0.0
  %4526 = vmatpush.msra.mxu0 0.0
  %4527 = vmatpush.msra.mxu0 0.0
  %4528 = vmatpush.msra.mxu0 0.0
  %4529 = vmatpush.msra.mxu0 %v529
  %4530 = vmatpush.msra.mxu0 %v528
  %4531 = vmatpush.msra.mxu0 %v527
  %4532 = vmatpush.msra.mxu0 %v526
  %4533 = vmatmul.f32.gmra.mxu0 %v4515
  %v4534 = vpop.f32.mrf.mxu0
  %v4535 = vadd.f32 %v3273, %v4534
  %4536 = vdwg.mxu0
  %v4538 = vrot.slane %v4535, 6
  %v4540 = vadd.f32 %v3249, %v4538
  %v4541 = vxor.u32 %v4540, 2147483648
  %v4542 = vmul.f32 %v4541, 1.442695
  %v4543 = vpow.pop %v4542
  %v4544 = vadd.f32 %v4543, 1.0
  %v4545 = vrcp.pop %v4544
  %v4546 = vmul.f32 %v4544, %v4545
  %v4547 = vsub.f32 1.0, %v4546
  %v4548 = vmul.f32 %v4545, %v4547
  %v4549 = vadd.f32 %v4545, %v4548
  %vm4550 = vweird.f32 %v4544
  %vm4551 = vweird.f32 %v4545
  %vm4552 = vmor %vm4550, %vm4551
  %v4553 = vsel %vm4552, %v4545, %v4549
  %v4554 = vand.u32 2147483647, %v4544
  %vm4555 = vcmp.eq.f32.partialorder %v4554, 8.507059e+37
  %v4556 = vand.u32 %v4544, 2147483648
  %v4557 = vor.u32 1.1754944e-38, %v4556
  %v4558 = vsel %vm4555, %v4557, %v4553
  %v4559 = vmul.f32 1.0, %v4558
  %4560 = vrot.lane.b32.xlu0 %v4538, 64
  %v4561 = vpop.permute.xlu0 %4560
  %v4563 = vmul.f32 %v4559, %v4561
  %4565 = vrot.lane.b32.xlu0 %v4563, 64
  %v4566 = vpop.permute.xlu0 %4565
  %v4568 = vadd.f32 %v3249, %v4566
  %v4569 = vtanh.pop %v4568
  %v4571 = vrot.slane %v4569, 2
  %v4573 = vsub.f32 %v4511, %v4571
  %v4575 = vrot.slane %v4573, 6
  %4576 = vrot.lane.b32.xlu0 %v4575, 96
  %v4577 = vpop.permute.xlu0 %4576
  %v4579 = vmul.f32 %v4559, %v4577
  %4581 = vrot.lane.b32.xlu0 %v4579, 32
  %v4582 = vpop.permute.xlu0 %4581
  %v4584 = vadd.f32 %v4569, %v4582
  %v4586 = vrot.slane %v4584, 2
  %4587 = vrot.lane.b32.xlu0 %v4586, 64
  %v4588 = vpop.permute.xlu0 %4587
  %v4589 = vsel %vm3000, %v4588, 0
  %4591 = vmatpush.msra.mxu0 0.0
  %4592 = vmatpush.msra.mxu0 0.0
  %4593 = vmatpush.msra.mxu0 0.0
  %4594 = vmatpush.msra.mxu0 0.0
  %4595 = vmatpush.msra.mxu0 0.0
  %4596 = vmatpush.msra.mxu0 0.0
  %4597 = vmatpush.msra.mxu0 0.0
  %4598 = vmatpush.msra.mxu0 0.0
  %4599 = vmatpush.msra.mxu0 0.0
  %4600 = vmatpush.msra.mxu0 0.0
  %4601 = vmatpush.msra.mxu0 0.0
  %4602 = vmatpush.msra.mxu0 0.0
  %4603 = vmatpush.msra.mxu0 %v529
  %4604 = vmatpush.msra.mxu0 %v528
  %4605 = vmatpush.msra.mxu0 %v527
  %4606 = vmatpush.msra.mxu0 %v526
  %4607 = vmatmul.f32.gmra.mxu0 %v4589
  %v4608 = vpop.f32.mrf.mxu0
  %v4609 = vadd.f32 %v3273, %v4608
  %4610 = vdwg.mxu0
  %v4612 = vrot.slane %v4609, 4
  %v4614 = vadd.f32 %v3249, %v4612
  %v4615 = vxor.u32 %v4614, 2147483648
  %v4616 = vmul.f32 %v4615, 1.442695
  %v4617 = vpow.pop %v4616
  %v4618 = vadd.f32 %v4617, 1.0
  %v4619 = vrcp.pop %v4618
  %v4620 = vmul.f32 %v4618, %v4619
  %v4621 = vsub.f32 1.0, %v4620
  %v4622 = vmul.f32 %v4619, %v4621
  %v4623 = vadd.f32 %v4619, %v4622
  %vm4624 = vweird.f32 %v4618
  %vm4625 = vweird.f32 %v4619
  %vm4626 = vmor %vm4624, %vm4625
  %v4627 = vsel %vm4626, %v4619, %v4623
  %v4628 = vand.u32 2147483647, %v4618
  %vm4629 = vcmp.eq.f32.partialorder %v4628, 8.507059e+37
  %v4630 = vand.u32 %v4618, 2147483648
  %v4631 = vor.u32 1.1754944e-38, %v4630
  %v4632 = vsel %vm4629, %v4631, %v4627
  %v4633 = vmul.f32 1.0, %v4632
  %4634 = vrot.lane.b32.xlu0 %v4612, 64
  %v4635 = vpop.permute.xlu0 %4634
  %v4637 = vmul.f32 %v4633, %v4635
  %4639 = vrot.lane.b32.xlu0 %v4637, 64
  %v4640 = vpop.permute.xlu0 %4639
  %v4642 = vadd.f32 %v3249, %v4640
  %v4643 = vtanh.pop %v4642
  %v4645 = vrot.slane %v4643, 2
  %v4647 = vsub.f32 %v4584, %v4645
  %v4649 = vrot.slane %v4647, 6
  %4650 = vrot.lane.b32.xlu0 %v4649, 96
  %v4651 = vpop.permute.xlu0 %4650
  %v4653 = vmul.f32 %v4633, %v4651
  %4655 = vrot.lane.b32.xlu0 %v4653, 32
  %v4656 = vpop.permute.xlu0 %4655
  %v4658 = vadd.f32 %v4643, %v4656
  %v4660 = vrot.slane %v4658, 4
  %4661 = vrot.lane.b32.xlu0 %v4660, 64
  %v4662 = vpop.permute.xlu0 %4661
  %v4663 = vsel %vm3000, %v4662, 0
  %4665 = vmatpush.msra.mxu0 0.0
  %4666 = vmatpush.msra.mxu0 0.0
  %4667 = vmatpush.msra.mxu0 0.0
  %4668 = vmatpush.msra.mxu0 0.0
  %4669 = vmatpush.msra.mxu0 0.0
  %4670 = vmatpush.msra.mxu0 0.0
  %4671 = vmatpush.msra.mxu0 0.0
  %4672 = vmatpush.msra.mxu0 0.0
  %4673 = vmatpush.msra.mxu0 0.0
  %4674 = vmatpush.msra.mxu0 0.0
  %4675 = vmatpush.msra.mxu0 0.0
  %4676 = vmatpush.msra.mxu0 0.0
  %4677 = vmatpush.msra.mxu0 %v529
  %4678 = vmatpush.msra.mxu0 %v528
  %4679 = vmatpush.msra.mxu0 %v527
  %4680 = vmatpush.msra.mxu0 %v526
  %4681 = vmatmul.f32.gmra.mxu0 %v4663
  %v4682 = vpop.f32.mrf.mxu0
  %v4683 = vadd.f32 %v3273, %v4682
  %4684 = vdwg.mxu0
  %v4686 = vrot.slane %v4683, 2
  %v4688 = vadd.f32 %v3249, %v4686
  %v4689 = vxor.u32 %v4688, 2147483648
  %v4690 = vmul.f32 %v4689, 1.442695
  %v4691 = vpow.pop %v4690
  %v4692 = vadd.f32 %v4691, 1.0
  %v4693 = vrcp.pop %v4692
  %v4694 = vmul.f32 %v4692, %v4693
  %v4695 = vsub.f32 1.0, %v4694
  %v4696 = vmul.f32 %v4693, %v4695
  %v4697 = vadd.f32 %v4693, %v4696
  %vm4698 = vweird.f32 %v4692
  %vm4699 = vweird.f32 %v4693
  %vm4700 = vmor %vm4698, %vm4699
  %v4701 = vsel %vm4700, %v4693, %v4697
  %v4702 = vand.u32 2147483647, %v4692
  %vm4703 = vcmp.eq.f32.partialorder %v4702, 8.507059e+37
  %v4704 = vand.u32 %v4692, 2147483648
  %v4705 = vor.u32 1.1754944e-38, %v4704
  %v4706 = vsel %vm4703, %v4705, %v4701
  %v4707 = vmul.f32 1.0, %v4706
  %4708 = vrot.lane.b32.xlu0 %v4686, 64
  %v4709 = vpop.permute.xlu0 %4708
  %v4711 = vmul.f32 %v4707, %v4709
  %4713 = vrot.lane.b32.xlu0 %v4711, 64
  %v4714 = vpop.permute.xlu0 %4713
  %v4716 = vadd.f32 %v3249, %v4714
  %v4717 = vtanh.pop %v4716
  %v4719 = vrot.slane %v4717, 2
  %v4721 = vsub.f32 %v4658, %v4719
  %v4723 = vrot.slane %v4721, 6
  %4724 = vrot.lane.b32.xlu0 %v4723, 96
  %v4725 = vpop.permute.xlu0 %4724
  %v4727 = vmul.f32 %v4707, %v4725
  %4729 = vrot.lane.b32.xlu0 %v4727, 32
  %v4730 = vpop.permute.xlu0 %4729
  %v4732 = vadd.f32 %v4717, %v4730
  %v4734 = vrot.slane %v4732, 6
  %4735 = vrot.lane.b32.xlu0 %v4734, 64
  %v4736 = vpop.permute.xlu0 %4735
  %v4737 = vsel %vm3000, %v4736, 0
  %4739 = vmatpush.msra.mxu0 0.0
  %4740 = vmatpush.msra.mxu0 0.0
  %4741 = vmatpush.msra.mxu0 0.0
  %4742 = vmatpush.msra.mxu0 0.0
  %4743 = vmatpush.msra.mxu0 0.0
  %4744 = vmatpush.msra.mxu0 0.0
  %4745 = vmatpush.msra.mxu0 0.0
  %4746 = vmatpush.msra.mxu0 0.0
  %4747 = vmatpush.msra.mxu0 0.0
  %4748 = vmatpush.msra.mxu0 0.0
  %4749 = vmatpush.msra.mxu0 0.0
  %4750 = vmatpush.msra.mxu0 0.0
  %4751 = vmatpush.msra.mxu0 %v529
  %4752 = vmatpush.msra.mxu0 %v528
  %4753 = vmatpush.msra.mxu0 %v527
  %4754 = vmatpush.msra.mxu0 %v526
  %4755 = vmatmul.f32.gmra.mxu0 %v4737
  %v4756 = vpop.f32.mrf.mxu0
  %v4757 = vadd.f32 %v3273, %v4756
  %4758 = vdwg.mxu0
  %v4759 = vadd.f32 %v3252, %v4757
  %v4760 = vxor.u32 %v4759, 2147483648
  %v4761 = vmul.f32 %v4760, 1.442695
  %v4762 = vpow.pop %v4761
  %v4763 = vadd.f32 %v4762, 1.0
  %v4764 = vrcp.pop %v4763
  %v4765 = vmul.f32 %v4763, %v4764
  %v4766 = vsub.f32 1.0, %v4765
  %v4767 = vmul.f32 %v4764, %v4766
  %v4768 = vadd.f32 %v4764, %v4767
  %vm4769 = vweird.f32 %v4763
  %vm4770 = vweird.f32 %v4764
  %vm4771 = vmor %vm4769, %vm4770
  %v4772 = vsel %vm4771, %v4764, %v4768
  %v4773 = vand.u32 2147483647, %v4763
  %vm4774 = vcmp.eq.f32.partialorder %v4773, 8.507059e+37
  %v4775 = vand.u32 %v4763, 2147483648
  %v4776 = vor.u32 1.1754944e-38, %v4775
  %v4777 = vsel %vm4774, %v4776, %v4772
  %v4778 = vmul.f32 1.0, %v4777
  %4780 = vrot.lane.b32.xlu0 %v4757, 64
  %v4781 = vpop.permute.xlu0 %4780
  %v4783 = vmul.f32 %v4778, %v4781
  %4785 = vrot.lane.b32.xlu0 %v4783, 64
  %v4786 = vpop.permute.xlu0 %4785
  %v4788 = vadd.f32 %v3252, %v4786
  %v4789 = vtanh.pop %v4788
  %v4791 = vrot.slane %v4789, 2
  %v4793 = vsub.f32 %v4732, %v4791
  %v4795 = vrot.slane %v4793, 6
  %4796 = vrot.lane.b32.xlu0 %v4795, 96
  %v4797 = vpop.permute.xlu0 %4796
  %v4799 = vmul.f32 %v4778, %v4797
  %4801 = vrot.lane.b32.xlu0 %v4799, 32
  %v4802 = vpop.permute.xlu0 %4801
  %v4804 = vadd.f32 %v4789, %v4802
  %4806 = vrot.lane.b32.xlu0 %v4804, 64
  %v4807 = vpop.permute.xlu0 %4806
  %v4808 = vsel %vm3000, %v4807, 0
  %4810 = vmatpush.msra.mxu0 0.0
  %4811 = vmatpush.msra.mxu0 0.0
  %4812 = vmatpush.msra.mxu0 0.0
  %4813 = vmatpush.msra.mxu0 0.0
  %4814 = vmatpush.msra.mxu0 0.0
  %4815 = vmatpush.msra.mxu0 0.0
  %4816 = vmatpush.msra.mxu0 0.0
  %4817 = vmatpush.msra.mxu0 0.0
  %4818 = vmatpush.msra.mxu0 0.0
  %4819 = vmatpush.msra.mxu0 0.0
  %4820 = vmatpush.msra.mxu0 0.0
  %4821 = vmatpush.msra.mxu0 0.0
  %4822 = vmatpush.msra.mxu0 %v529
  %4823 = vmatpush.msra.mxu0 %v528
  %4824 = vmatpush.msra.mxu0 %v527
  %4825 = vmatpush.msra.mxu0 %v526
  %4826 = vmatmul.f32.gmra.mxu0 %v4808
  %v4827 = vpop.f32.mrf.mxu0
  %v4828 = vadd.f32 %v3273, %v4827
  %4829 = vdwg.mxu0
  %v4831 = vrot.slane %v4828, 6
  %v4833 = vadd.f32 %v3252, %v4831
  %v4834 = vxor.u32 %v4833, 2147483648
  %v4835 = vmul.f32 %v4834, 1.442695
  %v4836 = vpow.pop %v4835
  %v4837 = vadd.f32 %v4836, 1.0
  %v4838 = vrcp.pop %v4837
  %v4839 = vmul.f32 %v4837, %v4838
  %v4840 = vsub.f32 1.0, %v4839
  %v4841 = vmul.f32 %v4838, %v4840
  %v4842 = vadd.f32 %v4838, %v4841
  %vm4843 = vweird.f32 %v4837
  %vm4844 = vweird.f32 %v4838
  %vm4845 = vmor %vm4843, %vm4844
  %v4846 = vsel %vm4845, %v4838, %v4842
  %v4847 = vand.u32 2147483647, %v4837
  %vm4848 = vcmp.eq.f32.partialorder %v4847, 8.507059e+37
  %v4849 = vand.u32 %v4837, 2147483648
  %v4850 = vor.u32 1.1754944e-38, %v4849
  %v4851 = vsel %vm4848, %v4850, %v4846
  %v4852 = vmul.f32 1.0, %v4851
  %4853 = vrot.lane.b32.xlu0 %v4831, 64
  %v4854 = vpop.permute.xlu0 %4853
  %v4856 = vmul.f32 %v4852, %v4854
  %4858 = vrot.lane.b32.xlu0 %v4856, 64
  %v4859 = vpop.permute.xlu0 %4858
  %v4861 = vadd.f32 %v3252, %v4859
  %v4862 = vtanh.pop %v4861
  %v4864 = vrot.slane %v4862, 2
  %v4866 = vsub.f32 %v4804, %v4864
  %v4868 = vrot.slane %v4866, 6
  %4869 = vrot.lane.b32.xlu0 %v4868, 96
  %v4870 = vpop.permute.xlu0 %4869
  %v4872 = vmul.f32 %v4852, %v4870
  %4874 = vrot.lane.b32.xlu0 %v4872, 32
  %v4875 = vpop.permute.xlu0 %4874
  %v4877 = vadd.f32 %v4862, %v4875
  %v4879 = vrot.slane %v4877, 2
  %4880 = vrot.lane.b32.xlu0 %v4879, 64
  %v4881 = vpop.permute.xlu0 %4880
  %v4882 = vsel %vm3000, %v4881, 0
  %4884 = vmatpush.msra.mxu0 0.0
  %4885 = vmatpush.msra.mxu0 0.0
  %4886 = vmatpush.msra.mxu0 0.0
  %4887 = vmatpush.msra.mxu0 0.0
  %4888 = vmatpush.msra.mxu0 0.0
  %4889 = vmatpush.msra.mxu0 0.0
  %4890 = vmatpush.msra.mxu0 0.0
  %4891 = vmatpush.msra.mxu0 0.0
  %4892 = vmatpush.msra.mxu0 0.0
  %4893 = vmatpush.msra.mxu0 0.0
  %4894 = vmatpush.msra.mxu0 0.0
  %4895 = vmatpush.msra.mxu0 0.0
  %4896 = vmatpush.msra.mxu0 %v529
  %4897 = vmatpush.msra.mxu0 %v528
  %4898 = vmatpush.msra.mxu0 %v527
  %4899 = vmatpush.msra.mxu0 %v526
  %4900 = vmatmul.f32.gmra.mxu0 %v4882
  %v4901 = vpop.f32.mrf.mxu0
  %v4902 = vadd.f32 %v3273, %v4901
  %4903 = vdwg.mxu0
  %v4905 = vrot.slane %v4902, 4
  %v4907 = vadd.f32 %v3252, %v4905
  %v4908 = vxor.u32 %v4907, 2147483648
  %v4909 = vmul.f32 %v4908, 1.442695
  %v4910 = vpow.pop %v4909
  %v4911 = vadd.f32 %v4910, 1.0
  %v4912 = vrcp.pop %v4911
  %v4913 = vmul.f32 %v4911, %v4912
  %v4914 = vsub.f32 1.0, %v4913
  %v4915 = vmul.f32 %v4912, %v4914
  %v4916 = vadd.f32 %v4912, %v4915
  %vm4917 = vweird.f32 %v4911
  %vm4918 = vweird.f32 %v4912
  %vm4919 = vmor %vm4917, %vm4918
  %v4920 = vsel %vm4919, %v4912, %v4916
  %v4921 = vand.u32 2147483647, %v4911
  %vm4922 = vcmp.eq.f32.partialorder %v4921, 8.507059e+37
  %v4923 = vand.u32 %v4911, 2147483648
  %v4924 = vor.u32 1.1754944e-38, %v4923
  %v4925 = vsel %vm4922, %v4924, %v4920
  %v4926 = vmul.f32 1.0, %v4925
  %4927 = vrot.lane.b32.xlu0 %v4905, 64
  %v4928 = vpop.permute.xlu0 %4927
  %v4930 = vmul.f32 %v4926, %v4928
  %4932 = vrot.lane.b32.xlu0 %v4930, 64
  %v4933 = vpop.permute.xlu0 %4932
  %v4935 = vadd.f32 %v3252, %v4933
  %v4936 = vtanh.pop %v4935
  %v4938 = vrot.slane %v4936, 2
  %v4940 = vsub.f32 %v4877, %v4938
  %v4942 = vrot.slane %v4940, 6
  %4943 = vrot.lane.b32.xlu0 %v4942, 96
  %v4944 = vpop.permute.xlu0 %4943
  %v4946 = vmul.f32 %v4926, %v4944
  %4948 = vrot.lane.b32.xlu0 %v4946, 32
  %v4949 = vpop.permute.xlu0 %4948
  %v4951 = vadd.f32 %v4936, %v4949
  %v4953 = vrot.slane %v4951, 4
  %4954 = vrot.lane.b32.xlu0 %v4953, 64
  %v4955 = vpop.permute.xlu0 %4954
  %v4956 = vsel %vm3000, %v4955, 0
  %4958 = vmatpush.msra.mxu0 0.0
  %4959 = vmatpush.msra.mxu0 0.0
  %4960 = vmatpush.msra.mxu0 0.0
  %4961 = vmatpush.msra.mxu0 0.0
  %4962 = vmatpush.msra.mxu0 0.0
  %4963 = vmatpush.msra.mxu0 0.0
  %4964 = vmatpush.msra.mxu0 0.0
  %4965 = vmatpush.msra.mxu0 0.0
  %4966 = vmatpush.msra.mxu0 0.0
  %4967 = vmatpush.msra.mxu0 0.0
  %4968 = vmatpush.msra.mxu0 0.0
  %4969 = vmatpush.msra.mxu0 0.0
  %4970 = vmatpush.msra.mxu0 %v529
  %4971 = vmatpush.msra.mxu0 %v528
  %4972 = vmatpush.msra.mxu0 %v527
  %4973 = vmatpush.msra.mxu0 %v526
  %4974 = vmatmul.f32.gmra.mxu0 %v4956
  %v4975 = vpop.f32.mrf.mxu0
  %v4976 = vadd.f32 %v3273, %v4975
  %4977 = vdwg.mxu0
  %v4979 = vrot.slane %v4976, 2
  %v4981 = vadd.f32 %v3252, %v4979
  %v4982 = vxor.u32 %v4981, 2147483648
  %v4983 = vmul.f32 %v4982, 1.442695
  %v4984 = vpow.pop %v4983
  %v4985 = vadd.f32 %v4984, 1.0
  %v4986 = vrcp.pop %v4985
  %v4987 = vmul.f32 %v4985, %v4986
  %v4988 = vsub.f32 1.0, %v4987
  %v4989 = vmul.f32 %v4986, %v4988
  %v4990 = vadd.f32 %v4986, %v4989
  %vm4991 = vweird.f32 %v4985
  %vm4992 = vweird.f32 %v4986
  %vm4993 = vmor %vm4991, %vm4992
  %v4994 = vsel %vm4993, %v4986, %v4990
  %v4995 = vand.u32 2147483647, %v4985
  %vm4996 = vcmp.eq.f32.partialorder %v4995, 8.507059e+37
  %v4997 = vand.u32 %v4985, 2147483648
  %v4998 = vor.u32 1.1754944e-38, %v4997
  %v4999 = vsel %vm4996, %v4998, %v4994
  %v5000 = vmul.f32 1.0, %v4999
  %5001 = vrot.lane.b32.xlu0 %v4979, 64
  %v5002 = vpop.permute.xlu0 %5001
  %v5004 = vmul.f32 %v5000, %v5002
  %5006 = vrot.lane.b32.xlu0 %v5004, 64
  %v5007 = vpop.permute.xlu0 %5006
  %v5009 = vadd.f32 %v3252, %v5007
  %v5010 = vtanh.pop %v5009
  %v5012 = vrot.slane %v5010, 2
  %v5014 = vsub.f32 %v4951, %v5012
  %v5016 = vrot.slane %v5014, 6
  %5017 = vrot.lane.b32.xlu0 %v5016, 96
  %v5018 = vpop.permute.xlu0 %5017
  %v5020 = vmul.f32 %v5000, %v5018
  %5022 = vrot.lane.b32.xlu0 %v5020, 32
  %v5023 = vpop.permute.xlu0 %5022
  %v5025 = vadd.f32 %v5010, %v5023
  %v5027 = vrot.slane %v5025, 6
  %5028 = vrot.lane.b32.xlu0 %v5027, 64
  %v5029 = vpop.permute.xlu0 %5028
  %v5030 = vsel %vm3000, %v5029, 0
  %5032 = vmatpush.msra.mxu0 0.0
  %5033 = vmatpush.msra.mxu0 0.0
  %5034 = vmatpush.msra.mxu0 0.0
  %5035 = vmatpush.msra.mxu0 0.0
  %5036 = vmatpush.msra.mxu0 0.0
  %5037 = vmatpush.msra.mxu0 0.0
  %5038 = vmatpush.msra.mxu0 0.0
  %5039 = vmatpush.msra.mxu0 0.0
  %5040 = vmatpush.msra.mxu0 0.0
  %5041 = vmatpush.msra.mxu0 0.0
  %5042 = vmatpush.msra.mxu0 0.0
  %5043 = vmatpush.msra.mxu0 0.0
  %5044 = vmatpush.msra.mxu0 %v529
  %5045 = vmatpush.msra.mxu0 %v528
  %5046 = vmatpush.msra.mxu0 %v527
  %5047 = vmatpush.msra.mxu0 %v526
  %5048 = vmatmul.f32.gmra.mxu0 %v5030
  %v5049 = vpop.f32.mrf.mxu0
  %v5050 = vadd.f32 %v3273, %v5049
  %5051 = vdwg.mxu0
  %v5052 = vadd.f32 %v3255, %v5050
  %v5053 = vxor.u32 %v5052, 2147483648
  %v5054 = vmul.f32 %v5053, 1.442695
  %v5055 = vpow.pop %v5054
  %v5056 = vadd.f32 %v5055, 1.0
  %v5057 = vrcp.pop %v5056
  %v5058 = vmul.f32 %v5056, %v5057
  %v5059 = vsub.f32 1.0, %v5058
  %v5060 = vmul.f32 %v5057, %v5059
  %v5061 = vadd.f32 %v5057, %v5060
  %vm5062 = vweird.f32 %v5056
  %vm5063 = vweird.f32 %v5057
  %vm5064 = vmor %vm5062, %vm5063
  %v5065 = vsel %vm5064, %v5057, %v5061
  %v5066 = vand.u32 2147483647, %v5056
  %vm5067 = vcmp.eq.f32.partialorder %v5066, 8.507059e+37
  %v5068 = vand.u32 %v5056, 2147483648
  %v5069 = vor.u32 1.1754944e-38, %v5068
  %v5070 = vsel %vm5067, %v5069, %v5065
  %v5071 = vmul.f32 1.0, %v5070
  %5073 = vrot.lane.b32.xlu0 %v5050, 64
  %v5074 = vpop.permute.xlu0 %5073
  %v5076 = vmul.f32 %v5071, %v5074
  %5078 = vrot.lane.b32.xlu0 %v5076, 64
  %v5079 = vpop.permute.xlu0 %5078
  %v5081 = vadd.f32 %v3255, %v5079
  %v5082 = vtanh.pop %v5081
  %v5084 = vrot.slane %v5082, 2
  %v5086 = vsub.f32 %v5025, %v5084
  %v5088 = vrot.slane %v5086, 6
  %5089 = vrot.lane.b32.xlu0 %v5088, 96
  %v5090 = vpop.permute.xlu0 %5089
  %v5092 = vmul.f32 %v5071, %v5090
  %5094 = vrot.lane.b32.xlu0 %v5092, 32
  %v5095 = vpop.permute.xlu0 %5094
  %v5097 = vadd.f32 %v5082, %v5095
  %5099 = vrot.lane.b32.xlu0 %v5097, 64
  %v5100 = vpop.permute.xlu0 %5099
  %v5101 = vsel %vm3000, %v5100, 0
  %5103 = vmatpush.msra.mxu0 0.0
  %5104 = vmatpush.msra.mxu0 0.0
  %5105 = vmatpush.msra.mxu0 0.0
  %5106 = vmatpush.msra.mxu0 0.0
  %5107 = vmatpush.msra.mxu0 0.0
  %5108 = vmatpush.msra.mxu0 0.0
  %5109 = vmatpush.msra.mxu0 0.0
  %5110 = vmatpush.msra.mxu0 0.0
  %5111 = vmatpush.msra.mxu0 0.0
  %5112 = vmatpush.msra.mxu0 0.0
  %5113 = vmatpush.msra.mxu0 0.0
  %5114 = vmatpush.msra.mxu0 0.0
  %5115 = vmatpush.msra.mxu0 %v529
  %5116 = vmatpush.msra.mxu0 %v528
  %5117 = vmatpush.msra.mxu0 %v527
  %5118 = vmatpush.msra.mxu0 %v526
  %5119 = vmatmul.f32.gmra.mxu0 %v5101
  %v5120 = vpop.f32.mrf.mxu0
  %v5121 = vadd.f32 %v3273, %v5120
  %5122 = vdwg.mxu0
  %v5124 = vrot.slane %v5121, 6
  %v5126 = vadd.f32 %v3255, %v5124
  %v5127 = vxor.u32 %v5126, 2147483648
  %v5128 = vmul.f32 %v5127, 1.442695
  %v5129 = vpow.pop %v5128
  %v5130 = vadd.f32 %v5129, 1.0
  %v5131 = vrcp.pop %v5130
  %v5132 = vmul.f32 %v5130, %v5131
  %v5133 = vsub.f32 1.0, %v5132
  %v5134 = vmul.f32 %v5131, %v5133
  %v5135 = vadd.f32 %v5131, %v5134
  %vm5136 = vweird.f32 %v5130
  %vm5137 = vweird.f32 %v5131
  %vm5138 = vmor %vm5136, %vm5137
  %v5139 = vsel %vm5138, %v5131, %v5135
  %v5140 = vand.u32 2147483647, %v5130
  %vm5141 = vcmp.eq.f32.partialorder %v5140, 8.507059e+37
  %v5142 = vand.u32 %v5130, 2147483648
  %v5143 = vor.u32 1.1754944e-38, %v5142
  %v5144 = vsel %vm5141, %v5143, %v5139
  %v5145 = vmul.f32 1.0, %v5144
  %5146 = vrot.lane.b32.xlu0 %v5124, 64
  %v5147 = vpop.permute.xlu0 %5146
  %v5149 = vmul.f32 %v5145, %v5147
  %5151 = vrot.lane.b32.xlu0 %v5149, 64
  %v5152 = vpop.permute.xlu0 %5151
  %v5154 = vadd.f32 %v3255, %v5152
  %v5155 = vtanh.pop %v5154
  %v5157 = vrot.slane %v5155, 2
  %v5159 = vsub.f32 %v5097, %v5157
  %v5161 = vrot.slane %v5159, 6
  %5162 = vrot.lane.b32.xlu0 %v5161, 96
  %v5163 = vpop.permute.xlu0 %5162
  %v5165 = vmul.f32 %v5145, %v5163
  %5167 = vrot.lane.b32.xlu0 %v5165, 32
  %v5168 = vpop.permute.xlu0 %5167
  %v5170 = vadd.f32 %v5155, %v5168
  %v5172 = vrot.slane %v5170, 2
  %5173 = vrot.lane.b32.xlu0 %v5172, 64
  %v5174 = vpop.permute.xlu0 %5173
  %v5175 = vsel %vm3000, %v5174, 0
  %5177 = vmatpush.msra.mxu0 0.0
  %5178 = vmatpush.msra.mxu0 0.0
  %5179 = vmatpush.msra.mxu0 0.0
  %5180 = vmatpush.msra.mxu0 0.0
  %5181 = vmatpush.msra.mxu0 0.0
  %5182 = vmatpush.msra.mxu0 0.0
  %5183 = vmatpush.msra.mxu0 0.0
  %5184 = vmatpush.msra.mxu0 0.0
  %5185 = vmatpush.msra.mxu0 0.0
  %5186 = vmatpush.msra.mxu0 0.0
  %5187 = vmatpush.msra.mxu0 0.0
  %5188 = vmatpush.msra.mxu0 0.0
  %5189 = vmatpush.msra.mxu0 %v529
  %5190 = vmatpush.msra.mxu0 %v528
  %5191 = vmatpush.msra.mxu0 %v527
  %5192 = vmatpush.msra.mxu0 %v526
  %5193 = vmatmul.f32.gmra.mxu0 %v5175
  %v5194 = vpop.f32.mrf.mxu0
  %v5195 = vadd.f32 %v3273, %v5194
  %5196 = vdwg.mxu0
  %v5198 = vrot.slane %v5195, 4
  %v5200 = vadd.f32 %v3255, %v5198
  %v5201 = vxor.u32 %v5200, 2147483648
  %v5202 = vmul.f32 %v5201, 1.442695
  %v5203 = vpow.pop %v5202
  %v5204 = vadd.f32 %v5203, 1.0
  %v5205 = vrcp.pop %v5204
  %v5206 = vmul.f32 %v5204, %v5205
  %v5207 = vsub.f32 1.0, %v5206
  %v5208 = vmul.f32 %v5205, %v5207
  %v5209 = vadd.f32 %v5205, %v5208
  %vm5210 = vweird.f32 %v5204
  %vm5211 = vweird.f32 %v5205
  %vm5212 = vmor %vm5210, %vm5211
  %v5213 = vsel %vm5212, %v5205, %v5209
  %v5214 = vand.u32 2147483647, %v5204
  %vm5215 = vcmp.eq.f32.partialorder %v5214, 8.507059e+37
  %v5216 = vand.u32 %v5204, 2147483648
  %v5217 = vor.u32 1.1754944e-38, %v5216
  %v5218 = vsel %vm5215, %v5217, %v5213
  %v5219 = vmul.f32 1.0, %v5218
  %5220 = vrot.lane.b32.xlu0 %v5198, 64
  %v5221 = vpop.permute.xlu0 %5220
  %v5223 = vmul.f32 %v5219, %v5221
  %5225 = vrot.lane.b32.xlu0 %v5223, 64
  %v5226 = vpop.permute.xlu0 %5225
  %v5228 = vadd.f32 %v3255, %v5226
  %v5229 = vtanh.pop %v5228
  %v5231 = vrot.slane %v5229, 2
  %v5233 = vsub.f32 %v5170, %v5231
  %v5235 = vrot.slane %v5233, 6
  %5236 = vrot.lane.b32.xlu0 %v5235, 96
  %v5237 = vpop.permute.xlu0 %5236
  %v5239 = vmul.f32 %v5219, %v5237
  %5241 = vrot.lane.b32.xlu0 %v5239, 32
  %v5242 = vpop.permute.xlu0 %5241
  %v5244 = vadd.f32 %v5229, %v5242
  %v5246 = vrot.slane %v5244, 4
  %5247 = vrot.lane.b32.xlu0 %v5246, 64
  %v5248 = vpop.permute.xlu0 %5247
  %v5249 = vsel %vm3000, %v5248, 0
  %5251 = vmatpush.msra.mxu0 0.0
  %5252 = vmatpush.msra.mxu0 0.0
  %5253 = vmatpush.msra.mxu0 0.0
  %5254 = vmatpush.msra.mxu0 0.0
  %5255 = vmatpush.msra.mxu0 0.0
  %5256 = vmatpush.msra.mxu0 0.0
  %5257 = vmatpush.msra.mxu0 0.0
  %5258 = vmatpush.msra.mxu0 0.0
  %5259 = vmatpush.msra.mxu0 0.0
  %5260 = vmatpush.msra.mxu0 0.0
  %5261 = vmatpush.msra.mxu0 0.0
  %5262 = vmatpush.msra.mxu0 0.0
  %5263 = vmatpush.msra.mxu0 %v529
  %5264 = vmatpush.msra.mxu0 %v528
  %5265 = vmatpush.msra.mxu0 %v527
  %5266 = vmatpush.msra.mxu0 %v526
  %5267 = vmatmul.f32.gmra.mxu0 %v5249
  %v5268 = vpop.f32.mrf.mxu0
  %v5269 = vadd.f32 %v3273, %v5268
  %5270 = vdwg.mxu0
  %v5272 = vrot.slane %v5269, 2
  %v5274 = vadd.f32 %v3255, %v5272
  %v5275 = vxor.u32 %v5274, 2147483648
  %v5276 = vmul.f32 %v5275, 1.442695
  %v5277 = vpow.pop %v5276
  %v5278 = vadd.f32 %v5277, 1.0
  %v5279 = vrcp.pop %v5278
  %v5280 = vmul.f32 %v5278, %v5279
  %v5281 = vsub.f32 1.0, %v5280
  %v5282 = vmul.f32 %v5279, %v5281
  %v5283 = vadd.f32 %v5279, %v5282
  %vm5284 = vweird.f32 %v5278
  %vm5285 = vweird.f32 %v5279
  %vm5286 = vmor %vm5284, %vm5285
  %v5287 = vsel %vm5286, %v5279, %v5283
  %v5288 = vand.u32 2147483647, %v5278
  %vm5289 = vcmp.eq.f32.partialorder %v5288, 8.507059e+37
  %v5290 = vand.u32 %v5278, 2147483648
  %v5291 = vor.u32 1.1754944e-38, %v5290
  %v5292 = vsel %vm5289, %v5291, %v5287
  %v5293 = vmul.f32 1.0, %v5292
  %5294 = vrot.lane.b32.xlu0 %v5272, 64
  %v5295 = vpop.permute.xlu0 %5294
  %v5297 = vmul.f32 %v5293, %v5295
  %5299 = vrot.lane.b32.xlu0 %v5297, 64
  %v5300 = vpop.permute.xlu0 %5299
  %v5302 = vadd.f32 %v3255, %v5300
  %v5303 = vtanh.pop %v5302
  %v5305 = vrot.slane %v5303, 2
  %v5307 = vsub.f32 %v5244, %v5305
  %v5309 = vrot.slane %v5307, 6
  %5310 = vrot.lane.b32.xlu0 %v5309, 96
  %v5311 = vpop.permute.xlu0 %5310
  %v5313 = vmul.f32 %v5293, %v5311
  %5315 = vrot.lane.b32.xlu0 %v5313, 32
  %v5316 = vpop.permute.xlu0 %5315
  %v5318 = vadd.f32 %v5303, %v5316
  %v5320 = vrot.slane %v5318, 6
  %5321 = vrot.lane.b32.xlu0 %v5320, 64
  %v5322 = vpop.permute.xlu0 %5321
  %v5323 = vsel %vm3000, %v5322, 0
  %5325 = vmatpush.msra.mxu0 0.0
  %5326 = vmatpush.msra.mxu0 0.0
  %5327 = vmatpush.msra.mxu0 0.0
  %5328 = vmatpush.msra.mxu0 0.0
  %5329 = vmatpush.msra.mxu0 0.0
  %5330 = vmatpush.msra.mxu0 0.0
  %5331 = vmatpush.msra.mxu0 0.0
  %5332 = vmatpush.msra.mxu0 0.0
  %5333 = vmatpush.msra.mxu0 0.0
  %5334 = vmatpush.msra.mxu0 0.0
  %5335 = vmatpush.msra.mxu0 0.0
  %5336 = vmatpush.msra.mxu0 0.0
  %5337 = vmatpush.msra.mxu0 %v529
  %5338 = vmatpush.msra.mxu0 %v528
  %5339 = vmatpush.msra.mxu0 %v527
  %5340 = vmatpush.msra.mxu0 %v526
  %5341 = vmatmul.f32.gmra.mxu0 %v5323
  %v5342 = vpop.f32.mrf.mxu0
  %v5343 = vadd.f32 %v3273, %v5342
  %5344 = vdwg.mxu0
  %v5345 = vadd.f32 %v3258, %v5343
  %v5346 = vxor.u32 %v5345, 2147483648
  %v5347 = vmul.f32 %v5346, 1.442695
  %v5348 = vpow.pop %v5347
  %v5349 = vadd.f32 %v5348, 1.0
  %v5350 = vrcp.pop %v5349
  %v5351 = vmul.f32 %v5349, %v5350
  %v5352 = vsub.f32 1.0, %v5351
  %v5353 = vmul.f32 %v5350, %v5352
  %v5354 = vadd.f32 %v5350, %v5353
  %vm5355 = vweird.f32 %v5349
  %vm5356 = vweird.f32 %v5350
  %vm5357 = vmor %vm5355, %vm5356
  %v5358 = vsel %vm5357, %v5350, %v5354
  %v5359 = vand.u32 2147483647, %v5349
  %vm5360 = vcmp.eq.f32.partialorder %v5359, 8.507059e+37
  %v5361 = vand.u32 %v5349, 2147483648
  %v5362 = vor.u32 1.1754944e-38, %v5361
  %v5363 = vsel %vm5360, %v5362, %v5358
  %v5364 = vmul.f32 1.0, %v5363
  %5366 = vrot.lane.b32.xlu0 %v5343, 64
  %v5367 = vpop.permute.xlu0 %5366
  %v5369 = vmul.f32 %v5364, %v5367
  %5371 = vrot.lane.b32.xlu0 %v5369, 64
  %v5372 = vpop.permute.xlu0 %5371
  %v5374 = vadd.f32 %v3258, %v5372
  %v5375 = vtanh.pop %v5374
  %v5377 = vrot.slane %v5375, 2
  %v5379 = vsub.f32 %v5318, %v5377
  %v5381 = vrot.slane %v5379, 6
  %5382 = vrot.lane.b32.xlu0 %v5381, 96
  %v5383 = vpop.permute.xlu0 %5382
  %v5385 = vmul.f32 %v5364, %v5383
  %5387 = vrot.lane.b32.xlu0 %v5385, 32
  %v5388 = vpop.permute.xlu0 %5387
  %v5390 = vadd.f32 %v5375, %v5388
  %5392 = vrot.lane.b32.xlu0 %v5390, 64
  %v5393 = vpop.permute.xlu0 %5392
  %v5394 = vsel %vm3000, %v5393, 0
  %5396 = vmatpush.msra.mxu0 0.0
  %5397 = vmatpush.msra.mxu0 0.0
  %5398 = vmatpush.msra.mxu0 0.0
  %5399 = vmatpush.msra.mxu0 0.0
  %5400 = vmatpush.msra.mxu0 0.0
  %5401 = vmatpush.msra.mxu0 0.0
  %5402 = vmatpush.msra.mxu0 0.0
  %5403 = vmatpush.msra.mxu0 0.0
  %5404 = vmatpush.msra.mxu0 0.0
  %5405 = vmatpush.msra.mxu0 0.0
  %5406 = vmatpush.msra.mxu0 0.0
  %5407 = vmatpush.msra.mxu0 0.0
  %5408 = vmatpush.msra.mxu0 %v529
  %5409 = vmatpush.msra.mxu0 %v528
  %5410 = vmatpush.msra.mxu0 %v527
  %5411 = vmatpush.msra.mxu0 %v526
  %5412 = vmatmul.f32.gmra.mxu0 %v5394
  %v5413 = vpop.f32.mrf.mxu0
  %v5414 = vadd.f32 %v3273, %v5413
  %5415 = vdwg.mxu0
  %v5417 = vrot.slane %v5414, 6
  %v5419 = vadd.f32 %v3258, %v5417
  %v5420 = vxor.u32 %v5419, 2147483648
  %v5421 = vmul.f32 %v5420, 1.442695
  %v5422 = vpow.pop %v5421
  %v5423 = vadd.f32 %v5422, 1.0
  %v5424 = vrcp.pop %v5423
  %v5425 = vmul.f32 %v5423, %v5424
  %v5426 = vsub.f32 1.0, %v5425
  %v5427 = vmul.f32 %v5424, %v5426
  %v5428 = vadd.f32 %v5424, %v5427
  %vm5429 = vweird.f32 %v5423
  %vm5430 = vweird.f32 %v5424
  %vm5431 = vmor %vm5429, %vm5430
  %v5432 = vsel %vm5431, %v5424, %v5428
  %v5433 = vand.u32 2147483647, %v5423
  %vm5434 = vcmp.eq.f32.partialorder %v5433, 8.507059e+37
  %v5435 = vand.u32 %v5423, 2147483648
  %v5436 = vor.u32 1.1754944e-38, %v5435
  %v5437 = vsel %vm5434, %v5436, %v5432
  %v5438 = vmul.f32 1.0, %v5437
  %5439 = vrot.lane.b32.xlu0 %v5417, 64
  %v5440 = vpop.permute.xlu0 %5439
  %v5442 = vmul.f32 %v5438, %v5440
  %5444 = vrot.lane.b32.xlu0 %v5442, 64
  %v5445 = vpop.permute.xlu0 %5444
  %v5447 = vadd.f32 %v3258, %v5445
  %v5448 = vtanh.pop %v5447
  %v5450 = vrot.slane %v5448, 2
  %v5452 = vsub.f32 %v5390, %v5450
  %v5454 = vrot.slane %v5452, 6
  %5455 = vrot.lane.b32.xlu0 %v5454, 96
  %v5456 = vpop.permute.xlu0 %5455
  %v5458 = vmul.f32 %v5438, %v5456
  %5460 = vrot.lane.b32.xlu0 %v5458, 32
  %v5461 = vpop.permute.xlu0 %5460
  %v5463 = vadd.f32 %v5448, %v5461
  %v5465 = vrot.slane %v5463, 2
  %5466 = vrot.lane.b32.xlu0 %v5465, 64
  %v5467 = vpop.permute.xlu0 %5466
  %v5468 = vsel %vm3000, %v5467, 0
  %5470 = vmatpush.msra.mxu0 0.0
  %5471 = vmatpush.msra.mxu0 0.0
  %5472 = vmatpush.msra.mxu0 0.0
  %5473 = vmatpush.msra.mxu0 0.0
  %5474 = vmatpush.msra.mxu0 0.0
  %5475 = vmatpush.msra.mxu0 0.0
  %5476 = vmatpush.msra.mxu0 0.0
  %5477 = vmatpush.msra.mxu0 0.0
  %5478 = vmatpush.msra.mxu0 0.0
  %5479 = vmatpush.msra.mxu0 0.0
  %5480 = vmatpush.msra.mxu0 0.0
  %5481 = vmatpush.msra.mxu0 0.0
  %5482 = vmatpush.msra.mxu0 %v529
  %5483 = vmatpush.msra.mxu0 %v528
  %5484 = vmatpush.msra.mxu0 %v527
  %5485 = vmatpush.msra.mxu0 %v526
  %5486 = vmatmul.f32.gmra.mxu0 %v5468
  %v5487 = vpop.f32.mrf.mxu0
  %v5488 = vadd.f32 %v3273, %v5487
  %5489 = vdwg.mxu0
  %v5491 = vrot.slane %v5488, 4
  %v5493 = vadd.f32 %v3258, %v5491
  %v5494 = vxor.u32 %v5493, 2147483648
  %v5495 = vmul.f32 %v5494, 1.442695
  %v5496 = vpow.pop %v5495
  %v5497 = vadd.f32 %v5496, 1.0
  %v5498 = vrcp.pop %v5497
  %v5499 = vmul.f32 %v5497, %v5498
  %v5500 = vsub.f32 1.0, %v5499
  %v5501 = vmul.f32 %v5498, %v5500
  %v5502 = vadd.f32 %v5498, %v5501
  %vm5503 = vweird.f32 %v5497
  %vm5504 = vweird.f32 %v5498
  %vm5505 = vmor %vm5503, %vm5504
  %v5506 = vsel %vm5505, %v5498, %v5502
  %v5507 = vand.u32 2147483647, %v5497
  %vm5508 = vcmp.eq.f32.partialorder %v5507, 8.507059e+37
  %v5509 = vand.u32 %v5497, 2147483648
  %v5510 = vor.u32 1.1754944e-38, %v5509
  %v5511 = vsel %vm5508, %v5510, %v5506
  %v5512 = vmul.f32 1.0, %v5511
  %5513 = vrot.lane.b32.xlu0 %v5491, 64
  %v5514 = vpop.permute.xlu0 %5513
  %v5516 = vmul.f32 %v5512, %v5514
  %5518 = vrot.lane.b32.xlu0 %v5516, 64
  %v5519 = vpop.permute.xlu0 %5518
  %v5521 = vadd.f32 %v3258, %v5519
  %v5522 = vtanh.pop %v5521
  %v5524 = vrot.slane %v5522, 2
  %v5526 = vsub.f32 %v5463, %v5524
  %v5528 = vrot.slane %v5526, 6
  %5529 = vrot.lane.b32.xlu0 %v5528, 96
  %v5530 = vpop.permute.xlu0 %5529
  %v5532 = vmul.f32 %v5512, %v5530
  %5534 = vrot.lane.b32.xlu0 %v5532, 32
  %v5535 = vpop.permute.xlu0 %5534
  %v5537 = vadd.f32 %v5522, %v5535
  %v5539 = vrot.slane %v5537, 4
  %5540 = vrot.lane.b32.xlu0 %v5539, 64
  %v5541 = vpop.permute.xlu0 %5540
  %v5542 = vsel %vm3000, %v5541, 0
  %5544 = vmatpush.msra.mxu0 0.0
  %5545 = vmatpush.msra.mxu0 0.0
  %5546 = vmatpush.msra.mxu0 0.0
  %5547 = vmatpush.msra.mxu0 0.0
  %5548 = vmatpush.msra.mxu0 0.0
  %5549 = vmatpush.msra.mxu0 0.0
  %5550 = vmatpush.msra.mxu0 0.0
  %5551 = vmatpush.msra.mxu0 0.0
  %5552 = vmatpush.msra.mxu0 0.0
  %5553 = vmatpush.msra.mxu0 0.0
  %5554 = vmatpush.msra.mxu0 0.0
  %5555 = vmatpush.msra.mxu0 0.0
  %5556 = vmatpush.msra.mxu0 %v529
  %5557 = vmatpush.msra.mxu0 %v528
  %5558 = vmatpush.msra.mxu0 %v527
  %5559 = vmatpush.msra.mxu0 %v526
  %5560 = vmatmul.f32.gmra.mxu0 %v5542
  %v5561 = vpop.f32.mrf.mxu0
  %v5562 = vadd.f32 %v3273, %v5561
  %5563 = vdwg.mxu0
  %v5565 = vrot.slane %v5562, 2
  %v5567 = vadd.f32 %v3258, %v5565
  %v5568 = vxor.u32 %v5567, 2147483648
  %v5569 = vmul.f32 %v5568, 1.442695
  %v5570 = vpow.pop %v5569
  %v5571 = vadd.f32 %v5570, 1.0
  %v5572 = vrcp.pop %v5571
  %v5573 = vmul.f32 %v5571, %v5572
  %v5574 = vsub.f32 1.0, %v5573
  %v5575 = vmul.f32 %v5572, %v5574
  %v5576 = vadd.f32 %v5572, %v5575
  %vm5577 = vweird.f32 %v5571
  %vm5578 = vweird.f32 %v5572
  %vm5579 = vmor %vm5577, %vm5578
  %v5580 = vsel %vm5579, %v5572, %v5576
  %v5581 = vand.u32 2147483647, %v5571
  %vm5582 = vcmp.eq.f32.partialorder %v5581, 8.507059e+37
  %v5583 = vand.u32 %v5571, 2147483648
  %v5584 = vor.u32 1.1754944e-38, %v5583
  %v5585 = vsel %vm5582, %v5584, %v5580
  %v5586 = vmul.f32 1.0, %v5585
  %5587 = vrot.lane.b32.xlu0 %v5565, 64
  %v5588 = vpop.permute.xlu0 %5587
  %v5590 = vmul.f32 %v5586, %v5588
  %5592 = vrot.lane.b32.xlu0 %v5590, 64
  %v5593 = vpop.permute.xlu0 %5592
  %v5595 = vadd.f32 %v3258, %v5593
  %v5596 = vtanh.pop %v5595
  %v5598 = vrot.slane %v5596, 2
  %v5600 = vsub.f32 %v5537, %v5598
  %v5602 = vrot.slane %v5600, 6
  %5603 = vrot.lane.b32.xlu0 %v5602, 96
  %v5604 = vpop.permute.xlu0 %5603
  %v5606 = vmul.f32 %v5586, %v5604
  %5608 = vrot.lane.b32.xlu0 %v5606, 32
  %v5609 = vpop.permute.xlu0 %5608
  %v5611 = vadd.f32 %v5596, %v5609
  %v5613 = vrot.slane %v5611, 6
  %5614 = vrot.lane.b32.xlu0 %v5613, 64
  %v5615 = vpop.permute.xlu0 %5614
  %v5616 = vsel %vm3000, %v5615, 0
  %5618 = vmatpush.msra.mxu0 0.0
  %5619 = vmatpush.msra.mxu0 0.0
  %5620 = vmatpush.msra.mxu0 0.0
  %5621 = vmatpush.msra.mxu0 0.0
  %5622 = vmatpush.msra.mxu0 0.0
  %5623 = vmatpush.msra.mxu0 0.0
  %5624 = vmatpush.msra.mxu0 0.0
  %5625 = vmatpush.msra.mxu0 0.0
  %5626 = vmatpush.msra.mxu0 0.0
  %5627 = vmatpush.msra.mxu0 0.0
  %5628 = vmatpush.msra.mxu0 0.0
  %5629 = vmatpush.msra.mxu0 0.0
  %5630 = vmatpush.msra.mxu0 %v529
  %5631 = vmatpush.msra.mxu0 %v528
  %5632 = vmatpush.msra.mxu0 %v527
  %5633 = vmatpush.msra.mxu0 %v526
  %5634 = vmatmul.f32.gmra.mxu0 %v5616
  %v5635 = vpop.f32.mrf.mxu0
  %v5636 = vadd.f32 %v3273, %v5635
  %5637 = vdwg.mxu0
  %v5638 = vadd.f32 %v3261, %v5636
  %v5639 = vxor.u32 %v5638, 2147483648
  %v5640 = vmul.f32 %v5639, 1.442695
  %v5641 = vpow.pop %v5640
  %v5642 = vadd.f32 %v5641, 1.0
  %v5643 = vrcp.pop %v5642
  %v5644 = vmul.f32 %v5642, %v5643
  %v5645 = vsub.f32 1.0, %v5644
  %v5646 = vmul.f32 %v5643, %v5645
  %v5647 = vadd.f32 %v5643, %v5646
  %vm5648 = vweird.f32 %v5642
  %vm5649 = vweird.f32 %v5643
  %vm5650 = vmor %vm5648, %vm5649
  %v5651 = vsel %vm5650, %v5643, %v5647
  %v5652 = vand.u32 2147483647, %v5642
  %vm5653 = vcmp.eq.f32.partialorder %v5652, 8.507059e+37
  %v5654 = vand.u32 %v5642, 2147483648
  %v5655 = vor.u32 1.1754944e-38, %v5654
  %v5656 = vsel %vm5653, %v5655, %v5651
  %v5657 = vmul.f32 1.0, %v5656
  %5659 = vrot.lane.b32.xlu0 %v5636, 64
  %v5660 = vpop.permute.xlu0 %5659
  %v5662 = vmul.f32 %v5657, %v5660
  %5664 = vrot.lane.b32.xlu0 %v5662, 64
  %v5665 = vpop.permute.xlu0 %5664
  %v5667 = vadd.f32 %v3261, %v5665
  %v5668 = vtanh.pop %v5667
  %v5670 = vrot.slane %v5668, 2
  %v5672 = vsub.f32 %v5611, %v5670
  %v5674 = vrot.slane %v5672, 6
  %5675 = vrot.lane.b32.xlu0 %v5674, 96
  %v5676 = vpop.permute.xlu0 %5675
  %v5678 = vmul.f32 %v5657, %v5676
  %5680 = vrot.lane.b32.xlu0 %v5678, 32
  %v5681 = vpop.permute.xlu0 %5680
  %v5683 = vadd.f32 %v5668, %v5681
  %5685 = vrot.lane.b32.xlu0 %v5683, 64
  %v5686 = vpop.permute.xlu0 %5685
  %v5687 = vsel %vm3000, %v5686, 0
  %5689 = vmatpush.msra.mxu0 0.0
  %5690 = vmatpush.msra.mxu0 0.0
  %5691 = vmatpush.msra.mxu0 0.0
  %5692 = vmatpush.msra.mxu0 0.0
  %5693 = vmatpush.msra.mxu0 0.0
  %5694 = vmatpush.msra.mxu0 0.0
  %5695 = vmatpush.msra.mxu0 0.0
  %5696 = vmatpush.msra.mxu0 0.0
  %5697 = vmatpush.msra.mxu0 0.0
  %5698 = vmatpush.msra.mxu0 0.0
  %5699 = vmatpush.msra.mxu0 0.0
  %5700 = vmatpush.msra.mxu0 0.0
  %5701 = vmatpush.msra.mxu0 %v529
  %5702 = vmatpush.msra.mxu0 %v528
  %5703 = vmatpush.msra.mxu0 %v527
  %5704 = vmatpush.msra.mxu0 %v526
  %5705 = vmatmul.f32.gmra.mxu0 %v5687
  %v5706 = vpop.f32.mrf.mxu0
  %v5707 = vadd.f32 %v3273, %v5706
  %5708 = vdwg.mxu0
  %v5710 = vrot.slane %v5707, 6
  %v5712 = vadd.f32 %v3261, %v5710
  %v5713 = vxor.u32 %v5712, 2147483648
  %v5714 = vmul.f32 %v5713, 1.442695
  %v5715 = vpow.pop %v5714
  %v5716 = vadd.f32 %v5715, 1.0
  %v5717 = vrcp.pop %v5716
  %v5718 = vmul.f32 %v5716, %v5717
  %v5719 = vsub.f32 1.0, %v5718
  %v5720 = vmul.f32 %v5717, %v5719
  %v5721 = vadd.f32 %v5717, %v5720
  %vm5722 = vweird.f32 %v5716
  %vm5723 = vweird.f32 %v5717
  %vm5724 = vmor %vm5722, %vm5723
  %v5725 = vsel %vm5724, %v5717, %v5721
  %v5726 = vand.u32 2147483647, %v5716
  %vm5727 = vcmp.eq.f32.partialorder %v5726, 8.507059e+37
  %v5728 = vand.u32 %v5716, 2147483648
  %v5729 = vor.u32 1.1754944e-38, %v5728
  %v5730 = vsel %vm5727, %v5729, %v5725
  %v5731 = vmul.f32 1.0, %v5730
  %5732 = vrot.lane.b32.xlu0 %v5710, 64
  %v5733 = vpop.permute.xlu0 %5732
  %v5735 = vmul.f32 %v5731, %v5733
  %5737 = vrot.lane.b32.xlu0 %v5735, 64
  %v5738 = vpop.permute.xlu0 %5737
  %v5740 = vadd.f32 %v3261, %v5738
  %v5741 = vtanh.pop %v5740
  %v5743 = vrot.slane %v5741, 2
  %v5745 = vsub.f32 %v5683, %v5743
  %v5747 = vrot.slane %v5745, 6
  %5748 = vrot.lane.b32.xlu0 %v5747, 96
  %v5749 = vpop.permute.xlu0 %5748
  %v5751 = vmul.f32 %v5731, %v5749
  %5753 = vrot.lane.b32.xlu0 %v5751, 32
  %v5754 = vpop.permute.xlu0 %5753
  %v5756 = vadd.f32 %v5741, %v5754
  %v5758 = vrot.slane %v5756, 2
  %5759 = vrot.lane.b32.xlu0 %v5758, 64
  %v5760 = vpop.permute.xlu0 %5759
  %v5761 = vsel %vm3000, %v5760, 0
  %5763 = vmatpush.msra.mxu0 0.0
  %5764 = vmatpush.msra.mxu0 0.0
  %5765 = vmatpush.msra.mxu0 0.0
  %5766 = vmatpush.msra.mxu0 0.0
  %5767 = vmatpush.msra.mxu0 0.0
  %5768 = vmatpush.msra.mxu0 0.0
  %5769 = vmatpush.msra.mxu0 0.0
  %5770 = vmatpush.msra.mxu0 0.0
  %5771 = vmatpush.msra.mxu0 0.0
  %5772 = vmatpush.msra.mxu0 0.0
  %5773 = vmatpush.msra.mxu0 0.0
  %5774 = vmatpush.msra.mxu0 0.0
  %5775 = vmatpush.msra.mxu0 %v529
  %5776 = vmatpush.msra.mxu0 %v528
  %5777 = vmatpush.msra.mxu0 %v527
  %5778 = vmatpush.msra.mxu0 %v526
  %5779 = vmatmul.f32.gmra.mxu0 %v5761
  %v5780 = vpop.f32.mrf.mxu0
  %v5781 = vadd.f32 %v3273, %v5780
  %5782 = vdwg.mxu0
  %v5784 = vrot.slane %v5781, 4
  %v5786 = vadd.f32 %v3261, %v5784
  %v5787 = vxor.u32 %v5786, 2147483648
  %v5788 = vmul.f32 %v5787, 1.442695
  %v5789 = vpow.pop %v5788
  %v5790 = vadd.f32 %v5789, 1.0
  %v5791 = vrcp.pop %v5790
  %v5792 = vmul.f32 %v5790, %v5791
  %v5793 = vsub.f32 1.0, %v5792
  %v5794 = vmul.f32 %v5791, %v5793
  %v5795 = vadd.f32 %v5791, %v5794
  %vm5796 = vweird.f32 %v5790
  %vm5797 = vweird.f32 %v5791
  %vm5798 = vmor %vm5796, %vm5797
  %v5799 = vsel %vm5798, %v5791, %v5795
  %v5800 = vand.u32 2147483647, %v5790
  %vm5801 = vcmp.eq.f32.partialorder %v5800, 8.507059e+37
  %v5802 = vand.u32 %v5790, 2147483648
  %v5803 = vor.u32 1.1754944e-38, %v5802
  %v5804 = vsel %vm5801, %v5803, %v5799
  %v5805 = vmul.f32 1.0, %v5804
  %5806 = vrot.lane.b32.xlu0 %v5784, 64
  %v5807 = vpop.permute.xlu0 %5806
  %v5809 = vmul.f32 %v5805, %v5807
  %5811 = vrot.lane.b32.xlu0 %v5809, 64
  %v5812 = vpop.permute.xlu0 %5811
  %v5814 = vadd.f32 %v3261, %v5812
  %v5815 = vtanh.pop %v5814
  %v5817 = vrot.slane %v5815, 2
  %v5819 = vsub.f32 %v5756, %v5817
  %v5821 = vrot.slane %v5819, 6
  %5822 = vrot.lane.b32.xlu0 %v5821, 96
  %v5823 = vpop.permute.xlu0 %5822
  %v5825 = vmul.f32 %v5805, %v5823
  %5827 = vrot.lane.b32.xlu0 %v5825, 32
  %v5828 = vpop.permute.xlu0 %5827
  %v5830 = vadd.f32 %v5815, %v5828
  %v5832 = vrot.slane %v5830, 4
  %5833 = vrot.lane.b32.xlu0 %v5832, 64
  %v5834 = vpop.permute.xlu0 %5833
  %v5835 = vsel %vm3000, %v5834, 0
  %5837 = vmatpush.msra.mxu0 0.0
  %5838 = vmatpush.msra.mxu0 0.0
  %5839 = vmatpush.msra.mxu0 0.0
  %5840 = vmatpush.msra.mxu0 0.0
  %5841 = vmatpush.msra.mxu0 0.0
  %5842 = vmatpush.msra.mxu0 0.0
  %5843 = vmatpush.msra.mxu0 0.0
  %5844 = vmatpush.msra.mxu0 0.0
  %5845 = vmatpush.msra.mxu0 0.0
  %5846 = vmatpush.msra.mxu0 0.0
  %5847 = vmatpush.msra.mxu0 0.0
  %5848 = vmatpush.msra.mxu0 0.0
  %5849 = vmatpush.msra.mxu0 %v529
  %5850 = vmatpush.msra.mxu0 %v528
  %5851 = vmatpush.msra.mxu0 %v527
  %5852 = vmatpush.msra.mxu0 %v526
  %5853 = vmatmul.f32.gmra.mxu0 %v5835
  %v5854 = vpop.f32.mrf.mxu0
  %v5855 = vadd.f32 %v3273, %v5854
  %5856 = vdwg.mxu0
  %v5858 = vrot.slane %v5855, 2
  %v5860 = vadd.f32 %v3261, %v5858
  %v5861 = vxor.u32 %v5860, 2147483648
  %v5862 = vmul.f32 %v5861, 1.442695
  %v5863 = vpow.pop %v5862
  %v5864 = vadd.f32 %v5863, 1.0
  %v5865 = vrcp.pop %v5864
  %v5866 = vmul.f32 %v5864, %v5865
  %v5867 = vsub.f32 1.0, %v5866
  %v5868 = vmul.f32 %v5865, %v5867
  %v5869 = vadd.f32 %v5865, %v5868
  %vm5870 = vweird.f32 %v5864
  %vm5871 = vweird.f32 %v5865
  %vm5872 = vmor %vm5870, %vm5871
  %v5873 = vsel %vm5872, %v5865, %v5869
  %v5874 = vand.u32 2147483647, %v5864
  %vm5875 = vcmp.eq.f32.partialorder %v5874, 8.507059e+37
  %v5876 = vand.u32 %v5864, 2147483648
  %v5877 = vor.u32 1.1754944e-38, %v5876
  %v5878 = vsel %vm5875, %v5877, %v5873
  %v5879 = vmul.f32 1.0, %v5878
  %5880 = vrot.lane.b32.xlu0 %v5858, 64
  %v5881 = vpop.permute.xlu0 %5880
  %v5883 = vmul.f32 %v5879, %v5881
  %5885 = vrot.lane.b32.xlu0 %v5883, 64
  %v5886 = vpop.permute.xlu0 %5885
  %v5888 = vadd.f32 %v3261, %v5886
  %v5889 = vtanh.pop %v5888
  %v5891 = vrot.slane %v5889, 2
  %v5893 = vsub.f32 %v5830, %v5891
  %v5895 = vrot.slane %v5893, 6
  %5896 = vrot.lane.b32.xlu0 %v5895, 96
  %v5897 = vpop.permute.xlu0 %5896
  %v5899 = vmul.f32 %v5879, %v5897
  %5901 = vrot.lane.b32.xlu0 %v5899, 32
  %v5902 = vpop.permute.xlu0 %5901
  %v5904 = vadd.f32 %v5889, %v5902
  %v5906 = vrot.slane %v5904, 6
  %5907 = vrot.lane.b32.xlu0 %v5906, 64
  %v5908 = vpop.permute.xlu0 %5907
  %v5909 = vsel %vm3000, %v5908, 0
  %5911 = vmatpush.msra.mxu0 0.0
  %5912 = vmatpush.msra.mxu0 0.0
  %5913 = vmatpush.msra.mxu0 0.0
  %5914 = vmatpush.msra.mxu0 0.0
  %5915 = vmatpush.msra.mxu0 0.0
  %5916 = vmatpush.msra.mxu0 0.0
  %5917 = vmatpush.msra.mxu0 0.0
  %5918 = vmatpush.msra.mxu0 0.0
  %5919 = vmatpush.msra.mxu0 0.0
  %5920 = vmatpush.msra.mxu0 0.0
  %5921 = vmatpush.msra.mxu0 0.0
  %5922 = vmatpush.msra.mxu0 0.0
  %5923 = vmatpush.msra.mxu0 %v529
  %5924 = vmatpush.msra.mxu0 %v528
  %5925 = vmatpush.msra.mxu0 %v527
  %5926 = vmatpush.msra.mxu0 %v526
  %5927 = vmatmul.f32.gmra.mxu0 %v5909
  %v5928 = vpop.f32.mrf.mxu0
  %v5929 = vadd.f32 %v3273, %v5928
  %5930 = vdwg.mxu0
  %v5931 = vadd.f32 %v3264, %v5929
  %v5932 = vxor.u32 %v5931, 2147483648
  %v5933 = vmul.f32 %v5932, 1.442695
  %v5934 = vpow.pop %v5933
  %v5935 = vadd.f32 %v5934, 1.0
  %v5936 = vrcp.pop %v5935
  %v5937 = vmul.f32 %v5935, %v5936
  %v5938 = vsub.f32 1.0, %v5937
  %v5939 = vmul.f32 %v5936, %v5938
  %v5940 = vadd.f32 %v5936, %v5939
  %vm5941 = vweird.f32 %v5935
  %vm5942 = vweird.f32 %v5936
  %vm5943 = vmor %vm5941, %vm5942
  %v5944 = vsel %vm5943, %v5936, %v5940
  %v5945 = vand.u32 2147483647, %v5935
  %vm5946 = vcmp.eq.f32.partialorder %v5945, 8.507059e+37
  %v5947 = vand.u32 %v5935, 2147483648
  %v5948 = vor.u32 1.1754944e-38, %v5947
  %v5949 = vsel %vm5946, %v5948, %v5944
  %v5950 = vmul.f32 1.0, %v5949
  %5952 = vrot.lane.b32.xlu0 %v5929, 64
  %v5953 = vpop.permute.xlu0 %5952
  %v5955 = vmul.f32 %v5950, %v5953
  %5957 = vrot.lane.b32.xlu0 %v5955, 64
  %v5958 = vpop.permute.xlu0 %5957
  %v5960 = vadd.f32 %v3264, %v5958
  %v5961 = vtanh.pop %v5960
  %v5963 = vrot.slane %v5961, 2
  %v5965 = vsub.f32 %v5904, %v5963
  %v5967 = vrot.slane %v5965, 6
  %5968 = vrot.lane.b32.xlu0 %v5967, 96
  %v5969 = vpop.permute.xlu0 %5968
  %v5971 = vmul.f32 %v5950, %v5969
  %5973 = vrot.lane.b32.xlu0 %v5971, 32
  %v5974 = vpop.permute.xlu0 %5973
  %v5976 = vadd.f32 %v5961, %v5974
  %5978 = vrot.lane.b32.xlu0 %v5976, 64
  %v5979 = vpop.permute.xlu0 %5978
  %v5980 = vsel %vm3000, %v5979, 0
  %5982 = vmatpush.msra.mxu0 0.0
  %5983 = vmatpush.msra.mxu0 0.0
  %5984 = vmatpush.msra.mxu0 0.0
  %5985 = vmatpush.msra.mxu0 0.0
  %5986 = vmatpush.msra.mxu0 0.0
  %5987 = vmatpush.msra.mxu0 0.0
  %5988 = vmatpush.msra.mxu0 0.0
  %5989 = vmatpush.msra.mxu0 0.0
  %5990 = vmatpush.msra.mxu0 0.0
  %5991 = vmatpush.msra.mxu0 0.0
  %5992 = vmatpush.msra.mxu0 0.0
  %5993 = vmatpush.msra.mxu0 0.0
  %5994 = vmatpush.msra.mxu0 %v529
  %5995 = vmatpush.msra.mxu0 %v528
  %5996 = vmatpush.msra.mxu0 %v527
  %5997 = vmatpush.msra.mxu0 %v526
  %5998 = vmatmul.f32.gmra.mxu0 %v5980
  %v5999 = vpop.f32.mrf.mxu0
  %v6000 = vadd.f32 %v3273, %v5999
  %6001 = vdwg.mxu0
  %v6003 = vrot.slane %v6000, 6
  %v6005 = vadd.f32 %v3264, %v6003
  %v6006 = vxor.u32 %v6005, 2147483648
  %v6007 = vmul.f32 %v6006, 1.442695
  %v6008 = vpow.pop %v6007
  %v6009 = vadd.f32 %v6008, 1.0
  %v6010 = vrcp.pop %v6009
  %v6011 = vmul.f32 %v6009, %v6010
  %v6012 = vsub.f32 1.0, %v6011
  %v6013 = vmul.f32 %v6010, %v6012
  %v6014 = vadd.f32 %v6010, %v6013
  %vm6015 = vweird.f32 %v6009
  %vm6016 = vweird.f32 %v6010
  %vm6017 = vmor %vm6015, %vm6016
  %v6018 = vsel %vm6017, %v6010, %v6014
  %v6019 = vand.u32 2147483647, %v6009
  %vm6020 = vcmp.eq.f32.partialorder %v6019, 8.507059e+37
  %v6021 = vand.u32 %v6009, 2147483648
  %v6022 = vor.u32 1.1754944e-38, %v6021
  %v6023 = vsel %vm6020, %v6022, %v6018
  %v6024 = vmul.f32 1.0, %v6023
  %6025 = vrot.lane.b32.xlu0 %v6003, 64
  %v6026 = vpop.permute.xlu0 %6025
  %v6028 = vmul.f32 %v6024, %v6026
  %6030 = vrot.lane.b32.xlu0 %v6028, 64
  %v6031 = vpop.permute.xlu0 %6030
  %v6033 = vadd.f32 %v3264, %v6031
  %v6034 = vtanh.pop %v6033
  %v6036 = vrot.slane %v6034, 2
  %v6038 = vsub.f32 %v5976, %v6036
  %v6040 = vrot.slane %v6038, 6
  %6041 = vrot.lane.b32.xlu0 %v6040, 96
  %v6042 = vpop.permute.xlu0 %6041
  %v6044 = vmul.f32 %v6024, %v6042
  %6046 = vrot.lane.b32.xlu0 %v6044, 32
  %v6047 = vpop.permute.xlu0 %6046
  %v6049 = vadd.f32 %v6034, %v6047
  %v6051 = vrot.slane %v6049, 2
  %6052 = vrot.lane.b32.xlu0 %v6051, 64
  %v6053 = vpop.permute.xlu0 %6052
  %v6054 = vsel %vm3000, %v6053, 0
  %6056 = vmatpush.msra.mxu0 0.0
  %6057 = vmatpush.msra.mxu0 0.0
  %6058 = vmatpush.msra.mxu0 0.0
  %6059 = vmatpush.msra.mxu0 0.0
  %6060 = vmatpush.msra.mxu0 0.0
  %6061 = vmatpush.msra.mxu0 0.0
  %6062 = vmatpush.msra.mxu0 0.0
  %6063 = vmatpush.msra.mxu0 0.0
  %6064 = vmatpush.msra.mxu0 0.0
  %6065 = vmatpush.msra.mxu0 0.0
  %6066 = vmatpush.msra.mxu0 0.0
  %6067 = vmatpush.msra.mxu0 0.0
  %6068 = vmatpush.msra.mxu0 %v529
  %6069 = vmatpush.msra.mxu0 %v528
  %6070 = vmatpush.msra.mxu0 %v527
  %6071 = vmatpush.msra.mxu0 %v526
  %6072 = vmatmul.f32.gmra.mxu0 %v6054
  %v6073 = vpop.f32.mrf.mxu0
  %v6074 = vadd.f32 %v3273, %v6073
  %6075 = vdwg.mxu0
  %v6077 = vrot.slane %v6074, 4
  %v6079 = vadd.f32 %v3264, %v6077
  %v6080 = vxor.u32 %v6079, 2147483648
  %v6081 = vmul.f32 %v6080, 1.442695
  %v6082 = vpow.pop %v6081
  %v6083 = vadd.f32 %v6082, 1.0
  %v6084 = vrcp.pop %v6083
  %v6085 = vmul.f32 %v6083, %v6084
  %v6086 = vsub.f32 1.0, %v6085
  %v6087 = vmul.f32 %v6084, %v6086
  %v6088 = vadd.f32 %v6084, %v6087
  %vm6089 = vweird.f32 %v6083
  %vm6090 = vweird.f32 %v6084
  %vm6091 = vmor %vm6089, %vm6090
  %v6092 = vsel %vm6091, %v6084, %v6088
  %v6093 = vand.u32 2147483647, %v6083
  %vm6094 = vcmp.eq.f32.partialorder %v6093, 8.507059e+37
  %v6095 = vand.u32 %v6083, 2147483648
  %v6096 = vor.u32 1.1754944e-38, %v6095
  %v6097 = vsel %vm6094, %v6096, %v6092
  %v6098 = vmul.f32 1.0, %v6097
  %6099 = vrot.lane.b32.xlu0 %v6077, 64
  %v6100 = vpop.permute.xlu0 %6099
  %v6102 = vmul.f32 %v6098, %v6100
  %6104 = vrot.lane.b32.xlu0 %v6102, 64
  %v6105 = vpop.permute.xlu0 %6104
  %v6107 = vadd.f32 %v3264, %v6105
  %v6108 = vtanh.pop %v6107
  %v6110 = vrot.slane %v6108, 2
  %v6112 = vsub.f32 %v6049, %v6110
  %v6114 = vrot.slane %v6112, 6
  %6115 = vrot.lane.b32.xlu0 %v6114, 96
  %v6116 = vpop.permute.xlu0 %6115
  %v6118 = vmul.f32 %v6098, %v6116
  %6120 = vrot.lane.b32.xlu0 %v6118, 32
  %v6121 = vpop.permute.xlu0 %6120
  %v6123 = vadd.f32 %v6108, %v6121
  %v6125 = vrot.slane %v6123, 4
  %6126 = vrot.lane.b32.xlu0 %v6125, 64
  %v6127 = vpop.permute.xlu0 %6126
  %v6128 = vsel %vm3000, %v6127, 0
  %6130 = vmatpush.msra.mxu0 0.0
  %6131 = vmatpush.msra.mxu0 0.0
  %6132 = vmatpush.msra.mxu0 0.0
  %6133 = vmatpush.msra.mxu0 0.0
  %6134 = vmatpush.msra.mxu0 0.0
  %6135 = vmatpush.msra.mxu0 0.0
  %6136 = vmatpush.msra.mxu0 0.0
  %6137 = vmatpush.msra.mxu0 0.0
  %6138 = vmatpush.msra.mxu0 0.0
  %6139 = vmatpush.msra.mxu0 0.0
  %6140 = vmatpush.msra.mxu0 0.0
  %6141 = vmatpush.msra.mxu0 0.0
  %6142 = vmatpush.msra.mxu0 %v529
  %6143 = vmatpush.msra.mxu0 %v528
  %6144 = vmatpush.msra.mxu0 %v527
  %6145 = vmatpush.msra.mxu0 %v526
  %6146 = vmatmul.f32.gmra.mxu0 %v6128
  %v6147 = vpop.f32.mrf.mxu0
  %v6148 = vadd.f32 %v3273, %v6147
  %6149 = vdwg.mxu0
  %v6151 = vrot.slane %v6148, 2
  %v6153 = vadd.f32 %v3264, %v6151
  %v6154 = vxor.u32 %v6153, 2147483648
  %v6155 = vmul.f32 %v6154, 1.442695
  %v6156 = vpow.pop %v6155
  %v6157 = vadd.f32 %v6156, 1.0
  %v6158 = vrcp.pop %v6157
  %v6159 = vmul.f32 %v6157, %v6158
  %v6160 = vsub.f32 1.0, %v6159
  %v6161 = vmul.f32 %v6158, %v6160
  %v6162 = vadd.f32 %v6158, %v6161
  %vm6163 = vweird.f32 %v6157
  %vm6164 = vweird.f32 %v6158
  %vm6165 = vmor %vm6163, %vm6164
  %v6166 = vsel %vm6165, %v6158, %v6162
  %v6167 = vand.u32 2147483647, %v6157
  %vm6168 = vcmp.eq.f32.partialorder %v6167, 8.507059e+37
  %v6169 = vand.u32 %v6157, 2147483648
  %v6170 = vor.u32 1.1754944e-38, %v6169
  %v6171 = vsel %vm6168, %v6170, %v6166
  %v6172 = vmul.f32 1.0, %v6171
  %6173 = vrot.lane.b32.xlu0 %v6151, 64
  %v6174 = vpop.permute.xlu0 %6173
  %v6176 = vmul.f32 %v6172, %v6174
  %6178 = vrot.lane.b32.xlu0 %v6176, 64
  %v6179 = vpop.permute.xlu0 %6178
  %v6181 = vadd.f32 %v3264, %v6179
  %v6182 = vtanh.pop %v6181
  %v6184 = vrot.slane %v6182, 2
  %v6186 = vsub.f32 %v6123, %v6184
  %v6188 = vrot.slane %v6186, 6
  %6189 = vrot.lane.b32.xlu0 %v6188, 96
  %v6190 = vpop.permute.xlu0 %6189
  %v6192 = vmul.f32 %v6172, %v6190
  %6194 = vrot.lane.b32.xlu0 %v6192, 32
  %v6195 = vpop.permute.xlu0 %6194
  %v6197 = vadd.f32 %v6182, %v6195
  %v6199 = vrot.slane %v6197, 6
  %6200 = vrot.lane.b32.xlu0 %v6199, 64
  %v6201 = vpop.permute.xlu0 %6200
  %v6202 = vsel %vm3000, %v6201, 0
  %6204 = vmatpush.msra.mxu0 0.0
  %6205 = vmatpush.msra.mxu0 0.0
  %6206 = vmatpush.msra.mxu0 0.0
  %6207 = vmatpush.msra.mxu0 0.0
  %6208 = vmatpush.msra.mxu0 0.0
  %6209 = vmatpush.msra.mxu0 0.0
  %6210 = vmatpush.msra.mxu0 0.0
  %6211 = vmatpush.msra.mxu0 0.0
  %6212 = vmatpush.msra.mxu0 0.0
  %6213 = vmatpush.msra.mxu0 0.0
  %6214 = vmatpush.msra.mxu0 0.0
  %6215 = vmatpush.msra.mxu0 0.0
  %6216 = vmatpush.msra.mxu0 %v529
  %6217 = vmatpush.msra.mxu0 %v528
  %6218 = vmatpush.msra.mxu0 %v527
  %6219 = vmatpush.msra.mxu0 %v526
  %6220 = vmatmul.f32.gmra.mxu0 %v6202
  %v6221 = vpop.f32.mrf.mxu0
  %v6222 = vadd.f32 %v3273, %v6221
  %6223 = vdwg.mxu0
  %v6224 = vadd.f32 %v3267, %v6222
  %v6225 = vxor.u32 %v6224, 2147483648
  %v6226 = vmul.f32 %v6225, 1.442695
  %v6227 = vpow.pop %v6226
  %v6228 = vadd.f32 %v6227, 1.0
  %v6229 = vrcp.pop %v6228
  %v6230 = vmul.f32 %v6228, %v6229
  %v6231 = vsub.f32 1.0, %v6230
  %v6232 = vmul.f32 %v6229, %v6231
  %v6233 = vadd.f32 %v6229, %v6232
  %vm6234 = vweird.f32 %v6228
  %vm6235 = vweird.f32 %v6229
  %vm6236 = vmor %vm6234, %vm6235
  %v6237 = vsel %vm6236, %v6229, %v6233
  %v6238 = vand.u32 2147483647, %v6228
  %vm6239 = vcmp.eq.f32.partialorder %v6238, 8.507059e+37
  %v6240 = vand.u32 %v6228, 2147483648
  %v6241 = vor.u32 1.1754944e-38, %v6240
  %v6242 = vsel %vm6239, %v6241, %v6237
  %v6243 = vmul.f32 1.0, %v6242
  %6245 = vrot.lane.b32.xlu0 %v6222, 64
  %v6246 = vpop.permute.xlu0 %6245
  %v6248 = vmul.f32 %v6243, %v6246
  %6250 = vrot.lane.b32.xlu0 %v6248, 64
  %v6251 = vpop.permute.xlu0 %6250
  %v6253 = vadd.f32 %v3267, %v6251
  %v6254 = vtanh.pop %v6253
  %v6256 = vrot.slane %v6254, 2
  %v6258 = vsub.f32 %v6197, %v6256
  %v6260 = vrot.slane %v6258, 6
  %6261 = vrot.lane.b32.xlu0 %v6260, 96
  %v6262 = vpop.permute.xlu0 %6261
  %v6264 = vmul.f32 %v6243, %v6262
  %6266 = vrot.lane.b32.xlu0 %v6264, 32
  %v6267 = vpop.permute.xlu0 %6266
  %v6269 = vadd.f32 %v6254, %v6267
  %6271 = vrot.lane.b32.xlu0 %v6269, 64
  %v6272 = vpop.permute.xlu0 %6271
  %v6273 = vsel %vm3000, %v6272, 0
  %6275 = vmatpush.msra.mxu0 0.0
  %6276 = vmatpush.msra.mxu0 0.0
  %6277 = vmatpush.msra.mxu0 0.0
  %6278 = vmatpush.msra.mxu0 0.0
  %6279 = vmatpush.msra.mxu0 0.0
  %6280 = vmatpush.msra.mxu0 0.0
  %6281 = vmatpush.msra.mxu0 0.0
  %6282 = vmatpush.msra.mxu0 0.0
  %6283 = vmatpush.msra.mxu0 0.0
  %6284 = vmatpush.msra.mxu0 0.0
  %6285 = vmatpush.msra.mxu0 0.0
  %6286 = vmatpush.msra.mxu0 0.0
  %6287 = vmatpush.msra.mxu0 %v529
  %6288 = vmatpush.msra.mxu0 %v528
  %6289 = vmatpush.msra.mxu0 %v527
  %6290 = vmatpush.msra.mxu0 %v526
  %6291 = vmatmul.f32.gmra.mxu0 %v6273
  %v6292 = vpop.f32.mrf.mxu0
  %v6293 = vadd.f32 %v3273, %v6292
  %6294 = vdwg.mxu0
  %v6296 = vrot.slane %v6293, 6
  %v6298 = vadd.f32 %v3267, %v6296
  %v6299 = vxor.u32 %v6298, 2147483648
  %v6300 = vmul.f32 %v6299, 1.442695
  %v6301 = vpow.pop %v6300
  %v6302 = vadd.f32 %v6301, 1.0
  %v6303 = vrcp.pop %v6302
  %v6304 = vmul.f32 %v6302, %v6303
  %v6305 = vsub.f32 1.0, %v6304
  %v6306 = vmul.f32 %v6303, %v6305
  %v6307 = vadd.f32 %v6303, %v6306
  %vm6308 = vweird.f32 %v6302
  %vm6309 = vweird.f32 %v6303
  %vm6310 = vmor %vm6308, %vm6309
  %v6311 = vsel %vm6310, %v6303, %v6307
  %v6312 = vand.u32 2147483647, %v6302
  %vm6313 = vcmp.eq.f32.partialorder %v6312, 8.507059e+37
  %v6314 = vand.u32 %v6302, 2147483648
  %v6315 = vor.u32 1.1754944e-38, %v6314
  %v6316 = vsel %vm6313, %v6315, %v6311
  %v6317 = vmul.f32 1.0, %v6316
  %6318 = vrot.lane.b32.xlu0 %v6296, 64
  %v6319 = vpop.permute.xlu0 %6318
  %v6321 = vmul.f32 %v6317, %v6319
  %6323 = vrot.lane.b32.xlu0 %v6321, 64
  %v6324 = vpop.permute.xlu0 %6323
  %v6326 = vadd.f32 %v3267, %v6324
  %v6327 = vtanh.pop %v6326
  %v6329 = vrot.slane %v6327, 2
  %v6331 = vsub.f32 %v6269, %v6329
  %v6333 = vrot.slane %v6331, 6
  %6334 = vrot.lane.b32.xlu0 %v6333, 96
  %v6335 = vpop.permute.xlu0 %6334
  %v6337 = vmul.f32 %v6317, %v6335
  %6339 = vrot.lane.b32.xlu0 %v6337, 32
  %v6340 = vpop.permute.xlu0 %6339
  %v6342 = vadd.f32 %v6327, %v6340
  %v6344 = vrot.slane %v6342, 2
  %6345 = vrot.lane.b32.xlu0 %v6344, 64
  %v6346 = vpop.permute.xlu0 %6345
  %v6347 = vsel %vm3000, %v6346, 0
  %6349 = vmatpush.msra.mxu0 0.0
  %6350 = vmatpush.msra.mxu0 0.0
  %6351 = vmatpush.msra.mxu0 0.0
  %6352 = vmatpush.msra.mxu0 0.0
  %6353 = vmatpush.msra.mxu0 0.0
  %6354 = vmatpush.msra.mxu0 0.0
  %6355 = vmatpush.msra.mxu0 0.0
  %6356 = vmatpush.msra.mxu0 0.0
  %6357 = vmatpush.msra.mxu0 0.0
  %6358 = vmatpush.msra.mxu0 0.0
  %6359 = vmatpush.msra.mxu0 0.0
  %6360 = vmatpush.msra.mxu0 0.0
  %6361 = vmatpush.msra.mxu0 %v529
  %6362 = vmatpush.msra.mxu0 %v528
  %6363 = vmatpush.msra.mxu0 %v527
  %6364 = vmatpush.msra.mxu0 %v526
  %6365 = vmatmul.f32.gmra.mxu0 %v6347
  %v6366 = vpop.f32.mrf.mxu0
  %v6367 = vadd.f32 %v3273, %v6366
  %6368 = vdwg.mxu0
  %v6370 = vrot.slane %v6367, 4
  %v6372 = vadd.f32 %v3267, %v6370
  %v6373 = vxor.u32 %v6372, 2147483648
  %v6374 = vmul.f32 %v6373, 1.442695
  %v6375 = vpow.pop %v6374
  %v6376 = vadd.f32 %v6375, 1.0
  %v6377 = vrcp.pop %v6376
  %v6378 = vmul.f32 %v6376, %v6377
  %v6379 = vsub.f32 1.0, %v6378
  %v6380 = vmul.f32 %v6377, %v6379
  %v6381 = vadd.f32 %v6377, %v6380
  %vm6382 = vweird.f32 %v6376
  %vm6383 = vweird.f32 %v6377
  %vm6384 = vmor %vm6382, %vm6383
  %v6385 = vsel %vm6384, %v6377, %v6381
  %v6386 = vand.u32 2147483647, %v6376
  %vm6387 = vcmp.eq.f32.partialorder %v6386, 8.507059e+37
  %v6388 = vand.u32 %v6376, 2147483648
  %v6389 = vor.u32 1.1754944e-38, %v6388
  %v6390 = vsel %vm6387, %v6389, %v6385
  %v6391 = vmul.f32 1.0, %v6390
  %6392 = vrot.lane.b32.xlu0 %v6370, 64
  %v6393 = vpop.permute.xlu0 %6392
  %v6395 = vmul.f32 %v6391, %v6393
  %6397 = vrot.lane.b32.xlu0 %v6395, 64
  %v6398 = vpop.permute.xlu0 %6397
  %v6400 = vadd.f32 %v3267, %v6398
  %v6401 = vtanh.pop %v6400
  %v6403 = vrot.slane %v6401, 2
  %v6405 = vsub.f32 %v6342, %v6403
  %v6407 = vrot.slane %v6405, 6
  %6408 = vrot.lane.b32.xlu0 %v6407, 96
  %v6409 = vpop.permute.xlu0 %6408
  %v6411 = vmul.f32 %v6391, %v6409
  %6413 = vrot.lane.b32.xlu0 %v6411, 32
  %v6414 = vpop.permute.xlu0 %6413
  %v6416 = vadd.f32 %v6401, %v6414
  %v6418 = vrot.slane %v6416, 4
  %6419 = vrot.lane.b32.xlu0 %v6418, 64
  %v6420 = vpop.permute.xlu0 %6419
  %v6421 = vsel %vm3000, %v6420, 0
  %6423 = vmatpush.msra.mxu0 0.0
  %6424 = vmatpush.msra.mxu0 0.0
  %6425 = vmatpush.msra.mxu0 0.0
  %6426 = vmatpush.msra.mxu0 0.0
  %6427 = vmatpush.msra.mxu0 0.0
  %6428 = vmatpush.msra.mxu0 0.0
  %6429 = vmatpush.msra.mxu0 0.0
  %6430 = vmatpush.msra.mxu0 0.0
  %6431 = vmatpush.msra.mxu0 0.0
  %6432 = vmatpush.msra.mxu0 0.0
  %6433 = vmatpush.msra.mxu0 0.0
  %6434 = vmatpush.msra.mxu0 0.0
  %6435 = vmatpush.msra.mxu0 %v529
  %6436 = vmatpush.msra.mxu0 %v528
  %6437 = vmatpush.msra.mxu0 %v527
  %6438 = vmatpush.msra.mxu0 %v526
  %6439 = vmatmul.f32.gmra.mxu0 %v6421
  %v6440 = vpop.f32.mrf.mxu0
  %v6441 = vadd.f32 %v3273, %v6440
  %6442 = vdwg.mxu0
  %v6444 = vrot.slane %v6441, 2
  %v6446 = vadd.f32 %v3267, %v6444
  %v6447 = vxor.u32 %v6446, 2147483648
  %v6448 = vmul.f32 %v6447, 1.442695
  %v6449 = vpow.pop %v6448
  %v6450 = vadd.f32 %v6449, 1.0
  %v6451 = vrcp.pop %v6450
  %v6452 = vmul.f32 %v6450, %v6451
  %v6453 = vsub.f32 1.0, %v6452
  %v6454 = vmul.f32 %v6451, %v6453
  %v6455 = vadd.f32 %v6451, %v6454
  %vm6456 = vweird.f32 %v6450
  %vm6457 = vweird.f32 %v6451
  %vm6458 = vmor %vm6456, %vm6457
  %v6459 = vsel %vm6458, %v6451, %v6455
  %v6460 = vand.u32 2147483647, %v6450
  %vm6461 = vcmp.eq.f32.partialorder %v6460, 8.507059e+37
  %v6462 = vand.u32 %v6450, 2147483648
  %v6463 = vor.u32 1.1754944e-38, %v6462
  %v6464 = vsel %vm6461, %v6463, %v6459
  %v6465 = vmul.f32 1.0, %v6464
  %6466 = vrot.lane.b32.xlu0 %v6444, 64
  %v6467 = vpop.permute.xlu0 %6466
  %v6469 = vmul.f32 %v6465, %v6467
  %6471 = vrot.lane.b32.xlu0 %v6469, 64
  %v6472 = vpop.permute.xlu0 %6471
  %v6474 = vadd.f32 %v3267, %v6472
  %v6475 = vtanh.pop %v6474
  %v6477 = vrot.slane %v6475, 2
  %v6479 = vsub.f32 %v6416, %v6477
  %v6481 = vrot.slane %v6479, 6
  %6482 = vrot.lane.b32.xlu0 %v6481, 96
  %v6483 = vpop.permute.xlu0 %6482
  %v6485 = vmul.f32 %v6465, %v6483
  %6487 = vrot.lane.b32.xlu0 %v6485, 32
  %v6488 = vpop.permute.xlu0 %6487
  %v6490 = vadd.f32 %v6475, %v6488
  %v6492 = vrot.slane %v6490, 6
  %6493 = vrot.lane.b32.xlu0 %v6492, 64
  %v6494 = vpop.permute.xlu0 %6493
  %v6495 = vsel %vm3000, %v6494, 0
  %6497 = vmatpush.msra.mxu0 0.0
  %6498 = vmatpush.msra.mxu0 0.0
  %6499 = vmatpush.msra.mxu0 0.0
  %6500 = vmatpush.msra.mxu0 0.0
  %6501 = vmatpush.msra.mxu0 0.0
  %6502 = vmatpush.msra.mxu0 0.0
  %6503 = vmatpush.msra.mxu0 0.0
  %6504 = vmatpush.msra.mxu0 0.0
  %6505 = vmatpush.msra.mxu0 0.0
  %6506 = vmatpush.msra.mxu0 0.0
  %6507 = vmatpush.msra.mxu0 0.0
  %6508 = vmatpush.msra.mxu0 0.0
  %6509 = vmatpush.msra.mxu0 %v529
  %6510 = vmatpush.msra.mxu0 %v528
  %6511 = vmatpush.msra.mxu0 %v527
  %6512 = vmatpush.msra.mxu0 %v526
  %6513 = vmatmul.f32.gmra.mxu0 %v6495
  %v6514 = vpop.f32.mrf.mxu0
  %v6515 = vadd.f32 %v3273, %v6514
  %6516 = vdwg.mxu0
  %v6517 = vadd.f32 %v3270, %v6515
  %v6518 = vxor.u32 %v6517, 2147483648
  %v6519 = vmul.f32 %v6518, 1.442695
  %v6520 = vpow.pop %v6519
  %v6521 = vadd.f32 %v6520, 1.0
  %v6522 = vrcp.pop %v6521
  %v6523 = vmul.f32 %v6521, %v6522
  %v6524 = vsub.f32 1.0, %v6523
  %v6525 = vmul.f32 %v6522, %v6524
  %v6526 = vadd.f32 %v6522, %v6525
  %vm6527 = vweird.f32 %v6521
  %vm6528 = vweird.f32 %v6522
  %vm6529 = vmor %vm6527, %vm6528
  %v6530 = vsel %vm6529, %v6522, %v6526
  %v6531 = vand.u32 2147483647, %v6521
  %vm6532 = vcmp.eq.f32.partialorder %v6531, 8.507059e+37
  %v6533 = vand.u32 %v6521, 2147483648
  %v6534 = vor.u32 1.1754944e-38, %v6533
  %v6535 = vsel %vm6532, %v6534, %v6530
  %v6536 = vmul.f32 1.0, %v6535
  %6538 = vrot.lane.b32.xlu0 %v6515, 64
  %v6539 = vpop.permute.xlu0 %6538
  %v6541 = vmul.f32 %v6536, %v6539
  %6543 = vrot.lane.b32.xlu0 %v6541, 64
  %v6544 = vpop.permute.xlu0 %6543
  %v6546 = vadd.f32 %v3270, %v6544
  %v6547 = vtanh.pop %v6546
  %v6549 = vrot.slane %v6547, 2
  %v6551 = vsub.f32 %v6490, %v6549
  %v6553 = vrot.slane %v6551, 6
  %6554 = vrot.lane.b32.xlu0 %v6553, 96
  %v6555 = vpop.permute.xlu0 %6554
  %v6557 = vmul.f32 %v6536, %v6555
  %6559 = vrot.lane.b32.xlu0 %v6557, 32
  %v6560 = vpop.permute.xlu0 %6559
  %v6562 = vadd.f32 %v6547, %v6560
  %6564 = vrot.lane.b32.xlu0 %v6562, 64
  %v6565 = vpop.permute.xlu0 %6564
  %v6566 = vsel %vm3000, %v6565, 0
  %6568 = vmatpush.msra.mxu0 0.0
  %6569 = vmatpush.msra.mxu0 0.0
  %6570 = vmatpush.msra.mxu0 0.0
  %6571 = vmatpush.msra.mxu0 0.0
  %6572 = vmatpush.msra.mxu0 0.0
  %6573 = vmatpush.msra.mxu0 0.0
  %6574 = vmatpush.msra.mxu0 0.0
  %6575 = vmatpush.msra.mxu0 0.0
  %6576 = vmatpush.msra.mxu0 0.0
  %6577 = vmatpush.msra.mxu0 0.0
  %6578 = vmatpush.msra.mxu0 0.0
  %6579 = vmatpush.msra.mxu0 0.0
  %6580 = vmatpush.msra.mxu0 %v529
  %6581 = vmatpush.msra.mxu0 %v528
  %6582 = vmatpush.msra.mxu0 %v527
  %6583 = vmatpush.msra.mxu0 %v526
  %6584 = vmatmul.f32.gmra.mxu0 %v6566
  %v6585 = vpop.f32.mrf.mxu0
  %v6586 = vadd.f32 %v3273, %v6585
  %6587 = vdwg.mxu0
  %v6589 = vrot.slane %v6586, 6
  %v6591 = vadd.f32 %v3270, %v6589
  %v6592 = vxor.u32 %v6591, 2147483648
  %v6593 = vmul.f32 %v6592, 1.442695
  %v6594 = vpow.pop %v6593
  %v6595 = vadd.f32 %v6594, 1.0
  %v6596 = vrcp.pop %v6595
  %v6597 = vmul.f32 %v6595, %v6596
  %v6598 = vsub.f32 1.0, %v6597
  %v6599 = vmul.f32 %v6596, %v6598
  %v6600 = vadd.f32 %v6596, %v6599
  %vm6601 = vweird.f32 %v6595
  %vm6602 = vweird.f32 %v6596
  %vm6603 = vmor %vm6601, %vm6602
  %v6604 = vsel %vm6603, %v6596, %v6600
  %v6605 = vand.u32 2147483647, %v6595
  %vm6606 = vcmp.eq.f32.partialorder %v6605, 8.507059e+37
  %v6607 = vand.u32 %v6595, 2147483648
  %v6608 = vor.u32 1.1754944e-38, %v6607
  %v6609 = vsel %vm6606, %v6608, %v6604
  %v6610 = vmul.f32 1.0, %v6609
  %6611 = vrot.lane.b32.xlu0 %v6589, 64
  %v6612 = vpop.permute.xlu0 %6611
  %v6614 = vmul.f32 %v6610, %v6612
  %6616 = vrot.lane.b32.xlu0 %v6614, 64
  %v6617 = vpop.permute.xlu0 %6616
  %v6619 = vadd.f32 %v3270, %v6617
  %v6620 = vtanh.pop %v6619
  %v6622 = vrot.slane %v6620, 2
  %v6624 = vsub.f32 %v6562, %v6622
  %v6626 = vrot.slane %v6624, 6
  %6627 = vrot.lane.b32.xlu0 %v6626, 96
  %v6628 = vpop.permute.xlu0 %6627
  %v6630 = vmul.f32 %v6610, %v6628
  %6632 = vrot.lane.b32.xlu0 %v6630, 32
  %v6633 = vpop.permute.xlu0 %6632
  %v6635 = vadd.f32 %v6620, %v6633
  %v6637 = vrot.slane %v6635, 2
  %6638 = vrot.lane.b32.xlu0 %v6637, 64
  %v6639 = vpop.permute.xlu0 %6638
  %v6640 = vsel %vm3000, %v6639, 0
  %6642 = vmatpush.msra.mxu0 0.0
  %6643 = vmatpush.msra.mxu0 0.0
  %6644 = vmatpush.msra.mxu0 0.0
  %6645 = vmatpush.msra.mxu0 0.0
  %6646 = vmatpush.msra.mxu0 0.0
  %6647 = vmatpush.msra.mxu0 0.0
  %6648 = vmatpush.msra.mxu0 0.0
  %6649 = vmatpush.msra.mxu0 0.0
  %6650 = vmatpush.msra.mxu0 0.0
  %6651 = vmatpush.msra.mxu0 0.0
  %6652 = vmatpush.msra.mxu0 0.0
  %6653 = vmatpush.msra.mxu0 0.0
  %6654 = vmatpush.msra.mxu0 %v529
  %6655 = vmatpush.msra.mxu0 %v528
  %6656 = vmatpush.msra.mxu0 %v527
  %6657 = vmatpush.msra.mxu0 %v526
  %6658 = vmatmul.f32.gmra.mxu0 %v6640
  %v6659 = vpop.f32.mrf.mxu0
  %v6660 = vadd.f32 %v3273, %v6659
  %6661 = vdwg.mxu0
  %v6663 = vrot.slane %v6660, 4
  %v6665 = vadd.f32 %v3270, %v6663
  %v6666 = vxor.u32 %v6665, 2147483648
  %v6667 = vmul.f32 %v6666, 1.442695
  %v6668 = vpow.pop %v6667
  %v6669 = vadd.f32 %v6668, 1.0
  %v6670 = vrcp.pop %v6669
  %v6671 = vmul.f32 %v6669, %v6670
  %v6672 = vsub.f32 1.0, %v6671
  %v6673 = vmul.f32 %v6670, %v6672
  %v6674 = vadd.f32 %v6670, %v6673
  %vm6675 = vweird.f32 %v6669
  %vm6676 = vweird.f32 %v6670
  %vm6677 = vmor %vm6675, %vm6676
  %v6678 = vsel %vm6677, %v6670, %v6674
  %v6679 = vand.u32 2147483647, %v6669
  %vm6680 = vcmp.eq.f32.partialorder %v6679, 8.507059e+37
  %v6681 = vand.u32 %v6669, 2147483648
  %v6682 = vor.u32 1.1754944e-38, %v6681
  %v6683 = vsel %vm6680, %v6682, %v6678
  %v6684 = vmul.f32 1.0, %v6683
  %6685 = vrot.lane.b32.xlu0 %v6663, 64
  %v6686 = vpop.permute.xlu0 %6685
  %v6688 = vmul.f32 %v6684, %v6686
  %6690 = vrot.lane.b32.xlu0 %v6688, 64
  %v6691 = vpop.permute.xlu0 %6690
  %v6693 = vadd.f32 %v3270, %v6691
  %v6694 = vtanh.pop %v6693
  %v6696 = vrot.slane %v6694, 2
  %v6698 = vsub.f32 %v6635, %v6696
  %v6700 = vrot.slane %v6698, 6
  %6701 = vrot.lane.b32.xlu0 %v6700, 96
  %v6702 = vpop.permute.xlu0 %6701
  %v6704 = vmul.f32 %v6684, %v6702
  %6706 = vrot.lane.b32.xlu0 %v6704, 32
  %v6707 = vpop.permute.xlu0 %6706
  %v6709 = vadd.f32 %v6694, %v6707
  %v6711 = vrot.slane %v6709, 4
  %6712 = vrot.lane.b32.xlu0 %v6711, 64
  %v6713 = vpop.permute.xlu0 %6712
  %v6714 = vsel %vm3000, %v6713, 0
  %6716 = vmatpush.msra.mxu0 0.0
  %6717 = vmatpush.msra.mxu0 0.0
  %6718 = vmatpush.msra.mxu0 0.0
  %6719 = vmatpush.msra.mxu0 0.0
  %6720 = vmatpush.msra.mxu0 0.0
  %6721 = vmatpush.msra.mxu0 0.0
  %6722 = vmatpush.msra.mxu0 0.0
  %6723 = vmatpush.msra.mxu0 0.0
  %6724 = vmatpush.msra.mxu0 0.0
  %6725 = vmatpush.msra.mxu0 0.0
  %6726 = vmatpush.msra.mxu0 0.0
  %6727 = vmatpush.msra.mxu0 0.0
  %6728 = vmatpush.msra.mxu0 %v529
  %6729 = vmatpush.msra.mxu0 %v528
  %6730 = vmatpush.msra.mxu0 %v527
  %6731 = vmatpush.msra.mxu0 %v526
  %6732 = vmatmul.f32.gmra.mxu0 %v6714
  %v6733 = vpop.f32.mrf.mxu0
  %v6734 = vadd.f32 %v3273, %v6733
  %6735 = vdwg.mxu0
  %v6737 = vrot.slane %v6734, 2
  %v6739 = vadd.f32 %v3270, %v6737
  %v6740 = vxor.u32 %v6739, 2147483648
  %v6741 = vmul.f32 %v6740, 1.442695
  %v6742 = vpow.pop %v6741
  %v6743 = vadd.f32 %v6742, 1.0
  %v6744 = vrcp.pop %v6743
  %v6745 = vmul.f32 %v6743, %v6744
  %v6746 = vsub.f32 1.0, %v6745
  %v6747 = vmul.f32 %v6744, %v6746
  %v6748 = vadd.f32 %v6744, %v6747
  %vm6749 = vweird.f32 %v6743
  %vm6750 = vweird.f32 %v6744
  %vm6751 = vmor %vm6749, %vm6750
  %v6752 = vsel %vm6751, %v6744, %v6748
  %v6753 = vand.u32 2147483647, %v6743
  %vm6754 = vcmp.eq.f32.partialorder %v6753, 8.507059e+37
  %v6755 = vand.u32 %v6743, 2147483648
  %v6756 = vor.u32 1.1754944e-38, %v6755
  %v6757 = vsel %vm6754, %v6756, %v6752
  %v6758 = vmul.f32 1.0, %v6757
  %6759 = vrot.lane.b32.xlu0 %v6737, 64
  %v6760 = vpop.permute.xlu0 %6759
  %v6762 = vmul.f32 %v6758, %v6760
  %6764 = vrot.lane.b32.xlu0 %v6762, 64
  %v6765 = vpop.permute.xlu0 %6764
  %v6767 = vadd.f32 %v3270, %v6765
  %v6768 = vtanh.pop %v6767
  %v6770 = vrot.slane %v6768, 2
  %v6772 = vsub.f32 %v6709, %v6770
  %v6774 = vrot.slane %v6772, 6
  %6775 = vrot.lane.b32.xlu0 %v6774, 96
  %v6776 = vpop.permute.xlu0 %6775
  %v6778 = vmul.f32 %v6758, %v6776
  %6780 = vrot.lane.b32.xlu0 %v6778, 32
  %v6781 = vpop.permute.xlu0 %6780
  %v6783 = vadd.f32 %v6768, %v6781
  %vm6784 = vcmask 1041408
  %v6785 = vsel %vm6784, %v3339, %v3412
  %vm6786 = vcmask 1043456
  %v6787 = vsel %vm6786, %v6785, %v3486
  %vm6788 = vcmask 1045504
  %v6789 = vsel %vm6788, %v6787, %v3560
  %v6790 = vsel %vm6784, %v3632, %v3705
  %v6791 = vsel %vm6786, %v6790, %v3779
  %v6792 = vsel %vm6788, %v6791, %v3853
  %v6793 = vsel %vm6784, %v3925, %v3998
  %v6794 = vsel %vm6786, %v6793, %v4072
  %v6795 = vsel %vm6788, %v6794, %v4146
  %v6796 = vsel %vm6784, %v4218, %v4291
  %v6797 = vsel %vm6786, %v6796, %v4365
  %v6798 = vsel %vm6788, %v6797, %v4439
  %v6799 = vsel %vm6784, %v4511, %v4584
  %v6800 = vsel %vm6786, %v6799, %v4658
  %v6801 = vsel %vm6788, %v6800, %v4732
  %v6802 = vsel %vm6784, %v4804, %v4877
  %v6803 = vsel %vm6786, %v6802, %v4951
  %v6804 = vsel %vm6788, %v6803, %v5025
  %v6805 = vsel %vm6784, %v5097, %v5170
  %v6806 = vsel %vm6786, %v6805, %v5244
  %v6807 = vsel %vm6788, %v6806, %v5318
  %v6808 = vsel %vm6784, %v5390, %v5463
  %v6809 = vsel %vm6786, %v6808, %v5537
  %v6810 = vsel %vm6788, %v6809, %v5611
  %v6811 = vsel %vm6784, %v5683, %v5756
  %v6812 = vsel %vm6786, %v6811, %v5830
  %v6813 = vsel %vm6788, %v6812, %v5904
  %v6814 = vsel %vm6784, %v5976, %v6049
  %v6815 = vsel %vm6786, %v6814, %v6123
  %v6816 = vsel %vm6788, %v6815, %v6197
  %v6817 = vsel %vm6784, %v6269, %v6342
  %v6818 = vsel %vm6786, %v6817, %v6416
  %v6819 = vsel %vm6788, %v6818, %v6490
  %v6820 = vsel %vm6784, %v6562, %v6635
  %v6821 = vsel %vm6786, %v6820, %v6709
  %v6822 = vsel %vm6788, %v6821, %v6783
  %6824 = vset.pattern.permute.xlu0 0
  %6825 = vperm.xlu0 %6824, %v532
  %v6826 = vpop.permute.xlu0 %6825
  %6840 = vrot.lane.b32.xlu0 %v6789, 64
  %v6841 = vpop.permute.xlu0 %6840
  %6842 = vrot.lane.b32.xlu0 %v6792, 64
  %v6843 = vpop.permute.xlu0 %6842
  %6844 = vrot.lane.b32.xlu0 %v6795, 64
  %v6845 = vpop.permute.xlu0 %6844
  %6846 = vrot.lane.b32.xlu0 %v6798, 64
  %v6847 = vpop.permute.xlu0 %6846
  %6848 = vrot.lane.b32.xlu0 %v6801, 64
  %v6849 = vpop.permute.xlu0 %6848
  %6850 = vrot.lane.b32.xlu0 %v6804, 64
  %v6851 = vpop.permute.xlu0 %6850
  %6852 = vrot.lane.b32.xlu0 %v6807, 64
  %v6853 = vpop.permute.xlu0 %6852
  %6854 = vrot.lane.b32.xlu0 %v6810, 64
  %v6855 = vpop.permute.xlu0 %6854
  %6856 = vrot.lane.b32.xlu0 %v6813, 64
  %v6857 = vpop.permute.xlu0 %6856
  %6858 = vrot.lane.b32.xlu0 %v6816, 64
  %v6859 = vpop.permute.xlu0 %6858
  %6860 = vrot.lane.b32.xlu0 %v6819, 64
  %v6861 = vpop.permute.xlu0 %6860
  %6862 = vrot.lane.b32.xlu0 %v6822, 64
  %v6863 = vpop.permute.xlu0 %6862
  %v6865 = vsel %vm3000, %v531, 0
  %v6867 = vsel %vm3000, %v6841, 0
  %v6869 = vsel %vm3000, %v6843, 0
  %v6871 = vsel %vm3000, %v6845, 0
  %v6873 = vsel %vm3000, %v6847, 0
  %v6875 = vsel %vm3000, %v6849, 0
  %v6877 = vsel %vm3000, %v6851, 0
  %v6879 = vsel %vm3000, %v6853, 0
  %v6881 = vsel %vm3000, %v6855, 0
  %v6883 = vsel %vm3000, %v6857, 0
  %v6885 = vsel %vm3000, %v6859, 0
  %v6887 = vsel %vm3000, %v6861, 0
  %v6889 = vsel %vm3000, %v6863, 0
  %6891 = vmatpush.xpose.msra.mxu0 0.0
  %6892 = vmatpush.xpose.msra.mxu0 0.0
  %6893 = vmatpush.xpose.msra.mxu0 0.0
  %6894 = vmatpush.xpose.msra.mxu0 0.0
  %6895 = vmatpush.xpose.msra.mxu0 %v6889
  %6896 = vmatpush.xpose.msra.mxu0 %v6887
  %6897 = vmatpush.xpose.msra.mxu0 %v6885
  %6898 = vmatpush.xpose.msra.mxu0 %v6883
  %6899 = vmatpush.xpose.msra.mxu0 %v6881
  %6900 = vmatpush.xpose.msra.mxu0 %v6879
  %6901 = vmatpush.xpose.msra.mxu0 %v6877
  %6902 = vmatpush.xpose.msra.mxu0 %v6875
  %6903 = vmatpush.xpose.msra.mxu0 %v6873
  %6904 = vmatpush.xpose.msra.mxu0 %v6871
  %6905 = vmatpush.xpose.msra.mxu0 %v6869
  %6906 = vmatpush.xpose.msra.mxu0 %v6867
  %6907 = vmatmul.f32.gmra.mxu0 %v6865
  %v6908 = vpop.f32.mrf.mxu0
  %v6909 = vadd.f32 %v6826, %v6908
  %6910 = vdwg.mxu0
  %v6911 = vxor.u32 %v6909, 2147483648
  %v6912 = vmul.f32 %v6911, 1.442695
  %v6913 = vpow.pop %v6912
  %v6914 = vadd.f32 %v6913, 1.0
  %v6915 = vrcp.pop %v6914
  %v6916 = vmul.f32 %v6914, %v6915
  %v6917 = vsub.f32 1.0, %v6916
  %v6918 = vmul.f32 %v6915, %v6917
  %v6919 = vadd.f32 %v6915, %v6918
  %vm6920 = vweird.f32 %v6914
  %vm6921 = vweird.f32 %v6915
  %vm6922 = vmor %vm6920, %vm6921
  %v6923 = vsel %vm6922, %v6915, %v6919
  %v6924 = vand.u32 2147483647, %v6914
  %vm6925 = vcmp.eq.f32.partialorder %v6924, 8.507059e+37
  %v6926 = vand.u32 %v6914, 2147483648
  %v6927 = vor.u32 1.1754944e-38, %v6926
  %v6928 = vsel %vm6925, %v6927, %v6923
  %v6929 = vmul.f32 1.0, %v6928
  %v6930 = vmul.f32 %v6929, %v533
  %v6931 = vadd.f32 %v6930, %v3179
  %vm6932 = vcmask 781312
  %6933 = vst.msk [vmem:[%s77] sm:$0xf] %vm6932, %v6931
  // Predicated region
  $region154: #{heterogeneous_forward.1} parent=0 // pred_check
    _
  $region155: #{heterogeneous_forward.1} parent=0 // pred_check_branch
    %6935 = sbr.rel (0) target = $region157
  $region156: #{heterogeneous_forward.1} parent=0 // pred_region
    _
  $region157: #{heterogeneous_forward.1} parent=0 // pred_fallthru
    _
  // Predicated region
  $region158: #{heterogeneous_forward.1} parent=0 // pred_check
    _
  $region159: #{heterogeneous_forward.1} parent=0 // pred_check_branch
    %6937 = sbr.rel (0) target = $region161
  $region160: #{heterogeneous_forward.1} parent=0 // pred_region
    _
  $region161: #{heterogeneous_forward.1} parent=0 // pred_fallthru
    _

</llo_original>
